<compile_context>
chip_gen: v7x
topology: tpu7x:2x2x1
jax: 0.10.0
libtpu: 0.0.40
codegen_flags: <defaults>
</compile_context>

<pallas_src>
import numpy as np
import jax
import jax.numpy as jnp
from jax.experimental import pallas as pl
from jax.experimental.pallas import tpu as pltpu

_COMPUTE_DTYPE = jnp.bfloat16   # matmul operand dtype; accumulation/epilogue stay f32

# (name, C_out, C_in, kernel, stride, padding) exactly as in the PyTorch module.
_LAYERS = [
    ("c1", 2, 1, (2, 2, 3), (2, 2, 1), (0, 0, 1)),
    ("c2", 5, 2, (2, 2, 3), (2, 2, 1), (0, 0, 1)),
    ("c3", 10, 5, (3, 3, 2), (2, 2, 1), (0, 0, 0)),
    ("c4", 25, 10, (2, 2, 2), (2, 2, 2), (0, 0, 0)),
    ("c5", 25, 25, (6, 6, 2), (1, 1, 2), (0, 0, 0)),
]


# ----------------------------- helpers (plain-JAX / host glue) -----------------------------

def _round_up(x, m):
    return ((x + m - 1) // m) * m


def _out_spatial(sp, k, s, p):
    return tuple((sp[i] + 2 * p[i] - k[i]) // s[i] + 1 for i in range(3))


def _im2col_3d(x, ksize, stride, padding, dtype):
    """x: (B,C,D,H,W) -> patches (B, C*kd*kh*kw, od*oh*ow). Transpose-free stacking."""
    B, C = x.shape[:2]
    kd, kh, kw = ksize
    sd, sh, sw = stride
    pd, ph, pw = padding
    xp = jnp.pad(x.astype(dtype), ((0, 0), (0, 0), (pd, pd), (ph, ph), (pw, pw)))
    Dp, Hp, Wp = xp.shape[2:]
    od = (Dp - kd) // sd + 1
    oh = (Hp - kh) // sh + 1
    ow = (Wp - kw) // sw + 1
    slices = []
    for dz in range(kd):
        for dy in range(kh):
            for dx in range(kw):
                sl = jax.lax.slice(
                    xp,
                    (0, 0, dz, dy, dx),
                    (B, C,
                     dz + (od - 1) * sd + 1,
                     dy + (oh - 1) * sh + 1,
                     dx + (ow - 1) * sw + 1),
                    (1, 1, sd, sh, sw))
                slices.append(sl)                       # (B, C, od, oh, ow)
    cols = jnp.stack(slices, axis=2)                    # (B, C, kt, od, oh, ow)
    return cols.reshape(B, C * kd * kh * kw, od * oh * ow), (od, oh, ow)


def _im2col_c3c4_blocked(act2, k3, s3, k4, s4, sp4, k_pad, m4_pad):
    """Two-level im2col feeding the fused c3+c4+c5 kernel.

    Output: (B, k_pad, kt4*m4_pad) bf16 with rows = (c_in, c3-offset) and columns
    grouped as kt4 blocks of m4_pad lanes, block o4 / lane m4 holding the input value
    the c3 output needed by c4-offset o4 at c4-output position m4.  Only c3 outputs
    that c4 actually consumes are materialized, and every block is 128-lane aligned so
    the in-kernel slices are aligned vreg slices.  Assumes zero padding on c3/c4.
    """
    B, C = act2.shape[:2]
    od4, oh4, ow4 = sp4
    M4 = od4 * oh4 * ow4
    sD, sH, sW = s3[0] * s4[0], s3[1] * s4[1], s3[2] * s4[2]
    per_o3 = []
    for dz3 in range(k3[0]):
        for dy3 in range(k3[1]):
            for dx3 in range(k3[2]):
                per_o4 = []
                for dz4 in range(k4[0]):
                    for dy4 in range(k4[1]):
                        for dx4 in range(k4[2]):
                            z0 = dz4 * s3[0] + dz3
                            y0 = dy4 * s3[1] + dy3
                            x0 = dx4 * s3[2] + dx3
                            sl = jax.lax.slice(
                                act2,
                                (0, 0, z0, y0, x0),
                                (B, C,
                                 z0 + (od4 - 1) * sD + 1,
                                 y0 + (oh4 - 1) * sH + 1,
                                 x0 + (ow4 - 1) * sW + 1),
                                (1, 1, sD, sH, sW))     # (B, C, od4, oh4, ow4)
                            per_o4.append(sl.reshape(B, C, M4))
                per_o3.append(jnp.stack(per_o4, axis=2))   # (B, C, kt4, M4)
    cols = jnp.stack(per_o3, axis=2)                        # (B, C, kt3, kt4, M4)
    kt3 = k3[0] * k3[1] * k3[2]
    kt4 = k4[0] * k4[1] * k4[2]
    K3 = C * kt3
    patches = cols.reshape(B, K3, kt4, M4).astype(_COMPUTE_DTYPE)
    patches = jnp.pad(patches, ((0, 0), (0, k_pad - K3), (0, 0), (0, m4_pad - M4)))
    return patches.reshape(B, k_pad, kt4 * m4_pad)


# ----------------------------- Pallas kernel: tiled conv (c1, c2) -----------------------------

def _mm_bias_relu_kernel(p_ref, w_ref, b_ref, o_ref):
    # p_ref: (Kp, TM) bf16 patches    w_ref: (C_out, Kp) bf16
    # b_ref: (C_out, 1) f32           o_ref: (C_out, TM) bf16
    acc = jnp.dot(w_ref[...], p_ref[...], preferred_element_type=jnp.float32)
    o_ref[...] = jnp.maximum(acc + b_ref[...], 0.0).astype(o_ref.dtype)


def _conv3d_relu_tiled(x, w_mat, b_col, layer, *, max_tm=32768):
    """Conv3d + bias + ReLU via im2col + M-tiled Pallas matmul (used for c1/c2)."""
    _, c_out, c_in, ksize, stride, padding = layer
    B = x.shape[0]
    patches, (od, oh, ow) = _im2col_3d(x, ksize, stride, padding, _COMPUTE_DTYPE)
    K = c_in * ksize[0] * ksize[1] * ksize[2]
    Kp = w_mat.shape[1]
    M = od * oh * ow

    # One tile per batch element when it fits (it always does here: <1 MB of VMEM),
    # so the grid is (B, 1) = B parallel steps -> minimal per-step overhead, and both
    # TensorCores get work on v7x when B >= 2.
    if M <= max_tm:
        tm = _round_up(M, 128)
    else:
        n = -(-M // max_tm)
        tm = _round_up(-(-M // n), 128)
    n_m = -(-M // tm)
    m_pad = n_m * tm
    patches = jnp.pad(patches, ((0, 0), (0, Kp - K), (0, m_pad - M)))

    out = pl.pallas_call(
        _mm_bias_relu_kernel,
        out_shape=jax.ShapeDtypeStruct((B, c_out, m_pad), _COMPUTE_DTYPE),  # bf16 writeback
        grid_spec=pltpu.PrefetchScalarGridSpec(
            num_scalar_prefetch=0,
            grid=(B, n_m),
            in_specs=[
                pl.BlockSpec((pl.Squeezed(), Kp, tm), lambda b, m: (b, 0, m)),
                pl.BlockSpec((c_out, Kp), lambda b, m: (0, 0)),
                pl.BlockSpec((c_out, 1), lambda b, m: (0, 0)),
            ],
            out_specs=pl.BlockSpec((pl.Squeezed(), c_out, tm), lambda b, m: (b, 0, m)),
        ),
        compiler_params=pltpu.CompilerParams(
            dimension_semantics=("parallel", "parallel")),
    )(patches, w_mat, b_col)

    # NOTE: padded M columns hold ReLU(bias) garbage; this slice must stay.
    out = out[:, :, :M]
    return out.reshape(B, c_out, od, oh, ow)


# ----------------------------- Pallas kernel: fused c3 + c4 + c5 -----------------------------

def _fused_c345_kernel(p3_ref, w3_ref, b3_ref, w4_ref, b4_ref, w5_ref, b5_ref, o_ref):
    kt4 = w4_ref.shape[0]          # number of c4 kernel offsets (8)
    m4p = w5_ref.shape[2]          # lane-padded c4 output spatial (128)
    c4_out = w4_ref.shape[1]

    # ---- c3: one matmul over all (c4-offset, c4-output) columns; stays in vregs/VMEM ----
    act3 = jnp.dot(w3_ref[...], p3_ref[...], preferred_element_type=jnp.float32)
    act3 = jnp.maximum(act3 + b3_ref[...], 0.0).astype(_COMPUTE_DTYPE)   # (10, kt4*m4p)

    # ---- c4: 8 tiny depth-10 matmuls on 128-aligned lane slices (no gather constant) ----
    acc4 = jnp.zeros((c4_out, m4p), jnp.float32)
    for o in range(kt4):
        blk = act3[:, o * m4p:(o + 1) * m4p]                             # (10, m4p)
        acc4 = acc4 + jnp.dot(w4_ref[o], blk, preferred_element_type=jnp.float32)
    act4 = jnp.maximum(acc4 + b4_ref[...], 0.0)                          # (25, m4p) f32

    # ---- c5: output spatial = 1 -> VPU multiply + XLU reduction (f32) ----
    # w5_ref is zero in padded / unused columns, masking the ReLU(b4) garbage there.
    z = jnp.sum(w5_ref[...] * act4[None, :, :], axis=2)                  # (25, 25)
    o_ref[...] = (jnp.sum(z, axis=1, keepdims=True) + b5_ref[...]).astype(o_ref.dtype)


def _conv345_fused(act2, prep):
    """c3 -> ReLU -> c4 -> ReLU -> c5 fused into one Pallas kernel per batch element."""
    B = act2.shape[0]
    _, c3_out, _, k3, s3, p3 = _LAYERS[2]
    _, c4_out, c4_in, k4, s4, p4 = _LAYERS[3]
    _, c5_out, c5_in, k5, s5, p5 = _LAYERS[4]
    assert p3 == (0, 0, 0) and p4 == (0, 0, 0) and p5 == (0, 0, 0)

    w3m, b3m = prep["c3_w"], prep["c3_b"]
    w4o, b4m = prep["c4_w"], prep["c4_b"]
    w5sel, b5m = prep["c5_w"], prep["c5_b"]

    sp3 = _out_spatial(act2.shape[2:], k3, s3, p3)
    sp4 = _out_spatial(sp3, k4, s4, p4)
    kt4 = k4[0] * k4[1] * k4[2]
    K3p = w3m.shape[1]
    M4P = w5sel.shape[2]

    patches3 = _im2col_c3c4_blocked(act2, k3, s3, k4, s4, sp4, K3p, M4P)  # (B, K3p, kt4*M4P)

    out = pl.pallas_call(
        _fused_c345_kernel,
        out_shape=jax.ShapeDtypeStruct((B, c5_out, 1), jnp.float32),
        grid_spec=pltpu.PrefetchScalarGridSpec(
            num_scalar_prefetch=0,
            grid=(B,),
            in_specs=[
                pl.BlockSpec((pl.Squeezed(), K3p, kt4 * M4P), lambda b: (b, 0, 0)),
                pl.BlockSpec((c3_out, K3p), lambda b: (0, 0)),
                pl.BlockSpec((c3_out, 1), lambda b: (0, 0)),
                pl.BlockSpec((kt4, c4_out, c4_in), lambda b: (0, 0, 0)),
                pl.BlockSpec((c4_out, 1), lambda b: (0, 0)),
                pl.BlockSpec((c5_out, c5_in, M4P), lambda b: (0, 0, 0)),
                pl.BlockSpec((c5_out, 1), lambda b: (0, 0)),
            ],
            out_specs=pl.BlockSpec((pl.Squeezed(), c5_out, 1), lambda b: (b, 0, 0)),
        ),
        compiler_params=pltpu.CompilerParams(dimension_semantics=("parallel",)),
    )(patches3, w3m, b3m, w4o, b4m, w5sel, b5m)

    return out.reshape(B, c5_out, 1, 1, 1)


# ----------------------------- parameter init & one-time preprocessing -----------------------------

def init_params(key):
    params = {}
    for name, c_out, c_in, ks, _, _ in _LAYERS:
        key, kw_key, kb_key = jax.random.split(key, 3)
        fan_in = c_in * ks[0] * ks[1] * ks[2]
        scale = 1.0 / jnp.sqrt(jnp.float32(fan_in))
        params[name + "_w"] = scale * jax.random.normal(
            kw_key, (c_out, c_in) + ks, dtype=jnp.float32)
        params[name + "_b"] = scale * jax.random.normal(
            kb_key, (c_out,), dtype=jnp.float32)
    return params


def prepare_params(params, in_spatial):
    """Hoisted, once-per-model weight preprocessing (runs OUTSIDE the jitted forward)."""
    prep = {}
    # c1 / c2: (C_out, Kp) bf16 weight matrices, K zero-padded for sublane packing.
    for li in (0, 1):
        name, c_out, c_in, k, _, _ = _LAYERS[li]
        K = c_in * k[0] * k[1] * k[2]
        Kp = max(_round_up(K, 8), 16)
        wm = params[name + "_w"].reshape(c_out, K).astype(_COMPUTE_DTYPE)
        prep[name + "_w"] = jnp.pad(wm, ((0, 0), (0, Kp - K)))
        prep[name + "_b"] = params[name + "_b"].reshape(c_out, 1).astype(jnp.float32)

    # Spatial chain (needed to lay out the c5 weights over c4's output grid).
    sp = tuple(in_spatial)
    sps = []
    for _, _, _, k, s, p in _LAYERS:
        sp = _out_spatial(sp, k, s, p)
        sps.append(sp)
    sp4, sp5 = sps[3], sps[4]
    assert sp5 == (1, 1, 1), "fused c5 stage assumes a 1x1x1 output"

    # c3 weight matrix (bf16, K padded).
    _, c3_out, c3_in, k3, _, _ = _LAYERS[2]
    K3 = c3_in * k3[0] * k3[1] * k3[2]
    K3p = max(_round_up(K3, 8), 16)
    w3m = params["c3_w"].reshape(c3_out, K3).astype(_COMPUTE_DTYPE)
    prep["c3_w"] = jnp.pad(w3m, ((0, 0), (0, K3p - K3)))
    prep["c3_b"] = params["c3_b"].reshape(c3_out, 1).astype(jnp.float32)

    # c4 weights per kernel offset: (kt4, C_out, C_in) bf16.
    _, c4_out, c4_in, k4, _, _ = _LAYERS[3]
    kt4 = k4[0] * k4[1] * k4[2]
    prep["c4_w"] = jnp.transpose(
        params["c4_w"].reshape(c4_out, c4_in, kt4), (2, 0, 1)).astype(_COMPUTE_DTYPE)
    prep["c4_b"] = params["c4_b"].reshape(c4_out, 1).astype(jnp.float32)

    # c5 weights scattered onto c4's (lane-padded) output grid; zeros elsewhere.
    _, c5_out, c5_in, k5, _, _ = _LAYERS[4]
    kt5 = k5[0] * k5[1] * k5[2]
    M4 = sp4[0] * sp4[1] * sp4[2]
    M4P = _round_up(M4, 128)
    idx = np.array([(dz * sp4[1] + dy) * sp4[2] + dx
                    for dz in range(k5[0]) for dy in range(k5[1]) for dx in range(k5[2])],
                   dtype=np.int32)
    w5flat = params["c5_w"].reshape(c5_out, c5_in, kt5).astype(jnp.float32)
    prep["c5_w"] = jnp.zeros((c5_out, c5_in, M4P), jnp.float32).at[:, :, idx].set(w5flat)
    prep["c5_b"] = params["c5_b"].reshape(c5_out, 1).astype(jnp.float32)
    return prep


# ----------------------------- ConvNetwork forward -----------------------------

def convnetwork_forward(prep, x):
    h = _conv3d_relu_tiled(x, prep["c1_w"], prep["c1_b"], _LAYERS[0])
    h = _conv3d_relu_tiled(h, prep["c2_w"], prep["c2_b"], _LAYERS[1])
    return _conv345_fused(h, prep)


# ----------------------------- pure-JAX reference -----------------------------

def convnetwork_reference(params, x):
    h = x
    for i, (name, _, _, _, stride, padding) in enumerate(_LAYERS):
        w = params[name + "_w"]
        b = params[name + "_b"]
        h = jax.lax.conv_general_dilated(
            h, w, window_strides=stride,
            padding=[(p, p) for p in padding],
            dimension_numbers=("NCDHW", "OIDHW", "NCDHW"),
            precision=jax.lax.Precision.HIGHEST)
        h = h + b.reshape(1, -1, 1, 1, 1)
        if i < len(_LAYERS) - 1:
            h = jnp.maximum(h, 0.0)
    return h


# ----------------------------- driver -----------------------------

if __name__ == "__main__":
    key = jax.random.PRNGKey(0)
    key_params, key_x = jax.random.split(key)
    params = init_params(key_params)

    # Smallest clean input the architecture supports: c5's 6x6 kernel after four
    # spatial down-samplings forces D,H >= 100; W >= 5 (we use 8).
    x = jax.random.normal(key_x, (2, 1, 100, 100, 8), dtype=jnp.float32)

    # One-time weight preprocessing, hoisted out of the per-call forward.
    prep = prepare_params(params, x.shape[2:])
    prep = jax.tree_util.tree_map(jax.block_until_ready, prep)

    fwd = jax.jit(convnetwork_forward)
    out = jax.block_until_ready(fwd(prep, x))

    assert out.shape == (2, 25, 1, 1, 1), out.shape

    ref = jax.block_until_ready(convnetwork_reference(params, x))
    max_err = float(jnp.max(jnp.abs(out - ref)))
    assert max_err < 5e-2, f"max abs error vs reference too large: {max_err}"

    print("KERNEL_OK")
</pallas_src>

<mosaic_0001>
module attributes {stable_mosaic.version = 11 : i64} {
  func.func @_mm_bias_relu_kernel(%arg0: i32, %arg1: i32, %arg2: memref<1x16x20096xbf16, #tpu.memory_space<vmem>>, %arg3: memref<2x16xbf16, #tpu.memory_space<vmem>>, %arg4: memref<2x1xf32, #tpu.memory_space<vmem>>, %arg5: memref<1x2x20096xbf16, #tpu.memory_space<vmem>>) attributes {dimension_semantics = [#tpu.dimension_semantics<parallel>, #tpu.dimension_semantics<parallel>], iteration_bounds = array<i64: 2, 1>, scalar_prefetch = 0 : i64, scratch_operands = 0 : i64, tpu.core_type = #tpu.core_type<tc>, window_params = [{transform_indices = @transform_0, window_bounds = array<i64: 1, 16, 20096>}, {pipeline_mode = #tpu.pipeline_mode<synchronous>, transform_indices = @transform_1, window_bounds = array<i64: 2, 16>}, {pipeline_mode = #tpu.pipeline_mode<synchronous>, transform_indices = @transform_2, window_bounds = array<i64: 2, 1>}, {transform_indices = @transform_3, window_bounds = array<i64: 1, 2, 20096>}]} {
    %c0 = arith.constant 0 : index
    %c0_0 = arith.constant 0 : index
    %0 = vector.load %arg3[%c0, %c0_0] : memref<2x16xbf16, #tpu.memory_space<vmem>>, vector<2x16xbf16>
    %c0_1 = arith.constant 0 : index
    %c0_2 = arith.constant 0 : index
    %c0_3 = arith.constant 0 : index
    %1 = vector.load %arg2[%c0_1, %c0_2, %c0_3] : memref<1x16x20096xbf16, #tpu.memory_space<vmem>>, vector<1x16x20096xbf16>
    %2 = vector.shape_cast %1 : vector<1x16x20096xbf16> to vector<16x20096xbf16>
    %cst = arith.constant dense<0.000000e+00> : vector<2x20096xf32>
    %3 = tpu.matmul %0, %2, %cst {dimension_numbers = #tpu.dot_dimension_numbers<[1], [0], [0], [1], [0, 0, 1, 1], [], []>} : vector<2x16xbf16>, vector<16x20096xbf16>, vector<2x20096xf32> -> vector<2x20096xf32>
    %c0_4 = arith.constant 0 : index
    %c0_5 = arith.constant 0 : index
    %4 = vector.load %arg4[%c0_4, %c0_5] : memref<2x1xf32, #tpu.memory_space<vmem>>, vector<2x1xf32>
    %5 = vector.broadcast %4 : vector<2x1xf32> to vector<2x20096xf32>
    %6 = arith.addf %3, %5 : vector<2x20096xf32>
    %cst_6 = arith.constant 0.000000e+00 : f32
    %7 = vector.broadcast %cst_6 : f32 to vector<2x20096xf32>
    %8 = arith.maximumf %6, %7 : vector<2x20096xf32>
    %9 = arith.truncf %8 : vector<2x20096xf32> to vector<2x20096xbf16>
    %c0_7 = arith.constant 0 : index
    %c0_8 = arith.constant 0 : index
    %c0_9 = arith.constant 0 : index
    %10 = vector.load %arg5[%c0_7, %c0_8, %c0_9] : memref<1x2x20096xbf16, #tpu.memory_space<vmem>>, vector<1x2x20096xbf16>
    %11 = vector.shape_cast %10 : vector<1x2x20096xbf16> to vector<2x20096xbf16>
    %12 = vector.shape_cast %9 : vector<2x20096xbf16> to vector<1x2x20096xbf16>
    tpu.vector_store %arg5[%c0_7, %c0_8, %c0_9], %12 {strides = array<i32>} : memref<1x2x20096xbf16, #tpu.memory_space<vmem>>, vector<1x2x20096xbf16>,
    return
  }
  func.func @transform_0(%arg0: i32, %arg1: i32) -> (i32, i32, i32) {
    %c0_i32 = arith.constant 0 : i32
    %c0_i32_0 = arith.constant 0 : i32
    return %arg0, %c0_i32, %arg1 : i32, i32, i32
  }
  func.func @transform_1(%arg0: i32, %arg1: i32) -> (i32, i32) {
    %c0_i32 = arith.constant 0 : i32
    %c0_i32_0 = arith.constant 0 : i32
    %c0_i32_1 = arith.constant 0 : i32
    return %c0_i32, %c0_i32_0 : i32, i32
  }
  func.func @transform_2(%arg0: i32, %arg1: i32) -> (i32, i32) {
    %c0_i32 = arith.constant 0 : i32
    %c0_i32_0 = arith.constant 0 : i32
    %c0_i32_1 = arith.constant 0 : i32
    return %c0_i32, %c0_i32_0 : i32, i32
  }
  func.func @transform_3(%arg0: i32, %arg1: i32) -> (i32, i32, i32) {
    %c0_i32 = arith.constant 0 : i32
    %c0_i32_0 = arith.constant 0 : i32
    return %arg0, %c0_i32, %arg1 : i32, i32, i32
  }
}

module attributes {stable_mosaic.version = 11 : i64} {
  func.func @_mm_bias_relu_kernel(%arg0: i32, %arg1: i32, %arg2: memref<1x24x5120xbf16, #tpu.memory_space<vmem>>, %arg3: memref<5x24xbf16, #tpu.memory_space<vmem>>, %arg4: memref<5x1xf32, #tpu.memory_space<vmem>>, %arg5: memref<1x5x5120xbf16, #tpu.memory_space<vmem>>) attributes {dimension_semantics = [#tpu.dimension_semantics<parallel>, #tpu.dimension_semantics<parallel>], iteration_bounds = array<i64: 2, 1>, scalar_prefetch = 0 : i64, scratch_operands = 0 : i64, tpu.core_type = #tpu.core_type<tc>, window_params = [{transform_indices = @transform_0, window_bounds = array<i64: 1, 24, 5120>}, {pipeline_mode = #tpu.pipeline_mode<synchronous>, transform_indices = @transform_1, window_bounds = array<i64: 5, 24>}, {pipeline_mode = #tpu.pipeline_mode<synchronous>, transform_indices = @transform_2, window_bounds = array<i64: 5, 1>}, {transform_indices = @transform_3, window_bounds = array<i64: 1, 5, 5120>}]} {
    %c0 = arith.constant 0 : index
    %c0_0 = arith.constant 0 : index
    %0 = vector.load %arg3[%c0, %c0_0] : memref<5x24xbf16, #tpu.memory_space<vmem>>, vector<5x24xbf16>
    %c0_1 = arith.constant 0 : index
    %c0_2 = arith.constant 0 : index
    %c0_3 = arith.constant 0 : index
    %1 = vector.load %arg2[%c0_1, %c0_2, %c0_3] : memref<1x24x5120xbf16, #tpu.memory_space<vmem>>, vector<1x24x5120xbf16>
    %2 = vector.shape_cast %1 : vector<1x24x5120xbf16> to vector<24x5120xbf16>
    %cst = arith.constant dense<0.000000e+00> : vector<5x5120xf32>
    %3 = tpu.matmul %0, %2, %cst {dimension_numbers = #tpu.dot_dimension_numbers<[1], [0], [0], [1], [0, 0, 1, 1], [], []>} : vector<5x24xbf16>, vector<24x5120xbf16>, vector<5x5120xf32> -> vector<5x5120xf32>
    %c0_4 = arith.constant 0 : index
    %c0_5 = arith.constant 0 : index
    %4 = vector.load %arg4[%c0_4, %c0_5] : memref<5x1xf32, #tpu.memory_space<vmem>>, vector<5x1xf32>
    %5 = vector.broadcast %4 : vector<5x1xf32> to vector<5x5120xf32>
    %6 = arith.addf %3, %5 : vector<5x5120xf32>
    %cst_6 = arith.constant 0.000000e+00 : f32
    %7 = vector.broadcast %cst_6 : f32 to vector<5x5120xf32>
    %8 = arith.maximumf %6, %7 : vector<5x5120xf32>
    %9 = arith.truncf %8 : vector<5x5120xf32> to vector<5x5120xbf16>
    %c0_7 = arith.constant 0 : index
    %c0_8 = arith.constant 0 : index
    %c0_9 = arith.constant 0 : index
    %10 = vector.load %arg5[%c0_7, %c0_8, %c0_9] : memref<1x5x5120xbf16, #tpu.memory_space<vmem>>, vector<1x5x5120xbf16>
    %11 = vector.shape_cast %10 : vector<1x5x5120xbf16> to vector<5x5120xbf16>
    %12 = vector.shape_cast %9 : vector<5x5120xbf16> to vector<1x5x5120xbf16>
    tpu.vector_store %arg5[%c0_7, %c0_8, %c0_9], %12 {strides = array<i32>} : memref<1x5x5120xbf16, #tpu.memory_space<vmem>>, vector<1x5x5120xbf16>,
    return
  }
  func.func @transform_0(%arg0: i32, %arg1: i32) -> (i32, i32, i32) {
    %c0_i32 = arith.constant 0 : i32
    %c0_i32_0 = arith.constant 0 : i32
    return %arg0, %c0_i32, %arg1 : i32, i32, i32
  }
  func.func @transform_1(%arg0: i32, %arg1: i32) -> (i32, i32) {
    %c0_i32 = arith.constant 0 : i32
    %c0_i32_0 = arith.constant 0 : i32
    %c0_i32_1 = arith.constant 0 : i32
    return %c0_i32, %c0_i32_0 : i32, i32
  }
  func.func @transform_2(%arg0: i32, %arg1: i32) -> (i32, i32) {
    %c0_i32 = arith.constant 0 : i32
    %c0_i32_0 = arith.constant 0 : i32
    %c0_i32_1 = arith.constant 0 : i32
    return %c0_i32, %c0_i32_0 : i32, i32
  }
  func.func @transform_3(%arg0: i32, %arg1: i32) -> (i32, i32, i32) {
    %c0_i32 = arith.constant 0 : i32
    %c0_i32_0 = arith.constant 0 : i32
    return %arg0, %c0_i32, %arg1 : i32, i32, i32
  }
}

module attributes {stable_mosaic.version = 11 : i64} {
  func.func @_fused_c345_kernel(%arg0: i32, %arg1: memref<1x96x1024xbf16, #tpu.memory_space<vmem>>, %arg2: memref<10x96xbf16, #tpu.memory_space<vmem>>, %arg3: memref<10x1xf32, #tpu.memory_space<vmem>>, %arg4: memref<8x25x10xbf16, #tpu.memory_space<vmem>>, %arg5: memref<25x1xf32, #tpu.memory_space<vmem>>, %arg6: memref<25x25x128xf32, #tpu.memory_space<vmem>>, %arg7: memref<25x1xf32, #tpu.memory_space<vmem>>, %arg8: memref<1x25x1xf32, #tpu.memory_space<vmem>>) attributes {dimension_semantics = [#tpu.dimension_semantics<parallel>], iteration_bounds = array<i64: 2>, scalar_prefetch = 0 : i64, scratch_operands = 0 : i64, tpu.core_type = #tpu.core_type<tc>, window_params = [{transform_indices = @transform_0, window_bounds = array<i64: 1, 96, 1024>}, {pipeline_mode = #tpu.pipeline_mode<synchronous>, transform_indices = @transform_1, window_bounds = array<i64: 10, 96>}, {pipeline_mode = #tpu.pipeline_mode<synchronous>, transform_indices = @transform_2, window_bounds = array<i64: 10, 1>}, {pipeline_mode = #tpu.pipeline_mode<synchronous>, transform_indices = @transform_3, window_bounds = array<i64: 8, 25, 10>}, {pipeline_mode = #tpu.pipeline_mode<synchronous>, transform_indices = @transform_4, window_bounds = array<i64: 25, 1>}, {pipeline_mode = #tpu.pipeline_mode<synchronous>, transform_indices = @transform_5, window_bounds = array<i64: 25, 25, 128>}, {pipeline_mode = #tpu.pipeline_mode<synchronous>, transform_indices = @transform_6, window_bounds = array<i64: 25, 1>}, {transform_indices = @transform_7, window_bounds = array<i64: 1, 25, 1>}]} {
    %c0 = arith.constant 0 : index
    %c0_0 = arith.constant 0 : index
    %0 = vector.load %arg2[%c0, %c0_0] : memref<10x96xbf16, #tpu.memory_space<vmem>>, vector<10x96xbf16>
    %c0_1 = arith.constant 0 : index
    %c0_2 = arith.constant 0 : index
    %c0_3 = arith.constant 0 : index
    %1 = vector.load %arg1[%c0_1, %c0_2, %c0_3] : memref<1x96x1024xbf16, #tpu.memory_space<vmem>>, vector<1x96x1024xbf16>
    %2 = vector.shape_cast %1 : vector<1x96x1024xbf16> to vector<96x1024xbf16>
    %cst = arith.constant dense<0.000000e+00> : vector<10x1024xf32>
    %3 = tpu.matmul %0, %2, %cst {dimension_numbers = #tpu.dot_dimension_numbers<[1], [0], [0], [1], [0, 0, 1, 1], [], []>} : vector<10x96xbf16>, vector<96x1024xbf16>, vector<10x1024xf32> -> vector<10x1024xf32>
    %c0_4 = arith.constant 0 : index
    %c0_5 = arith.constant 0 : index
    %4 = vector.load %arg3[%c0_4, %c0_5] : memref<10x1xf32, #tpu.memory_space<vmem>>, vector<10x1xf32>
    %5 = vector.broadcast %4 : vector<10x1xf32> to vector<10x1024xf32>
    %6 = arith.addf %3, %5 : vector<10x1024xf32>
    %cst_6 = arith.constant 0.000000e+00 : f32
    %7 = vector.broadcast %cst_6 : f32 to vector<10x1024xf32>
    %8 = arith.maximumf %6, %7 : vector<10x1024xf32>
    %9 = arith.truncf %8 : vector<10x1024xf32> to vector<10x1024xbf16>
    %cst_7 = arith.constant 0.000000e+00 : f32
    %10 = vector.broadcast %cst_7 : f32 to vector<25x128xf32>
    %11 = vector.extract_strided_slice %9 {offsets = [0, 0], sizes = [10, 128], strides = [1, 1]} : vector<10x1024xbf16> to vector<10x128xbf16>
    %c0_8 = arith.constant 0 : index
    %c0_9 = arith.constant 0 : index
    %c0_10 = arith.constant 0 : index
    %12 = vector.load %arg4[%c0_8, %c0_9, %c0_10] : memref<8x25x10xbf16, #tpu.memory_space<vmem>>, vector<1x25x10xbf16>
    %13 = vector.shape_cast %12 : vector<1x25x10xbf16> to vector<25x10xbf16>
    %cst_11 = arith.constant dense<0.000000e+00> : vector<25x128xf32>
    %14 = tpu.matmul %13, %11, %cst_11 {dimension_numbers = #tpu.dot_dimension_numbers<[1], [0], [0], [1], [0, 0, 1, 1], [], []>} : vector<25x10xbf16>, vector<10x128xbf16>, vector<25x128xf32> -> vector<25x128xf32>
    %15 = arith.addf %10, %14 : vector<25x128xf32>
    %16 = vector.extract_strided_slice %9 {offsets = [0, 128], sizes = [10, 128], strides = [1, 1]} : vector<10x1024xbf16> to vector<10x128xbf16>
    %c1 = arith.constant 1 : index
    %c0_12 = arith.constant 0 : index
    %c0_13 = arith.constant 0 : index
    %17 = vector.load %arg4[%c1, %c0_12, %c0_13] : memref<8x25x10xbf16, #tpu.memory_space<vmem>>, vector<1x25x10xbf16>
    %18 = vector.shape_cast %17 : vector<1x25x10xbf16> to vector<25x10xbf16>
    %cst_14 = arith.constant dense<0.000000e+00> : vector<25x128xf32>
    %19 = tpu.matmul %18, %16, %cst_14 {dimension_numbers = #tpu.dot_dimension_numbers<[1], [0], [0], [1], [0, 0, 1, 1], [], []>} : vector<25x10xbf16>, vector<10x128xbf16>, vector<25x128xf32> -> vector<25x128xf32>
    %20 = arith.addf %15, %19 : vector<25x128xf32>
    %21 = vector.extract_strided_slice %9 {offsets = [0, 256], sizes = [10, 128], strides = [1, 1]} : vector<10x1024xbf16> to vector<10x128xbf16>
    %c2 = arith.constant 2 : index
    %c0_15 = arith.constant 0 : index
    %c0_16 = arith.constant 0 : index
    %22 = vector.load %arg4[%c2, %c0_15, %c0_16] : memref<8x25x10xbf16, #tpu.memory_space<vmem>>, vector<1x25x10xbf16>
    %23 = vector.shape_cast %22 : vector<1x25x10xbf16> to vector<25x10xbf16>
    %cst_17 = arith.constant dense<0.000000e+00> : vector<25x128xf32>
    %24 = tpu.matmul %23, %21, %cst_17 {dimension_numbers = #tpu.dot_dimension_numbers<[1], [0], [0], [1], [0, 0, 1, 1], [], []>} : vector<25x10xbf16>, vector<10x128xbf16>, vector<25x128xf32> -> vector<25x128xf32>
    %25 = arith.addf %20, %24 : vector<25x128xf32>
    %26 = vector.extract_strided_slice %9 {offsets = [0, 384], sizes = [10, 128], strides = [1, 1]} : vector<10x1024xbf16> to vector<10x128xbf16>
    %c3 = arith.constant 3 : index
    %c0_18 = arith.constant 0 : index
    %c0_19 = arith.constant 0 : index
    %27 = vector.load %arg4[%c3, %c0_18, %c0_19] : memref<8x25x10xbf16, #tpu.memory_space<vmem>>, vector<1x25x10xbf16>
    %28 = vector.shape_cast %27 : vector<1x25x10xbf16> to vector<25x10xbf16>
    %cst_20 = arith.constant dense<0.000000e+00> : vector<25x128xf32>
    %29 = tpu.matmul %28, %26, %cst_20 {dimension_numbers = #tpu.dot_dimension_numbers<[1], [0], [0], [1], [0, 0, 1, 1], [], []>} : vector<25x10xbf16>, vector<10x128xbf16>, vector<25x128xf32> -> vector<25x128xf32>
    %30 = arith.addf %25, %29 : vector<25x128xf32>
    %31 = vector.extract_strided_slice %9 {offsets = [0, 512], sizes = [10, 128], strides = [1, 1]} : vector<10x1024xbf16> to vector<10x128xbf16>
    %c4 = arith.constant 4 : index
    %c0_21 = arith.constant 0 : index
    %c0_22 = arith.constant 0 : index
    %32 = vector.load %arg4[%c4, %c0_21, %c0_22] : memref<8x25x10xbf16, #tpu.memory_space<vmem>>, vector<1x25x10xbf16>
    %33 = vector.shape_cast %32 : vector<1x25x10xbf16> to vector<25x10xbf16>
    %cst_23 = arith.constant dense<0.000000e+00> : vector<25x128xf32>
    %34 = tpu.matmul %33, %31, %cst_23 {dimension_numbers = #tpu.dot_dimension_numbers<[1], [0], [0], [1], [0, 0, 1, 1], [], []>} : vector<25x10xbf16>, vector<10x128xbf16>, vector<25x128xf32> -> vector<25x128xf32>
    %35 = arith.addf %30, %34 : vector<25x128xf32>
    %36 = vector.extract_strided_slice %9 {offsets = [0, 640], sizes = [10, 128], strides = [1, 1]} : vector<10x1024xbf16> to vector<10x128xbf16>
    %c5 = arith.constant 5 : index
    %c0_24 = arith.constant 0 : index
    %c0_25 = arith.constant 0 : index
    %37 = vector.load %arg4[%c5, %c0_24, %c0_25] : memref<8x25x10xbf16, #tpu.memory_space<vmem>>, vector<1x25x10xbf16>
    %38 = vector.shape_cast %37 : vector<1x25x10xbf16> to vector<25x10xbf16>
    %cst_26 = arith.constant dense<0.000000e+00> : vector<25x128xf32>
    %39 = tpu.matmul %38, %36, %cst_26 {dimension_numbers = #tpu.dot_dimension_numbers<[1], [0], [0], [1], [0, 0, 1, 1], [], []>} : vector<25x10xbf16>, vector<10x128xbf16>, vector<25x128xf32> -> vector<25x128xf32>
    %40 = arith.addf %35, %39 : vector<25x128xf32>
    %41 = vector.extract_strided_slice %9 {offsets = [0, 768], sizes = [10, 128], strides = [1, 1]} : vector<10x1024xbf16> to vector<10x128xbf16>
    %c6 = arith.constant 6 : index
    %c0_27 = arith.constant 0 : index
    %c0_28 = arith.constant 0 : index
    %42 = vector.load %arg4[%c6, %c0_27, %c0_28] : memref<8x25x10xbf16, #tpu.memory_space<vmem>>, vector<1x25x10xbf16>
    %43 = vector.shape_cast %42 : vector<1x25x10xbf16> to vector<25x10xbf16>
    %cst_29 = arith.constant dense<0.000000e+00> : vector<25x128xf32>
    %44 = tpu.matmul %43, %41, %cst_29 {dimension_numbers = #tpu.dot_dimension_numbers<[1], [0], [0], [1], [0, 0, 1, 1], [], []>} : vector<25x10xbf16>, vector<10x128xbf16>, vector<25x128xf32> -> vector<25x128xf32>
    %45 = arith.addf %40, %44 : vector<25x128xf32>
    %46 = vector.extract_strided_slice %9 {offsets = [0, 896], sizes = [10, 128], strides = [1, 1]} : vector<10x1024xbf16> to vector<10x128xbf16>
    %c7 = arith.constant 7 : index
    %c0_30 = arith.constant 0 : index
    %c0_31 = arith.constant 0 : index
    %47 = vector.load %arg4[%c7, %c0_30, %c0_31] : memref<8x25x10xbf16, #tpu.memory_space<vmem>>, vector<1x25x10xbf16>
    %48 = vector.shape_cast %47 : vector<1x25x10xbf16> to vector<25x10xbf16>
    %cst_32 = arith.constant dense<0.000000e+00> : vector<25x128xf32>
    %49 = tpu.matmul %48, %46, %cst_32 {dimension_numbers = #tpu.dot_dimension_numbers<[1], [0], [0], [1], [0, 0, 1, 1], [], []>} : vector<25x10xbf16>, vector<10x128xbf16>, vector<25x128xf32> -> vector<25x128xf32>
    %50 = arith.addf %45, %49 : vector<25x128xf32>
    %c0_33 = arith.constant 0 : index
    %c0_34 = arith.constant 0 : index
    %51 = vector.load %arg5[%c0_33, %c0_34] : memref<25x1xf32, #tpu.memory_space<vmem>>, vector<25x1xf32>
    %52 = vector.broadcast %51 : vector<25x1xf32> to vector<25x128xf32>
    %53 = arith.addf %50, %52 : vector<25x128xf32>
    %cst_35 = arith.constant 0.000000e+00 : f32
    %54 = vector.broadcast %cst_35 : f32 to vector<25x128xf32>
    %55 = arith.maximumf %53, %54 : vector<25x128xf32>
    %c0_36 = arith.constant 0 : index
    %c0_37 = arith.constant 0 : index
    %c0_38 = arith.constant 0 : index
    %56 = vector.load %arg6[%c0_36, %c0_37, %c0_38] : memref<25x25x128xf32, #tpu.memory_space<vmem>>, vector<25x25x128xf32>
    %57 = vector.shape_cast %55 : vector<25x128xf32> to vector<1x25x128xf32>
    %58 = vector.broadcast %57 : vector<1x25x128xf32> to vector<25x25x128xf32>
    %59 = arith.mulf %56, %58 : vector<25x25x128xf32>
    %cst_39 = arith.constant dense<0.000000e+00> : vector<25x25xf32>
    %60 = vector.multi_reduction <add>, %59, %cst_39 [2] : vector<25x25x128xf32> to vector<25x25xf32>
    %cst_40 = arith.constant dense<0.000000e+00> : vector<25xf32>
    %61 = vector.multi_reduction <add>, %60, %cst_40 [1] : vector<25x25xf32> to vector<25xf32>
    %62 = vector.shape_cast %61 : vector<25xf32> to vector<25x1xf32>
    %c0_41 = arith.constant 0 : index
    %c0_42 = arith.constant 0 : index
    %63 = vector.load %arg7[%c0_41, %c0_42] : memref<25x1xf32, #tpu.memory_space<vmem>>, vector<25x1xf32>
    %64 = arith.addf %62, %63 : vector<25x1xf32>
    %c0_43 = arith.constant 0 : index
    %c0_44 = arith.constant 0 : index
    %c0_45 = arith.constant 0 : index
    %65 = vector.load %arg8[%c0_43, %c0_44, %c0_45] : memref<1x25x1xf32, #tpu.memory_space<vmem>>, vector<1x25x1xf32>
    %66 = vector.shape_cast %65 : vector<1x25x1xf32> to vector<25x1xf32>
    %67 = vector.shape_cast %64 : vector<25x1xf32> to vector<1x25x1xf32>
    tpu.vector_store %arg8[%c0_43, %c0_44, %c0_45], %67 {strides = array<i32>} : memref<1x25x1xf32, #tpu.memory_space<vmem>>, vector<1x25x1xf32>,
    return
  }
  func.func @transform_0(%arg0: i32) -> (i32, i32, i32) {
    %c0_i32 = arith.constant 0 : i32
    %c0_i32_0 = arith.constant 0 : i32
    %c0_i32_1 = arith.constant 0 : i32
    return %arg0, %c0_i32, %c0_i32_0 : i32, i32, i32
  }
  func.func @transform_1(%arg0: i32) -> (i32, i32) {
    %c0_i32 = arith.constant 0 : i32
    %c0_i32_0 = arith.constant 0 : i32
    %c0_i32_1 = arith.constant 0 : i32
    return %c0_i32, %c0_i32_0 : i32, i32
  }
  func.func @transform_2(%arg0: i32) -> (i32, i32) {
    %c0_i32 = arith.constant 0 : i32
    %c0_i32_0 = arith.constant 0 : i32
    %c0_i32_1 = arith.constant 0 : i32
    return %c0_i32, %c0_i32_0 : i32, i32
  }
  func.func @transform_3(%arg0: i32) -> (i32, i32, i32) {
    %c0_i32 = arith.constant 0 : i32
    %c0_i32_0 = arith.constant 0 : i32
    %c0_i32_1 = arith.constant 0 : i32
    %c0_i32_2 = arith.constant 0 : i32
    return %c0_i32, %c0_i32_0, %c0_i32_1 : i32, i32, i32
  }
  func.func @transform_4(%arg0: i32) -> (i32, i32) {
    %c0_i32 = arith.constant 0 : i32
    %c0_i32_0 = arith.constant 0 : i32
    %c0_i32_1 = arith.constant 0 : i32
    return %c0_i32, %c0_i32_0 : i32, i32
  }
  func.func @transform_5(%arg0: i32) -> (i32, i32, i32) {
    %c0_i32 = arith.constant 0 : i32
    %c0_i32_0 = arith.constant 0 : i32
    %c0_i32_1 = arith.constant 0 : i32
    %c0_i32_2 = arith.constant 0 : i32
    return %c0_i32, %c0_i32_0, %c0_i32_1 : i32, i32, i32
  }
  func.func @transform_6(%arg0: i32) -> (i32, i32) {
    %c0_i32 = arith.constant 0 : i32
    %c0_i32_0 = arith.constant 0 : i32
    %c0_i32_1 = arith.constant 0 : i32
    return %c0_i32, %c0_i32_0 : i32, i32
  }
  func.func @transform_7(%arg0: i32) -> (i32, i32, i32) {
    %c0_i32 = arith.constant 0 : i32
    %c0_i32_0 = arith.constant 0 : i32
    %c0_i32_1 = arith.constant 0 : i32
    return %arg0, %c0_i32, %c0_i32_0 : i32, i32, i32
  }
}

</mosaic_0001>

<llo_original>
// kernel: convnetwork_forward.3
$region0: #{convnetwork_forward.3}
  #allocation0 [shape = 'u32[]', space=smem, size = 0x4, offset = 0x4, fixed_abs, tag = 'smem constant byte address 0x4 - core index']
  #allocation1 [shape = 'u32[144,128]{1,0:T(1,128)}', space=vmem, size = 0x12000, scoped, tag = 'internal scratch']
  %s0 = inlined_call_operand.vmem [shape: bf16[2,16,20096], index: 0, kind: input, shape index: {}]
  %s1 = inlined_call_operand.vmem [shape: bf16[2,16], index: 1, kind: input, shape index: {}]
  %s2 = inlined_call_operand.vmem [shape: f32[2,1], index: 2, kind: input, shape index: {}]
  %s3 = inlined_call_operand.vmem [shape: bf16[2,2,20096], index: 3, kind: output, shape index: {}]
  %s4 = sld [smem:[#allocation0]]
  $region45: #{convnetwork_forward.3} parent=0
    _
  %s6 = ssub.s32 1, %s4
  %s7 = scalar_select 0, %s6, %s4
  loop: start=0, step=1, limit=4
  $region2: #{convnetwork_forward.3} parent=0 // loop_pre_header
    _
  $region3: #{convnetwork_forward.3} parent=0 // loop_header
    %s9 = sphi 0, %s13
    %p10 = scmp.ge.s32.totalorder %s9, 4
    %s16 = sphi 0, %s28
    %s17 = sphi 0, %s24
    %s18 = sphi 0, %s16
    %s19 = sphi 0, %s17
    %s20 = sphi 0, %s18
    %s21 = sphi 0, %s19
    %s33 = sphi 0, %s35
    %s36 = sphi 0, %s33
    %s37 = sphi 0, %s36
    %s53 = sphi 0, %s37
    %s57 = sphi 0, %s57
    %s59 = sphi 0, %s57
    %s60 = sphi 0, %s59
    %s74 = sphi 0, %s60
    %s78 = sphi 0, %s78
    %s80 = sphi 0, %s78
    %s81 = sphi 0, %s80
    %s95 = sphi 0, %s81
    %s103 = sphi 0, %s105
    %s106 = sphi 0, %s103
    %s107 = sphi 0, %s106
    %s123 = sphi 0, %s107
  $region4: #{convnetwork_forward.3} parent=0 // loop_header_branch
    %12 = sbr.rel (%p10) target = $region8
  $region5: #{convnetwork_forward.3} parent=0 // loop_body
    %s14 = ssub.s32 %s9, 1
    %s15 = ssub.s32 %s9, 2
    %s22 = sadd.s32 1, %s17
    %p23 = scmp.ge.s32.totalorder %s22, 1
    %s24 = scalar_select %p23, 0, %s22
    %s25 = sadd.s32 1, %s16
    %s26 = scalar_select %p23, %s25, %s16
    %p27 = scmp.ge.s32.totalorder %s26, 2
    %s28 = scalar_select %p27, 0, %s26
    %s29 = ssub.s32 %s16, %s28
    %s30 = ssub.s32 %s17, %s24
    %s31 = sor.u32 %s29, %s30
    %p32 = scmp.eq.s32.totalorder %s31, 0
    %s34 = sadd.s32 %s33, 1
    %s35 = scalar_select %p32, %s33, %s34
    %p38 = pneg %p32
    %p39 = scmp.eq.s32.totalorder %s9, 1
    %p40 = por %p38, %p39
    %p41 = scmp.ne.s32.totalorder %s33, %s36
    %p42 = scmp.eq.s32.totalorder %s9, 0
    %p43 = por %p41, %p42
    %p44 = scmp.ne.s32.totalorder %s33, %s36
    %p45 = scmp.eq.s32.totalorder %s14, 1
    %p46 = por %p44, %p45
    %p47 = scmp.ne.s32.totalorder %s36, %s37
    %p48 = scmp.eq.s32.totalorder %s14, 0
    %p49 = por %p47, %p48
    %p50 = scmp.ne.s32.totalorder %s36, %s37
    %p51 = scmp.eq.s32.totalorder %s15, 1
    %p52 = por %p50, %p51
    %p54 = scmp.ne.s32.totalorder %s37, %s53
    %p55 = scmp.eq.s32.totalorder %s15, 0
    %p56 = por %p54, %p55
    %s58 = sadd.s32 %s57, 1
    %p61 = scmp.eq.s32.totalorder %s9, 1
    %p62 = scmp.ne.s32.totalorder %s57, %s59
    %p63 = scmp.eq.s32.totalorder %s9, 0
    %p64 = por %p62, %p63
    %p65 = scmp.ne.s32.totalorder %s57, %s59
    %p66 = scmp.eq.s32.totalorder %s14, 1
    %p67 = por %p65, %p66
    %p68 = scmp.ne.s32.totalorder %s59, %s60
    %p69 = scmp.eq.s32.totalorder %s14, 0
    %p70 = por %p68, %p69
    %p71 = scmp.ne.s32.totalorder %s59, %s60
    %p72 = scmp.eq.s32.totalorder %s15, 1
    %p73 = por %p71, %p72
    %p75 = scmp.ne.s32.totalorder %s60, %s74
    %p76 = scmp.eq.s32.totalorder %s15, 0
    %p77 = por %p75, %p76
    %s79 = sadd.s32 %s78, 1
    %p82 = scmp.eq.s32.totalorder %s9, 1
    %p83 = scmp.ne.s32.totalorder %s78, %s80
    %p84 = scmp.eq.s32.totalorder %s9, 0
    %p85 = por %p83, %p84
    %p86 = scmp.ne.s32.totalorder %s78, %s80
    %p87 = scmp.eq.s32.totalorder %s14, 1
    %p88 = por %p86, %p87
    %p89 = scmp.ne.s32.totalorder %s80, %s81
    %p90 = scmp.eq.s32.totalorder %s14, 0
    %p91 = por %p89, %p90
    %p92 = scmp.ne.s32.totalorder %s80, %s81
    %p93 = scmp.eq.s32.totalorder %s15, 1
    %p94 = por %p92, %p93
    %p96 = scmp.ne.s32.totalorder %s81, %s95
    %p97 = scmp.eq.s32.totalorder %s15, 0
    %p98 = por %p96, %p97
    %s99 = ssub.s32 %s16, %s28
    %s100 = ssub.s32 %s17, %s24
    %s101 = sor.u32 %s99, %s100
    %p102 = scmp.eq.s32.totalorder %s101, 0
    %s104 = sadd.s32 %s103, 1
    %s105 = scalar_select %p102, %s103, %s104
    %p108 = pneg %p102
    %p109 = scmp.eq.s32.totalorder %s9, 1
    %p110 = por %p108, %p109
    %p111 = scmp.ne.s32.totalorder %s103, %s106
    %p112 = scmp.eq.s32.totalorder %s9, 0
    %p113 = por %p111, %p112
    %p114 = scmp.ne.s32.totalorder %s103, %s106
    %p115 = scmp.eq.s32.totalorder %s14, 1
    %p116 = por %p114, %p115
    %p117 = scmp.ne.s32.totalorder %s106, %s107
    %p118 = scmp.eq.s32.totalorder %s14, 0
    %p119 = por %p117, %p118
    %p120 = scmp.ne.s32.totalorder %s106, %s107
    %p121 = scmp.eq.s32.totalorder %s15, 1
    %p122 = por %p120, %p121
    %p124 = scmp.ne.s32.totalorder %s107, %s123
    %p125 = scmp.eq.s32.totalorder %s15, 0
    %p126 = por %p124, %p125
    %p127 = scmp.le.s32.totalorder 1, %s9
    %p128 = scmp.lt.s32.totalorder %s9, 3
    %p129 = pnand %p127, %p128
    %p130 = pneg %p129
    // Predicated region
    $region9: #{convnetwork_forward.3} parent=5 // pred_check
      _
    $region10: #{convnetwork_forward.3} parent=5 // pred_check_branch
      %132 = sbr.rel (%p129) target = $region12
    $region11: #{convnetwork_forward.3} parent=5 // pred_region
      %s133 = ssub.s32 %s9, 1
      // Predicated region
      $region13: #{convnetwork_forward.3} parent=11 // pred_check
        %p134 = pneg %p70
      $region14: #{convnetwork_forward.3} parent=11 // pred_check_branch
        %136 = sbr.rel (%p134) target = $region16
      $region15: #{convnetwork_forward.3} parent=11 // pred_region
        _
      $region16: #{convnetwork_forward.3} parent=11 // pred_fallthru
        _
      // Predicated region
      $region17: #{convnetwork_forward.3} parent=11 // pred_check
        %p137 = pneg %p91
      $region18: #{convnetwork_forward.3} parent=11 // pred_check_branch
        %139 = sbr.rel (%p137) target = $region20
      $region19: #{convnetwork_forward.3} parent=11 // pred_region
        _
      $region20: #{convnetwork_forward.3} parent=11 // pred_fallthru
        _
    $region12: #{convnetwork_forward.3} parent=5 // pred_fallthru
      _
    %p140 = scmp.lt.s32.totalorder %s9, 2
    // Predicated region
    $region21: #{convnetwork_forward.3} parent=5 // pred_check
      %p141 = pneg %p140
    $region22: #{convnetwork_forward.3} parent=5 // pred_check_branch
      %143 = sbr.rel (%p141) target = $region24
    $region23: #{convnetwork_forward.3} parent=5 // pred_region
      // Predicated region
      $region25: #{convnetwork_forward.3} parent=23 // pred_check
        %p144 = pneg %p43
      $region26: #{convnetwork_forward.3} parent=23 // pred_check_branch
        %146 = sbr.rel (%p144) target = $region28
      $region27: #{convnetwork_forward.3} parent=23 // pred_region
        %s147 = smul.u32 157, %s17
        %p148 = scmp.lt.s32.totalorder %s16, 1
        %s149 = scalar_select %p148, %s16, 1
        %p150 = scmp.lt.s32.totalorder %s147, 156
        %s151 = scalar_select %p150, %s147, 156
        %s152 = smul.addr %s149, 314
        %s153 = sadd.s32 %s151, %s152
        %s154 = smul.addr %s153, 4
        %s155 = scalar_lea.vmem %s0, %s154
        %s156 = smul.u32 157, %s17
      $region28: #{convnetwork_forward.3} parent=23 // pred_fallthru
        _
    $region24: #{convnetwork_forward.3} parent=5 // pred_fallthru
      _
    %p157 = scmp.le.s32.totalorder 1, %s9
    %p158 = scmp.lt.s32.totalorder %s9, 3
    %p159 = pnand %p157, %p158
    %p160 = pneg %p159
    // Predicated region
    $region29: #{convnetwork_forward.3} parent=5 // pred_check
      _
    $region30: #{convnetwork_forward.3} parent=5 // pred_check_branch
      %162 = sbr.rel (%p159) target = $region32
    $region31: #{convnetwork_forward.3} parent=5 // pred_region
      %s163 = ssub.s32 %s9, 1
      %s164 = smul.u32 157, %s19
      %p165 = scmp.lt.s32.totalorder %s18, 1
      %s166 = scalar_select %p165, %s18, 1
      %p167 = scmp.lt.s32.totalorder %s164, 156
      %s168 = scalar_select %p167, %s164, 156
      %s169 = smul.addr %s166, 314
      %s170 = sadd.s32 %s168, %s169
      %s171 = smul.addr %s170, 4
      %s172 = scalar_lea.vmem %s0, %s171
      %p173 = pneg %p49
      %p174 = pneg %p46
      %p175 = pneg %p70
      %p176 = pneg %p67
      %p177 = pneg %p91
      %p178 = pneg %p88
      %p179 = pneg %p119
      %p180 = pneg %p116
      %s181 = smul.u32 157, %s19
      %p182 = scmp.lt.s32.totalorder %s18, 1
      %s183 = scalar_select %p182, %s18, 1
      %p184 = scmp.lt.s32.totalorder %s181, 156
      %s185 = scalar_select %p184, %s181, 156
      %s186 = smul.addr %s183, 157
      %s187 = sadd.s32 %s185, %s186
      %s188 = scalar_lea.vmem %s3, %s187
      %s189 = smul.u32 157, %s19
      %p190 = scmp.lt.s32.totalorder %s18, 1
      %s191 = scalar_select %p190, %s18, 1
      %p192 = scmp.lt.s32.totalorder %s189, 156
      %s193 = scalar_select %p192, %s189, 156
      %s194 = smul.addr %s191, 314
      %s195 = sadd.s32 %s193, %s194
      %s196 = smul.addr %s195, 4
      %s197 = scalar_lea.vmem %s0, %s196
      %s198 = smul.u32 157, %s19
      %s199 = smul.u32 157, %s19
      %p200 = scmp.lt.s32.totalorder %s18, 1
      %s201 = scalar_select %p200, %s18, 1
      %p202 = scmp.lt.s32.totalorder %s199, 156
      %s203 = scalar_select %p202, %s199, 156
      %s204 = smul.addr %s201, 157
      %s205 = sadd.s32 %s203, %s204
      %s206 = scalar_lea.vmem %s3, %s205
      %s207 = smul.u32 157, %s19
      %v209 = vld [vmem:[%s1] sm:$0x1]
      %v210 = vld [vmem:[%s197] sm:$0xff]
      %v211 = vld [vmem:[%s197 + $0x8] sm:$0xff]
      %v212 = vld [vmem:[%s197 + $0x10] sm:$0xff]
      %v213 = vld [vmem:[%s197 + $0x18] sm:$0xff]
      %v214 = vld [vmem:[%s197 + $0x20] sm:$0xff]
      %v215 = vld [vmem:[%s197 + $0x28] sm:$0xff]
      %v216 = vld [vmem:[%s197 + $0x30] sm:$0xff]
      %v217 = vld [vmem:[%s197 + $0x38] sm:$0xff]
      %v218 = vld [vmem:[%s197 + $0x40] sm:$0xff]
      %v219 = vld [vmem:[%s197 + $0x48] sm:$0xff]
      %v220 = vld [vmem:[%s197 + $0x50] sm:$0xff]
      %v221 = vld [vmem:[%s197 + $0x58] sm:$0xff]
      %v222 = vld [vmem:[%s197 + $0x60] sm:$0xff]
      %v223 = vld [vmem:[%s197 + $0x68] sm:$0xff]
      %v224 = vld [vmem:[%s197 + $0x70] sm:$0xff]
      %v225 = vld [vmem:[%s197 + $0x78] sm:$0xff]
      %v226 = vld [vmem:[%s197 + $0x80] sm:$0xff]
      %v227 = vld [vmem:[%s197 + $0x88] sm:$0xff]
      %v228 = vld [vmem:[%s197 + $0x90] sm:$0xff]
      %v229 = vld [vmem:[%s197 + $0x98] sm:$0xff]
      %v230 = vld [vmem:[%s197 + $0xa0] sm:$0xff]
      %v231 = vld [vmem:[%s197 + $0xa8] sm:$0xff]
      %v232 = vld [vmem:[%s197 + $0xb0] sm:$0xff]
      %v233 = vld [vmem:[%s197 + $0xb8] sm:$0xff]
      %v234 = vld [vmem:[%s197 + $0xc0] sm:$0xff]
      %v235 = vld [vmem:[%s197 + $0xc8] sm:$0xff]
      %v236 = vld [vmem:[%s197 + $0xd0] sm:$0xff]
      %v237 = vld [vmem:[%s197 + $0xd8] sm:$0xff]
      %v238 = vld [vmem:[%s197 + $0xe0] sm:$0xff]
      %v239 = vld [vmem:[%s197 + $0xe8] sm:$0xff]
      %v240 = vld [vmem:[%s197 + $0xf0] sm:$0xff]
      %v241 = vld [vmem:[%s197 + $0xf8] sm:$0xff]
      %v242 = vld [vmem:[%s197 + $0x100] sm:$0xff]
      %v243 = vld [vmem:[%s197 + $0x108] sm:$0xff]
      %v244 = vld [vmem:[%s197 + $0x110] sm:$0xff]
      %v245 = vld [vmem:[%s197 + $0x118] sm:$0xff]
      %v246 = vld [vmem:[%s197 + $0x120] sm:$0xff]
      %v247 = vld [vmem:[%s197 + $0x128] sm:$0xff]
      %v248 = vld [vmem:[%s197 + $0x130] sm:$0xff]
      %v249 = vld [vmem:[%s197 + $0x138] sm:$0xff]
      %v250 = vld [vmem:[%s197 + $0x140] sm:$0xff]
      %v251 = vld [vmem:[%s197 + $0x148] sm:$0xff]
      %v252 = vld [vmem:[%s197 + $0x150] sm:$0xff]
      %v253 = vld [vmem:[%s197 + $0x158] sm:$0xff]
      %v254 = vld [vmem:[%s197 + $0x160] sm:$0xff]
      %v255 = vld [vmem:[%s197 + $0x168] sm:$0xff]
      %v256 = vld [vmem:[%s197 + $0x170] sm:$0xff]
      %v257 = vld [vmem:[%s197 + $0x178] sm:$0xff]
      %v258 = vld [vmem:[%s197 + $0x180] sm:$0xff]
      %v259 = vld [vmem:[%s197 + $0x188] sm:$0xff]
      %v260 = vld [vmem:[%s197 + $0x190] sm:$0xff]
      %v261 = vld [vmem:[%s197 + $0x198] sm:$0xff]
      %v262 = vld [vmem:[%s197 + $0x1a0] sm:$0xff]
      %v263 = vld [vmem:[%s197 + $0x1a8] sm:$0xff]
      %v264 = vld [vmem:[%s197 + $0x1b0] sm:$0xff]
      %v265 = vld [vmem:[%s197 + $0x1b8] sm:$0xff]
      %v266 = vld [vmem:[%s197 + $0x1c0] sm:$0xff]
      %v267 = vld [vmem:[%s197 + $0x1c8] sm:$0xff]
      %v268 = vld [vmem:[%s197 + $0x1d0] sm:$0xff]
      %v269 = vld [vmem:[%s197 + $0x1d8] sm:$0xff]
      %v270 = vld [vmem:[%s197 + $0x1e0] sm:$0xff]
      %v271 = vld [vmem:[%s197 + $0x1e8] sm:$0xff]
      %v272 = vld [vmem:[%s197 + $0x1f0] sm:$0xff]
      %v273 = vld [vmem:[%s197 + $0x1f8] sm:$0xff]
      %v274 = vld [vmem:[%s197 + $0x200] sm:$0xff]
      %v275 = vld [vmem:[%s197 + $0x208] sm:$0xff]
      %v276 = vld [vmem:[%s197 + $0x210] sm:$0xff]
      %v277 = vld [vmem:[%s197 + $0x218] sm:$0xff]
      %v278 = vld [vmem:[%s197 + $0x220] sm:$0xff]
      %v279 = vld [vmem:[%s197 + $0x228] sm:$0xff]
      %v280 = vld [vmem:[%s197 + $0x230] sm:$0xff]
      %v281 = vld [vmem:[%s197 + $0x238] sm:$0xff]
      %v282 = vld [vmem:[%s197 + $0x240] sm:$0xff]
      %v283 = vld [vmem:[%s197 + $0x248] sm:$0xff]
      %v284 = vld [vmem:[%s197 + $0x250] sm:$0xff]
      %v285 = vld [vmem:[%s197 + $0x258] sm:$0xff]
      %v286 = vld [vmem:[%s197 + $0x260] sm:$0xff]
      %v287 = vld [vmem:[%s197 + $0x268] sm:$0xff]
      %v288 = vld [vmem:[%s197 + $0x270] sm:$0xf]
      %v289 = vld [vmem:[%s197 + $0x274] sm:$0xff]
      %v290 = vld [vmem:[%s197 + $0x27c] sm:$0xff]
      %v291 = vld [vmem:[%s197 + $0x284] sm:$0xff]
      %v292 = vld [vmem:[%s197 + $0x28c] sm:$0xff]
      %v293 = vld [vmem:[%s197 + $0x294] sm:$0xff]
      %v294 = vld [vmem:[%s197 + $0x29c] sm:$0xff]
      %v295 = vld [vmem:[%s197 + $0x2a4] sm:$0xff]
      %v296 = vld [vmem:[%s197 + $0x2ac] sm:$0xff]
      %v297 = vld [vmem:[%s197 + $0x2b4] sm:$0xff]
      %v298 = vld [vmem:[%s197 + $0x2bc] sm:$0xff]
      %v299 = vld [vmem:[%s197 + $0x2c4] sm:$0xff]
      %v300 = vld [vmem:[%s197 + $0x2cc] sm:$0xff]
      %v301 = vld [vmem:[%s197 + $0x2d4] sm:$0xff]
      %v302 = vld [vmem:[%s197 + $0x2dc] sm:$0xff]
      %v303 = vld [vmem:[%s197 + $0x2e4] sm:$0xff]
      %v304 = vld [vmem:[%s197 + $0x2ec] sm:$0xff]
      %v305 = vld [vmem:[%s197 + $0x2f4] sm:$0xff]
      %v306 = vld [vmem:[%s197 + $0x2fc] sm:$0xff]
      %v307 = vld [vmem:[%s197 + $0x304] sm:$0xff]
      %v308 = vld [vmem:[%s197 + $0x30c] sm:$0xff]
      %v309 = vld [vmem:[%s197 + $0x314] sm:$0xff]
      %v310 = vld [vmem:[%s197 + $0x31c] sm:$0xff]
      %v311 = vld [vmem:[%s197 + $0x324] sm:$0xff]
      %v312 = vld [vmem:[%s197 + $0x32c] sm:$0xff]
      %v313 = vld [vmem:[%s197 + $0x334] sm:$0xff]
      %v314 = vld [vmem:[%s197 + $0x33c] sm:$0xff]
      %v315 = vld [vmem:[%s197 + $0x344] sm:$0xff]
      %v316 = vld [vmem:[%s197 + $0x34c] sm:$0xff]
      %v317 = vld [vmem:[%s197 + $0x354] sm:$0xff]
      %v318 = vld [vmem:[%s197 + $0x35c] sm:$0xff]
      %v319 = vld [vmem:[%s197 + $0x364] sm:$0xff]
      %v320 = vld [vmem:[%s197 + $0x36c] sm:$0xff]
      %v321 = vld [vmem:[%s197 + $0x374] sm:$0xff]
      %v322 = vld [vmem:[%s197 + $0x37c] sm:$0xff]
      %v323 = vld [vmem:[%s197 + $0x384] sm:$0xff]
      %v324 = vld [vmem:[%s197 + $0x38c] sm:$0xff]
      %v325 = vld [vmem:[%s197 + $0x394] sm:$0xff]
      %v326 = vld [vmem:[%s197 + $0x39c] sm:$0xff]
      %v327 = vld [vmem:[%s197 + $0x3a4] sm:$0xff]
      %v328 = vld [vmem:[%s197 + $0x3ac] sm:$0xff]
      %v329 = vld [vmem:[%s197 + $0x3b4] sm:$0xff]
      %v330 = vld [vmem:[%s197 + $0x3bc] sm:$0xff]
      %v331 = vld [vmem:[%s197 + $0x3c4] sm:$0xff]
      %v332 = vld [vmem:[%s197 + $0x3cc] sm:$0xff]
      %v333 = vld [vmem:[%s197 + $0x3d4] sm:$0xff]
      %v334 = vld [vmem:[%s197 + $0x3dc] sm:$0xff]
      %v335 = vld [vmem:[%s197 + $0x3e4] sm:$0xff]
      %v336 = vld [vmem:[%s197 + $0x3ec] sm:$0xff]
      %v337 = vld [vmem:[%s197 + $0x3f4] sm:$0xff]
      %v338 = vld [vmem:[%s197 + $0x3fc] sm:$0xff]
      %v339 = vld [vmem:[%s197 + $0x404] sm:$0xff]
      %v340 = vld [vmem:[%s197 + $0x40c] sm:$0xff]
      %v341 = vld [vmem:[%s197 + $0x414] sm:$0xff]
      %v342 = vld [vmem:[%s197 + $0x41c] sm:$0xff]
      %v343 = vld [vmem:[%s197 + $0x424] sm:$0xff]
      %v344 = vld [vmem:[%s197 + $0x42c] sm:$0xff]
      %v345 = vld [vmem:[%s197 + $0x434] sm:$0xff]
      %v346 = vld [vmem:[%s197 + $0x43c] sm:$0xff]
      %v347 = vld [vmem:[%s197 + $0x444] sm:$0xff]
      %v348 = vld [vmem:[%s197 + $0x44c] sm:$0xff]
      %v349 = vld [vmem:[%s197 + $0x454] sm:$0xff]
      %v350 = vld [vmem:[%s197 + $0x45c] sm:$0xff]
      %v351 = vld [vmem:[%s197 + $0x464] sm:$0xff]
      %v352 = vld [vmem:[%s197 + $0x46c] sm:$0xff]
      %v353 = vld [vmem:[%s197 + $0x474] sm:$0xff]
      %v354 = vld [vmem:[%s197 + $0x47c] sm:$0xff]
      %v355 = vld [vmem:[%s197 + $0x484] sm:$0xff]
      %v356 = vld [vmem:[%s197 + $0x48c] sm:$0xff]
      %v357 = vld [vmem:[%s197 + $0x494] sm:$0xff]
      %v358 = vld [vmem:[%s197 + $0x49c] sm:$0xff]
      %v359 = vld [vmem:[%s197 + $0x4a4] sm:$0xff]
      %v360 = vld [vmem:[%s197 + $0x4ac] sm:$0xff]
      %v361 = vld [vmem:[%s197 + $0x4b4] sm:$0xff]
      %v362 = vld [vmem:[%s197 + $0x4bc] sm:$0xff]
      %v363 = vld [vmem:[%s197 + $0x4c4] sm:$0xff]
      %v364 = vld [vmem:[%s197 + $0x4cc] sm:$0xff]
      %v365 = vld [vmem:[%s197 + $0x4d4] sm:$0xff]
      %v366 = vld [vmem:[%s197 + $0x4dc] sm:$0xff]
      %v367 = vld [vmem:[%s197 + $0x4e4] sm:$0xf]
      %v368 = vld [vmem:[%s2] sm:$0x3]
      %370 = vset.pattern.permute.xlu0 0
      %371 = vperm.xlu0 %370, %v368
      %v372 = vpop.permute.xlu0 %371
      %v532 = vunpack.c.l.b16 %v210
      %v533 = vunpack.c.h.b16 %v210
      %v534 = vunpack.c.l.b16 %v211
      %v535 = vunpack.c.h.b16 %v211
      %v536 = vunpack.c.l.b16 %v212
      %v537 = vunpack.c.h.b16 %v212
      %v538 = vunpack.c.l.b16 %v213
      %v539 = vunpack.c.h.b16 %v213
      %v540 = vunpack.c.l.b16 %v214
      %v541 = vunpack.c.h.b16 %v214
      %v542 = vunpack.c.l.b16 %v215
      %v543 = vunpack.c.h.b16 %v215
      %v544 = vunpack.c.l.b16 %v216
      %v545 = vunpack.c.h.b16 %v216
      %v546 = vunpack.c.l.b16 %v217
      %v547 = vunpack.c.h.b16 %v217
      %v548 = vunpack.c.l.b16 %v218
      %v549 = vunpack.c.h.b16 %v218
      %v550 = vunpack.c.l.b16 %v219
      %v551 = vunpack.c.h.b16 %v219
      %v552 = vunpack.c.l.b16 %v220
      %v553 = vunpack.c.h.b16 %v220
      %v554 = vunpack.c.l.b16 %v221
      %v555 = vunpack.c.h.b16 %v221
      %v556 = vunpack.c.l.b16 %v222
      %v557 = vunpack.c.h.b16 %v222
      %v558 = vunpack.c.l.b16 %v223
      %v559 = vunpack.c.h.b16 %v223
      %v560 = vunpack.c.l.b16 %v224
      %v561 = vunpack.c.h.b16 %v224
      %v562 = vunpack.c.l.b16 %v225
      %v563 = vunpack.c.h.b16 %v225
      %v564 = vunpack.c.l.b16 %v226
      %v565 = vunpack.c.h.b16 %v226
      %v566 = vunpack.c.l.b16 %v227
      %v567 = vunpack.c.h.b16 %v227
      %v568 = vunpack.c.l.b16 %v228
      %v569 = vunpack.c.h.b16 %v228
      %v570 = vunpack.c.l.b16 %v229
      %v571 = vunpack.c.h.b16 %v229
      %v572 = vunpack.c.l.b16 %v230
      %v573 = vunpack.c.h.b16 %v230
      %v574 = vunpack.c.l.b16 %v231
      %v575 = vunpack.c.h.b16 %v231
      %v576 = vunpack.c.l.b16 %v232
      %v577 = vunpack.c.h.b16 %v232
      %v578 = vunpack.c.l.b16 %v233
      %v579 = vunpack.c.h.b16 %v233
      %v580 = vunpack.c.l.b16 %v234
      %v581 = vunpack.c.h.b16 %v234
      %v582 = vunpack.c.l.b16 %v235
      %v583 = vunpack.c.h.b16 %v235
      %v584 = vunpack.c.l.b16 %v236
      %v585 = vunpack.c.h.b16 %v236
      %v586 = vunpack.c.l.b16 %v237
      %v587 = vunpack.c.h.b16 %v237
      %v588 = vunpack.c.l.b16 %v238
      %v589 = vunpack.c.h.b16 %v238
      %v590 = vunpack.c.l.b16 %v239
      %v591 = vunpack.c.h.b16 %v239
      %v592 = vunpack.c.l.b16 %v240
      %v593 = vunpack.c.h.b16 %v240
      %v594 = vunpack.c.l.b16 %v241
      %v595 = vunpack.c.h.b16 %v241
      %v596 = vunpack.c.l.b16 %v242
      %v597 = vunpack.c.h.b16 %v242
      %v598 = vunpack.c.l.b16 %v243
      %v599 = vunpack.c.h.b16 %v243
      %v600 = vunpack.c.l.b16 %v244
      %v601 = vunpack.c.h.b16 %v244
      %v602 = vunpack.c.l.b16 %v245
      %v603 = vunpack.c.h.b16 %v245
      %v604 = vunpack.c.l.b16 %v246
      %v605 = vunpack.c.h.b16 %v246
      %v606 = vunpack.c.l.b16 %v247
      %v607 = vunpack.c.h.b16 %v247
      %v608 = vunpack.c.l.b16 %v248
      %v609 = vunpack.c.h.b16 %v248
      %v610 = vunpack.c.l.b16 %v249
      %v611 = vunpack.c.h.b16 %v249
      %v612 = vunpack.c.l.b16 %v250
      %v613 = vunpack.c.h.b16 %v250
      %v614 = vunpack.c.l.b16 %v251
      %v615 = vunpack.c.h.b16 %v251
      %v616 = vunpack.c.l.b16 %v252
      %v617 = vunpack.c.h.b16 %v252
      %v618 = vunpack.c.l.b16 %v253
      %v619 = vunpack.c.h.b16 %v253
      %v620 = vunpack.c.l.b16 %v254
      %v621 = vunpack.c.h.b16 %v254
      %v622 = vunpack.c.l.b16 %v255
      %v623 = vunpack.c.h.b16 %v255
      %v624 = vunpack.c.l.b16 %v256
      %v625 = vunpack.c.h.b16 %v256
      %v626 = vunpack.c.l.b16 %v257
      %v627 = vunpack.c.h.b16 %v257
      %v628 = vunpack.c.l.b16 %v258
      %v629 = vunpack.c.h.b16 %v258
      %v630 = vunpack.c.l.b16 %v259
      %v631 = vunpack.c.h.b16 %v259
      %v632 = vunpack.c.l.b16 %v260
      %v633 = vunpack.c.h.b16 %v260
      %v634 = vunpack.c.l.b16 %v261
      %v635 = vunpack.c.h.b16 %v261
      %v636 = vunpack.c.l.b16 %v262
      %v637 = vunpack.c.h.b16 %v262
      %v638 = vunpack.c.l.b16 %v263
      %v639 = vunpack.c.h.b16 %v263
      %v640 = vunpack.c.l.b16 %v264
      %v641 = vunpack.c.h.b16 %v264
      %v642 = vunpack.c.l.b16 %v265
      %v643 = vunpack.c.h.b16 %v265
      %v644 = vunpack.c.l.b16 %v266
      %v645 = vunpack.c.h.b16 %v266
      %v646 = vunpack.c.l.b16 %v267
      %v647 = vunpack.c.h.b16 %v267
      %v648 = vunpack.c.l.b16 %v268
      %v649 = vunpack.c.h.b16 %v268
      %v650 = vunpack.c.l.b16 %v269
      %v651 = vunpack.c.h.b16 %v269
      %v652 = vunpack.c.l.b16 %v270
      %v653 = vunpack.c.h.b16 %v270
      %v654 = vunpack.c.l.b16 %v271
      %v655 = vunpack.c.h.b16 %v271
      %v656 = vunpack.c.l.b16 %v272
      %v657 = vunpack.c.h.b16 %v272
      %v658 = vunpack.c.l.b16 %v273
      %v659 = vunpack.c.h.b16 %v273
      %v660 = vunpack.c.l.b16 %v274
      %v661 = vunpack.c.h.b16 %v274
      %v662 = vunpack.c.l.b16 %v275
      %v663 = vunpack.c.h.b16 %v275
      %v664 = vunpack.c.l.b16 %v276
      %v665 = vunpack.c.h.b16 %v276
      %v666 = vunpack.c.l.b16 %v277
      %v667 = vunpack.c.h.b16 %v277
      %v668 = vunpack.c.l.b16 %v278
      %v669 = vunpack.c.h.b16 %v278
      %v670 = vunpack.c.l.b16 %v279
      %v671 = vunpack.c.h.b16 %v279
      %v672 = vunpack.c.l.b16 %v280
      %v673 = vunpack.c.h.b16 %v280
      %v674 = vunpack.c.l.b16 %v281
      %v675 = vunpack.c.h.b16 %v281
      %v676 = vunpack.c.l.b16 %v282
      %v677 = vunpack.c.h.b16 %v282
      %v678 = vunpack.c.l.b16 %v283
      %v679 = vunpack.c.h.b16 %v283
      %v680 = vunpack.c.l.b16 %v284
      %v681 = vunpack.c.h.b16 %v284
      %v682 = vunpack.c.l.b16 %v285
      %v683 = vunpack.c.h.b16 %v285
      %v684 = vunpack.c.l.b16 %v286
      %v685 = vunpack.c.h.b16 %v286
      %v686 = vunpack.c.l.b16 %v287
      %v687 = vunpack.c.h.b16 %v287
      %v688 = vunpack.c.l.b16 %v288
      %v689 = vunpack.c.l.b16 %v289
      %v690 = vunpack.c.h.b16 %v289
      %v691 = vunpack.c.l.b16 %v290
      %v692 = vunpack.c.h.b16 %v290
      %v693 = vunpack.c.l.b16 %v291
      %v694 = vunpack.c.h.b16 %v291
      %v695 = vunpack.c.l.b16 %v292
      %v696 = vunpack.c.h.b16 %v292
      %v697 = vunpack.c.l.b16 %v293
      %v698 = vunpack.c.h.b16 %v293
      %v699 = vunpack.c.l.b16 %v294
      %v700 = vunpack.c.h.b16 %v294
      %v701 = vunpack.c.l.b16 %v295
      %v702 = vunpack.c.h.b16 %v295
      %v703 = vunpack.c.l.b16 %v296
      %v704 = vunpack.c.h.b16 %v296
      %v705 = vunpack.c.l.b16 %v297
      %v706 = vunpack.c.h.b16 %v297
      %v707 = vunpack.c.l.b16 %v298
      %v708 = vunpack.c.h.b16 %v298
      %v709 = vunpack.c.l.b16 %v299
      %v710 = vunpack.c.h.b16 %v299
      %v711 = vunpack.c.l.b16 %v300
      %v712 = vunpack.c.h.b16 %v300
      %v713 = vunpack.c.l.b16 %v301
      %v714 = vunpack.c.h.b16 %v301
      %v715 = vunpack.c.l.b16 %v302
      %v716 = vunpack.c.h.b16 %v302
      %v717 = vunpack.c.l.b16 %v303
      %v718 = vunpack.c.h.b16 %v303
      %v719 = vunpack.c.l.b16 %v304
      %v720 = vunpack.c.h.b16 %v304
      %v721 = vunpack.c.l.b16 %v305
      %v722 = vunpack.c.h.b16 %v305
      %v723 = vunpack.c.l.b16 %v306
      %v724 = vunpack.c.h.b16 %v306
      %v725 = vunpack.c.l.b16 %v307
      %v726 = vunpack.c.h.b16 %v307
      %v727 = vunpack.c.l.b16 %v308
      %v728 = vunpack.c.h.b16 %v308
      %v729 = vunpack.c.l.b16 %v309
      %v730 = vunpack.c.h.b16 %v309
      %v731 = vunpack.c.l.b16 %v310
      %v732 = vunpack.c.h.b16 %v310
      %v733 = vunpack.c.l.b16 %v311
      %v734 = vunpack.c.h.b16 %v311
      %v735 = vunpack.c.l.b16 %v312
      %v736 = vunpack.c.h.b16 %v312
      %v737 = vunpack.c.l.b16 %v313
      %v738 = vunpack.c.h.b16 %v313
      %v739 = vunpack.c.l.b16 %v314
      %v740 = vunpack.c.h.b16 %v314
      %v741 = vunpack.c.l.b16 %v315
      %v742 = vunpack.c.h.b16 %v315
      %v743 = vunpack.c.l.b16 %v316
      %v744 = vunpack.c.h.b16 %v316
      %v745 = vunpack.c.l.b16 %v317
      %v746 = vunpack.c.h.b16 %v317
      %v747 = vunpack.c.l.b16 %v318
      %v748 = vunpack.c.h.b16 %v318
      %v749 = vunpack.c.l.b16 %v319
      %v750 = vunpack.c.h.b16 %v319
      %v751 = vunpack.c.l.b16 %v320
      %v752 = vunpack.c.h.b16 %v320
      %v753 = vunpack.c.l.b16 %v321
      %v754 = vunpack.c.h.b16 %v321
      %v755 = vunpack.c.l.b16 %v322
      %v756 = vunpack.c.h.b16 %v322
      %v757 = vunpack.c.l.b16 %v323
      %v758 = vunpack.c.h.b16 %v323
      %v759 = vunpack.c.l.b16 %v324
      %v760 = vunpack.c.h.b16 %v324
      %v761 = vunpack.c.l.b16 %v325
      %v762 = vunpack.c.h.b16 %v325
      %v763 = vunpack.c.l.b16 %v326
      %v764 = vunpack.c.h.b16 %v326
      %v765 = vunpack.c.l.b16 %v327
      %v766 = vunpack.c.h.b16 %v327
      %v767 = vunpack.c.l.b16 %v328
      %v768 = vunpack.c.h.b16 %v328
      %v769 = vunpack.c.l.b16 %v329
      %v770 = vunpack.c.h.b16 %v329
      %v771 = vunpack.c.l.b16 %v330
      %v772 = vunpack.c.h.b16 %v330
      %v773 = vunpack.c.l.b16 %v331
      %v774 = vunpack.c.h.b16 %v331
      %v775 = vunpack.c.l.b16 %v332
      %v776 = vunpack.c.h.b16 %v332
      %v777 = vunpack.c.l.b16 %v333
      %v778 = vunpack.c.h.b16 %v333
      %v779 = vunpack.c.l.b16 %v334
      %v780 = vunpack.c.h.b16 %v334
      %v781 = vunpack.c.l.b16 %v335
      %v782 = vunpack.c.h.b16 %v335
      %v783 = vunpack.c.l.b16 %v336
      %v784 = vunpack.c.h.b16 %v336
      %v785 = vunpack.c.l.b16 %v337
      %v786 = vunpack.c.h.b16 %v337
      %v787 = vunpack.c.l.b16 %v338
      %v788 = vunpack.c.h.b16 %v338
      %v789 = vunpack.c.l.b16 %v339
      %v790 = vunpack.c.h.b16 %v339
      %v791 = vunpack.c.l.b16 %v340
      %v792 = vunpack.c.h.b16 %v340
      %v793 = vunpack.c.l.b16 %v341
      %v794 = vunpack.c.h.b16 %v341
      %v795 = vunpack.c.l.b16 %v342
      %v796 = vunpack.c.h.b16 %v342
      %v797 = vunpack.c.l.b16 %v343
      %v798 = vunpack.c.h.b16 %v343
      %v799 = vunpack.c.l.b16 %v344
      %v800 = vunpack.c.h.b16 %v344
      %v801 = vunpack.c.l.b16 %v345
      %v802 = vunpack.c.h.b16 %v345
      %v803 = vunpack.c.l.b16 %v346
      %v804 = vunpack.c.h.b16 %v346
      %v805 = vunpack.c.l.b16 %v347
      %v806 = vunpack.c.h.b16 %v347
      %v807 = vunpack.c.l.b16 %v348
      %v808 = vunpack.c.h.b16 %v348
      %v809 = vunpack.c.l.b16 %v349
      %v810 = vunpack.c.h.b16 %v349
      %v811 = vunpack.c.l.b16 %v350
      %v812 = vunpack.c.h.b16 %v350
      %v813 = vunpack.c.l.b16 %v351
      %v814 = vunpack.c.h.b16 %v351
      %v815 = vunpack.c.l.b16 %v352
      %v816 = vunpack.c.h.b16 %v352
      %v817 = vunpack.c.l.b16 %v353
      %v818 = vunpack.c.h.b16 %v353
      %v819 = vunpack.c.l.b16 %v354
      %v820 = vunpack.c.h.b16 %v354
      %v821 = vunpack.c.l.b16 %v355
      %v822 = vunpack.c.h.b16 %v355
      %v823 = vunpack.c.l.b16 %v356
      %v824 = vunpack.c.h.b16 %v356
      %v825 = vunpack.c.l.b16 %v357
      %v826 = vunpack.c.h.b16 %v357
      %v827 = vunpack.c.l.b16 %v358
      %v828 = vunpack.c.h.b16 %v358
      %v829 = vunpack.c.l.b16 %v359
      %v830 = vunpack.c.h.b16 %v359
      %v831 = vunpack.c.l.b16 %v360
      %v832 = vunpack.c.h.b16 %v360
      %v833 = vunpack.c.l.b16 %v361
      %v834 = vunpack.c.h.b16 %v361
      %v835 = vunpack.c.l.b16 %v362
      %v836 = vunpack.c.h.b16 %v362
      %v837 = vunpack.c.l.b16 %v363
      %v838 = vunpack.c.h.b16 %v363
      %v839 = vunpack.c.l.b16 %v364
      %v840 = vunpack.c.h.b16 %v364
      %v841 = vunpack.c.l.b16 %v365
      %v842 = vunpack.c.h.b16 %v365
      %v843 = vunpack.c.l.b16 %v366
      %v844 = vunpack.c.h.b16 %v366
      %v845 = vunpack.c.l.b16 %v367
      %v846 = vpack.c.b16 %v689, %v532
      %v847 = vpack.c.b16 %v690, %v533
      %v848 = vpack.c.b16 %v691, %v534
      %v849 = vpack.c.b16 %v692, %v535
      %v850 = vpack.c.b16 %v693, %v536
      %v851 = vpack.c.b16 %v694, %v537
      %v852 = vpack.c.b16 %v695, %v538
      %v853 = vpack.c.b16 %v696, %v539
      %v854 = vpack.c.b16 %v697, %v540
      %v855 = vpack.c.b16 %v698, %v541
      %v856 = vpack.c.b16 %v699, %v542
      %v857 = vpack.c.b16 %v700, %v543
      %v858 = vpack.c.b16 %v701, %v544
      %v859 = vpack.c.b16 %v702, %v545
      %v860 = vpack.c.b16 %v703, %v546
      %v861 = vpack.c.b16 %v704, %v547
      %v862 = vpack.c.b16 %v705, %v548
      %v863 = vpack.c.b16 %v706, %v549
      %v864 = vpack.c.b16 %v707, %v550
      %v865 = vpack.c.b16 %v708, %v551
      %v866 = vpack.c.b16 %v709, %v552
      %v867 = vpack.c.b16 %v710, %v553
      %v868 = vpack.c.b16 %v711, %v554
      %v869 = vpack.c.b16 %v712, %v555
      %v870 = vpack.c.b16 %v713, %v556
      %v871 = vpack.c.b16 %v714, %v557
      %v872 = vpack.c.b16 %v715, %v558
      %v873 = vpack.c.b16 %v716, %v559
      %v874 = vpack.c.b16 %v717, %v560
      %v875 = vpack.c.b16 %v718, %v561
      %v876 = vpack.c.b16 %v719, %v562
      %v877 = vpack.c.b16 %v720, %v563
      %v878 = vpack.c.b16 %v721, %v564
      %v879 = vpack.c.b16 %v722, %v565
      %v880 = vpack.c.b16 %v723, %v566
      %v881 = vpack.c.b16 %v724, %v567
      %v882 = vpack.c.b16 %v725, %v568
      %v883 = vpack.c.b16 %v726, %v569
      %v884 = vpack.c.b16 %v727, %v570
      %v885 = vpack.c.b16 %v728, %v571
      %v886 = vpack.c.b16 %v729, %v572
      %v887 = vpack.c.b16 %v730, %v573
      %v888 = vpack.c.b16 %v731, %v574
      %v889 = vpack.c.b16 %v732, %v575
      %v890 = vpack.c.b16 %v733, %v576
      %v891 = vpack.c.b16 %v734, %v577
      %v892 = vpack.c.b16 %v735, %v578
      %v893 = vpack.c.b16 %v736, %v579
      %v894 = vpack.c.b16 %v737, %v580
      %v895 = vpack.c.b16 %v738, %v581
      %v896 = vpack.c.b16 %v739, %v582
      %v897 = vpack.c.b16 %v740, %v583
      %v898 = vpack.c.b16 %v741, %v584
      %v899 = vpack.c.b16 %v742, %v585
      %v900 = vpack.c.b16 %v743, %v586
      %v901 = vpack.c.b16 %v744, %v587
      %v902 = vpack.c.b16 %v745, %v588
      %v903 = vpack.c.b16 %v746, %v589
      %v904 = vpack.c.b16 %v747, %v590
      %v905 = vpack.c.b16 %v748, %v591
      %v906 = vpack.c.b16 %v749, %v592
      %v907 = vpack.c.b16 %v750, %v593
      %v908 = vpack.c.b16 %v751, %v594
      %v909 = vpack.c.b16 %v752, %v595
      %v910 = vpack.c.b16 %v753, %v596
      %v911 = vpack.c.b16 %v754, %v597
      %v912 = vpack.c.b16 %v755, %v598
      %v913 = vpack.c.b16 %v756, %v599
      %v914 = vpack.c.b16 %v757, %v600
      %v915 = vpack.c.b16 %v758, %v601
      %v916 = vpack.c.b16 %v759, %v602
      %v917 = vpack.c.b16 %v760, %v603
      %v918 = vpack.c.b16 %v761, %v604
      %v919 = vpack.c.b16 %v762, %v605
      %v920 = vpack.c.b16 %v763, %v606
      %v921 = vpack.c.b16 %v764, %v607
      %v922 = vpack.c.b16 %v765, %v608
      %v923 = vpack.c.b16 %v766, %v609
      %v924 = vpack.c.b16 %v767, %v610
      %v925 = vpack.c.b16 %v768, %v611
      %v926 = vpack.c.b16 %v769, %v612
      %v927 = vpack.c.b16 %v770, %v613
      %v928 = vpack.c.b16 %v771, %v614
      %v929 = vpack.c.b16 %v772, %v615
      %v930 = vpack.c.b16 %v773, %v616
      %v931 = vpack.c.b16 %v774, %v617
      %v932 = vpack.c.b16 %v775, %v618
      %v933 = vpack.c.b16 %v776, %v619
      %v934 = vpack.c.b16 %v777, %v620
      %v935 = vpack.c.b16 %v778, %v621
      %v936 = vpack.c.b16 %v779, %v622
      %v937 = vpack.c.b16 %v780, %v623
      %v938 = vpack.c.b16 %v781, %v624
      %v939 = vpack.c.b16 %v782, %v625
      %v940 = vpack.c.b16 %v783, %v626
      %v941 = vpack.c.b16 %v784, %v627
      %v942 = vpack.c.b16 %v785, %v628
      %v943 = vpack.c.b16 %v786, %v629
      %v944 = vpack.c.b16 %v787, %v630
      %v945 = vpack.c.b16 %v788, %v631
      %v946 = vpack.c.b16 %v789, %v632
      %v947 = vpack.c.b16 %v790, %v633
      %v948 = vpack.c.b16 %v791, %v634
      %v949 = vpack.c.b16 %v792, %v635
      %v950 = vpack.c.b16 %v793, %v636
      %v951 = vpack.c.b16 %v794, %v637
      %v952 = vpack.c.b16 %v795, %v638
      %v953 = vpack.c.b16 %v796, %v639
      %v954 = vpack.c.b16 %v797, %v640
      %v955 = vpack.c.b16 %v798, %v641
      %v956 = vpack.c.b16 %v799, %v642
      %v957 = vpack.c.b16 %v800, %v643
      %v958 = vpack.c.b16 %v801, %v644
      %v959 = vpack.c.b16 %v802, %v645
      %v960 = vpack.c.b16 %v803, %v646
      %v961 = vpack.c.b16 %v804, %v647
      %v962 = vpack.c.b16 %v805, %v648
      %v963 = vpack.c.b16 %v806, %v649
      %v964 = vpack.c.b16 %v807, %v650
      %v965 = vpack.c.b16 %v808, %v651
      %v966 = vpack.c.b16 %v809, %v652
      %v967 = vpack.c.b16 %v810, %v653
      %v968 = vpack.c.b16 %v811, %v654
      %v969 = vpack.c.b16 %v812, %v655
      %v970 = vpack.c.b16 %v813, %v656
      %v971 = vpack.c.b16 %v814, %v657
      %v972 = vpack.c.b16 %v815, %v658
      %v973 = vpack.c.b16 %v816, %v659
      %v974 = vpack.c.b16 %v817, %v660
      %v975 = vpack.c.b16 %v818, %v661
      %v976 = vpack.c.b16 %v819, %v662
      %v977 = vpack.c.b16 %v820, %v663
      %v978 = vpack.c.b16 %v821, %v664
      %v979 = vpack.c.b16 %v822, %v665
      %v980 = vpack.c.b16 %v823, %v666
      %v981 = vpack.c.b16 %v824, %v667
      %v982 = vpack.c.b16 %v825, %v668
      %v983 = vpack.c.b16 %v826, %v669
      %v984 = vpack.c.b16 %v827, %v670
      %v985 = vpack.c.b16 %v828, %v671
      %v986 = vpack.c.b16 %v829, %v672
      %v987 = vpack.c.b16 %v830, %v673
      %v988 = vpack.c.b16 %v831, %v674
      %v989 = vpack.c.b16 %v832, %v675
      %v990 = vpack.c.b16 %v833, %v676
      %v991 = vpack.c.b16 %v834, %v677
      %v992 = vpack.c.b16 %v835, %v678
      %v993 = vpack.c.b16 %v836, %v679
      %v994 = vpack.c.b16 %v837, %v680
      %v995 = vpack.c.b16 %v838, %v681
      %v996 = vpack.c.b16 %v839, %v682
      %v997 = vpack.c.b16 %v840, %v683
      %v998 = vpack.c.b16 %v841, %v684
      %v999 = vpack.c.b16 %v842, %v685
      %v1000 = vpack.c.b16 %v843, %v686
      %v1001 = vpack.c.b16 %v844, %v687
      %v1002 = vpack.c.b16 %v845, %v688
      %vm1160 = vcmask 130048
      %v1162 = vsel %vm1160, %v209, 0
      %1164 = vmatprep.subr.bf16.mxu0 %v847
      %1165 = vmatpush1.bf16.msra.mxu0 %v846
      %1166 = vmatprep.subr.bf16.mxu0 0
      %1167 = vmatpush1.bf16.msra.mxu0 0
      %1168 = vmatprep.subr.bf16.mxu0 0
      %1169 = vmatpush1.bf16.msra.mxu0 0
      %1170 = vmatprep.subr.bf16.mxu0 0
      %1171 = vmatpush1.bf16.msra.mxu0 0
      %1172 = vmatprep.subr.bf16.mxu0 0
      %1173 = vmatpush1.bf16.msra.mxu0 0
      %1174 = vmatprep.subr.bf16.mxu0 0
      %1175 = vmatpush1.bf16.msra.mxu0 0
      %1176 = vmatprep.subr.bf16.mxu0 0
      %1177 = vmatpush1.bf16.msra.mxu0 0
      %1178 = vmatprep.subr.bf16.mxu0 0
      %1179 = vmatpush1.bf16.msra.mxu0 0
      %1180 = vmatprep.subr.bf16.mxu0 0
      %1181 = vmatpush1.bf16.msra.mxu0 0
      %1182 = vmatprep.subr.bf16.mxu0 0
      %1183 = vmatpush1.bf16.msra.mxu0 0
      %1184 = vmatprep.subr.bf16.mxu0 0
      %1185 = vmatpush1.bf16.msra.mxu0 0
      %1186 = vmatprep.subr.bf16.mxu0 0
      %1187 = vmatpush1.bf16.msra.mxu0 0
      %1188 = vmatprep.subr.bf16.mxu0 0
      %1189 = vmatpush1.bf16.msra.mxu0 0
      %1190 = vmatprep.subr.bf16.mxu0 0
      %1191 = vmatpush1.bf16.msra.mxu0 0
      %1192 = vmatprep.subr.bf16.mxu0 0
      %1193 = vmatpush1.bf16.msra.mxu0 0
      %1194 = vmatprep.subr.bf16.mxu0 0
      %1195 = vmatpush1.bf16.msra.mxu0 0
      %1196 = vmatprep.mubr.bf16.mxu0 0
      %1197 = vmatmul.mubr.bf16.gmra.mrb[0].mxu0 %v1162
      %v1198 = vpop.f32.mrb[0].mxu0
      %v1199 = vadd.f32 %v372, %v1198
      %v1200 = vpop.f32.mrb[0].mxu0
      %v1201 = vadd.f32 %v372, %v1200
      %v1202 = vpop.f32.mrb[0].mxu0
      %v1203 = vpop.f32.mrb[0].mxu0
      %1204 = vdwg.mxu0
      %1205 = vmatprep.subr.bf16.mxu0 %v849
      %1206 = vmatpush1.bf16.msra.mxu0 %v848
      %1207 = vmatprep.subr.bf16.mxu0 0
      %1208 = vmatpush1.bf16.msra.mxu0 0
      %1209 = vmatprep.subr.bf16.mxu0 0
      %1210 = vmatpush1.bf16.msra.mxu0 0
      %1211 = vmatprep.subr.bf16.mxu0 0
      %1212 = vmatpush1.bf16.msra.mxu0 0
      %1213 = vmatprep.subr.bf16.mxu0 0
      %1214 = vmatpush1.bf16.msra.mxu0 0
      %1215 = vmatprep.subr.bf16.mxu0 0
      %1216 = vmatpush1.bf16.msra.mxu0 0
      %1217 = vmatprep.subr.bf16.mxu0 0
      %1218 = vmatpush1.bf16.msra.mxu0 0
      %1219 = vmatprep.subr.bf16.mxu0 0
      %1220 = vmatpush1.bf16.msra.mxu0 0
      %1221 = vmatprep.subr.bf16.mxu0 0
      %1222 = vmatpush1.bf16.msra.mxu0 0
      %1223 = vmatprep.subr.bf16.mxu0 0
      %1224 = vmatpush1.bf16.msra.mxu0 0
      %1225 = vmatprep.subr.bf16.mxu0 0
      %1226 = vmatpush1.bf16.msra.mxu0 0
      %1227 = vmatprep.subr.bf16.mxu0 0
      %1228 = vmatpush1.bf16.msra.mxu0 0
      %1229 = vmatprep.subr.bf16.mxu0 0
      %1230 = vmatpush1.bf16.msra.mxu0 0
      %1231 = vmatprep.subr.bf16.mxu0 0
      %1232 = vmatpush1.bf16.msra.mxu0 0
      %1233 = vmatprep.subr.bf16.mxu0 0
      %1234 = vmatpush1.bf16.msra.mxu0 0
      %1235 = vmatprep.subr.bf16.mxu0 0
      %1236 = vmatpush1.bf16.msra.mxu0 0
      %1237 = vmatprep.mubr.bf16.mxu0 0
      %1238 = vmatmul.mubr.bf16.gmra.mrb[0].mxu0 %v1162
      %v1239 = vpop.f32.mrb[0].mxu0
      %v1240 = vadd.f32 %v372, %v1239
      %v1241 = vpop.f32.mrb[0].mxu0
      %v1242 = vadd.f32 %v372, %v1241
      %v1243 = vpop.f32.mrb[0].mxu0
      %v1244 = vpop.f32.mrb[0].mxu0
      %1245 = vdwg.mxu0
      %1246 = vmatprep.subr.bf16.mxu0 %v851
      %1247 = vmatpush1.bf16.msra.mxu0 %v850
      %1248 = vmatprep.subr.bf16.mxu0 0
      %1249 = vmatpush1.bf16.msra.mxu0 0
      %1250 = vmatprep.subr.bf16.mxu0 0
      %1251 = vmatpush1.bf16.msra.mxu0 0
      %1252 = vmatprep.subr.bf16.mxu0 0
      %1253 = vmatpush1.bf16.msra.mxu0 0
      %1254 = vmatprep.subr.bf16.mxu0 0
      %1255 = vmatpush1.bf16.msra.mxu0 0
      %1256 = vmatprep.subr.bf16.mxu0 0
      %1257 = vmatpush1.bf16.msra.mxu0 0
      %1258 = vmatprep.subr.bf16.mxu0 0
      %1259 = vmatpush1.bf16.msra.mxu0 0
      %1260 = vmatprep.subr.bf16.mxu0 0
      %1261 = vmatpush1.bf16.msra.mxu0 0
      %1262 = vmatprep.subr.bf16.mxu0 0
      %1263 = vmatpush1.bf16.msra.mxu0 0
      %1264 = vmatprep.subr.bf16.mxu0 0
      %1265 = vmatpush1.bf16.msra.mxu0 0
      %1266 = vmatprep.subr.bf16.mxu0 0
      %1267 = vmatpush1.bf16.msra.mxu0 0
      %1268 = vmatprep.subr.bf16.mxu0 0
      %1269 = vmatpush1.bf16.msra.mxu0 0
      %1270 = vmatprep.subr.bf16.mxu0 0
      %1271 = vmatpush1.bf16.msra.mxu0 0
      %1272 = vmatprep.subr.bf16.mxu0 0
      %1273 = vmatpush1.bf16.msra.mxu0 0
      %1274 = vmatprep.subr.bf16.mxu0 0
      %1275 = vmatpush1.bf16.msra.mxu0 0
      %1276 = vmatprep.subr.bf16.mxu0 0
      %1277 = vmatpush1.bf16.msra.mxu0 0
      %1278 = vmatprep.mubr.bf16.mxu0 0
      %1279 = vmatmul.mubr.bf16.gmra.mrb[0].mxu0 %v1162
      %v1280 = vpop.f32.mrb[0].mxu0
      %v1281 = vadd.f32 %v372, %v1280
      %v1282 = vpop.f32.mrb[0].mxu0
      %v1283 = vadd.f32 %v372, %v1282
      %v1284 = vpop.f32.mrb[0].mxu0
      %v1285 = vpop.f32.mrb[0].mxu0
      %1286 = vdwg.mxu0
      %1287 = vmatprep.subr.bf16.mxu0 %v853
      %1288 = vmatpush1.bf16.msra.mxu0 %v852
      %1289 = vmatprep.subr.bf16.mxu0 0
      %1290 = vmatpush1.bf16.msra.mxu0 0
      %1291 = vmatprep.subr.bf16.mxu0 0
      %1292 = vmatpush1.bf16.msra.mxu0 0
      %1293 = vmatprep.subr.bf16.mxu0 0
      %1294 = vmatpush1.bf16.msra.mxu0 0
      %1295 = vmatprep.subr.bf16.mxu0 0
      %1296 = vmatpush1.bf16.msra.mxu0 0
      %1297 = vmatprep.subr.bf16.mxu0 0
      %1298 = vmatpush1.bf16.msra.mxu0 0
      %1299 = vmatprep.subr.bf16.mxu0 0
      %1300 = vmatpush1.bf16.msra.mxu0 0
      %1301 = vmatprep.subr.bf16.mxu0 0
      %1302 = vmatpush1.bf16.msra.mxu0 0
      %1303 = vmatprep.subr.bf16.mxu0 0
      %1304 = vmatpush1.bf16.msra.mxu0 0
      %1305 = vmatprep.subr.bf16.mxu0 0
      %1306 = vmatpush1.bf16.msra.mxu0 0
      %1307 = vmatprep.subr.bf16.mxu0 0
      %1308 = vmatpush1.bf16.msra.mxu0 0
      %1309 = vmatprep.subr.bf16.mxu0 0
      %1310 = vmatpush1.bf16.msra.mxu0 0
      %1311 = vmatprep.subr.bf16.mxu0 0
      %1312 = vmatpush1.bf16.msra.mxu0 0
      %1313 = vmatprep.subr.bf16.mxu0 0
      %1314 = vmatpush1.bf16.msra.mxu0 0
      %1315 = vmatprep.subr.bf16.mxu0 0
      %1316 = vmatpush1.bf16.msra.mxu0 0
      %1317 = vmatprep.subr.bf16.mxu0 0
      %1318 = vmatpush1.bf16.msra.mxu0 0
      %1319 = vmatprep.mubr.bf16.mxu0 0
      %1320 = vmatmul.mubr.bf16.gmra.mrb[0].mxu0 %v1162
      %v1321 = vpop.f32.mrb[0].mxu0
      %v1322 = vadd.f32 %v372, %v1321
      %v1323 = vpop.f32.mrb[0].mxu0
      %v1324 = vadd.f32 %v372, %v1323
      %v1325 = vpop.f32.mrb[0].mxu0
      %v1326 = vpop.f32.mrb[0].mxu0
      %1327 = vdwg.mxu0
      %1328 = vmatprep.subr.bf16.mxu0 %v855
      %1329 = vmatpush1.bf16.msra.mxu0 %v854
      %1330 = vmatprep.subr.bf16.mxu0 0
      %1331 = vmatpush1.bf16.msra.mxu0 0
      %1332 = vmatprep.subr.bf16.mxu0 0
      %1333 = vmatpush1.bf16.msra.mxu0 0
      %1334 = vmatprep.subr.bf16.mxu0 0
      %1335 = vmatpush1.bf16.msra.mxu0 0
      %1336 = vmatprep.subr.bf16.mxu0 0
      %1337 = vmatpush1.bf16.msra.mxu0 0
      %1338 = vmatprep.subr.bf16.mxu0 0
      %1339 = vmatpush1.bf16.msra.mxu0 0
      %1340 = vmatprep.subr.bf16.mxu0 0
      %1341 = vmatpush1.bf16.msra.mxu0 0
      %1342 = vmatprep.subr.bf16.mxu0 0
      %1343 = vmatpush1.bf16.msra.mxu0 0
      %1344 = vmatprep.subr.bf16.mxu0 0
      %1345 = vmatpush1.bf16.msra.mxu0 0
      %1346 = vmatprep.subr.bf16.mxu0 0
      %1347 = vmatpush1.bf16.msra.mxu0 0
      %1348 = vmatprep.subr.bf16.mxu0 0
      %1349 = vmatpush1.bf16.msra.mxu0 0
      %1350 = vmatprep.subr.bf16.mxu0 0
      %1351 = vmatpush1.bf16.msra.mxu0 0
      %1352 = vmatprep.subr.bf16.mxu0 0
      %1353 = vmatpush1.bf16.msra.mxu0 0
      %1354 = vmatprep.subr.bf16.mxu0 0
      %1355 = vmatpush1.bf16.msra.mxu0 0
      %1356 = vmatprep.subr.bf16.mxu0 0
      %1357 = vmatpush1.bf16.msra.mxu0 0
      %1358 = vmatprep.subr.bf16.mxu0 0
      %1359 = vmatpush1.bf16.msra.mxu0 0
      %1360 = vmatprep.mubr.bf16.mxu0 0
      %1361 = vmatmul.mubr.bf16.gmra.mrb[0].mxu0 %v1162
      %v1362 = vpop.f32.mrb[0].mxu0
      %v1363 = vadd.f32 %v372, %v1362
      %v1364 = vpop.f32.mrb[0].mxu0
      %v1365 = vadd.f32 %v372, %v1364
      %v1366 = vpop.f32.mrb[0].mxu0
      %v1367 = vpop.f32.mrb[0].mxu0
      %1368 = vdwg.mxu0
      %1369 = vmatprep.subr.bf16.mxu0 %v857
      %1370 = vmatpush1.bf16.msra.mxu0 %v856
      %1371 = vmatprep.subr.bf16.mxu0 0
      %1372 = vmatpush1.bf16.msra.mxu0 0
      %1373 = vmatprep.subr.bf16.mxu0 0
      %1374 = vmatpush1.bf16.msra.mxu0 0
      %1375 = vmatprep.subr.bf16.mxu0 0
      %1376 = vmatpush1.bf16.msra.mxu0 0
      %1377 = vmatprep.subr.bf16.mxu0 0
      %1378 = vmatpush1.bf16.msra.mxu0 0
      %1379 = vmatprep.subr.bf16.mxu0 0
      %1380 = vmatpush1.bf16.msra.mxu0 0
      %1381 = vmatprep.subr.bf16.mxu0 0
      %1382 = vmatpush1.bf16.msra.mxu0 0
      %1383 = vmatprep.subr.bf16.mxu0 0
      %1384 = vmatpush1.bf16.msra.mxu0 0
      %1385 = vmatprep.subr.bf16.mxu0 0
      %1386 = vmatpush1.bf16.msra.mxu0 0
      %1387 = vmatprep.subr.bf16.mxu0 0
      %1388 = vmatpush1.bf16.msra.mxu0 0
      %1389 = vmatprep.subr.bf16.mxu0 0
      %1390 = vmatpush1.bf16.msra.mxu0 0
      %1391 = vmatprep.subr.bf16.mxu0 0
      %1392 = vmatpush1.bf16.msra.mxu0 0
      %1393 = vmatprep.subr.bf16.mxu0 0
      %1394 = vmatpush1.bf16.msra.mxu0 0
      %1395 = vmatprep.subr.bf16.mxu0 0
      %1396 = vmatpush1.bf16.msra.mxu0 0
      %1397 = vmatprep.subr.bf16.mxu0 0
      %1398 = vmatpush1.bf16.msra.mxu0 0
      %1399 = vmatprep.subr.bf16.mxu0 0
      %1400 = vmatpush1.bf16.msra.mxu0 0
      %1401 = vmatprep.mubr.bf16.mxu0 0
      %1402 = vmatmul.mubr.bf16.gmra.mrb[0].mxu0 %v1162
      %v1403 = vpop.f32.mrb[0].mxu0
      %v1404 = vadd.f32 %v372, %v1403
      %v1405 = vpop.f32.mrb[0].mxu0
      %v1406 = vadd.f32 %v372, %v1405
      %v1407 = vpop.f32.mrb[0].mxu0
      %v1408 = vpop.f32.mrb[0].mxu0
      %1409 = vdwg.mxu0
      %1410 = vmatprep.subr.bf16.mxu0 %v859
      %1411 = vmatpush1.bf16.msra.mxu0 %v858
      %1412 = vmatprep.subr.bf16.mxu0 0
      %1413 = vmatpush1.bf16.msra.mxu0 0
      %1414 = vmatprep.subr.bf16.mxu0 0
      %1415 = vmatpush1.bf16.msra.mxu0 0
      %1416 = vmatprep.subr.bf16.mxu0 0
      %1417 = vmatpush1.bf16.msra.mxu0 0
      %1418 = vmatprep.subr.bf16.mxu0 0
      %1419 = vmatpush1.bf16.msra.mxu0 0
      %1420 = vmatprep.subr.bf16.mxu0 0
      %1421 = vmatpush1.bf16.msra.mxu0 0
      %1422 = vmatprep.subr.bf16.mxu0 0
      %1423 = vmatpush1.bf16.msra.mxu0 0
      %1424 = vmatprep.subr.bf16.mxu0 0
      %1425 = vmatpush1.bf16.msra.mxu0 0
      %1426 = vmatprep.subr.bf16.mxu0 0
      %1427 = vmatpush1.bf16.msra.mxu0 0
      %1428 = vmatprep.subr.bf16.mxu0 0
      %1429 = vmatpush1.bf16.msra.mxu0 0
      %1430 = vmatprep.subr.bf16.mxu0 0
      %1431 = vmatpush1.bf16.msra.mxu0 0
      %1432 = vmatprep.subr.bf16.mxu0 0
      %1433 = vmatpush1.bf16.msra.mxu0 0
      %1434 = vmatprep.subr.bf16.mxu0 0
      %1435 = vmatpush1.bf16.msra.mxu0 0
      %1436 = vmatprep.subr.bf16.mxu0 0
      %1437 = vmatpush1.bf16.msra.mxu0 0
      %1438 = vmatprep.subr.bf16.mxu0 0
      %1439 = vmatpush1.bf16.msra.mxu0 0
      %1440 = vmatprep.subr.bf16.mxu0 0
      %1441 = vmatpush1.bf16.msra.mxu0 0
      %1442 = vmatprep.mubr.bf16.mxu0 0
      %1443 = vmatmul.mubr.bf16.gmra.mrb[0].mxu0 %v1162
      %v1444 = vpop.f32.mrb[0].mxu0
      %v1445 = vadd.f32 %v372, %v1444
      %v1446 = vpop.f32.mrb[0].mxu0
      %v1447 = vadd.f32 %v372, %v1446
      %v1448 = vpop.f32.mrb[0].mxu0
      %v1449 = vpop.f32.mrb[0].mxu0
      %1450 = vdwg.mxu0
      %1451 = vmatprep.subr.bf16.mxu0 %v861
      %1452 = vmatpush1.bf16.msra.mxu0 %v860
      %1453 = vmatprep.subr.bf16.mxu0 0
      %1454 = vmatpush1.bf16.msra.mxu0 0
      %1455 = vmatprep.subr.bf16.mxu0 0
      %1456 = vmatpush1.bf16.msra.mxu0 0
      %1457 = vmatprep.subr.bf16.mxu0 0
      %1458 = vmatpush1.bf16.msra.mxu0 0
      %1459 = vmatprep.subr.bf16.mxu0 0
      %1460 = vmatpush1.bf16.msra.mxu0 0
      %1461 = vmatprep.subr.bf16.mxu0 0
      %1462 = vmatpush1.bf16.msra.mxu0 0
      %1463 = vmatprep.subr.bf16.mxu0 0
      %1464 = vmatpush1.bf16.msra.mxu0 0
      %1465 = vmatprep.subr.bf16.mxu0 0
      %1466 = vmatpush1.bf16.msra.mxu0 0
      %1467 = vmatprep.subr.bf16.mxu0 0
      %1468 = vmatpush1.bf16.msra.mxu0 0
      %1469 = vmatprep.subr.bf16.mxu0 0
      %1470 = vmatpush1.bf16.msra.mxu0 0
      %1471 = vmatprep.subr.bf16.mxu0 0
      %1472 = vmatpush1.bf16.msra.mxu0 0
      %1473 = vmatprep.subr.bf16.mxu0 0
      %1474 = vmatpush1.bf16.msra.mxu0 0
      %1475 = vmatprep.subr.bf16.mxu0 0
      %1476 = vmatpush1.bf16.msra.mxu0 0
      %1477 = vmatprep.subr.bf16.mxu0 0
      %1478 = vmatpush1.bf16.msra.mxu0 0
      %1479 = vmatprep.subr.bf16.mxu0 0
      %1480 = vmatpush1.bf16.msra.mxu0 0
      %1481 = vmatprep.subr.bf16.mxu0 0
      %1482 = vmatpush1.bf16.msra.mxu0 0
      %1483 = vmatprep.mubr.bf16.mxu0 0
      %1484 = vmatmul.mubr.bf16.gmra.mrb[0].mxu0 %v1162
      %v1485 = vpop.f32.mrb[0].mxu0
      %v1486 = vadd.f32 %v372, %v1485
      %v1487 = vpop.f32.mrb[0].mxu0
      %v1488 = vadd.f32 %v372, %v1487
      %v1489 = vpop.f32.mrb[0].mxu0
      %v1490 = vpop.f32.mrb[0].mxu0
      %1491 = vdwg.mxu0
      %1492 = vmatprep.subr.bf16.mxu0 %v863
      %1493 = vmatpush1.bf16.msra.mxu0 %v862
      %1494 = vmatprep.subr.bf16.mxu0 0
      %1495 = vmatpush1.bf16.msra.mxu0 0
      %1496 = vmatprep.subr.bf16.mxu0 0
      %1497 = vmatpush1.bf16.msra.mxu0 0
      %1498 = vmatprep.subr.bf16.mxu0 0
      %1499 = vmatpush1.bf16.msra.mxu0 0
      %1500 = vmatprep.subr.bf16.mxu0 0
      %1501 = vmatpush1.bf16.msra.mxu0 0
      %1502 = vmatprep.subr.bf16.mxu0 0
      %1503 = vmatpush1.bf16.msra.mxu0 0
      %1504 = vmatprep.subr.bf16.mxu0 0
      %1505 = vmatpush1.bf16.msra.mxu0 0
      %1506 = vmatprep.subr.bf16.mxu0 0
      %1507 = vmatpush1.bf16.msra.mxu0 0
      %1508 = vmatprep.subr.bf16.mxu0 0
      %1509 = vmatpush1.bf16.msra.mxu0 0
      %1510 = vmatprep.subr.bf16.mxu0 0
      %1511 = vmatpush1.bf16.msra.mxu0 0
      %1512 = vmatprep.subr.bf16.mxu0 0
      %1513 = vmatpush1.bf16.msra.mxu0 0
      %1514 = vmatprep.subr.bf16.mxu0 0
      %1515 = vmatpush1.bf16.msra.mxu0 0
      %1516 = vmatprep.subr.bf16.mxu0 0
      %1517 = vmatpush1.bf16.msra.mxu0 0
      %1518 = vmatprep.subr.bf16.mxu0 0
      %1519 = vmatpush1.bf16.msra.mxu0 0
      %1520 = vmatprep.subr.bf16.mxu0 0
      %1521 = vmatpush1.bf16.msra.mxu0 0
      %1522 = vmatprep.subr.bf16.mxu0 0
      %1523 = vmatpush1.bf16.msra.mxu0 0
      %1524 = vmatprep.mubr.bf16.mxu0 0
      %1525 = vmatmul.mubr.bf16.gmra.mrb[0].mxu0 %v1162
      %v1526 = vpop.f32.mrb[0].mxu0
      %v1527 = vadd.f32 %v372, %v1526
      %v1528 = vpop.f32.mrb[0].mxu0
      %v1529 = vadd.f32 %v372, %v1528
      %v1530 = vpop.f32.mrb[0].mxu0
      %v1531 = vpop.f32.mrb[0].mxu0
      %1532 = vdwg.mxu0
      %1533 = vmatprep.subr.bf16.mxu0 %v865
      %1534 = vmatpush1.bf16.msra.mxu0 %v864
      %1535 = vmatprep.subr.bf16.mxu0 0
      %1536 = vmatpush1.bf16.msra.mxu0 0
      %1537 = vmatprep.subr.bf16.mxu0 0
      %1538 = vmatpush1.bf16.msra.mxu0 0
      %1539 = vmatprep.subr.bf16.mxu0 0
      %1540 = vmatpush1.bf16.msra.mxu0 0
      %1541 = vmatprep.subr.bf16.mxu0 0
      %1542 = vmatpush1.bf16.msra.mxu0 0
      %1543 = vmatprep.subr.bf16.mxu0 0
      %1544 = vmatpush1.bf16.msra.mxu0 0
      %1545 = vmatprep.subr.bf16.mxu0 0
      %1546 = vmatpush1.bf16.msra.mxu0 0
      %1547 = vmatprep.subr.bf16.mxu0 0
      %1548 = vmatpush1.bf16.msra.mxu0 0
      %1549 = vmatprep.subr.bf16.mxu0 0
      %1550 = vmatpush1.bf16.msra.mxu0 0
      %1551 = vmatprep.subr.bf16.mxu0 0
      %1552 = vmatpush1.bf16.msra.mxu0 0
      %1553 = vmatprep.subr.bf16.mxu0 0
      %1554 = vmatpush1.bf16.msra.mxu0 0
      %1555 = vmatprep.subr.bf16.mxu0 0
      %1556 = vmatpush1.bf16.msra.mxu0 0
      %1557 = vmatprep.subr.bf16.mxu0 0
      %1558 = vmatpush1.bf16.msra.mxu0 0
      %1559 = vmatprep.subr.bf16.mxu0 0
      %1560 = vmatpush1.bf16.msra.mxu0 0
      %1561 = vmatprep.subr.bf16.mxu0 0
      %1562 = vmatpush1.bf16.msra.mxu0 0
      %1563 = vmatprep.subr.bf16.mxu0 0
      %1564 = vmatpush1.bf16.msra.mxu0 0
      %1565 = vmatprep.mubr.bf16.mxu0 0
      %1566 = vmatmul.mubr.bf16.gmra.mrb[0].mxu0 %v1162
      %v1567 = vpop.f32.mrb[0].mxu0
      %v1568 = vadd.f32 %v372, %v1567
      %v1569 = vpop.f32.mrb[0].mxu0
      %v1570 = vadd.f32 %v372, %v1569
      %v1571 = vpop.f32.mrb[0].mxu0
      %v1572 = vpop.f32.mrb[0].mxu0
      %1573 = vdwg.mxu0
      %1574 = vmatprep.subr.bf16.mxu0 %v867
      %1575 = vmatpush1.bf16.msra.mxu0 %v866
      %1576 = vmatprep.subr.bf16.mxu0 0
      %1577 = vmatpush1.bf16.msra.mxu0 0
      %1578 = vmatprep.subr.bf16.mxu0 0
      %1579 = vmatpush1.bf16.msra.mxu0 0
      %1580 = vmatprep.subr.bf16.mxu0 0
      %1581 = vmatpush1.bf16.msra.mxu0 0
      %1582 = vmatprep.subr.bf16.mxu0 0
      %1583 = vmatpush1.bf16.msra.mxu0 0
      %1584 = vmatprep.subr.bf16.mxu0 0
      %1585 = vmatpush1.bf16.msra.mxu0 0
      %1586 = vmatprep.subr.bf16.mxu0 0
      %1587 = vmatpush1.bf16.msra.mxu0 0
      %1588 = vmatprep.subr.bf16.mxu0 0
      %1589 = vmatpush1.bf16.msra.mxu0 0
      %1590 = vmatprep.subr.bf16.mxu0 0
      %1591 = vmatpush1.bf16.msra.mxu0 0
      %1592 = vmatprep.subr.bf16.mxu0 0
      %1593 = vmatpush1.bf16.msra.mxu0 0
      %1594 = vmatprep.subr.bf16.mxu0 0
      %1595 = vmatpush1.bf16.msra.mxu0 0
      %1596 = vmatprep.subr.bf16.mxu0 0
      %1597 = vmatpush1.bf16.msra.mxu0 0
      %1598 = vmatprep.subr.bf16.mxu0 0
      %1599 = vmatpush1.bf16.msra.mxu0 0
      %1600 = vmatprep.subr.bf16.mxu0 0
      %1601 = vmatpush1.bf16.msra.mxu0 0
      %1602 = vmatprep.subr.bf16.mxu0 0
      %1603 = vmatpush1.bf16.msra.mxu0 0
      %1604 = vmatprep.subr.bf16.mxu0 0
      %1605 = vmatpush1.bf16.msra.mxu0 0
      %1606 = vmatprep.mubr.bf16.mxu0 0
      %1607 = vmatmul.mubr.bf16.gmra.mrb[0].mxu0 %v1162
      %v1608 = vpop.f32.mrb[0].mxu0
      %v1609 = vadd.f32 %v372, %v1608
      %v1610 = vpop.f32.mrb[0].mxu0
      %v1611 = vadd.f32 %v372, %v1610
      %v1612 = vpop.f32.mrb[0].mxu0
      %v1613 = vpop.f32.mrb[0].mxu0
      %1614 = vdwg.mxu0
      %1615 = vmatprep.subr.bf16.mxu0 %v869
      %1616 = vmatpush1.bf16.msra.mxu0 %v868
      %1617 = vmatprep.subr.bf16.mxu0 0
      %1618 = vmatpush1.bf16.msra.mxu0 0
      %1619 = vmatprep.subr.bf16.mxu0 0
      %1620 = vmatpush1.bf16.msra.mxu0 0
      %1621 = vmatprep.subr.bf16.mxu0 0
      %1622 = vmatpush1.bf16.msra.mxu0 0
      %1623 = vmatprep.subr.bf16.mxu0 0
      %1624 = vmatpush1.bf16.msra.mxu0 0
      %1625 = vmatprep.subr.bf16.mxu0 0
      %1626 = vmatpush1.bf16.msra.mxu0 0
      %1627 = vmatprep.subr.bf16.mxu0 0
      %1628 = vmatpush1.bf16.msra.mxu0 0
      %1629 = vmatprep.subr.bf16.mxu0 0
      %1630 = vmatpush1.bf16.msra.mxu0 0
      %1631 = vmatprep.subr.bf16.mxu0 0
      %1632 = vmatpush1.bf16.msra.mxu0 0
      %1633 = vmatprep.subr.bf16.mxu0 0
      %1634 = vmatpush1.bf16.msra.mxu0 0
      %1635 = vmatprep.subr.bf16.mxu0 0
      %1636 = vmatpush1.bf16.msra.mxu0 0
      %1637 = vmatprep.subr.bf16.mxu0 0
      %1638 = vmatpush1.bf16.msra.mxu0 0
      %1639 = vmatprep.subr.bf16.mxu0 0
      %1640 = vmatpush1.bf16.msra.mxu0 0
      %1641 = vmatprep.subr.bf16.mxu0 0
      %1642 = vmatpush1.bf16.msra.mxu0 0
      %1643 = vmatprep.subr.bf16.mxu0 0
      %1644 = vmatpush1.bf16.msra.mxu0 0
      %1645 = vmatprep.subr.bf16.mxu0 0
      %1646 = vmatpush1.bf16.msra.mxu0 0
      %1647 = vmatprep.mubr.bf16.mxu0 0
      %1648 = vmatmul.mubr.bf16.gmra.mrb[0].mxu0 %v1162
      %v1649 = vpop.f32.mrb[0].mxu0
      %v1650 = vadd.f32 %v372, %v1649
      %v1651 = vpop.f32.mrb[0].mxu0
      %v1652 = vadd.f32 %v372, %v1651
      %v1653 = vpop.f32.mrb[0].mxu0
      %v1654 = vpop.f32.mrb[0].mxu0
      %1655 = vdwg.mxu0
      %1656 = vmatprep.subr.bf16.mxu0 %v871
      %1657 = vmatpush1.bf16.msra.mxu0 %v870
      %1658 = vmatprep.subr.bf16.mxu0 0
      %1659 = vmatpush1.bf16.msra.mxu0 0
      %1660 = vmatprep.subr.bf16.mxu0 0
      %1661 = vmatpush1.bf16.msra.mxu0 0
      %1662 = vmatprep.subr.bf16.mxu0 0
      %1663 = vmatpush1.bf16.msra.mxu0 0
      %1664 = vmatprep.subr.bf16.mxu0 0
      %1665 = vmatpush1.bf16.msra.mxu0 0
      %1666 = vmatprep.subr.bf16.mxu0 0
      %1667 = vmatpush1.bf16.msra.mxu0 0
      %1668 = vmatprep.subr.bf16.mxu0 0
      %1669 = vmatpush1.bf16.msra.mxu0 0
      %1670 = vmatprep.subr.bf16.mxu0 0
      %1671 = vmatpush1.bf16.msra.mxu0 0
      %1672 = vmatprep.subr.bf16.mxu0 0
      %1673 = vmatpush1.bf16.msra.mxu0 0
      %1674 = vmatprep.subr.bf16.mxu0 0
      %1675 = vmatpush1.bf16.msra.mxu0 0
      %1676 = vmatprep.subr.bf16.mxu0 0
      %1677 = vmatpush1.bf16.msra.mxu0 0
      %1678 = vmatprep.subr.bf16.mxu0 0
      %1679 = vmatpush1.bf16.msra.mxu0 0
      %1680 = vmatprep.subr.bf16.mxu0 0
      %1681 = vmatpush1.bf16.msra.mxu0 0
      %1682 = vmatprep.subr.bf16.mxu0 0
      %1683 = vmatpush1.bf16.msra.mxu0 0
      %1684 = vmatprep.subr.bf16.mxu0 0
      %1685 = vmatpush1.bf16.msra.mxu0 0
      %1686 = vmatprep.subr.bf16.mxu0 0
      %1687 = vmatpush1.bf16.msra.mxu0 0
      %1688 = vmatprep.mubr.bf16.mxu0 0
      %1689 = vmatmul.mubr.bf16.gmra.mrb[0].mxu0 %v1162
      %v1690 = vpop.f32.mrb[0].mxu0
      %v1691 = vadd.f32 %v372, %v1690
      %v1692 = vpop.f32.mrb[0].mxu0
      %v1693 = vadd.f32 %v372, %v1692
      %v1694 = vpop.f32.mrb[0].mxu0
      %v1695 = vpop.f32.mrb[0].mxu0
      %1696 = vdwg.mxu0
      %1697 = vmatprep.subr.bf16.mxu0 %v873
      %1698 = vmatpush1.bf16.msra.mxu0 %v872
      %1699 = vmatprep.subr.bf16.mxu0 0
      %1700 = vmatpush1.bf16.msra.mxu0 0
      %1701 = vmatprep.subr.bf16.mxu0 0
      %1702 = vmatpush1.bf16.msra.mxu0 0
      %1703 = vmatprep.subr.bf16.mxu0 0
      %1704 = vmatpush1.bf16.msra.mxu0 0
      %1705 = vmatprep.subr.bf16.mxu0 0
      %1706 = vmatpush1.bf16.msra.mxu0 0
      %1707 = vmatprep.subr.bf16.mxu0 0
      %1708 = vmatpush1.bf16.msra.mxu0 0
      %1709 = vmatprep.subr.bf16.mxu0 0
      %1710 = vmatpush1.bf16.msra.mxu0 0
      %1711 = vmatprep.subr.bf16.mxu0 0
      %1712 = vmatpush1.bf16.msra.mxu0 0
      %1713 = vmatprep.subr.bf16.mxu0 0
      %1714 = vmatpush1.bf16.msra.mxu0 0
      %1715 = vmatprep.subr.bf16.mxu0 0
      %1716 = vmatpush1.bf16.msra.mxu0 0
      %1717 = vmatprep.subr.bf16.mxu0 0
      %1718 = vmatpush1.bf16.msra.mxu0 0
      %1719 = vmatprep.subr.bf16.mxu0 0
      %1720 = vmatpush1.bf16.msra.mxu0 0
      %1721 = vmatprep.subr.bf16.mxu0 0
      %1722 = vmatpush1.bf16.msra.mxu0 0
      %1723 = vmatprep.subr.bf16.mxu0 0
      %1724 = vmatpush1.bf16.msra.mxu0 0
      %1725 = vmatprep.subr.bf16.mxu0 0
      %1726 = vmatpush1.bf16.msra.mxu0 0
      %1727 = vmatprep.subr.bf16.mxu0 0
      %1728 = vmatpush1.bf16.msra.mxu0 0
      %1729 = vmatprep.mubr.bf16.mxu0 0
      %1730 = vmatmul.mubr.bf16.gmra.mrb[0].mxu0 %v1162
      %v1731 = vpop.f32.mrb[0].mxu0
      %v1732 = vadd.f32 %v372, %v1731
      %v1733 = vpop.f32.mrb[0].mxu0
      %v1734 = vadd.f32 %v372, %v1733
      %v1735 = vpop.f32.mrb[0].mxu0
      %v1736 = vpop.f32.mrb[0].mxu0
      %1737 = vdwg.mxu0
      %1738 = vmatprep.subr.bf16.mxu0 %v875
      %1739 = vmatpush1.bf16.msra.mxu0 %v874
      %1740 = vmatprep.subr.bf16.mxu0 0
      %1741 = vmatpush1.bf16.msra.mxu0 0
      %1742 = vmatprep.subr.bf16.mxu0 0
      %1743 = vmatpush1.bf16.msra.mxu0 0
      %1744 = vmatprep.subr.bf16.mxu0 0
      %1745 = vmatpush1.bf16.msra.mxu0 0
      %1746 = vmatprep.subr.bf16.mxu0 0
      %1747 = vmatpush1.bf16.msra.mxu0 0
      %1748 = vmatprep.subr.bf16.mxu0 0
      %1749 = vmatpush1.bf16.msra.mxu0 0
      %1750 = vmatprep.subr.bf16.mxu0 0
      %1751 = vmatpush1.bf16.msra.mxu0 0
      %1752 = vmatprep.subr.bf16.mxu0 0
      %1753 = vmatpush1.bf16.msra.mxu0 0
      %1754 = vmatprep.subr.bf16.mxu0 0
      %1755 = vmatpush1.bf16.msra.mxu0 0
      %1756 = vmatprep.subr.bf16.mxu0 0
      %1757 = vmatpush1.bf16.msra.mxu0 0
      %1758 = vmatprep.subr.bf16.mxu0 0
      %1759 = vmatpush1.bf16.msra.mxu0 0
      %1760 = vmatprep.subr.bf16.mxu0 0
      %1761 = vmatpush1.bf16.msra.mxu0 0
      %1762 = vmatprep.subr.bf16.mxu0 0
      %1763 = vmatpush1.bf16.msra.mxu0 0
      %1764 = vmatprep.subr.bf16.mxu0 0
      %1765 = vmatpush1.bf16.msra.mxu0 0
      %1766 = vmatprep.subr.bf16.mxu0 0
      %1767 = vmatpush1.bf16.msra.mxu0 0
      %1768 = vmatprep.subr.bf16.mxu0 0
      %1769 = vmatpush1.bf16.msra.mxu0 0
      %1770 = vmatprep.mubr.bf16.mxu0 0
      %1771 = vmatmul.mubr.bf16.gmra.mrb[0].mxu0 %v1162
      %v1772 = vpop.f32.mrb[0].mxu0
      %v1773 = vadd.f32 %v372, %v1772
      %v1774 = vpop.f32.mrb[0].mxu0
      %v1775 = vadd.f32 %v372, %v1774
      %v1776 = vpop.f32.mrb[0].mxu0
      %v1777 = vpop.f32.mrb[0].mxu0
      %1778 = vdwg.mxu0
      %1779 = vmatprep.subr.bf16.mxu0 %v877
      %1780 = vmatpush1.bf16.msra.mxu0 %v876
      %1781 = vmatprep.subr.bf16.mxu0 0
      %1782 = vmatpush1.bf16.msra.mxu0 0
      %1783 = vmatprep.subr.bf16.mxu0 0
      %1784 = vmatpush1.bf16.msra.mxu0 0
      %1785 = vmatprep.subr.bf16.mxu0 0
      %1786 = vmatpush1.bf16.msra.mxu0 0
      %1787 = vmatprep.subr.bf16.mxu0 0
      %1788 = vmatpush1.bf16.msra.mxu0 0
      %1789 = vmatprep.subr.bf16.mxu0 0
      %1790 = vmatpush1.bf16.msra.mxu0 0
      %1791 = vmatprep.subr.bf16.mxu0 0
      %1792 = vmatpush1.bf16.msra.mxu0 0
      %1793 = vmatprep.subr.bf16.mxu0 0
      %1794 = vmatpush1.bf16.msra.mxu0 0
      %1795 = vmatprep.subr.bf16.mxu0 0
      %1796 = vmatpush1.bf16.msra.mxu0 0
      %1797 = vmatprep.subr.bf16.mxu0 0
      %1798 = vmatpush1.bf16.msra.mxu0 0
      %1799 = vmatprep.subr.bf16.mxu0 0
      %1800 = vmatpush1.bf16.msra.mxu0 0
      %1801 = vmatprep.subr.bf16.mxu0 0
      %1802 = vmatpush1.bf16.msra.mxu0 0
      %1803 = vmatprep.subr.bf16.mxu0 0
      %1804 = vmatpush1.bf16.msra.mxu0 0
      %1805 = vmatprep.subr.bf16.mxu0 0
      %1806 = vmatpush1.bf16.msra.mxu0 0
      %1807 = vmatprep.subr.bf16.mxu0 0
      %1808 = vmatpush1.bf16.msra.mxu0 0
      %1809 = vmatprep.subr.bf16.mxu0 0
      %1810 = vmatpush1.bf16.msra.mxu0 0
      %1811 = vmatprep.mubr.bf16.mxu0 0
      %1812 = vmatmul.mubr.bf16.gmra.mrb[0].mxu0 %v1162
      %v1813 = vpop.f32.mrb[0].mxu0
      %v1814 = vadd.f32 %v372, %v1813
      %v1815 = vpop.f32.mrb[0].mxu0
      %v1816 = vadd.f32 %v372, %v1815
      %v1817 = vpop.f32.mrb[0].mxu0
      %v1818 = vpop.f32.mrb[0].mxu0
      %1819 = vdwg.mxu0
      %1820 = vmatprep.subr.bf16.mxu0 %v879
      %1821 = vmatpush1.bf16.msra.mxu0 %v878
      %1822 = vmatprep.subr.bf16.mxu0 0
      %1823 = vmatpush1.bf16.msra.mxu0 0
      %1824 = vmatprep.subr.bf16.mxu0 0
      %1825 = vmatpush1.bf16.msra.mxu0 0
      %1826 = vmatprep.subr.bf16.mxu0 0
      %1827 = vmatpush1.bf16.msra.mxu0 0
      %1828 = vmatprep.subr.bf16.mxu0 0
      %1829 = vmatpush1.bf16.msra.mxu0 0
      %1830 = vmatprep.subr.bf16.mxu0 0
      %1831 = vmatpush1.bf16.msra.mxu0 0
      %1832 = vmatprep.subr.bf16.mxu0 0
      %1833 = vmatpush1.bf16.msra.mxu0 0
      %1834 = vmatprep.subr.bf16.mxu0 0
      %1835 = vmatpush1.bf16.msra.mxu0 0
      %1836 = vmatprep.subr.bf16.mxu0 0
      %1837 = vmatpush1.bf16.msra.mxu0 0
      %1838 = vmatprep.subr.bf16.mxu0 0
      %1839 = vmatpush1.bf16.msra.mxu0 0
      %1840 = vmatprep.subr.bf16.mxu0 0
      %1841 = vmatpush1.bf16.msra.mxu0 0
      %1842 = vmatprep.subr.bf16.mxu0 0
      %1843 = vmatpush1.bf16.msra.mxu0 0
      %1844 = vmatprep.subr.bf16.mxu0 0
      %1845 = vmatpush1.bf16.msra.mxu0 0
      %1846 = vmatprep.subr.bf16.mxu0 0
      %1847 = vmatpush1.bf16.msra.mxu0 0
      %1848 = vmatprep.subr.bf16.mxu0 0
      %1849 = vmatpush1.bf16.msra.mxu0 0
      %1850 = vmatprep.subr.bf16.mxu0 0
      %1851 = vmatpush1.bf16.msra.mxu0 0
      %1852 = vmatprep.mubr.bf16.mxu0 0
      %1853 = vmatmul.mubr.bf16.gmra.mrb[0].mxu0 %v1162
      %v1854 = vpop.f32.mrb[0].mxu0
      %v1855 = vadd.f32 %v372, %v1854
      %v1856 = vpop.f32.mrb[0].mxu0
      %v1857 = vadd.f32 %v372, %v1856
      %v1858 = vpop.f32.mrb[0].mxu0
      %v1859 = vpop.f32.mrb[0].mxu0
      %1860 = vdwg.mxu0
      %1861 = vmatprep.subr.bf16.mxu0 %v881
      %1862 = vmatpush1.bf16.msra.mxu0 %v880
      %1863 = vmatprep.subr.bf16.mxu0 0
      %1864 = vmatpush1.bf16.msra.mxu0 0
      %1865 = vmatprep.subr.bf16.mxu0 0
      %1866 = vmatpush1.bf16.msra.mxu0 0
      %1867 = vmatprep.subr.bf16.mxu0 0
      %1868 = vmatpush1.bf16.msra.mxu0 0
      %1869 = vmatprep.subr.bf16.mxu0 0
      %1870 = vmatpush1.bf16.msra.mxu0 0
      %1871 = vmatprep.subr.bf16.mxu0 0
      %1872 = vmatpush1.bf16.msra.mxu0 0
      %1873 = vmatprep.subr.bf16.mxu0 0
      %1874 = vmatpush1.bf16.msra.mxu0 0
      %1875 = vmatprep.subr.bf16.mxu0 0
      %1876 = vmatpush1.bf16.msra.mxu0 0
      %1877 = vmatprep.subr.bf16.mxu0 0
      %1878 = vmatpush1.bf16.msra.mxu0 0
      %1879 = vmatprep.subr.bf16.mxu0 0
      %1880 = vmatpush1.bf16.msra.mxu0 0
      %1881 = vmatprep.subr.bf16.mxu0 0
      %1882 = vmatpush1.bf16.msra.mxu0 0
      %1883 = vmatprep.subr.bf16.mxu0 0
      %1884 = vmatpush1.bf16.msra.mxu0 0
      %1885 = vmatprep.subr.bf16.mxu0 0
      %1886 = vmatpush1.bf16.msra.mxu0 0
      %1887 = vmatprep.subr.bf16.mxu0 0
      %1888 = vmatpush1.bf16.msra.mxu0 0
      %1889 = vmatprep.subr.bf16.mxu0 0
      %1890 = vmatpush1.bf16.msra.mxu0 0
      %1891 = vmatprep.subr.bf16.mxu0 0
      %1892 = vmatpush1.bf16.msra.mxu0 0
      %1893 = vmatprep.mubr.bf16.mxu0 0
      %1894 = vmatmul.mubr.bf16.gmra.mrb[0].mxu0 %v1162
      %v1895 = vpop.f32.mrb[0].mxu0
      %v1896 = vadd.f32 %v372, %v1895
      %v1897 = vpop.f32.mrb[0].mxu0
      %v1898 = vadd.f32 %v372, %v1897
      %v1899 = vpop.f32.mrb[0].mxu0
      %v1900 = vpop.f32.mrb[0].mxu0
      %1901 = vdwg.mxu0
      %1902 = vmatprep.subr.bf16.mxu0 %v883
      %1903 = vmatpush1.bf16.msra.mxu0 %v882
      %1904 = vmatprep.subr.bf16.mxu0 0
      %1905 = vmatpush1.bf16.msra.mxu0 0
      %1906 = vmatprep.subr.bf16.mxu0 0
      %1907 = vmatpush1.bf16.msra.mxu0 0
      %1908 = vmatprep.subr.bf16.mxu0 0
      %1909 = vmatpush1.bf16.msra.mxu0 0
      %1910 = vmatprep.subr.bf16.mxu0 0
      %1911 = vmatpush1.bf16.msra.mxu0 0
      %1912 = vmatprep.subr.bf16.mxu0 0
      %1913 = vmatpush1.bf16.msra.mxu0 0
      %1914 = vmatprep.subr.bf16.mxu0 0
      %1915 = vmatpush1.bf16.msra.mxu0 0
      %1916 = vmatprep.subr.bf16.mxu0 0
      %1917 = vmatpush1.bf16.msra.mxu0 0
      %1918 = vmatprep.subr.bf16.mxu0 0
      %1919 = vmatpush1.bf16.msra.mxu0 0
      %1920 = vmatprep.subr.bf16.mxu0 0
      %1921 = vmatpush1.bf16.msra.mxu0 0
      %1922 = vmatprep.subr.bf16.mxu0 0
      %1923 = vmatpush1.bf16.msra.mxu0 0
      %1924 = vmatprep.subr.bf16.mxu0 0
      %1925 = vmatpush1.bf16.msra.mxu0 0
      %1926 = vmatprep.subr.bf16.mxu0 0
      %1927 = vmatpush1.bf16.msra.mxu0 0
      %1928 = vmatprep.subr.bf16.mxu0 0
      %1929 = vmatpush1.bf16.msra.mxu0 0
      %1930 = vmatprep.subr.bf16.mxu0 0
      %1931 = vmatpush1.bf16.msra.mxu0 0
      %1932 = vmatprep.subr.bf16.mxu0 0
      %1933 = vmatpush1.bf16.msra.mxu0 0
      %1934 = vmatprep.mubr.bf16.mxu0 0
      %1935 = vmatmul.mubr.bf16.gmra.mrb[0].mxu0 %v1162
      %v1936 = vpop.f32.mrb[0].mxu0
      %v1937 = vadd.f32 %v372, %v1936
      %v1938 = vpop.f32.mrb[0].mxu0
      %v1939 = vadd.f32 %v372, %v1938
      %v1940 = vpop.f32.mrb[0].mxu0
      %v1941 = vpop.f32.mrb[0].mxu0
      %1942 = vdwg.mxu0
      %1943 = vmatprep.subr.bf16.mxu0 %v885
      %1944 = vmatpush1.bf16.msra.mxu0 %v884
      %1945 = vmatprep.subr.bf16.mxu0 0
      %1946 = vmatpush1.bf16.msra.mxu0 0
      %1947 = vmatprep.subr.bf16.mxu0 0
      %1948 = vmatpush1.bf16.msra.mxu0 0
      %1949 = vmatprep.subr.bf16.mxu0 0
      %1950 = vmatpush1.bf16.msra.mxu0 0
      %1951 = vmatprep.subr.bf16.mxu0 0
      %1952 = vmatpush1.bf16.msra.mxu0 0
      %1953 = vmatprep.subr.bf16.mxu0 0
      %1954 = vmatpush1.bf16.msra.mxu0 0
      %1955 = vmatprep.subr.bf16.mxu0 0
      %1956 = vmatpush1.bf16.msra.mxu0 0
      %1957 = vmatprep.subr.bf16.mxu0 0
      %1958 = vmatpush1.bf16.msra.mxu0 0
      %1959 = vmatprep.subr.bf16.mxu0 0
      %1960 = vmatpush1.bf16.msra.mxu0 0
      %1961 = vmatprep.subr.bf16.mxu0 0
      %1962 = vmatpush1.bf16.msra.mxu0 0
      %1963 = vmatprep.subr.bf16.mxu0 0
      %1964 = vmatpush1.bf16.msra.mxu0 0
      %1965 = vmatprep.subr.bf16.mxu0 0
      %1966 = vmatpush1.bf16.msra.mxu0 0
      %1967 = vmatprep.subr.bf16.mxu0 0
      %1968 = vmatpush1.bf16.msra.mxu0 0
      %1969 = vmatprep.subr.bf16.mxu0 0
      %1970 = vmatpush1.bf16.msra.mxu0 0
      %1971 = vmatprep.subr.bf16.mxu0 0
      %1972 = vmatpush1.bf16.msra.mxu0 0
      %1973 = vmatprep.subr.bf16.mxu0 0
      %1974 = vmatpush1.bf16.msra.mxu0 0
      %1975 = vmatprep.mubr.bf16.mxu0 0
      %1976 = vmatmul.mubr.bf16.gmra.mrb[0].mxu0 %v1162
      %v1977 = vpop.f32.mrb[0].mxu0
      %v1978 = vadd.f32 %v372, %v1977
      %v1979 = vpop.f32.mrb[0].mxu0
      %v1980 = vadd.f32 %v372, %v1979
      %v1981 = vpop.f32.mrb[0].mxu0
      %v1982 = vpop.f32.mrb[0].mxu0
      %1983 = vdwg.mxu0
      %1984 = vmatprep.subr.bf16.mxu0 %v887
      %1985 = vmatpush1.bf16.msra.mxu0 %v886
      %1986 = vmatprep.subr.bf16.mxu0 0
      %1987 = vmatpush1.bf16.msra.mxu0 0
      %1988 = vmatprep.subr.bf16.mxu0 0
      %1989 = vmatpush1.bf16.msra.mxu0 0
      %1990 = vmatprep.subr.bf16.mxu0 0
      %1991 = vmatpush1.bf16.msra.mxu0 0
      %1992 = vmatprep.subr.bf16.mxu0 0
      %1993 = vmatpush1.bf16.msra.mxu0 0
      %1994 = vmatprep.subr.bf16.mxu0 0
      %1995 = vmatpush1.bf16.msra.mxu0 0
      %1996 = vmatprep.subr.bf16.mxu0 0
      %1997 = vmatpush1.bf16.msra.mxu0 0
      %1998 = vmatprep.subr.bf16.mxu0 0
      %1999 = vmatpush1.bf16.msra.mxu0 0
      %2000 = vmatprep.subr.bf16.mxu0 0
      %2001 = vmatpush1.bf16.msra.mxu0 0
      %2002 = vmatprep.subr.bf16.mxu0 0
      %2003 = vmatpush1.bf16.msra.mxu0 0
      %2004 = vmatprep.subr.bf16.mxu0 0
      %2005 = vmatpush1.bf16.msra.mxu0 0
      %2006 = vmatprep.subr.bf16.mxu0 0
      %2007 = vmatpush1.bf16.msra.mxu0 0
      %2008 = vmatprep.subr.bf16.mxu0 0
      %2009 = vmatpush1.bf16.msra.mxu0 0
      %2010 = vmatprep.subr.bf16.mxu0 0
      %2011 = vmatpush1.bf16.msra.mxu0 0
      %2012 = vmatprep.subr.bf16.mxu0 0
      %2013 = vmatpush1.bf16.msra.mxu0 0
      %2014 = vmatprep.subr.bf16.mxu0 0
      %2015 = vmatpush1.bf16.msra.mxu0 0
      %2016 = vmatprep.mubr.bf16.mxu0 0
      %2017 = vmatmul.mubr.bf16.gmra.mrb[0].mxu0 %v1162
      %v2018 = vpop.f32.mrb[0].mxu0
      %v2019 = vadd.f32 %v372, %v2018
      %v2020 = vpop.f32.mrb[0].mxu0
      %v2021 = vadd.f32 %v372, %v2020
      %v2022 = vpop.f32.mrb[0].mxu0
      %v2023 = vpop.f32.mrb[0].mxu0
      %2024 = vdwg.mxu0
      %2025 = vmatprep.subr.bf16.mxu0 %v889
      %2026 = vmatpush1.bf16.msra.mxu0 %v888
      %2027 = vmatprep.subr.bf16.mxu0 0
      %2028 = vmatpush1.bf16.msra.mxu0 0
      %2029 = vmatprep.subr.bf16.mxu0 0
      %2030 = vmatpush1.bf16.msra.mxu0 0
      %2031 = vmatprep.subr.bf16.mxu0 0
      %2032 = vmatpush1.bf16.msra.mxu0 0
      %2033 = vmatprep.subr.bf16.mxu0 0
      %2034 = vmatpush1.bf16.msra.mxu0 0
      %2035 = vmatprep.subr.bf16.mxu0 0
      %2036 = vmatpush1.bf16.msra.mxu0 0
      %2037 = vmatprep.subr.bf16.mxu0 0
      %2038 = vmatpush1.bf16.msra.mxu0 0
      %2039 = vmatprep.subr.bf16.mxu0 0
      %2040 = vmatpush1.bf16.msra.mxu0 0
      %2041 = vmatprep.subr.bf16.mxu0 0
      %2042 = vmatpush1.bf16.msra.mxu0 0
      %2043 = vmatprep.subr.bf16.mxu0 0
      %2044 = vmatpush1.bf16.msra.mxu0 0
      %2045 = vmatprep.subr.bf16.mxu0 0
      %2046 = vmatpush1.bf16.msra.mxu0 0
      %2047 = vmatprep.subr.bf16.mxu0 0
      %2048 = vmatpush1.bf16.msra.mxu0 0
      %2049 = vmatprep.subr.bf16.mxu0 0
      %2050 = vmatpush1.bf16.msra.mxu0 0
      %2051 = vmatprep.subr.bf16.mxu0 0
      %2052 = vmatpush1.bf16.msra.mxu0 0
      %2053 = vmatprep.subr.bf16.mxu0 0
      %2054 = vmatpush1.bf16.msra.mxu0 0
      %2055 = vmatprep.subr.bf16.mxu0 0
      %2056 = vmatpush1.bf16.msra.mxu0 0
      %2057 = vmatprep.mubr.bf16.mxu0 0
      %2058 = vmatmul.mubr.bf16.gmra.mrb[0].mxu0 %v1162
      %v2059 = vpop.f32.mrb[0].mxu0
      %v2060 = vadd.f32 %v372, %v2059
      %v2061 = vpop.f32.mrb[0].mxu0
      %v2062 = vadd.f32 %v372, %v2061
      %v2063 = vpop.f32.mrb[0].mxu0
      %v2064 = vpop.f32.mrb[0].mxu0
      %2065 = vdwg.mxu0
      %2066 = vmatprep.subr.bf16.mxu0 %v891
      %2067 = vmatpush1.bf16.msra.mxu0 %v890
      %2068 = vmatprep.subr.bf16.mxu0 0
      %2069 = vmatpush1.bf16.msra.mxu0 0
      %2070 = vmatprep.subr.bf16.mxu0 0
      %2071 = vmatpush1.bf16.msra.mxu0 0
      %2072 = vmatprep.subr.bf16.mxu0 0
      %2073 = vmatpush1.bf16.msra.mxu0 0
      %2074 = vmatprep.subr.bf16.mxu0 0
      %2075 = vmatpush1.bf16.msra.mxu0 0
      %2076 = vmatprep.subr.bf16.mxu0 0
      %2077 = vmatpush1.bf16.msra.mxu0 0
      %2078 = vmatprep.subr.bf16.mxu0 0
      %2079 = vmatpush1.bf16.msra.mxu0 0
      %2080 = vmatprep.subr.bf16.mxu0 0
      %2081 = vmatpush1.bf16.msra.mxu0 0
      %2082 = vmatprep.subr.bf16.mxu0 0
      %2083 = vmatpush1.bf16.msra.mxu0 0
      %2084 = vmatprep.subr.bf16.mxu0 0
      %2085 = vmatpush1.bf16.msra.mxu0 0
      %2086 = vmatprep.subr.bf16.mxu0 0
      %2087 = vmatpush1.bf16.msra.mxu0 0
      %2088 = vmatprep.subr.bf16.mxu0 0
      %2089 = vmatpush1.bf16.msra.mxu0 0
      %2090 = vmatprep.subr.bf16.mxu0 0
      %2091 = vmatpush1.bf16.msra.mxu0 0
      %2092 = vmatprep.subr.bf16.mxu0 0
      %2093 = vmatpush1.bf16.msra.mxu0 0
      %2094 = vmatprep.subr.bf16.mxu0 0
      %2095 = vmatpush1.bf16.msra.mxu0 0
      %2096 = vmatprep.subr.bf16.mxu0 0
      %2097 = vmatpush1.bf16.msra.mxu0 0
      %2098 = vmatprep.mubr.bf16.mxu0 0
      %2099 = vmatmul.mubr.bf16.gmra.mrb[0].mxu0 %v1162
      %v2100 = vpop.f32.mrb[0].mxu0
      %v2101 = vadd.f32 %v372, %v2100
      %v2102 = vpop.f32.mrb[0].mxu0
      %v2103 = vadd.f32 %v372, %v2102
      %v2104 = vpop.f32.mrb[0].mxu0
      %v2105 = vpop.f32.mrb[0].mxu0
      %2106 = vdwg.mxu0
      %2107 = vmatprep.subr.bf16.mxu0 %v893
      %2108 = vmatpush1.bf16.msra.mxu0 %v892
      %2109 = vmatprep.subr.bf16.mxu0 0
      %2110 = vmatpush1.bf16.msra.mxu0 0
      %2111 = vmatprep.subr.bf16.mxu0 0
      %2112 = vmatpush1.bf16.msra.mxu0 0
      %2113 = vmatprep.subr.bf16.mxu0 0
      %2114 = vmatpush1.bf16.msra.mxu0 0
      %2115 = vmatprep.subr.bf16.mxu0 0
      %2116 = vmatpush1.bf16.msra.mxu0 0
      %2117 = vmatprep.subr.bf16.mxu0 0
      %2118 = vmatpush1.bf16.msra.mxu0 0
      %2119 = vmatprep.subr.bf16.mxu0 0
      %2120 = vmatpush1.bf16.msra.mxu0 0
      %2121 = vmatprep.subr.bf16.mxu0 0
      %2122 = vmatpush1.bf16.msra.mxu0 0
      %2123 = vmatprep.subr.bf16.mxu0 0
      %2124 = vmatpush1.bf16.msra.mxu0 0
      %2125 = vmatprep.subr.bf16.mxu0 0
      %2126 = vmatpush1.bf16.msra.mxu0 0
      %2127 = vmatprep.subr.bf16.mxu0 0
      %2128 = vmatpush1.bf16.msra.mxu0 0
      %2129 = vmatprep.subr.bf16.mxu0 0
      %2130 = vmatpush1.bf16.msra.mxu0 0
      %2131 = vmatprep.subr.bf16.mxu0 0
      %2132 = vmatpush1.bf16.msra.mxu0 0
      %2133 = vmatprep.subr.bf16.mxu0 0
      %2134 = vmatpush1.bf16.msra.mxu0 0
      %2135 = vmatprep.subr.bf16.mxu0 0
      %2136 = vmatpush1.bf16.msra.mxu0 0
      %2137 = vmatprep.subr.bf16.mxu0 0
      %2138 = vmatpush1.bf16.msra.mxu0 0
      %2139 = vmatprep.mubr.bf16.mxu0 0
      %2140 = vmatmul.mubr.bf16.gmra.mrb[0].mxu0 %v1162
      %v2141 = vpop.f32.mrb[0].mxu0
      %v2142 = vadd.f32 %v372, %v2141
      %v2143 = vpop.f32.mrb[0].mxu0
      %v2144 = vadd.f32 %v372, %v2143
      %v2145 = vpop.f32.mrb[0].mxu0
      %v2146 = vpop.f32.mrb[0].mxu0
      %2147 = vdwg.mxu0
      %2148 = vmatprep.subr.bf16.mxu0 %v895
      %2149 = vmatpush1.bf16.msra.mxu0 %v894
      %2150 = vmatprep.subr.bf16.mxu0 0
      %2151 = vmatpush1.bf16.msra.mxu0 0
      %2152 = vmatprep.subr.bf16.mxu0 0
      %2153 = vmatpush1.bf16.msra.mxu0 0
      %2154 = vmatprep.subr.bf16.mxu0 0
      %2155 = vmatpush1.bf16.msra.mxu0 0
      %2156 = vmatprep.subr.bf16.mxu0 0
      %2157 = vmatpush1.bf16.msra.mxu0 0
      %2158 = vmatprep.subr.bf16.mxu0 0
      %2159 = vmatpush1.bf16.msra.mxu0 0
      %2160 = vmatprep.subr.bf16.mxu0 0
      %2161 = vmatpush1.bf16.msra.mxu0 0
      %2162 = vmatprep.subr.bf16.mxu0 0
      %2163 = vmatpush1.bf16.msra.mxu0 0
      %2164 = vmatprep.subr.bf16.mxu0 0
      %2165 = vmatpush1.bf16.msra.mxu0 0
      %2166 = vmatprep.subr.bf16.mxu0 0
      %2167 = vmatpush1.bf16.msra.mxu0 0
      %2168 = vmatprep.subr.bf16.mxu0 0
      %2169 = vmatpush1.bf16.msra.mxu0 0
      %2170 = vmatprep.subr.bf16.mxu0 0
      %2171 = vmatpush1.bf16.msra.mxu0 0
      %2172 = vmatprep.subr.bf16.mxu0 0
      %2173 = vmatpush1.bf16.msra.mxu0 0
      %2174 = vmatprep.subr.bf16.mxu0 0
      %2175 = vmatpush1.bf16.msra.mxu0 0
      %2176 = vmatprep.subr.bf16.mxu0 0
      %2177 = vmatpush1.bf16.msra.mxu0 0
      %2178 = vmatprep.subr.bf16.mxu0 0
      %2179 = vmatpush1.bf16.msra.mxu0 0
      %2180 = vmatprep.mubr.bf16.mxu0 0
      %2181 = vmatmul.mubr.bf16.gmra.mrb[0].mxu0 %v1162
      %v2182 = vpop.f32.mrb[0].mxu0
      %v2183 = vadd.f32 %v372, %v2182
      %v2184 = vpop.f32.mrb[0].mxu0
      %v2185 = vadd.f32 %v372, %v2184
      %v2186 = vpop.f32.mrb[0].mxu0
      %v2187 = vpop.f32.mrb[0].mxu0
      %2188 = vdwg.mxu0
      %2189 = vmatprep.subr.bf16.mxu0 %v897
      %2190 = vmatpush1.bf16.msra.mxu0 %v896
      %2191 = vmatprep.subr.bf16.mxu0 0
      %2192 = vmatpush1.bf16.msra.mxu0 0
      %2193 = vmatprep.subr.bf16.mxu0 0
      %2194 = vmatpush1.bf16.msra.mxu0 0
      %2195 = vmatprep.subr.bf16.mxu0 0
      %2196 = vmatpush1.bf16.msra.mxu0 0
      %2197 = vmatprep.subr.bf16.mxu0 0
      %2198 = vmatpush1.bf16.msra.mxu0 0
      %2199 = vmatprep.subr.bf16.mxu0 0
      %2200 = vmatpush1.bf16.msra.mxu0 0
      %2201 = vmatprep.subr.bf16.mxu0 0
      %2202 = vmatpush1.bf16.msra.mxu0 0
      %2203 = vmatprep.subr.bf16.mxu0 0
      %2204 = vmatpush1.bf16.msra.mxu0 0
      %2205 = vmatprep.subr.bf16.mxu0 0
      %2206 = vmatpush1.bf16.msra.mxu0 0
      %2207 = vmatprep.subr.bf16.mxu0 0
      %2208 = vmatpush1.bf16.msra.mxu0 0
      %2209 = vmatprep.subr.bf16.mxu0 0
      %2210 = vmatpush1.bf16.msra.mxu0 0
      %2211 = vmatprep.subr.bf16.mxu0 0
      %2212 = vmatpush1.bf16.msra.mxu0 0
      %2213 = vmatprep.subr.bf16.mxu0 0
      %2214 = vmatpush1.bf16.msra.mxu0 0
      %2215 = vmatprep.subr.bf16.mxu0 0
      %2216 = vmatpush1.bf16.msra.mxu0 0
      %2217 = vmatprep.subr.bf16.mxu0 0
      %2218 = vmatpush1.bf16.msra.mxu0 0
      %2219 = vmatprep.subr.bf16.mxu0 0
      %2220 = vmatpush1.bf16.msra.mxu0 0
      %2221 = vmatprep.mubr.bf16.mxu0 0
      %2222 = vmatmul.mubr.bf16.gmra.mrb[0].mxu0 %v1162
      %v2223 = vpop.f32.mrb[0].mxu0
      %v2224 = vadd.f32 %v372, %v2223
      %v2225 = vpop.f32.mrb[0].mxu0
      %v2226 = vadd.f32 %v372, %v2225
      %v2227 = vpop.f32.mrb[0].mxu0
      %v2228 = vpop.f32.mrb[0].mxu0
      %2229 = vdwg.mxu0
      %2230 = vmatprep.subr.bf16.mxu0 %v899
      %2231 = vmatpush1.bf16.msra.mxu0 %v898
      %2232 = vmatprep.subr.bf16.mxu0 0
      %2233 = vmatpush1.bf16.msra.mxu0 0
      %2234 = vmatprep.subr.bf16.mxu0 0
      %2235 = vmatpush1.bf16.msra.mxu0 0
      %2236 = vmatprep.subr.bf16.mxu0 0
      %2237 = vmatpush1.bf16.msra.mxu0 0
      %2238 = vmatprep.subr.bf16.mxu0 0
      %2239 = vmatpush1.bf16.msra.mxu0 0
      %2240 = vmatprep.subr.bf16.mxu0 0
      %2241 = vmatpush1.bf16.msra.mxu0 0
      %2242 = vmatprep.subr.bf16.mxu0 0
      %2243 = vmatpush1.bf16.msra.mxu0 0
      %2244 = vmatprep.subr.bf16.mxu0 0
      %2245 = vmatpush1.bf16.msra.mxu0 0
      %2246 = vmatprep.subr.bf16.mxu0 0
      %2247 = vmatpush1.bf16.msra.mxu0 0
      %2248 = vmatprep.subr.bf16.mxu0 0
      %2249 = vmatpush1.bf16.msra.mxu0 0
      %2250 = vmatprep.subr.bf16.mxu0 0
      %2251 = vmatpush1.bf16.msra.mxu0 0
      %2252 = vmatprep.subr.bf16.mxu0 0
      %2253 = vmatpush1.bf16.msra.mxu0 0
      %2254 = vmatprep.subr.bf16.mxu0 0
      %2255 = vmatpush1.bf16.msra.mxu0 0
      %2256 = vmatprep.subr.bf16.mxu0 0
      %2257 = vmatpush1.bf16.msra.mxu0 0
      %2258 = vmatprep.subr.bf16.mxu0 0
      %2259 = vmatpush1.bf16.msra.mxu0 0
      %2260 = vmatprep.subr.bf16.mxu0 0
      %2261 = vmatpush1.bf16.msra.mxu0 0
      %2262 = vmatprep.mubr.bf16.mxu0 0
      %2263 = vmatmul.mubr.bf16.gmra.mrb[0].mxu0 %v1162
      %v2264 = vpop.f32.mrb[0].mxu0
      %v2265 = vadd.f32 %v372, %v2264
      %v2266 = vpop.f32.mrb[0].mxu0
      %v2267 = vadd.f32 %v372, %v2266
      %v2268 = vpop.f32.mrb[0].mxu0
      %v2269 = vpop.f32.mrb[0].mxu0
      %2270 = vdwg.mxu0
      %2271 = vmatprep.subr.bf16.mxu0 %v901
      %2272 = vmatpush1.bf16.msra.mxu0 %v900
      %2273 = vmatprep.subr.bf16.mxu0 0
      %2274 = vmatpush1.bf16.msra.mxu0 0
      %2275 = vmatprep.subr.bf16.mxu0 0
      %2276 = vmatpush1.bf16.msra.mxu0 0
      %2277 = vmatprep.subr.bf16.mxu0 0
      %2278 = vmatpush1.bf16.msra.mxu0 0
      %2279 = vmatprep.subr.bf16.mxu0 0
      %2280 = vmatpush1.bf16.msra.mxu0 0
      %2281 = vmatprep.subr.bf16.mxu0 0
      %2282 = vmatpush1.bf16.msra.mxu0 0
      %2283 = vmatprep.subr.bf16.mxu0 0
      %2284 = vmatpush1.bf16.msra.mxu0 0
      %2285 = vmatprep.subr.bf16.mxu0 0
      %2286 = vmatpush1.bf16.msra.mxu0 0
      %2287 = vmatprep.subr.bf16.mxu0 0
      %2288 = vmatpush1.bf16.msra.mxu0 0
      %2289 = vmatprep.subr.bf16.mxu0 0
      %2290 = vmatpush1.bf16.msra.mxu0 0
      %2291 = vmatprep.subr.bf16.mxu0 0
      %2292 = vmatpush1.bf16.msra.mxu0 0
      %2293 = vmatprep.subr.bf16.mxu0 0
      %2294 = vmatpush1.bf16.msra.mxu0 0
      %2295 = vmatprep.subr.bf16.mxu0 0
      %2296 = vmatpush1.bf16.msra.mxu0 0
      %2297 = vmatprep.subr.bf16.mxu0 0
      %2298 = vmatpush1.bf16.msra.mxu0 0
      %2299 = vmatprep.subr.bf16.mxu0 0
      %2300 = vmatpush1.bf16.msra.mxu0 0
      %2301 = vmatprep.subr.bf16.mxu0 0
      %2302 = vmatpush1.bf16.msra.mxu0 0
      %2303 = vmatprep.mubr.bf16.mxu0 0
      %2304 = vmatmul.mubr.bf16.gmra.mrb[0].mxu0 %v1162
      %v2305 = vpop.f32.mrb[0].mxu0
      %v2306 = vadd.f32 %v372, %v2305
      %v2307 = vpop.f32.mrb[0].mxu0
      %v2308 = vadd.f32 %v372, %v2307
      %v2309 = vpop.f32.mrb[0].mxu0
      %v2310 = vpop.f32.mrb[0].mxu0
      %2311 = vdwg.mxu0
      %2312 = vmatprep.subr.bf16.mxu0 %v903
      %2313 = vmatpush1.bf16.msra.mxu0 %v902
      %2314 = vmatprep.subr.bf16.mxu0 0
      %2315 = vmatpush1.bf16.msra.mxu0 0
      %2316 = vmatprep.subr.bf16.mxu0 0
      %2317 = vmatpush1.bf16.msra.mxu0 0
      %2318 = vmatprep.subr.bf16.mxu0 0
      %2319 = vmatpush1.bf16.msra.mxu0 0
      %2320 = vmatprep.subr.bf16.mxu0 0
      %2321 = vmatpush1.bf16.msra.mxu0 0
      %2322 = vmatprep.subr.bf16.mxu0 0
      %2323 = vmatpush1.bf16.msra.mxu0 0
      %2324 = vmatprep.subr.bf16.mxu0 0
      %2325 = vmatpush1.bf16.msra.mxu0 0
      %2326 = vmatprep.subr.bf16.mxu0 0
      %2327 = vmatpush1.bf16.msra.mxu0 0
      %2328 = vmatprep.subr.bf16.mxu0 0
      %2329 = vmatpush1.bf16.msra.mxu0 0
      %2330 = vmatprep.subr.bf16.mxu0 0
      %2331 = vmatpush1.bf16.msra.mxu0 0
      %2332 = vmatprep.subr.bf16.mxu0 0
      %2333 = vmatpush1.bf16.msra.mxu0 0
      %2334 = vmatprep.subr.bf16.mxu0 0
      %2335 = vmatpush1.bf16.msra.mxu0 0
      %2336 = vmatprep.subr.bf16.mxu0 0
      %2337 = vmatpush1.bf16.msra.mxu0 0
      %2338 = vmatprep.subr.bf16.mxu0 0
      %2339 = vmatpush1.bf16.msra.mxu0 0
      %2340 = vmatprep.subr.bf16.mxu0 0
      %2341 = vmatpush1.bf16.msra.mxu0 0
      %2342 = vmatprep.subr.bf16.mxu0 0
      %2343 = vmatpush1.bf16.msra.mxu0 0
      %2344 = vmatprep.mubr.bf16.mxu0 0
      %2345 = vmatmul.mubr.bf16.gmra.mrb[0].mxu0 %v1162
      %v2346 = vpop.f32.mrb[0].mxu0
      %v2347 = vadd.f32 %v372, %v2346
      %v2348 = vpop.f32.mrb[0].mxu0
      %v2349 = vadd.f32 %v372, %v2348
      %v2350 = vpop.f32.mrb[0].mxu0
      %v2351 = vpop.f32.mrb[0].mxu0
      %2352 = vdwg.mxu0
      %2353 = vmatprep.subr.bf16.mxu0 %v905
      %2354 = vmatpush1.bf16.msra.mxu0 %v904
      %2355 = vmatprep.subr.bf16.mxu0 0
      %2356 = vmatpush1.bf16.msra.mxu0 0
      %2357 = vmatprep.subr.bf16.mxu0 0
      %2358 = vmatpush1.bf16.msra.mxu0 0
      %2359 = vmatprep.subr.bf16.mxu0 0
      %2360 = vmatpush1.bf16.msra.mxu0 0
      %2361 = vmatprep.subr.bf16.mxu0 0
      %2362 = vmatpush1.bf16.msra.mxu0 0
      %2363 = vmatprep.subr.bf16.mxu0 0
      %2364 = vmatpush1.bf16.msra.mxu0 0
      %2365 = vmatprep.subr.bf16.mxu0 0
      %2366 = vmatpush1.bf16.msra.mxu0 0
      %2367 = vmatprep.subr.bf16.mxu0 0
      %2368 = vmatpush1.bf16.msra.mxu0 0
      %2369 = vmatprep.subr.bf16.mxu0 0
      %2370 = vmatpush1.bf16.msra.mxu0 0
      %2371 = vmatprep.subr.bf16.mxu0 0
      %2372 = vmatpush1.bf16.msra.mxu0 0
      %2373 = vmatprep.subr.bf16.mxu0 0
      %2374 = vmatpush1.bf16.msra.mxu0 0
      %2375 = vmatprep.subr.bf16.mxu0 0
      %2376 = vmatpush1.bf16.msra.mxu0 0
      %2377 = vmatprep.subr.bf16.mxu0 0
      %2378 = vmatpush1.bf16.msra.mxu0 0
      %2379 = vmatprep.subr.bf16.mxu0 0
      %2380 = vmatpush1.bf16.msra.mxu0 0
      %2381 = vmatprep.subr.bf16.mxu0 0
      %2382 = vmatpush1.bf16.msra.mxu0 0
      %2383 = vmatprep.subr.bf16.mxu0 0
      %2384 = vmatpush1.bf16.msra.mxu0 0
      %2385 = vmatprep.mubr.bf16.mxu0 0
      %2386 = vmatmul.mubr.bf16.gmra.mrb[0].mxu0 %v1162
      %v2387 = vpop.f32.mrb[0].mxu0
      %v2388 = vadd.f32 %v372, %v2387
      %v2389 = vpop.f32.mrb[0].mxu0
      %v2390 = vadd.f32 %v372, %v2389
      %v2391 = vpop.f32.mrb[0].mxu0
      %v2392 = vpop.f32.mrb[0].mxu0
      %2393 = vdwg.mxu0
      %2394 = vmatprep.subr.bf16.mxu0 %v907
      %2395 = vmatpush1.bf16.msra.mxu0 %v906
      %2396 = vmatprep.subr.bf16.mxu0 0
      %2397 = vmatpush1.bf16.msra.mxu0 0
      %2398 = vmatprep.subr.bf16.mxu0 0
      %2399 = vmatpush1.bf16.msra.mxu0 0
      %2400 = vmatprep.subr.bf16.mxu0 0
      %2401 = vmatpush1.bf16.msra.mxu0 0
      %2402 = vmatprep.subr.bf16.mxu0 0
      %2403 = vmatpush1.bf16.msra.mxu0 0
      %2404 = vmatprep.subr.bf16.mxu0 0
      %2405 = vmatpush1.bf16.msra.mxu0 0
      %2406 = vmatprep.subr.bf16.mxu0 0
      %2407 = vmatpush1.bf16.msra.mxu0 0
      %2408 = vmatprep.subr.bf16.mxu0 0
      %2409 = vmatpush1.bf16.msra.mxu0 0
      %2410 = vmatprep.subr.bf16.mxu0 0
      %2411 = vmatpush1.bf16.msra.mxu0 0
      %2412 = vmatprep.subr.bf16.mxu0 0
      %2413 = vmatpush1.bf16.msra.mxu0 0
      %2414 = vmatprep.subr.bf16.mxu0 0
      %2415 = vmatpush1.bf16.msra.mxu0 0
      %2416 = vmatprep.subr.bf16.mxu0 0
      %2417 = vmatpush1.bf16.msra.mxu0 0
      %2418 = vmatprep.subr.bf16.mxu0 0
      %2419 = vmatpush1.bf16.msra.mxu0 0
      %2420 = vmatprep.subr.bf16.mxu0 0
      %2421 = vmatpush1.bf16.msra.mxu0 0
      %2422 = vmatprep.subr.bf16.mxu0 0
      %2423 = vmatpush1.bf16.msra.mxu0 0
      %2424 = vmatprep.subr.bf16.mxu0 0
      %2425 = vmatpush1.bf16.msra.mxu0 0
      %2426 = vmatprep.mubr.bf16.mxu0 0
      %2427 = vmatmul.mubr.bf16.gmra.mrb[0].mxu0 %v1162
      %v2428 = vpop.f32.mrb[0].mxu0
      %v2429 = vadd.f32 %v372, %v2428
      %v2430 = vpop.f32.mrb[0].mxu0
      %v2431 = vadd.f32 %v372, %v2430
      %v2432 = vpop.f32.mrb[0].mxu0
      %v2433 = vpop.f32.mrb[0].mxu0
      %2434 = vdwg.mxu0
      %2435 = vmatprep.subr.bf16.mxu0 %v909
      %2436 = vmatpush1.bf16.msra.mxu0 %v908
      %2437 = vmatprep.subr.bf16.mxu0 0
      %2438 = vmatpush1.bf16.msra.mxu0 0
      %2439 = vmatprep.subr.bf16.mxu0 0
      %2440 = vmatpush1.bf16.msra.mxu0 0
      %2441 = vmatprep.subr.bf16.mxu0 0
      %2442 = vmatpush1.bf16.msra.mxu0 0
      %2443 = vmatprep.subr.bf16.mxu0 0
      %2444 = vmatpush1.bf16.msra.mxu0 0
      %2445 = vmatprep.subr.bf16.mxu0 0
      %2446 = vmatpush1.bf16.msra.mxu0 0
      %2447 = vmatprep.subr.bf16.mxu0 0
      %2448 = vmatpush1.bf16.msra.mxu0 0
      %2449 = vmatprep.subr.bf16.mxu0 0
      %2450 = vmatpush1.bf16.msra.mxu0 0
      %2451 = vmatprep.subr.bf16.mxu0 0
      %2452 = vmatpush1.bf16.msra.mxu0 0
      %2453 = vmatprep.subr.bf16.mxu0 0
      %2454 = vmatpush1.bf16.msra.mxu0 0
      %2455 = vmatprep.subr.bf16.mxu0 0
      %2456 = vmatpush1.bf16.msra.mxu0 0
      %2457 = vmatprep.subr.bf16.mxu0 0
      %2458 = vmatpush1.bf16.msra.mxu0 0
      %2459 = vmatprep.subr.bf16.mxu0 0
      %2460 = vmatpush1.bf16.msra.mxu0 0
      %2461 = vmatprep.subr.bf16.mxu0 0
      %2462 = vmatpush1.bf16.msra.mxu0 0
      %2463 = vmatprep.subr.bf16.mxu0 0
      %2464 = vmatpush1.bf16.msra.mxu0 0
      %2465 = vmatprep.subr.bf16.mxu0 0
      %2466 = vmatpush1.bf16.msra.mxu0 0
      %2467 = vmatprep.mubr.bf16.mxu0 0
      %2468 = vmatmul.mubr.bf16.gmra.mrb[0].mxu0 %v1162
      %v2469 = vpop.f32.mrb[0].mxu0
      %v2470 = vadd.f32 %v372, %v2469
      %v2471 = vpop.f32.mrb[0].mxu0
      %v2472 = vadd.f32 %v372, %v2471
      %v2473 = vpop.f32.mrb[0].mxu0
      %v2474 = vpop.f32.mrb[0].mxu0
      %2475 = vdwg.mxu0
      %2476 = vmatprep.subr.bf16.mxu0 %v911
      %2477 = vmatpush1.bf16.msra.mxu0 %v910
      %2478 = vmatprep.subr.bf16.mxu0 0
      %2479 = vmatpush1.bf16.msra.mxu0 0
      %2480 = vmatprep.subr.bf16.mxu0 0
      %2481 = vmatpush1.bf16.msra.mxu0 0
      %2482 = vmatprep.subr.bf16.mxu0 0
      %2483 = vmatpush1.bf16.msra.mxu0 0
      %2484 = vmatprep.subr.bf16.mxu0 0
      %2485 = vmatpush1.bf16.msra.mxu0 0
      %2486 = vmatprep.subr.bf16.mxu0 0
      %2487 = vmatpush1.bf16.msra.mxu0 0
      %2488 = vmatprep.subr.bf16.mxu0 0
      %2489 = vmatpush1.bf16.msra.mxu0 0
      %2490 = vmatprep.subr.bf16.mxu0 0
      %2491 = vmatpush1.bf16.msra.mxu0 0
      %2492 = vmatprep.subr.bf16.mxu0 0
      %2493 = vmatpush1.bf16.msra.mxu0 0
      %2494 = vmatprep.subr.bf16.mxu0 0
      %2495 = vmatpush1.bf16.msra.mxu0 0
      %2496 = vmatprep.subr.bf16.mxu0 0
      %2497 = vmatpush1.bf16.msra.mxu0 0
      %2498 = vmatprep.subr.bf16.mxu0 0
      %2499 = vmatpush1.bf16.msra.mxu0 0
      %2500 = vmatprep.subr.bf16.mxu0 0
      %2501 = vmatpush1.bf16.msra.mxu0 0
      %2502 = vmatprep.subr.bf16.mxu0 0
      %2503 = vmatpush1.bf16.msra.mxu0 0
      %2504 = vmatprep.subr.bf16.mxu0 0
      %2505 = vmatpush1.bf16.msra.mxu0 0
      %2506 = vmatprep.subr.bf16.mxu0 0
      %2507 = vmatpush1.bf16.msra.mxu0 0
      %2508 = vmatprep.mubr.bf16.mxu0 0
      %2509 = vmatmul.mubr.bf16.gmra.mrb[0].mxu0 %v1162
      %v2510 = vpop.f32.mrb[0].mxu0
      %v2511 = vadd.f32 %v372, %v2510
      %v2512 = vpop.f32.mrb[0].mxu0
      %v2513 = vadd.f32 %v372, %v2512
      %v2514 = vpop.f32.mrb[0].mxu0
      %v2515 = vpop.f32.mrb[0].mxu0
      %2516 = vdwg.mxu0
      %2517 = vmatprep.subr.bf16.mxu0 %v913
      %2518 = vmatpush1.bf16.msra.mxu0 %v912
      %2519 = vmatprep.subr.bf16.mxu0 0
      %2520 = vmatpush1.bf16.msra.mxu0 0
      %2521 = vmatprep.subr.bf16.mxu0 0
      %2522 = vmatpush1.bf16.msra.mxu0 0
      %2523 = vmatprep.subr.bf16.mxu0 0
      %2524 = vmatpush1.bf16.msra.mxu0 0
      %2525 = vmatprep.subr.bf16.mxu0 0
      %2526 = vmatpush1.bf16.msra.mxu0 0
      %2527 = vmatprep.subr.bf16.mxu0 0
      %2528 = vmatpush1.bf16.msra.mxu0 0
      %2529 = vmatprep.subr.bf16.mxu0 0
      %2530 = vmatpush1.bf16.msra.mxu0 0
      %2531 = vmatprep.subr.bf16.mxu0 0
      %2532 = vmatpush1.bf16.msra.mxu0 0
      %2533 = vmatprep.subr.bf16.mxu0 0
      %2534 = vmatpush1.bf16.msra.mxu0 0
      %2535 = vmatprep.subr.bf16.mxu0 0
      %2536 = vmatpush1.bf16.msra.mxu0 0
      %2537 = vmatprep.subr.bf16.mxu0 0
      %2538 = vmatpush1.bf16.msra.mxu0 0
      %2539 = vmatprep.subr.bf16.mxu0 0
      %2540 = vmatpush1.bf16.msra.mxu0 0
      %2541 = vmatprep.subr.bf16.mxu0 0
      %2542 = vmatpush1.bf16.msra.mxu0 0
      %2543 = vmatprep.subr.bf16.mxu0 0
      %2544 = vmatpush1.bf16.msra.mxu0 0
      %2545 = vmatprep.subr.bf16.mxu0 0
      %2546 = vmatpush1.bf16.msra.mxu0 0
      %2547 = vmatprep.subr.bf16.mxu0 0
      %2548 = vmatpush1.bf16.msra.mxu0 0
      %2549 = vmatprep.mubr.bf16.mxu0 0
      %2550 = vmatmul.mubr.bf16.gmra.mrb[0].mxu0 %v1162
      %v2551 = vpop.f32.mrb[0].mxu0
      %v2552 = vadd.f32 %v372, %v2551
      %v2553 = vpop.f32.mrb[0].mxu0
      %v2554 = vadd.f32 %v372, %v2553
      %v2555 = vpop.f32.mrb[0].mxu0
      %v2556 = vpop.f32.mrb[0].mxu0
      %2557 = vdwg.mxu0
      %2558 = vmatprep.subr.bf16.mxu0 %v915
      %2559 = vmatpush1.bf16.msra.mxu0 %v914
      %2560 = vmatprep.subr.bf16.mxu0 0
      %2561 = vmatpush1.bf16.msra.mxu0 0
      %2562 = vmatprep.subr.bf16.mxu0 0
      %2563 = vmatpush1.bf16.msra.mxu0 0
      %2564 = vmatprep.subr.bf16.mxu0 0
      %2565 = vmatpush1.bf16.msra.mxu0 0
      %2566 = vmatprep.subr.bf16.mxu0 0
      %2567 = vmatpush1.bf16.msra.mxu0 0
      %2568 = vmatprep.subr.bf16.mxu0 0
      %2569 = vmatpush1.bf16.msra.mxu0 0
      %2570 = vmatprep.subr.bf16.mxu0 0
      %2571 = vmatpush1.bf16.msra.mxu0 0
      %2572 = vmatprep.subr.bf16.mxu0 0
      %2573 = vmatpush1.bf16.msra.mxu0 0
      %2574 = vmatprep.subr.bf16.mxu0 0
      %2575 = vmatpush1.bf16.msra.mxu0 0
      %2576 = vmatprep.subr.bf16.mxu0 0
      %2577 = vmatpush1.bf16.msra.mxu0 0
      %2578 = vmatprep.subr.bf16.mxu0 0
      %2579 = vmatpush1.bf16.msra.mxu0 0
      %2580 = vmatprep.subr.bf16.mxu0 0
      %2581 = vmatpush1.bf16.msra.mxu0 0
      %2582 = vmatprep.subr.bf16.mxu0 0
      %2583 = vmatpush1.bf16.msra.mxu0 0
      %2584 = vmatprep.subr.bf16.mxu0 0
      %2585 = vmatpush1.bf16.msra.mxu0 0
      %2586 = vmatprep.subr.bf16.mxu0 0
      %2587 = vmatpush1.bf16.msra.mxu0 0
      %2588 = vmatprep.subr.bf16.mxu0 0
      %2589 = vmatpush1.bf16.msra.mxu0 0
      %2590 = vmatprep.mubr.bf16.mxu0 0
      %2591 = vmatmul.mubr.bf16.gmra.mrb[0].mxu0 %v1162
      %v2592 = vpop.f32.mrb[0].mxu0
      %v2593 = vadd.f32 %v372, %v2592
      %v2594 = vpop.f32.mrb[0].mxu0
      %v2595 = vadd.f32 %v372, %v2594
      %v2596 = vpop.f32.mrb[0].mxu0
      %v2597 = vpop.f32.mrb[0].mxu0
      %2598 = vdwg.mxu0
      %2599 = vmatprep.subr.bf16.mxu0 %v917
      %2600 = vmatpush1.bf16.msra.mxu0 %v916
      %2601 = vmatprep.subr.bf16.mxu0 0
      %2602 = vmatpush1.bf16.msra.mxu0 0
      %2603 = vmatprep.subr.bf16.mxu0 0
      %2604 = vmatpush1.bf16.msra.mxu0 0
      %2605 = vmatprep.subr.bf16.mxu0 0
      %2606 = vmatpush1.bf16.msra.mxu0 0
      %2607 = vmatprep.subr.bf16.mxu0 0
      %2608 = vmatpush1.bf16.msra.mxu0 0
      %2609 = vmatprep.subr.bf16.mxu0 0
      %2610 = vmatpush1.bf16.msra.mxu0 0
      %2611 = vmatprep.subr.bf16.mxu0 0
      %2612 = vmatpush1.bf16.msra.mxu0 0
      %2613 = vmatprep.subr.bf16.mxu0 0
      %2614 = vmatpush1.bf16.msra.mxu0 0
      %2615 = vmatprep.subr.bf16.mxu0 0
      %2616 = vmatpush1.bf16.msra.mxu0 0
      %2617 = vmatprep.subr.bf16.mxu0 0
      %2618 = vmatpush1.bf16.msra.mxu0 0
      %2619 = vmatprep.subr.bf16.mxu0 0
      %2620 = vmatpush1.bf16.msra.mxu0 0
      %2621 = vmatprep.subr.bf16.mxu0 0
      %2622 = vmatpush1.bf16.msra.mxu0 0
      %2623 = vmatprep.subr.bf16.mxu0 0
      %2624 = vmatpush1.bf16.msra.mxu0 0
      %2625 = vmatprep.subr.bf16.mxu0 0
      %2626 = vmatpush1.bf16.msra.mxu0 0
      %2627 = vmatprep.subr.bf16.mxu0 0
      %2628 = vmatpush1.bf16.msra.mxu0 0
      %2629 = vmatprep.subr.bf16.mxu0 0
      %2630 = vmatpush1.bf16.msra.mxu0 0
      %2631 = vmatprep.mubr.bf16.mxu0 0
      %2632 = vmatmul.mubr.bf16.gmra.mrb[0].mxu0 %v1162
      %v2633 = vpop.f32.mrb[0].mxu0
      %v2634 = vadd.f32 %v372, %v2633
      %v2635 = vpop.f32.mrb[0].mxu0
      %v2636 = vadd.f32 %v372, %v2635
      %v2637 = vpop.f32.mrb[0].mxu0
      %v2638 = vpop.f32.mrb[0].mxu0
      %2639 = vdwg.mxu0
      %2640 = vmatprep.subr.bf16.mxu0 %v919
      %2641 = vmatpush1.bf16.msra.mxu0 %v918
      %2642 = vmatprep.subr.bf16.mxu0 0
      %2643 = vmatpush1.bf16.msra.mxu0 0
      %2644 = vmatprep.subr.bf16.mxu0 0
      %2645 = vmatpush1.bf16.msra.mxu0 0
      %2646 = vmatprep.subr.bf16.mxu0 0
      %2647 = vmatpush1.bf16.msra.mxu0 0
      %2648 = vmatprep.subr.bf16.mxu0 0
      %2649 = vmatpush1.bf16.msra.mxu0 0
      %2650 = vmatprep.subr.bf16.mxu0 0
      %2651 = vmatpush1.bf16.msra.mxu0 0
      %2652 = vmatprep.subr.bf16.mxu0 0
      %2653 = vmatpush1.bf16.msra.mxu0 0
      %2654 = vmatprep.subr.bf16.mxu0 0
      %2655 = vmatpush1.bf16.msra.mxu0 0
      %2656 = vmatprep.subr.bf16.mxu0 0
      %2657 = vmatpush1.bf16.msra.mxu0 0
      %2658 = vmatprep.subr.bf16.mxu0 0
      %2659 = vmatpush1.bf16.msra.mxu0 0
      %2660 = vmatprep.subr.bf16.mxu0 0
      %2661 = vmatpush1.bf16.msra.mxu0 0
      %2662 = vmatprep.subr.bf16.mxu0 0
      %2663 = vmatpush1.bf16.msra.mxu0 0
      %2664 = vmatprep.subr.bf16.mxu0 0
      %2665 = vmatpush1.bf16.msra.mxu0 0
      %2666 = vmatprep.subr.bf16.mxu0 0
      %2667 = vmatpush1.bf16.msra.mxu0 0
      %2668 = vmatprep.subr.bf16.mxu0 0
      %2669 = vmatpush1.bf16.msra.mxu0 0
      %2670 = vmatprep.subr.bf16.mxu0 0
      %2671 = vmatpush1.bf16.msra.mxu0 0
      %2672 = vmatprep.mubr.bf16.mxu0 0
      %2673 = vmatmul.mubr.bf16.gmra.mrb[0].mxu0 %v1162
      %v2674 = vpop.f32.mrb[0].mxu0
      %v2675 = vadd.f32 %v372, %v2674
      %v2676 = vpop.f32.mrb[0].mxu0
      %v2677 = vadd.f32 %v372, %v2676
      %v2678 = vpop.f32.mrb[0].mxu0
      %v2679 = vpop.f32.mrb[0].mxu0
      %2680 = vdwg.mxu0
      %2681 = vmatprep.subr.bf16.mxu0 %v921
      %2682 = vmatpush1.bf16.msra.mxu0 %v920
      %2683 = vmatprep.subr.bf16.mxu0 0
      %2684 = vmatpush1.bf16.msra.mxu0 0
      %2685 = vmatprep.subr.bf16.mxu0 0
      %2686 = vmatpush1.bf16.msra.mxu0 0
      %2687 = vmatprep.subr.bf16.mxu0 0
      %2688 = vmatpush1.bf16.msra.mxu0 0
      %2689 = vmatprep.subr.bf16.mxu0 0
      %2690 = vmatpush1.bf16.msra.mxu0 0
      %2691 = vmatprep.subr.bf16.mxu0 0
      %2692 = vmatpush1.bf16.msra.mxu0 0
      %2693 = vmatprep.subr.bf16.mxu0 0
      %2694 = vmatpush1.bf16.msra.mxu0 0
      %2695 = vmatprep.subr.bf16.mxu0 0
      %2696 = vmatpush1.bf16.msra.mxu0 0
      %2697 = vmatprep.subr.bf16.mxu0 0
      %2698 = vmatpush1.bf16.msra.mxu0 0
      %2699 = vmatprep.subr.bf16.mxu0 0
      %2700 = vmatpush1.bf16.msra.mxu0 0
      %2701 = vmatprep.subr.bf16.mxu0 0
      %2702 = vmatpush1.bf16.msra.mxu0 0
      %2703 = vmatprep.subr.bf16.mxu0 0
      %2704 = vmatpush1.bf16.msra.mxu0 0
      %2705 = vmatprep.subr.bf16.mxu0 0
      %2706 = vmatpush1.bf16.msra.mxu0 0
      %2707 = vmatprep.subr.bf16.mxu0 0
      %2708 = vmatpush1.bf16.msra.mxu0 0
      %2709 = vmatprep.subr.bf16.mxu0 0
      %2710 = vmatpush1.bf16.msra.mxu0 0
      %2711 = vmatprep.subr.bf16.mxu0 0
      %2712 = vmatpush1.bf16.msra.mxu0 0
      %2713 = vmatprep.mubr.bf16.mxu0 0
      %2714 = vmatmul.mubr.bf16.gmra.mrb[0].mxu0 %v1162
      %v2715 = vpop.f32.mrb[0].mxu0
      %v2716 = vadd.f32 %v372, %v2715
      %v2717 = vpop.f32.mrb[0].mxu0
      %v2718 = vadd.f32 %v372, %v2717
      %v2719 = vpop.f32.mrb[0].mxu0
      %v2720 = vpop.f32.mrb[0].mxu0
      %2721 = vdwg.mxu0
      %2722 = vmatprep.subr.bf16.mxu0 %v923
      %2723 = vmatpush1.bf16.msra.mxu0 %v922
      %2724 = vmatprep.subr.bf16.mxu0 0
      %2725 = vmatpush1.bf16.msra.mxu0 0
      %2726 = vmatprep.subr.bf16.mxu0 0
      %2727 = vmatpush1.bf16.msra.mxu0 0
      %2728 = vmatprep.subr.bf16.mxu0 0
      %2729 = vmatpush1.bf16.msra.mxu0 0
      %2730 = vmatprep.subr.bf16.mxu0 0
      %2731 = vmatpush1.bf16.msra.mxu0 0
      %2732 = vmatprep.subr.bf16.mxu0 0
      %2733 = vmatpush1.bf16.msra.mxu0 0
      %2734 = vmatprep.subr.bf16.mxu0 0
      %2735 = vmatpush1.bf16.msra.mxu0 0
      %2736 = vmatprep.subr.bf16.mxu0 0
      %2737 = vmatpush1.bf16.msra.mxu0 0
      %2738 = vmatprep.subr.bf16.mxu0 0
      %2739 = vmatpush1.bf16.msra.mxu0 0
      %2740 = vmatprep.subr.bf16.mxu0 0
      %2741 = vmatpush1.bf16.msra.mxu0 0
      %2742 = vmatprep.subr.bf16.mxu0 0
      %2743 = vmatpush1.bf16.msra.mxu0 0
      %2744 = vmatprep.subr.bf16.mxu0 0
      %2745 = vmatpush1.bf16.msra.mxu0 0
      %2746 = vmatprep.subr.bf16.mxu0 0
      %2747 = vmatpush1.bf16.msra.mxu0 0
      %2748 = vmatprep.subr.bf16.mxu0 0
      %2749 = vmatpush1.bf16.msra.mxu0 0
      %2750 = vmatprep.subr.bf16.mxu0 0
      %2751 = vmatpush1.bf16.msra.mxu0 0
      %2752 = vmatprep.subr.bf16.mxu0 0
      %2753 = vmatpush1.bf16.msra.mxu0 0
      %2754 = vmatprep.mubr.bf16.mxu0 0
      %2755 = vmatmul.mubr.bf16.gmra.mrb[0].mxu0 %v1162
      %v2756 = vpop.f32.mrb[0].mxu0
      %v2757 = vadd.f32 %v372, %v2756
      %v2758 = vpop.f32.mrb[0].mxu0
      %v2759 = vadd.f32 %v372, %v2758
      %v2760 = vpop.f32.mrb[0].mxu0
      %v2761 = vpop.f32.mrb[0].mxu0
      %2762 = vdwg.mxu0
      %2763 = vmatprep.subr.bf16.mxu0 %v925
      %2764 = vmatpush1.bf16.msra.mxu0 %v924
      %2765 = vmatprep.subr.bf16.mxu0 0
      %2766 = vmatpush1.bf16.msra.mxu0 0
      %2767 = vmatprep.subr.bf16.mxu0 0
      %2768 = vmatpush1.bf16.msra.mxu0 0
      %2769 = vmatprep.subr.bf16.mxu0 0
      %2770 = vmatpush1.bf16.msra.mxu0 0
      %2771 = vmatprep.subr.bf16.mxu0 0
      %2772 = vmatpush1.bf16.msra.mxu0 0
      %2773 = vmatprep.subr.bf16.mxu0 0
      %2774 = vmatpush1.bf16.msra.mxu0 0
      %2775 = vmatprep.subr.bf16.mxu0 0
      %2776 = vmatpush1.bf16.msra.mxu0 0
      %2777 = vmatprep.subr.bf16.mxu0 0
      %2778 = vmatpush1.bf16.msra.mxu0 0
      %2779 = vmatprep.subr.bf16.mxu0 0
      %2780 = vmatpush1.bf16.msra.mxu0 0
      %2781 = vmatprep.subr.bf16.mxu0 0
      %2782 = vmatpush1.bf16.msra.mxu0 0
      %2783 = vmatprep.subr.bf16.mxu0 0
      %2784 = vmatpush1.bf16.msra.mxu0 0
      %2785 = vmatprep.subr.bf16.mxu0 0
      %2786 = vmatpush1.bf16.msra.mxu0 0
      %2787 = vmatprep.subr.bf16.mxu0 0
      %2788 = vmatpush1.bf16.msra.mxu0 0
      %2789 = vmatprep.subr.bf16.mxu0 0
      %2790 = vmatpush1.bf16.msra.mxu0 0
      %2791 = vmatprep.subr.bf16.mxu0 0
      %2792 = vmatpush1.bf16.msra.mxu0 0
      %2793 = vmatprep.subr.bf16.mxu0 0
      %2794 = vmatpush1.bf16.msra.mxu0 0
      %2795 = vmatprep.mubr.bf16.mxu0 0
      %2796 = vmatmul.mubr.bf16.gmra.mrb[0].mxu0 %v1162
      %v2797 = vpop.f32.mrb[0].mxu0
      %v2798 = vadd.f32 %v372, %v2797
      %v2799 = vpop.f32.mrb[0].mxu0
      %v2800 = vadd.f32 %v372, %v2799
      %v2801 = vpop.f32.mrb[0].mxu0
      %v2802 = vpop.f32.mrb[0].mxu0
      %2803 = vdwg.mxu0
      %2804 = vmatprep.subr.bf16.mxu0 %v927
      %2805 = vmatpush1.bf16.msra.mxu0 %v926
      %2806 = vmatprep.subr.bf16.mxu0 0
      %2807 = vmatpush1.bf16.msra.mxu0 0
      %2808 = vmatprep.subr.bf16.mxu0 0
      %2809 = vmatpush1.bf16.msra.mxu0 0
      %2810 = vmatprep.subr.bf16.mxu0 0
      %2811 = vmatpush1.bf16.msra.mxu0 0
      %2812 = vmatprep.subr.bf16.mxu0 0
      %2813 = vmatpush1.bf16.msra.mxu0 0
      %2814 = vmatprep.subr.bf16.mxu0 0
      %2815 = vmatpush1.bf16.msra.mxu0 0
      %2816 = vmatprep.subr.bf16.mxu0 0
      %2817 = vmatpush1.bf16.msra.mxu0 0
      %2818 = vmatprep.subr.bf16.mxu0 0
      %2819 = vmatpush1.bf16.msra.mxu0 0
      %2820 = vmatprep.subr.bf16.mxu0 0
      %2821 = vmatpush1.bf16.msra.mxu0 0
      %2822 = vmatprep.subr.bf16.mxu0 0
      %2823 = vmatpush1.bf16.msra.mxu0 0
      %2824 = vmatprep.subr.bf16.mxu0 0
      %2825 = vmatpush1.bf16.msra.mxu0 0
      %2826 = vmatprep.subr.bf16.mxu0 0
      %2827 = vmatpush1.bf16.msra.mxu0 0
      %2828 = vmatprep.subr.bf16.mxu0 0
      %2829 = vmatpush1.bf16.msra.mxu0 0
      %2830 = vmatprep.subr.bf16.mxu0 0
      %2831 = vmatpush1.bf16.msra.mxu0 0
      %2832 = vmatprep.subr.bf16.mxu0 0
      %2833 = vmatpush1.bf16.msra.mxu0 0
      %2834 = vmatprep.subr.bf16.mxu0 0
      %2835 = vmatpush1.bf16.msra.mxu0 0
      %2836 = vmatprep.mubr.bf16.mxu0 0
      %2837 = vmatmul.mubr.bf16.gmra.mrb[0].mxu0 %v1162
      %v2838 = vpop.f32.mrb[0].mxu0
      %v2839 = vadd.f32 %v372, %v2838
      %v2840 = vpop.f32.mrb[0].mxu0
      %v2841 = vadd.f32 %v372, %v2840
      %v2842 = vpop.f32.mrb[0].mxu0
      %v2843 = vpop.f32.mrb[0].mxu0
      %2844 = vdwg.mxu0
      %2845 = vmatprep.subr.bf16.mxu0 %v929
      %2846 = vmatpush1.bf16.msra.mxu0 %v928
      %2847 = vmatprep.subr.bf16.mxu0 0
      %2848 = vmatpush1.bf16.msra.mxu0 0
      %2849 = vmatprep.subr.bf16.mxu0 0
      %2850 = vmatpush1.bf16.msra.mxu0 0
      %2851 = vmatprep.subr.bf16.mxu0 0
      %2852 = vmatpush1.bf16.msra.mxu0 0
      %2853 = vmatprep.subr.bf16.mxu0 0
      %2854 = vmatpush1.bf16.msra.mxu0 0
      %2855 = vmatprep.subr.bf16.mxu0 0
      %2856 = vmatpush1.bf16.msra.mxu0 0
      %2857 = vmatprep.subr.bf16.mxu0 0
      %2858 = vmatpush1.bf16.msra.mxu0 0
      %2859 = vmatprep.subr.bf16.mxu0 0
      %2860 = vmatpush1.bf16.msra.mxu0 0
      %2861 = vmatprep.subr.bf16.mxu0 0
      %2862 = vmatpush1.bf16.msra.mxu0 0
      %2863 = vmatprep.subr.bf16.mxu0 0
      %2864 = vmatpush1.bf16.msra.mxu0 0
      %2865 = vmatprep.subr.bf16.mxu0 0
      %2866 = vmatpush1.bf16.msra.mxu0 0
      %2867 = vmatprep.subr.bf16.mxu0 0
      %2868 = vmatpush1.bf16.msra.mxu0 0
      %2869 = vmatprep.subr.bf16.mxu0 0
      %2870 = vmatpush1.bf16.msra.mxu0 0
      %2871 = vmatprep.subr.bf16.mxu0 0
      %2872 = vmatpush1.bf16.msra.mxu0 0
      %2873 = vmatprep.subr.bf16.mxu0 0
      %2874 = vmatpush1.bf16.msra.mxu0 0
      %2875 = vmatprep.subr.bf16.mxu0 0
      %2876 = vmatpush1.bf16.msra.mxu0 0
      %2877 = vmatprep.mubr.bf16.mxu0 0
      %2878 = vmatmul.mubr.bf16.gmra.mrb[0].mxu0 %v1162
      %v2879 = vpop.f32.mrb[0].mxu0
      %v2880 = vadd.f32 %v372, %v2879
      %v2881 = vpop.f32.mrb[0].mxu0
      %v2882 = vadd.f32 %v372, %v2881
      %v2883 = vpop.f32.mrb[0].mxu0
      %v2884 = vpop.f32.mrb[0].mxu0
      %2885 = vdwg.mxu0
      %2886 = vmatprep.subr.bf16.mxu0 %v931
      %2887 = vmatpush1.bf16.msra.mxu0 %v930
      %2888 = vmatprep.subr.bf16.mxu0 0
      %2889 = vmatpush1.bf16.msra.mxu0 0
      %2890 = vmatprep.subr.bf16.mxu0 0
      %2891 = vmatpush1.bf16.msra.mxu0 0
      %2892 = vmatprep.subr.bf16.mxu0 0
      %2893 = vmatpush1.bf16.msra.mxu0 0
      %2894 = vmatprep.subr.bf16.mxu0 0
      %2895 = vmatpush1.bf16.msra.mxu0 0
      %2896 = vmatprep.subr.bf16.mxu0 0
      %2897 = vmatpush1.bf16.msra.mxu0 0
      %2898 = vmatprep.subr.bf16.mxu0 0
      %2899 = vmatpush1.bf16.msra.mxu0 0
      %2900 = vmatprep.subr.bf16.mxu0 0
      %2901 = vmatpush1.bf16.msra.mxu0 0
      %2902 = vmatprep.subr.bf16.mxu0 0
      %2903 = vmatpush1.bf16.msra.mxu0 0
      %2904 = vmatprep.subr.bf16.mxu0 0
      %2905 = vmatpush1.bf16.msra.mxu0 0
      %2906 = vmatprep.subr.bf16.mxu0 0
      %2907 = vmatpush1.bf16.msra.mxu0 0
      %2908 = vmatprep.subr.bf16.mxu0 0
      %2909 = vmatpush1.bf16.msra.mxu0 0
      %2910 = vmatprep.subr.bf16.mxu0 0
      %2911 = vmatpush1.bf16.msra.mxu0 0
      %2912 = vmatprep.subr.bf16.mxu0 0
      %2913 = vmatpush1.bf16.msra.mxu0 0
      %2914 = vmatprep.subr.bf16.mxu0 0
      %2915 = vmatpush1.bf16.msra.mxu0 0
      %2916 = vmatprep.subr.bf16.mxu0 0
      %2917 = vmatpush1.bf16.msra.mxu0 0
      %2918 = vmatprep.mubr.bf16.mxu0 0
      %2919 = vmatmul.mubr.bf16.gmra.mrb[0].mxu0 %v1162
      %v2920 = vpop.f32.mrb[0].mxu0
      %v2921 = vadd.f32 %v372, %v2920
      %v2922 = vpop.f32.mrb[0].mxu0
      %v2923 = vadd.f32 %v372, %v2922
      %v2924 = vpop.f32.mrb[0].mxu0
      %v2925 = vpop.f32.mrb[0].mxu0
      %2926 = vdwg.mxu0
      %2927 = vmatprep.subr.bf16.mxu0 %v933
      %2928 = vmatpush1.bf16.msra.mxu0 %v932
      %2929 = vmatprep.subr.bf16.mxu0 0
      %2930 = vmatpush1.bf16.msra.mxu0 0
      %2931 = vmatprep.subr.bf16.mxu0 0
      %2932 = vmatpush1.bf16.msra.mxu0 0
      %2933 = vmatprep.subr.bf16.mxu0 0
      %2934 = vmatpush1.bf16.msra.mxu0 0
      %2935 = vmatprep.subr.bf16.mxu0 0
      %2936 = vmatpush1.bf16.msra.mxu0 0
      %2937 = vmatprep.subr.bf16.mxu0 0
      %2938 = vmatpush1.bf16.msra.mxu0 0
      %2939 = vmatprep.subr.bf16.mxu0 0
      %2940 = vmatpush1.bf16.msra.mxu0 0
      %2941 = vmatprep.subr.bf16.mxu0 0
      %2942 = vmatpush1.bf16.msra.mxu0 0
      %2943 = vmatprep.subr.bf16.mxu0 0
      %2944 = vmatpush1.bf16.msra.mxu0 0
      %2945 = vmatprep.subr.bf16.mxu0 0
      %2946 = vmatpush1.bf16.msra.mxu0 0
      %2947 = vmatprep.subr.bf16.mxu0 0
      %2948 = vmatpush1.bf16.msra.mxu0 0
      %2949 = vmatprep.subr.bf16.mxu0 0
      %2950 = vmatpush1.bf16.msra.mxu0 0
      %2951 = vmatprep.subr.bf16.mxu0 0
      %2952 = vmatpush1.bf16.msra.mxu0 0
      %2953 = vmatprep.subr.bf16.mxu0 0
      %2954 = vmatpush1.bf16.msra.mxu0 0
      %2955 = vmatprep.subr.bf16.mxu0 0
      %2956 = vmatpush1.bf16.msra.mxu0 0
      %2957 = vmatprep.subr.bf16.mxu0 0
      %2958 = vmatpush1.bf16.msra.mxu0 0
      %2959 = vmatprep.mubr.bf16.mxu0 0
      %2960 = vmatmul.mubr.bf16.gmra.mrb[0].mxu0 %v1162
      %v2961 = vpop.f32.mrb[0].mxu0
      %v2962 = vadd.f32 %v372, %v2961
      %v2963 = vpop.f32.mrb[0].mxu0
      %v2964 = vadd.f32 %v372, %v2963
      %v2965 = vpop.f32.mrb[0].mxu0
      %v2966 = vpop.f32.mrb[0].mxu0
      %2967 = vdwg.mxu0
      %2968 = vmatprep.subr.bf16.mxu0 %v935
      %2969 = vmatpush1.bf16.msra.mxu0 %v934
      %2970 = vmatprep.subr.bf16.mxu0 0
      %2971 = vmatpush1.bf16.msra.mxu0 0
      %2972 = vmatprep.subr.bf16.mxu0 0
      %2973 = vmatpush1.bf16.msra.mxu0 0
      %2974 = vmatprep.subr.bf16.mxu0 0
      %2975 = vmatpush1.bf16.msra.mxu0 0
      %2976 = vmatprep.subr.bf16.mxu0 0
      %2977 = vmatpush1.bf16.msra.mxu0 0
      %2978 = vmatprep.subr.bf16.mxu0 0
      %2979 = vmatpush1.bf16.msra.mxu0 0
      %2980 = vmatprep.subr.bf16.mxu0 0
      %2981 = vmatpush1.bf16.msra.mxu0 0
      %2982 = vmatprep.subr.bf16.mxu0 0
      %2983 = vmatpush1.bf16.msra.mxu0 0
      %2984 = vmatprep.subr.bf16.mxu0 0
      %2985 = vmatpush1.bf16.msra.mxu0 0
      %2986 = vmatprep.subr.bf16.mxu0 0
      %2987 = vmatpush1.bf16.msra.mxu0 0
      %2988 = vmatprep.subr.bf16.mxu0 0
      %2989 = vmatpush1.bf16.msra.mxu0 0
      %2990 = vmatprep.subr.bf16.mxu0 0
      %2991 = vmatpush1.bf16.msra.mxu0 0
      %2992 = vmatprep.subr.bf16.mxu0 0
      %2993 = vmatpush1.bf16.msra.mxu0 0
      %2994 = vmatprep.subr.bf16.mxu0 0
      %2995 = vmatpush1.bf16.msra.mxu0 0
      %2996 = vmatprep.subr.bf16.mxu0 0
      %2997 = vmatpush1.bf16.msra.mxu0 0
      %2998 = vmatprep.subr.bf16.mxu0 0
      %2999 = vmatpush1.bf16.msra.mxu0 0
      %3000 = vmatprep.mubr.bf16.mxu0 0
      %3001 = vmatmul.mubr.bf16.gmra.mrb[0].mxu0 %v1162
      %v3002 = vpop.f32.mrb[0].mxu0
      %v3003 = vadd.f32 %v372, %v3002
      %v3004 = vpop.f32.mrb[0].mxu0
      %v3005 = vadd.f32 %v372, %v3004
      %v3006 = vpop.f32.mrb[0].mxu0
      %v3007 = vpop.f32.mrb[0].mxu0
      %3008 = vdwg.mxu0
      %3009 = vmatprep.subr.bf16.mxu0 %v937
      %3010 = vmatpush1.bf16.msra.mxu0 %v936
      %3011 = vmatprep.subr.bf16.mxu0 0
      %3012 = vmatpush1.bf16.msra.mxu0 0
      %3013 = vmatprep.subr.bf16.mxu0 0
      %3014 = vmatpush1.bf16.msra.mxu0 0
      %3015 = vmatprep.subr.bf16.mxu0 0
      %3016 = vmatpush1.bf16.msra.mxu0 0
      %3017 = vmatprep.subr.bf16.mxu0 0
      %3018 = vmatpush1.bf16.msra.mxu0 0
      %3019 = vmatprep.subr.bf16.mxu0 0
      %3020 = vmatpush1.bf16.msra.mxu0 0
      %3021 = vmatprep.subr.bf16.mxu0 0
      %3022 = vmatpush1.bf16.msra.mxu0 0
      %3023 = vmatprep.subr.bf16.mxu0 0
      %3024 = vmatpush1.bf16.msra.mxu0 0
      %3025 = vmatprep.subr.bf16.mxu0 0
      %3026 = vmatpush1.bf16.msra.mxu0 0
      %3027 = vmatprep.subr.bf16.mxu0 0
      %3028 = vmatpush1.bf16.msra.mxu0 0
      %3029 = vmatprep.subr.bf16.mxu0 0
      %3030 = vmatpush1.bf16.msra.mxu0 0
      %3031 = vmatprep.subr.bf16.mxu0 0
      %3032 = vmatpush1.bf16.msra.mxu0 0
      %3033 = vmatprep.subr.bf16.mxu0 0
      %3034 = vmatpush1.bf16.msra.mxu0 0
      %3035 = vmatprep.subr.bf16.mxu0 0
      %3036 = vmatpush1.bf16.msra.mxu0 0
      %3037 = vmatprep.subr.bf16.mxu0 0
      %3038 = vmatpush1.bf16.msra.mxu0 0
      %3039 = vmatprep.subr.bf16.mxu0 0
      %3040 = vmatpush1.bf16.msra.mxu0 0
      %3041 = vmatprep.mubr.bf16.mxu0 0
      %3042 = vmatmul.mubr.bf16.gmra.mrb[0].mxu0 %v1162
      %v3043 = vpop.f32.mrb[0].mxu0
      %v3044 = vadd.f32 %v372, %v3043
      %v3045 = vpop.f32.mrb[0].mxu0
      %v3046 = vadd.f32 %v372, %v3045
      %v3047 = vpop.f32.mrb[0].mxu0
      %v3048 = vpop.f32.mrb[0].mxu0
      %3049 = vdwg.mxu0
      %3050 = vmatprep.subr.bf16.mxu0 %v939
      %3051 = vmatpush1.bf16.msra.mxu0 %v938
      %3052 = vmatprep.subr.bf16.mxu0 0
      %3053 = vmatpush1.bf16.msra.mxu0 0
      %3054 = vmatprep.subr.bf16.mxu0 0
      %3055 = vmatpush1.bf16.msra.mxu0 0
      %3056 = vmatprep.subr.bf16.mxu0 0
      %3057 = vmatpush1.bf16.msra.mxu0 0
      %3058 = vmatprep.subr.bf16.mxu0 0
      %3059 = vmatpush1.bf16.msra.mxu0 0
      %3060 = vmatprep.subr.bf16.mxu0 0
      %3061 = vmatpush1.bf16.msra.mxu0 0
      %3062 = vmatprep.subr.bf16.mxu0 0
      %3063 = vmatpush1.bf16.msra.mxu0 0
      %3064 = vmatprep.subr.bf16.mxu0 0
      %3065 = vmatpush1.bf16.msra.mxu0 0
      %3066 = vmatprep.subr.bf16.mxu0 0
      %3067 = vmatpush1.bf16.msra.mxu0 0
      %3068 = vmatprep.subr.bf16.mxu0 0
      %3069 = vmatpush1.bf16.msra.mxu0 0
      %3070 = vmatprep.subr.bf16.mxu0 0
      %3071 = vmatpush1.bf16.msra.mxu0 0
      %3072 = vmatprep.subr.bf16.mxu0 0
      %3073 = vmatpush1.bf16.msra.mxu0 0
      %3074 = vmatprep.subr.bf16.mxu0 0
      %3075 = vmatpush1.bf16.msra.mxu0 0
      %3076 = vmatprep.subr.bf16.mxu0 0
      %3077 = vmatpush1.bf16.msra.mxu0 0
      %3078 = vmatprep.subr.bf16.mxu0 0
      %3079 = vmatpush1.bf16.msra.mxu0 0
      %3080 = vmatprep.subr.bf16.mxu0 0
      %3081 = vmatpush1.bf16.msra.mxu0 0
      %3082 = vmatprep.mubr.bf16.mxu0 0
      %3083 = vmatmul.mubr.bf16.gmra.mrb[0].mxu0 %v1162
      %v3084 = vpop.f32.mrb[0].mxu0
      %v3085 = vadd.f32 %v372, %v3084
      %v3086 = vpop.f32.mrb[0].mxu0
      %v3087 = vadd.f32 %v372, %v3086
      %v3088 = vpop.f32.mrb[0].mxu0
      %v3089 = vpop.f32.mrb[0].mxu0
      %3090 = vdwg.mxu0
      %3091 = vmatprep.subr.bf16.mxu0 %v941
      %3092 = vmatpush1.bf16.msra.mxu0 %v940
      %3093 = vmatprep.subr.bf16.mxu0 0
      %3094 = vmatpush1.bf16.msra.mxu0 0
      %3095 = vmatprep.subr.bf16.mxu0 0
      %3096 = vmatpush1.bf16.msra.mxu0 0
      %3097 = vmatprep.subr.bf16.mxu0 0
      %3098 = vmatpush1.bf16.msra.mxu0 0
      %3099 = vmatprep.subr.bf16.mxu0 0
      %3100 = vmatpush1.bf16.msra.mxu0 0
      %3101 = vmatprep.subr.bf16.mxu0 0
      %3102 = vmatpush1.bf16.msra.mxu0 0
      %3103 = vmatprep.subr.bf16.mxu0 0
      %3104 = vmatpush1.bf16.msra.mxu0 0
      %3105 = vmatprep.subr.bf16.mxu0 0
      %3106 = vmatpush1.bf16.msra.mxu0 0
      %3107 = vmatprep.subr.bf16.mxu0 0
      %3108 = vmatpush1.bf16.msra.mxu0 0
      %3109 = vmatprep.subr.bf16.mxu0 0
      %3110 = vmatpush1.bf16.msra.mxu0 0
      %3111 = vmatprep.subr.bf16.mxu0 0
      %3112 = vmatpush1.bf16.msra.mxu0 0
      %3113 = vmatprep.subr.bf16.mxu0 0
      %3114 = vmatpush1.bf16.msra.mxu0 0
      %3115 = vmatprep.subr.bf16.mxu0 0
      %3116 = vmatpush1.bf16.msra.mxu0 0
      %3117 = vmatprep.subr.bf16.mxu0 0
      %3118 = vmatpush1.bf16.msra.mxu0 0
      %3119 = vmatprep.subr.bf16.mxu0 0
      %3120 = vmatpush1.bf16.msra.mxu0 0
      %3121 = vmatprep.subr.bf16.mxu0 0
      %3122 = vmatpush1.bf16.msra.mxu0 0
      %3123 = vmatprep.mubr.bf16.mxu0 0
      %3124 = vmatmul.mubr.bf16.gmra.mrb[0].mxu0 %v1162
      %v3125 = vpop.f32.mrb[0].mxu0
      %v3126 = vadd.f32 %v372, %v3125
      %v3127 = vpop.f32.mrb[0].mxu0
      %v3128 = vadd.f32 %v372, %v3127
      %v3129 = vpop.f32.mrb[0].mxu0
      %v3130 = vpop.f32.mrb[0].mxu0
      %3131 = vdwg.mxu0
      %3132 = vmatprep.subr.bf16.mxu0 %v943
      %3133 = vmatpush1.bf16.msra.mxu0 %v942
      %3134 = vmatprep.subr.bf16.mxu0 0
      %3135 = vmatpush1.bf16.msra.mxu0 0
      %3136 = vmatprep.subr.bf16.mxu0 0
      %3137 = vmatpush1.bf16.msra.mxu0 0
      %3138 = vmatprep.subr.bf16.mxu0 0
      %3139 = vmatpush1.bf16.msra.mxu0 0
      %3140 = vmatprep.subr.bf16.mxu0 0
      %3141 = vmatpush1.bf16.msra.mxu0 0
      %3142 = vmatprep.subr.bf16.mxu0 0
      %3143 = vmatpush1.bf16.msra.mxu0 0
      %3144 = vmatprep.subr.bf16.mxu0 0
      %3145 = vmatpush1.bf16.msra.mxu0 0
      %3146 = vmatprep.subr.bf16.mxu0 0
      %3147 = vmatpush1.bf16.msra.mxu0 0
      %3148 = vmatprep.subr.bf16.mxu0 0
      %3149 = vmatpush1.bf16.msra.mxu0 0
      %3150 = vmatprep.subr.bf16.mxu0 0
      %3151 = vmatpush1.bf16.msra.mxu0 0
      %3152 = vmatprep.subr.bf16.mxu0 0
      %3153 = vmatpush1.bf16.msra.mxu0 0
      %3154 = vmatprep.subr.bf16.mxu0 0
      %3155 = vmatpush1.bf16.msra.mxu0 0
      %3156 = vmatprep.subr.bf16.mxu0 0
      %3157 = vmatpush1.bf16.msra.mxu0 0
      %3158 = vmatprep.subr.bf16.mxu0 0
      %3159 = vmatpush1.bf16.msra.mxu0 0
      %3160 = vmatprep.subr.bf16.mxu0 0
      %3161 = vmatpush1.bf16.msra.mxu0 0
      %3162 = vmatprep.subr.bf16.mxu0 0
      %3163 = vmatpush1.bf16.msra.mxu0 0
      %3164 = vmatprep.mubr.bf16.mxu0 0
      %3165 = vmatmul.mubr.bf16.gmra.mrb[0].mxu0 %v1162
      %v3166 = vpop.f32.mrb[0].mxu0
      %v3167 = vadd.f32 %v372, %v3166
      %v3168 = vpop.f32.mrb[0].mxu0
      %v3169 = vadd.f32 %v372, %v3168
      %v3170 = vpop.f32.mrb[0].mxu0
      %v3171 = vpop.f32.mrb[0].mxu0
      %3172 = vdwg.mxu0
      %3173 = vmatprep.subr.bf16.mxu0 %v945
      %3174 = vmatpush1.bf16.msra.mxu0 %v944
      %3175 = vmatprep.subr.bf16.mxu0 0
      %3176 = vmatpush1.bf16.msra.mxu0 0
      %3177 = vmatprep.subr.bf16.mxu0 0
      %3178 = vmatpush1.bf16.msra.mxu0 0
      %3179 = vmatprep.subr.bf16.mxu0 0
      %3180 = vmatpush1.bf16.msra.mxu0 0
      %3181 = vmatprep.subr.bf16.mxu0 0
      %3182 = vmatpush1.bf16.msra.mxu0 0
      %3183 = vmatprep.subr.bf16.mxu0 0
      %3184 = vmatpush1.bf16.msra.mxu0 0
      %3185 = vmatprep.subr.bf16.mxu0 0
      %3186 = vmatpush1.bf16.msra.mxu0 0
      %3187 = vmatprep.subr.bf16.mxu0 0
      %3188 = vmatpush1.bf16.msra.mxu0 0
      %3189 = vmatprep.subr.bf16.mxu0 0
      %3190 = vmatpush1.bf16.msra.mxu0 0
      %3191 = vmatprep.subr.bf16.mxu0 0
      %3192 = vmatpush1.bf16.msra.mxu0 0
      %3193 = vmatprep.subr.bf16.mxu0 0
      %3194 = vmatpush1.bf16.msra.mxu0 0
      %3195 = vmatprep.subr.bf16.mxu0 0
      %3196 = vmatpush1.bf16.msra.mxu0 0
      %3197 = vmatprep.subr.bf16.mxu0 0
      %3198 = vmatpush1.bf16.msra.mxu0 0
      %3199 = vmatprep.subr.bf16.mxu0 0
      %3200 = vmatpush1.bf16.msra.mxu0 0
      %3201 = vmatprep.subr.bf16.mxu0 0
      %3202 = vmatpush1.bf16.msra.mxu0 0
      %3203 = vmatprep.subr.bf16.mxu0 0
      %3204 = vmatpush1.bf16.msra.mxu0 0
      %3205 = vmatprep.mubr.bf16.mxu0 0
      %3206 = vmatmul.mubr.bf16.gmra.mrb[0].mxu0 %v1162
      %v3207 = vpop.f32.mrb[0].mxu0
      %v3208 = vadd.f32 %v372, %v3207
      %v3209 = vpop.f32.mrb[0].mxu0
      %v3210 = vadd.f32 %v372, %v3209
      %v3211 = vpop.f32.mrb[0].mxu0
      %v3212 = vpop.f32.mrb[0].mxu0
      %3213 = vdwg.mxu0
      %3214 = vmatprep.subr.bf16.mxu0 %v947
      %3215 = vmatpush1.bf16.msra.mxu0 %v946
      %3216 = vmatprep.subr.bf16.mxu0 0
      %3217 = vmatpush1.bf16.msra.mxu0 0
      %3218 = vmatprep.subr.bf16.mxu0 0
      %3219 = vmatpush1.bf16.msra.mxu0 0
      %3220 = vmatprep.subr.bf16.mxu0 0
      %3221 = vmatpush1.bf16.msra.mxu0 0
      %3222 = vmatprep.subr.bf16.mxu0 0
      %3223 = vmatpush1.bf16.msra.mxu0 0
      %3224 = vmatprep.subr.bf16.mxu0 0
      %3225 = vmatpush1.bf16.msra.mxu0 0
      %3226 = vmatprep.subr.bf16.mxu0 0
      %3227 = vmatpush1.bf16.msra.mxu0 0
      %3228 = vmatprep.subr.bf16.mxu0 0
      %3229 = vmatpush1.bf16.msra.mxu0 0
      %3230 = vmatprep.subr.bf16.mxu0 0
      %3231 = vmatpush1.bf16.msra.mxu0 0
      %3232 = vmatprep.subr.bf16.mxu0 0
      %3233 = vmatpush1.bf16.msra.mxu0 0
      %3234 = vmatprep.subr.bf16.mxu0 0
      %3235 = vmatpush1.bf16.msra.mxu0 0
      %3236 = vmatprep.subr.bf16.mxu0 0
      %3237 = vmatpush1.bf16.msra.mxu0 0
      %3238 = vmatprep.subr.bf16.mxu0 0
      %3239 = vmatpush1.bf16.msra.mxu0 0
      %3240 = vmatprep.subr.bf16.mxu0 0
      %3241 = vmatpush1.bf16.msra.mxu0 0
      %3242 = vmatprep.subr.bf16.mxu0 0
      %3243 = vmatpush1.bf16.msra.mxu0 0
      %3244 = vmatprep.subr.bf16.mxu0 0
      %3245 = vmatpush1.bf16.msra.mxu0 0
      %3246 = vmatprep.mubr.bf16.mxu0 0
      %3247 = vmatmul.mubr.bf16.gmra.mrb[0].mxu0 %v1162
      %v3248 = vpop.f32.mrb[0].mxu0
      %v3249 = vadd.f32 %v372, %v3248
      %v3250 = vpop.f32.mrb[0].mxu0
      %v3251 = vadd.f32 %v372, %v3250
      %v3252 = vpop.f32.mrb[0].mxu0
      %v3253 = vpop.f32.mrb[0].mxu0
      %3254 = vdwg.mxu0
      %3255 = vmatprep.subr.bf16.mxu0 %v949
      %3256 = vmatpush1.bf16.msra.mxu0 %v948
      %3257 = vmatprep.subr.bf16.mxu0 0
      %3258 = vmatpush1.bf16.msra.mxu0 0
      %3259 = vmatprep.subr.bf16.mxu0 0
      %3260 = vmatpush1.bf16.msra.mxu0 0
      %3261 = vmatprep.subr.bf16.mxu0 0
      %3262 = vmatpush1.bf16.msra.mxu0 0
      %3263 = vmatprep.subr.bf16.mxu0 0
      %3264 = vmatpush1.bf16.msra.mxu0 0
      %3265 = vmatprep.subr.bf16.mxu0 0
      %3266 = vmatpush1.bf16.msra.mxu0 0
      %3267 = vmatprep.subr.bf16.mxu0 0
      %3268 = vmatpush1.bf16.msra.mxu0 0
      %3269 = vmatprep.subr.bf16.mxu0 0
      %3270 = vmatpush1.bf16.msra.mxu0 0
      %3271 = vmatprep.subr.bf16.mxu0 0
      %3272 = vmatpush1.bf16.msra.mxu0 0
      %3273 = vmatprep.subr.bf16.mxu0 0
      %3274 = vmatpush1.bf16.msra.mxu0 0
      %3275 = vmatprep.subr.bf16.mxu0 0
      %3276 = vmatpush1.bf16.msra.mxu0 0
      %3277 = vmatprep.subr.bf16.mxu0 0
      %3278 = vmatpush1.bf16.msra.mxu0 0
      %3279 = vmatprep.subr.bf16.mxu0 0
      %3280 = vmatpush1.bf16.msra.mxu0 0
      %3281 = vmatprep.subr.bf16.mxu0 0
      %3282 = vmatpush1.bf16.msra.mxu0 0
      %3283 = vmatprep.subr.bf16.mxu0 0
      %3284 = vmatpush1.bf16.msra.mxu0 0
      %3285 = vmatprep.subr.bf16.mxu0 0
      %3286 = vmatpush1.bf16.msra.mxu0 0
      %3287 = vmatprep.mubr.bf16.mxu0 0
      %3288 = vmatmul.mubr.bf16.gmra.mrb[0].mxu0 %v1162
      %v3289 = vpop.f32.mrb[0].mxu0
      %v3290 = vadd.f32 %v372, %v3289
      %v3291 = vpop.f32.mrb[0].mxu0
      %v3292 = vadd.f32 %v372, %v3291
      %v3293 = vpop.f32.mrb[0].mxu0
      %v3294 = vpop.f32.mrb[0].mxu0
      %3295 = vdwg.mxu0
      %3296 = vmatprep.subr.bf16.mxu0 %v951
      %3297 = vmatpush1.bf16.msra.mxu0 %v950
      %3298 = vmatprep.subr.bf16.mxu0 0
      %3299 = vmatpush1.bf16.msra.mxu0 0
      %3300 = vmatprep.subr.bf16.mxu0 0
      %3301 = vmatpush1.bf16.msra.mxu0 0
      %3302 = vmatprep.subr.bf16.mxu0 0
      %3303 = vmatpush1.bf16.msra.mxu0 0
      %3304 = vmatprep.subr.bf16.mxu0 0
      %3305 = vmatpush1.bf16.msra.mxu0 0
      %3306 = vmatprep.subr.bf16.mxu0 0
      %3307 = vmatpush1.bf16.msra.mxu0 0
      %3308 = vmatprep.subr.bf16.mxu0 0
      %3309 = vmatpush1.bf16.msra.mxu0 0
      %3310 = vmatprep.subr.bf16.mxu0 0
      %3311 = vmatpush1.bf16.msra.mxu0 0
      %3312 = vmatprep.subr.bf16.mxu0 0
      %3313 = vmatpush1.bf16.msra.mxu0 0
      %3314 = vmatprep.subr.bf16.mxu0 0
      %3315 = vmatpush1.bf16.msra.mxu0 0
      %3316 = vmatprep.subr.bf16.mxu0 0
      %3317 = vmatpush1.bf16.msra.mxu0 0
      %3318 = vmatprep.subr.bf16.mxu0 0
      %3319 = vmatpush1.bf16.msra.mxu0 0
      %3320 = vmatprep.subr.bf16.mxu0 0
      %3321 = vmatpush1.bf16.msra.mxu0 0
      %3322 = vmatprep.subr.bf16.mxu0 0
      %3323 = vmatpush1.bf16.msra.mxu0 0
      %3324 = vmatprep.subr.bf16.mxu0 0
      %3325 = vmatpush1.bf16.msra.mxu0 0
      %3326 = vmatprep.subr.bf16.mxu0 0
      %3327 = vmatpush1.bf16.msra.mxu0 0
      %3328 = vmatprep.mubr.bf16.mxu0 0
      %3329 = vmatmul.mubr.bf16.gmra.mrb[0].mxu0 %v1162
      %v3330 = vpop.f32.mrb[0].mxu0
      %v3331 = vadd.f32 %v372, %v3330
      %v3332 = vpop.f32.mrb[0].mxu0
      %v3333 = vadd.f32 %v372, %v3332
      %v3334 = vpop.f32.mrb[0].mxu0
      %v3335 = vpop.f32.mrb[0].mxu0
      %3336 = vdwg.mxu0
      %3337 = vmatprep.subr.bf16.mxu0 %v953
      %3338 = vmatpush1.bf16.msra.mxu0 %v952
      %3339 = vmatprep.subr.bf16.mxu0 0
      %3340 = vmatpush1.bf16.msra.mxu0 0
      %3341 = vmatprep.subr.bf16.mxu0 0
      %3342 = vmatpush1.bf16.msra.mxu0 0
      %3343 = vmatprep.subr.bf16.mxu0 0
      %3344 = vmatpush1.bf16.msra.mxu0 0
      %3345 = vmatprep.subr.bf16.mxu0 0
      %3346 = vmatpush1.bf16.msra.mxu0 0
      %3347 = vmatprep.subr.bf16.mxu0 0
      %3348 = vmatpush1.bf16.msra.mxu0 0
      %3349 = vmatprep.subr.bf16.mxu0 0
      %3350 = vmatpush1.bf16.msra.mxu0 0
      %3351 = vmatprep.subr.bf16.mxu0 0
      %3352 = vmatpush1.bf16.msra.mxu0 0
      %3353 = vmatprep.subr.bf16.mxu0 0
      %3354 = vmatpush1.bf16.msra.mxu0 0
      %3355 = vmatprep.subr.bf16.mxu0 0
      %3356 = vmatpush1.bf16.msra.mxu0 0
      %3357 = vmatprep.subr.bf16.mxu0 0
      %3358 = vmatpush1.bf16.msra.mxu0 0
      %3359 = vmatprep.subr.bf16.mxu0 0
      %3360 = vmatpush1.bf16.msra.mxu0 0
      %3361 = vmatprep.subr.bf16.mxu0 0
      %3362 = vmatpush1.bf16.msra.mxu0 0
      %3363 = vmatprep.subr.bf16.mxu0 0
      %3364 = vmatpush1.bf16.msra.mxu0 0
      %3365 = vmatprep.subr.bf16.mxu0 0
      %3366 = vmatpush1.bf16.msra.mxu0 0
      %3367 = vmatprep.subr.bf16.mxu0 0
      %3368 = vmatpush1.bf16.msra.mxu0 0
      %3369 = vmatprep.mubr.bf16.mxu0 0
      %3370 = vmatmul.mubr.bf16.gmra.mrb[0].mxu0 %v1162
      %v3371 = vpop.f32.mrb[0].mxu0
      %v3372 = vadd.f32 %v372, %v3371
      %v3373 = vpop.f32.mrb[0].mxu0
      %v3374 = vadd.f32 %v372, %v3373
      %v3375 = vpop.f32.mrb[0].mxu0
      %v3376 = vpop.f32.mrb[0].mxu0
      %3377 = vdwg.mxu0
      %3378 = vmatprep.subr.bf16.mxu0 %v955
      %3379 = vmatpush1.bf16.msra.mxu0 %v954
      %3380 = vmatprep.subr.bf16.mxu0 0
      %3381 = vmatpush1.bf16.msra.mxu0 0
      %3382 = vmatprep.subr.bf16.mxu0 0
      %3383 = vmatpush1.bf16.msra.mxu0 0
      %3384 = vmatprep.subr.bf16.mxu0 0
      %3385 = vmatpush1.bf16.msra.mxu0 0
      %3386 = vmatprep.subr.bf16.mxu0 0
      %3387 = vmatpush1.bf16.msra.mxu0 0
      %3388 = vmatprep.subr.bf16.mxu0 0
      %3389 = vmatpush1.bf16.msra.mxu0 0
      %3390 = vmatprep.subr.bf16.mxu0 0
      %3391 = vmatpush1.bf16.msra.mxu0 0
      %3392 = vmatprep.subr.bf16.mxu0 0
      %3393 = vmatpush1.bf16.msra.mxu0 0
      %3394 = vmatprep.subr.bf16.mxu0 0
      %3395 = vmatpush1.bf16.msra.mxu0 0
      %3396 = vmatprep.subr.bf16.mxu0 0
      %3397 = vmatpush1.bf16.msra.mxu0 0
      %3398 = vmatprep.subr.bf16.mxu0 0
      %3399 = vmatpush1.bf16.msra.mxu0 0
      %3400 = vmatprep.subr.bf16.mxu0 0
      %3401 = vmatpush1.bf16.msra.mxu0 0
      %3402 = vmatprep.subr.bf16.mxu0 0
      %3403 = vmatpush1.bf16.msra.mxu0 0
      %3404 = vmatprep.subr.bf16.mxu0 0
      %3405 = vmatpush1.bf16.msra.mxu0 0
      %3406 = vmatprep.subr.bf16.mxu0 0
      %3407 = vmatpush1.bf16.msra.mxu0 0
      %3408 = vmatprep.subr.bf16.mxu0 0
      %3409 = vmatpush1.bf16.msra.mxu0 0
      %3410 = vmatprep.mubr.bf16.mxu0 0
      %3411 = vmatmul.mubr.bf16.gmra.mrb[0].mxu0 %v1162
      %v3412 = vpop.f32.mrb[0].mxu0
      %v3413 = vadd.f32 %v372, %v3412
      %v3414 = vpop.f32.mrb[0].mxu0
      %v3415 = vadd.f32 %v372, %v3414
      %v3416 = vpop.f32.mrb[0].mxu0
      %v3417 = vpop.f32.mrb[0].mxu0
      %3418 = vdwg.mxu0
      %3419 = vmatprep.subr.bf16.mxu0 %v957
      %3420 = vmatpush1.bf16.msra.mxu0 %v956
      %3421 = vmatprep.subr.bf16.mxu0 0
      %3422 = vmatpush1.bf16.msra.mxu0 0
      %3423 = vmatprep.subr.bf16.mxu0 0
      %3424 = vmatpush1.bf16.msra.mxu0 0
      %3425 = vmatprep.subr.bf16.mxu0 0
      %3426 = vmatpush1.bf16.msra.mxu0 0
      %3427 = vmatprep.subr.bf16.mxu0 0
      %3428 = vmatpush1.bf16.msra.mxu0 0
      %3429 = vmatprep.subr.bf16.mxu0 0
      %3430 = vmatpush1.bf16.msra.mxu0 0
      %3431 = vmatprep.subr.bf16.mxu0 0
      %3432 = vmatpush1.bf16.msra.mxu0 0
      %3433 = vmatprep.subr.bf16.mxu0 0
      %3434 = vmatpush1.bf16.msra.mxu0 0
      %3435 = vmatprep.subr.bf16.mxu0 0
      %3436 = vmatpush1.bf16.msra.mxu0 0
      %3437 = vmatprep.subr.bf16.mxu0 0
      %3438 = vmatpush1.bf16.msra.mxu0 0
      %3439 = vmatprep.subr.bf16.mxu0 0
      %3440 = vmatpush1.bf16.msra.mxu0 0
      %3441 = vmatprep.subr.bf16.mxu0 0
      %3442 = vmatpush1.bf16.msra.mxu0 0
      %3443 = vmatprep.subr.bf16.mxu0 0
      %3444 = vmatpush1.bf16.msra.mxu0 0
      %3445 = vmatprep.subr.bf16.mxu0 0
      %3446 = vmatpush1.bf16.msra.mxu0 0
      %3447 = vmatprep.subr.bf16.mxu0 0
      %3448 = vmatpush1.bf16.msra.mxu0 0
      %3449 = vmatprep.subr.bf16.mxu0 0
      %3450 = vmatpush1.bf16.msra.mxu0 0
      %3451 = vmatprep.mubr.bf16.mxu0 0
      %3452 = vmatmul.mubr.bf16.gmra.mrb[0].mxu0 %v1162
      %v3453 = vpop.f32.mrb[0].mxu0
      %v3454 = vadd.f32 %v372, %v3453
      %v3455 = vpop.f32.mrb[0].mxu0
      %v3456 = vadd.f32 %v372, %v3455
      %v3457 = vpop.f32.mrb[0].mxu0
      %v3458 = vpop.f32.mrb[0].mxu0
      %3459 = vdwg.mxu0
      %3460 = vmatprep.subr.bf16.mxu0 %v959
      %3461 = vmatpush1.bf16.msra.mxu0 %v958
      %3462 = vmatprep.subr.bf16.mxu0 0
      %3463 = vmatpush1.bf16.msra.mxu0 0
      %3464 = vmatprep.subr.bf16.mxu0 0
      %3465 = vmatpush1.bf16.msra.mxu0 0
      %3466 = vmatprep.subr.bf16.mxu0 0
      %3467 = vmatpush1.bf16.msra.mxu0 0
      %3468 = vmatprep.subr.bf16.mxu0 0
      %3469 = vmatpush1.bf16.msra.mxu0 0
      %3470 = vmatprep.subr.bf16.mxu0 0
      %3471 = vmatpush1.bf16.msra.mxu0 0
      %3472 = vmatprep.subr.bf16.mxu0 0
      %3473 = vmatpush1.bf16.msra.mxu0 0
      %3474 = vmatprep.subr.bf16.mxu0 0
      %3475 = vmatpush1.bf16.msra.mxu0 0
      %3476 = vmatprep.subr.bf16.mxu0 0
      %3477 = vmatpush1.bf16.msra.mxu0 0
      %3478 = vmatprep.subr.bf16.mxu0 0
      %3479 = vmatpush1.bf16.msra.mxu0 0
      %3480 = vmatprep.subr.bf16.mxu0 0
      %3481 = vmatpush1.bf16.msra.mxu0 0
      %3482 = vmatprep.subr.bf16.mxu0 0
      %3483 = vmatpush1.bf16.msra.mxu0 0
      %3484 = vmatprep.subr.bf16.mxu0 0
      %3485 = vmatpush1.bf16.msra.mxu0 0
      %3486 = vmatprep.subr.bf16.mxu0 0
      %3487 = vmatpush1.bf16.msra.mxu0 0
      %3488 = vmatprep.subr.bf16.mxu0 0
      %3489 = vmatpush1.bf16.msra.mxu0 0
      %3490 = vmatprep.subr.bf16.mxu0 0
      %3491 = vmatpush1.bf16.msra.mxu0 0
      %3492 = vmatprep.mubr.bf16.mxu0 0
      %3493 = vmatmul.mubr.bf16.gmra.mrb[0].mxu0 %v1162
      %v3494 = vpop.f32.mrb[0].mxu0
      %v3495 = vadd.f32 %v372, %v3494
      %v3496 = vpop.f32.mrb[0].mxu0
      %v3497 = vadd.f32 %v372, %v3496
      %v3498 = vpop.f32.mrb[0].mxu0
      %v3499 = vpop.f32.mrb[0].mxu0
      %3500 = vdwg.mxu0
      %3501 = vmatprep.subr.bf16.mxu0 %v961
      %3502 = vmatpush1.bf16.msra.mxu0 %v960
      %3503 = vmatprep.subr.bf16.mxu0 0
      %3504 = vmatpush1.bf16.msra.mxu0 0
      %3505 = vmatprep.subr.bf16.mxu0 0
      %3506 = vmatpush1.bf16.msra.mxu0 0
      %3507 = vmatprep.subr.bf16.mxu0 0
      %3508 = vmatpush1.bf16.msra.mxu0 0
      %3509 = vmatprep.subr.bf16.mxu0 0
      %3510 = vmatpush1.bf16.msra.mxu0 0
      %3511 = vmatprep.subr.bf16.mxu0 0
      %3512 = vmatpush1.bf16.msra.mxu0 0
      %3513 = vmatprep.subr.bf16.mxu0 0
      %3514 = vmatpush1.bf16.msra.mxu0 0
      %3515 = vmatprep.subr.bf16.mxu0 0
      %3516 = vmatpush1.bf16.msra.mxu0 0
      %3517 = vmatprep.subr.bf16.mxu0 0
      %3518 = vmatpush1.bf16.msra.mxu0 0
      %3519 = vmatprep.subr.bf16.mxu0 0
      %3520 = vmatpush1.bf16.msra.mxu0 0
      %3521 = vmatprep.subr.bf16.mxu0 0
      %3522 = vmatpush1.bf16.msra.mxu0 0
      %3523 = vmatprep.subr.bf16.mxu0 0
      %3524 = vmatpush1.bf16.msra.mxu0 0
      %3525 = vmatprep.subr.bf16.mxu0 0
      %3526 = vmatpush1.bf16.msra.mxu0 0
      %3527 = vmatprep.subr.bf16.mxu0 0
      %3528 = vmatpush1.bf16.msra.mxu0 0
      %3529 = vmatprep.subr.bf16.mxu0 0
      %3530 = vmatpush1.bf16.msra.mxu0 0
      %3531 = vmatprep.subr.bf16.mxu0 0
      %3532 = vmatpush1.bf16.msra.mxu0 0
      %3533 = vmatprep.mubr.bf16.mxu0 0
      %3534 = vmatmul.mubr.bf16.gmra.mrb[0].mxu0 %v1162
      %v3535 = vpop.f32.mrb[0].mxu0
      %v3536 = vadd.f32 %v372, %v3535
      %v3537 = vpop.f32.mrb[0].mxu0
      %v3538 = vadd.f32 %v372, %v3537
      %v3539 = vpop.f32.mrb[0].mxu0
      %v3540 = vpop.f32.mrb[0].mxu0
      %3541 = vdwg.mxu0
      %3542 = vmatprep.subr.bf16.mxu0 %v963
      %3543 = vmatpush1.bf16.msra.mxu0 %v962
      %3544 = vmatprep.subr.bf16.mxu0 0
      %3545 = vmatpush1.bf16.msra.mxu0 0
      %3546 = vmatprep.subr.bf16.mxu0 0
      %3547 = vmatpush1.bf16.msra.mxu0 0
      %3548 = vmatprep.subr.bf16.mxu0 0
      %3549 = vmatpush1.bf16.msra.mxu0 0
      %3550 = vmatprep.subr.bf16.mxu0 0
      %3551 = vmatpush1.bf16.msra.mxu0 0
      %3552 = vmatprep.subr.bf16.mxu0 0
      %3553 = vmatpush1.bf16.msra.mxu0 0
      %3554 = vmatprep.subr.bf16.mxu0 0
      %3555 = vmatpush1.bf16.msra.mxu0 0
      %3556 = vmatprep.subr.bf16.mxu0 0
      %3557 = vmatpush1.bf16.msra.mxu0 0
      %3558 = vmatprep.subr.bf16.mxu0 0
      %3559 = vmatpush1.bf16.msra.mxu0 0
      %3560 = vmatprep.subr.bf16.mxu0 0
      %3561 = vmatpush1.bf16.msra.mxu0 0
      %3562 = vmatprep.subr.bf16.mxu0 0
      %3563 = vmatpush1.bf16.msra.mxu0 0
      %3564 = vmatprep.subr.bf16.mxu0 0
      %3565 = vmatpush1.bf16.msra.mxu0 0
      %3566 = vmatprep.subr.bf16.mxu0 0
      %3567 = vmatpush1.bf16.msra.mxu0 0
      %3568 = vmatprep.subr.bf16.mxu0 0
      %3569 = vmatpush1.bf16.msra.mxu0 0
      %3570 = vmatprep.subr.bf16.mxu0 0
      %3571 = vmatpush1.bf16.msra.mxu0 0
      %3572 = vmatprep.subr.bf16.mxu0 0
      %3573 = vmatpush1.bf16.msra.mxu0 0
      %3574 = vmatprep.mubr.bf16.mxu0 0
      %3575 = vmatmul.mubr.bf16.gmra.mrb[0].mxu0 %v1162
      %v3576 = vpop.f32.mrb[0].mxu0
      %v3577 = vadd.f32 %v372, %v3576
      %v3578 = vpop.f32.mrb[0].mxu0
      %v3579 = vadd.f32 %v372, %v3578
      %v3580 = vpop.f32.mrb[0].mxu0
      %v3581 = vpop.f32.mrb[0].mxu0
      %3582 = vdwg.mxu0
      %3583 = vmatprep.subr.bf16.mxu0 %v965
      %3584 = vmatpush1.bf16.msra.mxu0 %v964
      %3585 = vmatprep.subr.bf16.mxu0 0
      %3586 = vmatpush1.bf16.msra.mxu0 0
      %3587 = vmatprep.subr.bf16.mxu0 0
      %3588 = vmatpush1.bf16.msra.mxu0 0
      %3589 = vmatprep.subr.bf16.mxu0 0
      %3590 = vmatpush1.bf16.msra.mxu0 0
      %3591 = vmatprep.subr.bf16.mxu0 0
      %3592 = vmatpush1.bf16.msra.mxu0 0
      %3593 = vmatprep.subr.bf16.mxu0 0
      %3594 = vmatpush1.bf16.msra.mxu0 0
      %3595 = vmatprep.subr.bf16.mxu0 0
      %3596 = vmatpush1.bf16.msra.mxu0 0
      %3597 = vmatprep.subr.bf16.mxu0 0
      %3598 = vmatpush1.bf16.msra.mxu0 0
      %3599 = vmatprep.subr.bf16.mxu0 0
      %3600 = vmatpush1.bf16.msra.mxu0 0
      %3601 = vmatprep.subr.bf16.mxu0 0
      %3602 = vmatpush1.bf16.msra.mxu0 0
      %3603 = vmatprep.subr.bf16.mxu0 0
      %3604 = vmatpush1.bf16.msra.mxu0 0
      %3605 = vmatprep.subr.bf16.mxu0 0
      %3606 = vmatpush1.bf16.msra.mxu0 0
      %3607 = vmatprep.subr.bf16.mxu0 0
      %3608 = vmatpush1.bf16.msra.mxu0 0
      %3609 = vmatprep.subr.bf16.mxu0 0
      %3610 = vmatpush1.bf16.msra.mxu0 0
      %3611 = vmatprep.subr.bf16.mxu0 0
      %3612 = vmatpush1.bf16.msra.mxu0 0
      %3613 = vmatprep.subr.bf16.mxu0 0
      %3614 = vmatpush1.bf16.msra.mxu0 0
      %3615 = vmatprep.mubr.bf16.mxu0 0
      %3616 = vmatmul.mubr.bf16.gmra.mrb[0].mxu0 %v1162
      %v3617 = vpop.f32.mrb[0].mxu0
      %v3618 = vadd.f32 %v372, %v3617
      %v3619 = vpop.f32.mrb[0].mxu0
      %v3620 = vadd.f32 %v372, %v3619
      %v3621 = vpop.f32.mrb[0].mxu0
      %v3622 = vpop.f32.mrb[0].mxu0
      %3623 = vdwg.mxu0
      %3624 = vmatprep.subr.bf16.mxu0 %v967
      %3625 = vmatpush1.bf16.msra.mxu0 %v966
      %3626 = vmatprep.subr.bf16.mxu0 0
      %3627 = vmatpush1.bf16.msra.mxu0 0
      %3628 = vmatprep.subr.bf16.mxu0 0
      %3629 = vmatpush1.bf16.msra.mxu0 0
      %3630 = vmatprep.subr.bf16.mxu0 0
      %3631 = vmatpush1.bf16.msra.mxu0 0
      %3632 = vmatprep.subr.bf16.mxu0 0
      %3633 = vmatpush1.bf16.msra.mxu0 0
      %3634 = vmatprep.subr.bf16.mxu0 0
      %3635 = vmatpush1.bf16.msra.mxu0 0
      %3636 = vmatprep.subr.bf16.mxu0 0
      %3637 = vmatpush1.bf16.msra.mxu0 0
      %3638 = vmatprep.subr.bf16.mxu0 0
      %3639 = vmatpush1.bf16.msra.mxu0 0
      %3640 = vmatprep.subr.bf16.mxu0 0
      %3641 = vmatpush1.bf16.msra.mxu0 0
      %3642 = vmatprep.subr.bf16.mxu0 0
      %3643 = vmatpush1.bf16.msra.mxu0 0
      %3644 = vmatprep.subr.bf16.mxu0 0
      %3645 = vmatpush1.bf16.msra.mxu0 0
      %3646 = vmatprep.subr.bf16.mxu0 0
      %3647 = vmatpush1.bf16.msra.mxu0 0
      %3648 = vmatprep.subr.bf16.mxu0 0
      %3649 = vmatpush1.bf16.msra.mxu0 0
      %3650 = vmatprep.subr.bf16.mxu0 0
      %3651 = vmatpush1.bf16.msra.mxu0 0
      %3652 = vmatprep.subr.bf16.mxu0 0
      %3653 = vmatpush1.bf16.msra.mxu0 0
      %3654 = vmatprep.subr.bf16.mxu0 0
      %3655 = vmatpush1.bf16.msra.mxu0 0
      %3656 = vmatprep.mubr.bf16.mxu0 0
      %3657 = vmatmul.mubr.bf16.gmra.mrb[0].mxu0 %v1162
      %v3658 = vpop.f32.mrb[0].mxu0
      %v3659 = vadd.f32 %v372, %v3658
      %v3660 = vpop.f32.mrb[0].mxu0
      %v3661 = vadd.f32 %v372, %v3660
      %v3662 = vpop.f32.mrb[0].mxu0
      %v3663 = vpop.f32.mrb[0].mxu0
      %3664 = vdwg.mxu0
      %3665 = vmatprep.subr.bf16.mxu0 %v969
      %3666 = vmatpush1.bf16.msra.mxu0 %v968
      %3667 = vmatprep.subr.bf16.mxu0 0
      %3668 = vmatpush1.bf16.msra.mxu0 0
      %3669 = vmatprep.subr.bf16.mxu0 0
      %3670 = vmatpush1.bf16.msra.mxu0 0
      %3671 = vmatprep.subr.bf16.mxu0 0
      %3672 = vmatpush1.bf16.msra.mxu0 0
      %3673 = vmatprep.subr.bf16.mxu0 0
      %3674 = vmatpush1.bf16.msra.mxu0 0
      %3675 = vmatprep.subr.bf16.mxu0 0
      %3676 = vmatpush1.bf16.msra.mxu0 0
      %3677 = vmatprep.subr.bf16.mxu0 0
      %3678 = vmatpush1.bf16.msra.mxu0 0
      %3679 = vmatprep.subr.bf16.mxu0 0
      %3680 = vmatpush1.bf16.msra.mxu0 0
      %3681 = vmatprep.subr.bf16.mxu0 0
      %3682 = vmatpush1.bf16.msra.mxu0 0
      %3683 = vmatprep.subr.bf16.mxu0 0
      %3684 = vmatpush1.bf16.msra.mxu0 0
      %3685 = vmatprep.subr.bf16.mxu0 0
      %3686 = vmatpush1.bf16.msra.mxu0 0
      %3687 = vmatprep.subr.bf16.mxu0 0
      %3688 = vmatpush1.bf16.msra.mxu0 0
      %3689 = vmatprep.subr.bf16.mxu0 0
      %3690 = vmatpush1.bf16.msra.mxu0 0
      %3691 = vmatprep.subr.bf16.mxu0 0
      %3692 = vmatpush1.bf16.msra.mxu0 0
      %3693 = vmatprep.subr.bf16.mxu0 0
      %3694 = vmatpush1.bf16.msra.mxu0 0
      %3695 = vmatprep.subr.bf16.mxu0 0
      %3696 = vmatpush1.bf16.msra.mxu0 0
      %3697 = vmatprep.mubr.bf16.mxu0 0
      %3698 = vmatmul.mubr.bf16.gmra.mrb[0].mxu0 %v1162
      %v3699 = vpop.f32.mrb[0].mxu0
      %v3700 = vadd.f32 %v372, %v3699
      %v3701 = vpop.f32.mrb[0].mxu0
      %v3702 = vadd.f32 %v372, %v3701
      %v3703 = vpop.f32.mrb[0].mxu0
      %v3704 = vpop.f32.mrb[0].mxu0
      %3705 = vdwg.mxu0
      %3706 = vmatprep.subr.bf16.mxu0 %v971
      %3707 = vmatpush1.bf16.msra.mxu0 %v970
      %3708 = vmatprep.subr.bf16.mxu0 0
      %3709 = vmatpush1.bf16.msra.mxu0 0
      %3710 = vmatprep.subr.bf16.mxu0 0
      %3711 = vmatpush1.bf16.msra.mxu0 0
      %3712 = vmatprep.subr.bf16.mxu0 0
      %3713 = vmatpush1.bf16.msra.mxu0 0
      %3714 = vmatprep.subr.bf16.mxu0 0
      %3715 = vmatpush1.bf16.msra.mxu0 0
      %3716 = vmatprep.subr.bf16.mxu0 0
      %3717 = vmatpush1.bf16.msra.mxu0 0
      %3718 = vmatprep.subr.bf16.mxu0 0
      %3719 = vmatpush1.bf16.msra.mxu0 0
      %3720 = vmatprep.subr.bf16.mxu0 0
      %3721 = vmatpush1.bf16.msra.mxu0 0
      %3722 = vmatprep.subr.bf16.mxu0 0
      %3723 = vmatpush1.bf16.msra.mxu0 0
      %3724 = vmatprep.subr.bf16.mxu0 0
      %3725 = vmatpush1.bf16.msra.mxu0 0
      %3726 = vmatprep.subr.bf16.mxu0 0
      %3727 = vmatpush1.bf16.msra.mxu0 0
      %3728 = vmatprep.subr.bf16.mxu0 0
      %3729 = vmatpush1.bf16.msra.mxu0 0
      %3730 = vmatprep.subr.bf16.mxu0 0
      %3731 = vmatpush1.bf16.msra.mxu0 0
      %3732 = vmatprep.subr.bf16.mxu0 0
      %3733 = vmatpush1.bf16.msra.mxu0 0
      %3734 = vmatprep.subr.bf16.mxu0 0
      %3735 = vmatpush1.bf16.msra.mxu0 0
      %3736 = vmatprep.subr.bf16.mxu0 0
      %3737 = vmatpush1.bf16.msra.mxu0 0
      %3738 = vmatprep.mubr.bf16.mxu0 0
      %3739 = vmatmul.mubr.bf16.gmra.mrb[0].mxu0 %v1162
      %v3740 = vpop.f32.mrb[0].mxu0
      %v3741 = vadd.f32 %v372, %v3740
      %v3742 = vpop.f32.mrb[0].mxu0
      %v3743 = vadd.f32 %v372, %v3742
      %v3744 = vpop.f32.mrb[0].mxu0
      %v3745 = vpop.f32.mrb[0].mxu0
      %3746 = vdwg.mxu0
      %3747 = vmatprep.subr.bf16.mxu0 %v973
      %3748 = vmatpush1.bf16.msra.mxu0 %v972
      %3749 = vmatprep.subr.bf16.mxu0 0
      %3750 = vmatpush1.bf16.msra.mxu0 0
      %3751 = vmatprep.subr.bf16.mxu0 0
      %3752 = vmatpush1.bf16.msra.mxu0 0
      %3753 = vmatprep.subr.bf16.mxu0 0
      %3754 = vmatpush1.bf16.msra.mxu0 0
      %3755 = vmatprep.subr.bf16.mxu0 0
      %3756 = vmatpush1.bf16.msra.mxu0 0
      %3757 = vmatprep.subr.bf16.mxu0 0
      %3758 = vmatpush1.bf16.msra.mxu0 0
      %3759 = vmatprep.subr.bf16.mxu0 0
      %3760 = vmatpush1.bf16.msra.mxu0 0
      %3761 = vmatprep.subr.bf16.mxu0 0
      %3762 = vmatpush1.bf16.msra.mxu0 0
      %3763 = vmatprep.subr.bf16.mxu0 0
      %3764 = vmatpush1.bf16.msra.mxu0 0
      %3765 = vmatprep.subr.bf16.mxu0 0
      %3766 = vmatpush1.bf16.msra.mxu0 0
      %3767 = vmatprep.subr.bf16.mxu0 0
      %3768 = vmatpush1.bf16.msra.mxu0 0
      %3769 = vmatprep.subr.bf16.mxu0 0
      %3770 = vmatpush1.bf16.msra.mxu0 0
      %3771 = vmatprep.subr.bf16.mxu0 0
      %3772 = vmatpush1.bf16.msra.mxu0 0
      %3773 = vmatprep.subr.bf16.mxu0 0
      %3774 = vmatpush1.bf16.msra.mxu0 0
      %3775 = vmatprep.subr.bf16.mxu0 0
      %3776 = vmatpush1.bf16.msra.mxu0 0
      %3777 = vmatprep.subr.bf16.mxu0 0
      %3778 = vmatpush1.bf16.msra.mxu0 0
      %3779 = vmatprep.mubr.bf16.mxu0 0
      %3780 = vmatmul.mubr.bf16.gmra.mrb[0].mxu0 %v1162
      %v3781 = vpop.f32.mrb[0].mxu0
      %v3782 = vadd.f32 %v372, %v3781
      %v3783 = vpop.f32.mrb[0].mxu0
      %v3784 = vadd.f32 %v372, %v3783
      %v3785 = vpop.f32.mrb[0].mxu0
      %v3786 = vpop.f32.mrb[0].mxu0
      %3787 = vdwg.mxu0
      %3788 = vmatprep.subr.bf16.mxu0 %v975
      %3789 = vmatpush1.bf16.msra.mxu0 %v974
      %3790 = vmatprep.subr.bf16.mxu0 0
      %3791 = vmatpush1.bf16.msra.mxu0 0
      %3792 = vmatprep.subr.bf16.mxu0 0
      %3793 = vmatpush1.bf16.msra.mxu0 0
      %3794 = vmatprep.subr.bf16.mxu0 0
      %3795 = vmatpush1.bf16.msra.mxu0 0
      %3796 = vmatprep.subr.bf16.mxu0 0
      %3797 = vmatpush1.bf16.msra.mxu0 0
      %3798 = vmatprep.subr.bf16.mxu0 0
      %3799 = vmatpush1.bf16.msra.mxu0 0
      %3800 = vmatprep.subr.bf16.mxu0 0
      %3801 = vmatpush1.bf16.msra.mxu0 0
      %3802 = vmatprep.subr.bf16.mxu0 0
      %3803 = vmatpush1.bf16.msra.mxu0 0
      %3804 = vmatprep.subr.bf16.mxu0 0
      %3805 = vmatpush1.bf16.msra.mxu0 0
      %3806 = vmatprep.subr.bf16.mxu0 0
      %3807 = vmatpush1.bf16.msra.mxu0 0
      %3808 = vmatprep.subr.bf16.mxu0 0
      %3809 = vmatpush1.bf16.msra.mxu0 0
      %3810 = vmatprep.subr.bf16.mxu0 0
      %3811 = vmatpush1.bf16.msra.mxu0 0
      %3812 = vmatprep.subr.bf16.mxu0 0
      %3813 = vmatpush1.bf16.msra.mxu0 0
      %3814 = vmatprep.subr.bf16.mxu0 0
      %3815 = vmatpush1.bf16.msra.mxu0 0
      %3816 = vmatprep.subr.bf16.mxu0 0
      %3817 = vmatpush1.bf16.msra.mxu0 0
      %3818 = vmatprep.subr.bf16.mxu0 0
      %3819 = vmatpush1.bf16.msra.mxu0 0
      %3820 = vmatprep.mubr.bf16.mxu0 0
      %3821 = vmatmul.mubr.bf16.gmra.mrb[0].mxu0 %v1162
      %v3822 = vpop.f32.mrb[0].mxu0
      %v3823 = vadd.f32 %v372, %v3822
      %v3824 = vpop.f32.mrb[0].mxu0
      %v3825 = vadd.f32 %v372, %v3824
      %v3826 = vpop.f32.mrb[0].mxu0
      %v3827 = vpop.f32.mrb[0].mxu0
      %3828 = vdwg.mxu0
      %3829 = vmatprep.subr.bf16.mxu0 %v977
      %3830 = vmatpush1.bf16.msra.mxu0 %v976
      %3831 = vmatprep.subr.bf16.mxu0 0
      %3832 = vmatpush1.bf16.msra.mxu0 0
      %3833 = vmatprep.subr.bf16.mxu0 0
      %3834 = vmatpush1.bf16.msra.mxu0 0
      %3835 = vmatprep.subr.bf16.mxu0 0
      %3836 = vmatpush1.bf16.msra.mxu0 0
      %3837 = vmatprep.subr.bf16.mxu0 0
      %3838 = vmatpush1.bf16.msra.mxu0 0
      %3839 = vmatprep.subr.bf16.mxu0 0
      %3840 = vmatpush1.bf16.msra.mxu0 0
      %3841 = vmatprep.subr.bf16.mxu0 0
      %3842 = vmatpush1.bf16.msra.mxu0 0
      %3843 = vmatprep.subr.bf16.mxu0 0
      %3844 = vmatpush1.bf16.msra.mxu0 0
      %3845 = vmatprep.subr.bf16.mxu0 0
      %3846 = vmatpush1.bf16.msra.mxu0 0
      %3847 = vmatprep.subr.bf16.mxu0 0
      %3848 = vmatpush1.bf16.msra.mxu0 0
      %3849 = vmatprep.subr.bf16.mxu0 0
      %3850 = vmatpush1.bf16.msra.mxu0 0
      %3851 = vmatprep.subr.bf16.mxu0 0
      %3852 = vmatpush1.bf16.msra.mxu0 0
      %3853 = vmatprep.subr.bf16.mxu0 0
      %3854 = vmatpush1.bf16.msra.mxu0 0
      %3855 = vmatprep.subr.bf16.mxu0 0
      %3856 = vmatpush1.bf16.msra.mxu0 0
      %3857 = vmatprep.subr.bf16.mxu0 0
      %3858 = vmatpush1.bf16.msra.mxu0 0
      %3859 = vmatprep.subr.bf16.mxu0 0
      %3860 = vmatpush1.bf16.msra.mxu0 0
      %3861 = vmatprep.mubr.bf16.mxu0 0
      %3862 = vmatmul.mubr.bf16.gmra.mrb[0].mxu0 %v1162
      %v3863 = vpop.f32.mrb[0].mxu0
      %v3864 = vadd.f32 %v372, %v3863
      %v3865 = vpop.f32.mrb[0].mxu0
      %v3866 = vadd.f32 %v372, %v3865
      %v3867 = vpop.f32.mrb[0].mxu0
      %v3868 = vpop.f32.mrb[0].mxu0
      %3869 = vdwg.mxu0
      %3870 = vmatprep.subr.bf16.mxu0 %v979
      %3871 = vmatpush1.bf16.msra.mxu0 %v978
      %3872 = vmatprep.subr.bf16.mxu0 0
      %3873 = vmatpush1.bf16.msra.mxu0 0
      %3874 = vmatprep.subr.bf16.mxu0 0
      %3875 = vmatpush1.bf16.msra.mxu0 0
      %3876 = vmatprep.subr.bf16.mxu0 0
      %3877 = vmatpush1.bf16.msra.mxu0 0
      %3878 = vmatprep.subr.bf16.mxu0 0
      %3879 = vmatpush1.bf16.msra.mxu0 0
      %3880 = vmatprep.subr.bf16.mxu0 0
      %3881 = vmatpush1.bf16.msra.mxu0 0
      %3882 = vmatprep.subr.bf16.mxu0 0
      %3883 = vmatpush1.bf16.msra.mxu0 0
      %3884 = vmatprep.subr.bf16.mxu0 0
      %3885 = vmatpush1.bf16.msra.mxu0 0
      %3886 = vmatprep.subr.bf16.mxu0 0
      %3887 = vmatpush1.bf16.msra.mxu0 0
      %3888 = vmatprep.subr.bf16.mxu0 0
      %3889 = vmatpush1.bf16.msra.mxu0 0
      %3890 = vmatprep.subr.bf16.mxu0 0
      %3891 = vmatpush1.bf16.msra.mxu0 0
      %3892 = vmatprep.subr.bf16.mxu0 0
      %3893 = vmatpush1.bf16.msra.mxu0 0
      %3894 = vmatprep.subr.bf16.mxu0 0
      %3895 = vmatpush1.bf16.msra.mxu0 0
      %3896 = vmatprep.subr.bf16.mxu0 0
      %3897 = vmatpush1.bf16.msra.mxu0 0
      %3898 = vmatprep.subr.bf16.mxu0 0
      %3899 = vmatpush1.bf16.msra.mxu0 0
      %3900 = vmatprep.subr.bf16.mxu0 0
      %3901 = vmatpush1.bf16.msra.mxu0 0
      %3902 = vmatprep.mubr.bf16.mxu0 0
      %3903 = vmatmul.mubr.bf16.gmra.mrb[0].mxu0 %v1162
      %v3904 = vpop.f32.mrb[0].mxu0
      %v3905 = vadd.f32 %v372, %v3904
      %v3906 = vpop.f32.mrb[0].mxu0
      %v3907 = vadd.f32 %v372, %v3906
      %v3908 = vpop.f32.mrb[0].mxu0
      %v3909 = vpop.f32.mrb[0].mxu0
      %3910 = vdwg.mxu0
      %3911 = vmatprep.subr.bf16.mxu0 %v981
      %3912 = vmatpush1.bf16.msra.mxu0 %v980
      %3913 = vmatprep.subr.bf16.mxu0 0
      %3914 = vmatpush1.bf16.msra.mxu0 0
      %3915 = vmatprep.subr.bf16.mxu0 0
      %3916 = vmatpush1.bf16.msra.mxu0 0
      %3917 = vmatprep.subr.bf16.mxu0 0
      %3918 = vmatpush1.bf16.msra.mxu0 0
      %3919 = vmatprep.subr.bf16.mxu0 0
      %3920 = vmatpush1.bf16.msra.mxu0 0
      %3921 = vmatprep.subr.bf16.mxu0 0
      %3922 = vmatpush1.bf16.msra.mxu0 0
      %3923 = vmatprep.subr.bf16.mxu0 0
      %3924 = vmatpush1.bf16.msra.mxu0 0
      %3925 = vmatprep.subr.bf16.mxu0 0
      %3926 = vmatpush1.bf16.msra.mxu0 0
      %3927 = vmatprep.subr.bf16.mxu0 0
      %3928 = vmatpush1.bf16.msra.mxu0 0
      %3929 = vmatprep.subr.bf16.mxu0 0
      %3930 = vmatpush1.bf16.msra.mxu0 0
      %3931 = vmatprep.subr.bf16.mxu0 0
      %3932 = vmatpush1.bf16.msra.mxu0 0
      %3933 = vmatprep.subr.bf16.mxu0 0
      %3934 = vmatpush1.bf16.msra.mxu0 0
      %3935 = vmatprep.subr.bf16.mxu0 0
      %3936 = vmatpush1.bf16.msra.mxu0 0
      %3937 = vmatprep.subr.bf16.mxu0 0
      %3938 = vmatpush1.bf16.msra.mxu0 0
      %3939 = vmatprep.subr.bf16.mxu0 0
      %3940 = vmatpush1.bf16.msra.mxu0 0
      %3941 = vmatprep.subr.bf16.mxu0 0
      %3942 = vmatpush1.bf16.msra.mxu0 0
      %3943 = vmatprep.mubr.bf16.mxu0 0
      %3944 = vmatmul.mubr.bf16.gmra.mrb[0].mxu0 %v1162
      %v3945 = vpop.f32.mrb[0].mxu0
      %v3946 = vadd.f32 %v372, %v3945
      %v3947 = vpop.f32.mrb[0].mxu0
      %v3948 = vadd.f32 %v372, %v3947
      %v3949 = vpop.f32.mrb[0].mxu0
      %v3950 = vpop.f32.mrb[0].mxu0
      %3951 = vdwg.mxu0
      %3952 = vmatprep.subr.bf16.mxu0 %v983
      %3953 = vmatpush1.bf16.msra.mxu0 %v982
      %3954 = vmatprep.subr.bf16.mxu0 0
      %3955 = vmatpush1.bf16.msra.mxu0 0
      %3956 = vmatprep.subr.bf16.mxu0 0
      %3957 = vmatpush1.bf16.msra.mxu0 0
      %3958 = vmatprep.subr.bf16.mxu0 0
      %3959 = vmatpush1.bf16.msra.mxu0 0
      %3960 = vmatprep.subr.bf16.mxu0 0
      %3961 = vmatpush1.bf16.msra.mxu0 0
      %3962 = vmatprep.subr.bf16.mxu0 0
      %3963 = vmatpush1.bf16.msra.mxu0 0
      %3964 = vmatprep.subr.bf16.mxu0 0
      %3965 = vmatpush1.bf16.msra.mxu0 0
      %3966 = vmatprep.subr.bf16.mxu0 0
      %3967 = vmatpush1.bf16.msra.mxu0 0
      %3968 = vmatprep.subr.bf16.mxu0 0
      %3969 = vmatpush1.bf16.msra.mxu0 0
      %3970 = vmatprep.subr.bf16.mxu0 0
      %3971 = vmatpush1.bf16.msra.mxu0 0
      %3972 = vmatprep.subr.bf16.mxu0 0
      %3973 = vmatpush1.bf16.msra.mxu0 0
      %3974 = vmatprep.subr.bf16.mxu0 0
      %3975 = vmatpush1.bf16.msra.mxu0 0
      %3976 = vmatprep.subr.bf16.mxu0 0
      %3977 = vmatpush1.bf16.msra.mxu0 0
      %3978 = vmatprep.subr.bf16.mxu0 0
      %3979 = vmatpush1.bf16.msra.mxu0 0
      %3980 = vmatprep.subr.bf16.mxu0 0
      %3981 = vmatpush1.bf16.msra.mxu0 0
      %3982 = vmatprep.subr.bf16.mxu0 0
      %3983 = vmatpush1.bf16.msra.mxu0 0
      %3984 = vmatprep.mubr.bf16.mxu0 0
      %3985 = vmatmul.mubr.bf16.gmra.mrb[0].mxu0 %v1162
      %v3986 = vpop.f32.mrb[0].mxu0
      %v3987 = vadd.f32 %v372, %v3986
      %v3988 = vpop.f32.mrb[0].mxu0
      %v3989 = vadd.f32 %v372, %v3988
      %v3990 = vpop.f32.mrb[0].mxu0
      %v3991 = vpop.f32.mrb[0].mxu0
      %3992 = vdwg.mxu0
      %3993 = vmatprep.subr.bf16.mxu0 %v985
      %3994 = vmatpush1.bf16.msra.mxu0 %v984
      %3995 = vmatprep.subr.bf16.mxu0 0
      %3996 = vmatpush1.bf16.msra.mxu0 0
      %3997 = vmatprep.subr.bf16.mxu0 0
      %3998 = vmatpush1.bf16.msra.mxu0 0
      %3999 = vmatprep.subr.bf16.mxu0 0
      %4000 = vmatpush1.bf16.msra.mxu0 0
      %4001 = vmatprep.subr.bf16.mxu0 0
      %4002 = vmatpush1.bf16.msra.mxu0 0
      %4003 = vmatprep.subr.bf16.mxu0 0
      %4004 = vmatpush1.bf16.msra.mxu0 0
      %4005 = vmatprep.subr.bf16.mxu0 0
      %4006 = vmatpush1.bf16.msra.mxu0 0
      %4007 = vmatprep.subr.bf16.mxu0 0
      %4008 = vmatpush1.bf16.msra.mxu0 0
      %4009 = vmatprep.subr.bf16.mxu0 0
      %4010 = vmatpush1.bf16.msra.mxu0 0
      %4011 = vmatprep.subr.bf16.mxu0 0
      %4012 = vmatpush1.bf16.msra.mxu0 0
      %4013 = vmatprep.subr.bf16.mxu0 0
      %4014 = vmatpush1.bf16.msra.mxu0 0
      %4015 = vmatprep.subr.bf16.mxu0 0
      %4016 = vmatpush1.bf16.msra.mxu0 0
      %4017 = vmatprep.subr.bf16.mxu0 0
      %4018 = vmatpush1.bf16.msra.mxu0 0
      %4019 = vmatprep.subr.bf16.mxu0 0
      %4020 = vmatpush1.bf16.msra.mxu0 0
      %4021 = vmatprep.subr.bf16.mxu0 0
      %4022 = vmatpush1.bf16.msra.mxu0 0
      %4023 = vmatprep.subr.bf16.mxu0 0
      %4024 = vmatpush1.bf16.msra.mxu0 0
      %4025 = vmatprep.mubr.bf16.mxu0 0
      %4026 = vmatmul.mubr.bf16.gmra.mrb[0].mxu0 %v1162
      %v4027 = vpop.f32.mrb[0].mxu0
      %v4028 = vadd.f32 %v372, %v4027
      %v4029 = vpop.f32.mrb[0].mxu0
      %v4030 = vadd.f32 %v372, %v4029
      %v4031 = vpop.f32.mrb[0].mxu0
      %v4032 = vpop.f32.mrb[0].mxu0
      %4033 = vdwg.mxu0
      %4034 = vmatprep.subr.bf16.mxu0 %v987
      %4035 = vmatpush1.bf16.msra.mxu0 %v986
      %4036 = vmatprep.subr.bf16.mxu0 0
      %4037 = vmatpush1.bf16.msra.mxu0 0
      %4038 = vmatprep.subr.bf16.mxu0 0
      %4039 = vmatpush1.bf16.msra.mxu0 0
      %4040 = vmatprep.subr.bf16.mxu0 0
      %4041 = vmatpush1.bf16.msra.mxu0 0
      %4042 = vmatprep.subr.bf16.mxu0 0
      %4043 = vmatpush1.bf16.msra.mxu0 0
      %4044 = vmatprep.subr.bf16.mxu0 0
      %4045 = vmatpush1.bf16.msra.mxu0 0
      %4046 = vmatprep.subr.bf16.mxu0 0
      %4047 = vmatpush1.bf16.msra.mxu0 0
      %4048 = vmatprep.subr.bf16.mxu0 0
      %4049 = vmatpush1.bf16.msra.mxu0 0
      %4050 = vmatprep.subr.bf16.mxu0 0
      %4051 = vmatpush1.bf16.msra.mxu0 0
      %4052 = vmatprep.subr.bf16.mxu0 0
      %4053 = vmatpush1.bf16.msra.mxu0 0
      %4054 = vmatprep.subr.bf16.mxu0 0
      %4055 = vmatpush1.bf16.msra.mxu0 0
      %4056 = vmatprep.subr.bf16.mxu0 0
      %4057 = vmatpush1.bf16.msra.mxu0 0
      %4058 = vmatprep.subr.bf16.mxu0 0
      %4059 = vmatpush1.bf16.msra.mxu0 0
      %4060 = vmatprep.subr.bf16.mxu0 0
      %4061 = vmatpush1.bf16.msra.mxu0 0
      %4062 = vmatprep.subr.bf16.mxu0 0
      %4063 = vmatpush1.bf16.msra.mxu0 0
      %4064 = vmatprep.subr.bf16.mxu0 0
      %4065 = vmatpush1.bf16.msra.mxu0 0
      %4066 = vmatprep.mubr.bf16.mxu0 0
      %4067 = vmatmul.mubr.bf16.gmra.mrb[0].mxu0 %v1162
      %v4068 = vpop.f32.mrb[0].mxu0
      %v4069 = vadd.f32 %v372, %v4068
      %v4070 = vpop.f32.mrb[0].mxu0
      %v4071 = vadd.f32 %v372, %v4070
      %v4072 = vpop.f32.mrb[0].mxu0
      %v4073 = vpop.f32.mrb[0].mxu0
      %4074 = vdwg.mxu0
      %4075 = vmatprep.subr.bf16.mxu0 %v989
      %4076 = vmatpush1.bf16.msra.mxu0 %v988
      %4077 = vmatprep.subr.bf16.mxu0 0
      %4078 = vmatpush1.bf16.msra.mxu0 0
      %4079 = vmatprep.subr.bf16.mxu0 0
      %4080 = vmatpush1.bf16.msra.mxu0 0
      %4081 = vmatprep.subr.bf16.mxu0 0
      %4082 = vmatpush1.bf16.msra.mxu0 0
      %4083 = vmatprep.subr.bf16.mxu0 0
      %4084 = vmatpush1.bf16.msra.mxu0 0
      %4085 = vmatprep.subr.bf16.mxu0 0
      %4086 = vmatpush1.bf16.msra.mxu0 0
      %4087 = vmatprep.subr.bf16.mxu0 0
      %4088 = vmatpush1.bf16.msra.mxu0 0
      %4089 = vmatprep.subr.bf16.mxu0 0
      %4090 = vmatpush1.bf16.msra.mxu0 0
      %4091 = vmatprep.subr.bf16.mxu0 0
      %4092 = vmatpush1.bf16.msra.mxu0 0
      %4093 = vmatprep.subr.bf16.mxu0 0
      %4094 = vmatpush1.bf16.msra.mxu0 0
      %4095 = vmatprep.subr.bf16.mxu0 0
      %4096 = vmatpush1.bf16.msra.mxu0 0
      %4097 = vmatprep.subr.bf16.mxu0 0
      %4098 = vmatpush1.bf16.msra.mxu0 0
      %4099 = vmatprep.subr.bf16.mxu0 0
      %4100 = vmatpush1.bf16.msra.mxu0 0
      %4101 = vmatprep.subr.bf16.mxu0 0
      %4102 = vmatpush1.bf16.msra.mxu0 0
      %4103 = vmatprep.subr.bf16.mxu0 0
      %4104 = vmatpush1.bf16.msra.mxu0 0
      %4105 = vmatprep.subr.bf16.mxu0 0
      %4106 = vmatpush1.bf16.msra.mxu0 0
      %4107 = vmatprep.mubr.bf16.mxu0 0
      %4108 = vmatmul.mubr.bf16.gmra.mrb[0].mxu0 %v1162
      %v4109 = vpop.f32.mrb[0].mxu0
      %v4110 = vadd.f32 %v372, %v4109
      %v4111 = vpop.f32.mrb[0].mxu0
      %v4112 = vadd.f32 %v372, %v4111
      %v4113 = vpop.f32.mrb[0].mxu0
      %v4114 = vpop.f32.mrb[0].mxu0
      %4115 = vdwg.mxu0
      %4116 = vmatprep.subr.bf16.mxu0 %v991
      %4117 = vmatpush1.bf16.msra.mxu0 %v990
      %4118 = vmatprep.subr.bf16.mxu0 0
      %4119 = vmatpush1.bf16.msra.mxu0 0
      %4120 = vmatprep.subr.bf16.mxu0 0
      %4121 = vmatpush1.bf16.msra.mxu0 0
      %4122 = vmatprep.subr.bf16.mxu0 0
      %4123 = vmatpush1.bf16.msra.mxu0 0
      %4124 = vmatprep.subr.bf16.mxu0 0
      %4125 = vmatpush1.bf16.msra.mxu0 0
      %4126 = vmatprep.subr.bf16.mxu0 0
      %4127 = vmatpush1.bf16.msra.mxu0 0
      %4128 = vmatprep.subr.bf16.mxu0 0
      %4129 = vmatpush1.bf16.msra.mxu0 0
      %4130 = vmatprep.subr.bf16.mxu0 0
      %4131 = vmatpush1.bf16.msra.mxu0 0
      %4132 = vmatprep.subr.bf16.mxu0 0
      %4133 = vmatpush1.bf16.msra.mxu0 0
      %4134 = vmatprep.subr.bf16.mxu0 0
      %4135 = vmatpush1.bf16.msra.mxu0 0
      %4136 = vmatprep.subr.bf16.mxu0 0
      %4137 = vmatpush1.bf16.msra.mxu0 0
      %4138 = vmatprep.subr.bf16.mxu0 0
      %4139 = vmatpush1.bf16.msra.mxu0 0
      %4140 = vmatprep.subr.bf16.mxu0 0
      %4141 = vmatpush1.bf16.msra.mxu0 0
      %4142 = vmatprep.subr.bf16.mxu0 0
      %4143 = vmatpush1.bf16.msra.mxu0 0
      %4144 = vmatprep.subr.bf16.mxu0 0
      %4145 = vmatpush1.bf16.msra.mxu0 0
      %4146 = vmatprep.subr.bf16.mxu0 0
      %4147 = vmatpush1.bf16.msra.mxu0 0
      %4148 = vmatprep.mubr.bf16.mxu0 0
      %4149 = vmatmul.mubr.bf16.gmra.mrb[0].mxu0 %v1162
      %v4150 = vpop.f32.mrb[0].mxu0
      %v4151 = vadd.f32 %v372, %v4150
      %v4152 = vpop.f32.mrb[0].mxu0
      %v4153 = vadd.f32 %v372, %v4152
      %v4154 = vpop.f32.mrb[0].mxu0
      %v4155 = vpop.f32.mrb[0].mxu0
      %4156 = vdwg.mxu0
      %4157 = vmatprep.subr.bf16.mxu0 %v993
      %4158 = vmatpush1.bf16.msra.mxu0 %v992
      %4159 = vmatprep.subr.bf16.mxu0 0
      %4160 = vmatpush1.bf16.msra.mxu0 0
      %4161 = vmatprep.subr.bf16.mxu0 0
      %4162 = vmatpush1.bf16.msra.mxu0 0
      %4163 = vmatprep.subr.bf16.mxu0 0
      %4164 = vmatpush1.bf16.msra.mxu0 0
      %4165 = vmatprep.subr.bf16.mxu0 0
      %4166 = vmatpush1.bf16.msra.mxu0 0
      %4167 = vmatprep.subr.bf16.mxu0 0
      %4168 = vmatpush1.bf16.msra.mxu0 0
      %4169 = vmatprep.subr.bf16.mxu0 0
      %4170 = vmatpush1.bf16.msra.mxu0 0
      %4171 = vmatprep.subr.bf16.mxu0 0
      %4172 = vmatpush1.bf16.msra.mxu0 0
      %4173 = vmatprep.subr.bf16.mxu0 0
      %4174 = vmatpush1.bf16.msra.mxu0 0
      %4175 = vmatprep.subr.bf16.mxu0 0
      %4176 = vmatpush1.bf16.msra.mxu0 0
      %4177 = vmatprep.subr.bf16.mxu0 0
      %4178 = vmatpush1.bf16.msra.mxu0 0
      %4179 = vmatprep.subr.bf16.mxu0 0
      %4180 = vmatpush1.bf16.msra.mxu0 0
      %4181 = vmatprep.subr.bf16.mxu0 0
      %4182 = vmatpush1.bf16.msra.mxu0 0
      %4183 = vmatprep.subr.bf16.mxu0 0
      %4184 = vmatpush1.bf16.msra.mxu0 0
      %4185 = vmatprep.subr.bf16.mxu0 0
      %4186 = vmatpush1.bf16.msra.mxu0 0
      %4187 = vmatprep.subr.bf16.mxu0 0
      %4188 = vmatpush1.bf16.msra.mxu0 0
      %4189 = vmatprep.mubr.bf16.mxu0 0
      %4190 = vmatmul.mubr.bf16.gmra.mrb[0].mxu0 %v1162
      %v4191 = vpop.f32.mrb[0].mxu0
      %v4192 = vadd.f32 %v372, %v4191
      %v4193 = vpop.f32.mrb[0].mxu0
      %v4194 = vadd.f32 %v372, %v4193
      %v4195 = vpop.f32.mrb[0].mxu0
      %v4196 = vpop.f32.mrb[0].mxu0
      %4197 = vdwg.mxu0
      %4198 = vmatprep.subr.bf16.mxu0 %v995
      %4199 = vmatpush1.bf16.msra.mxu0 %v994
      %4200 = vmatprep.subr.bf16.mxu0 0
      %4201 = vmatpush1.bf16.msra.mxu0 0
      %4202 = vmatprep.subr.bf16.mxu0 0
      %4203 = vmatpush1.bf16.msra.mxu0 0
      %4204 = vmatprep.subr.bf16.mxu0 0
      %4205 = vmatpush1.bf16.msra.mxu0 0
      %4206 = vmatprep.subr.bf16.mxu0 0
      %4207 = vmatpush1.bf16.msra.mxu0 0
      %4208 = vmatprep.subr.bf16.mxu0 0
      %4209 = vmatpush1.bf16.msra.mxu0 0
      %4210 = vmatprep.subr.bf16.mxu0 0
      %4211 = vmatpush1.bf16.msra.mxu0 0
      %4212 = vmatprep.subr.bf16.mxu0 0
      %4213 = vmatpush1.bf16.msra.mxu0 0
      %4214 = vmatprep.subr.bf16.mxu0 0
      %4215 = vmatpush1.bf16.msra.mxu0 0
      %4216 = vmatprep.subr.bf16.mxu0 0
      %4217 = vmatpush1.bf16.msra.mxu0 0
      %4218 = vmatprep.subr.bf16.mxu0 0
      %4219 = vmatpush1.bf16.msra.mxu0 0
      %4220 = vmatprep.subr.bf16.mxu0 0
      %4221 = vmatpush1.bf16.msra.mxu0 0
      %4222 = vmatprep.subr.bf16.mxu0 0
      %4223 = vmatpush1.bf16.msra.mxu0 0
      %4224 = vmatprep.subr.bf16.mxu0 0
      %4225 = vmatpush1.bf16.msra.mxu0 0
      %4226 = vmatprep.subr.bf16.mxu0 0
      %4227 = vmatpush1.bf16.msra.mxu0 0
      %4228 = vmatprep.subr.bf16.mxu0 0
      %4229 = vmatpush1.bf16.msra.mxu0 0
      %4230 = vmatprep.mubr.bf16.mxu0 0
      %4231 = vmatmul.mubr.bf16.gmra.mrb[0].mxu0 %v1162
      %v4232 = vpop.f32.mrb[0].mxu0
      %v4233 = vadd.f32 %v372, %v4232
      %v4234 = vpop.f32.mrb[0].mxu0
      %v4235 = vadd.f32 %v372, %v4234
      %v4236 = vpop.f32.mrb[0].mxu0
      %v4237 = vpop.f32.mrb[0].mxu0
      %4238 = vdwg.mxu0
      %4239 = vmatprep.subr.bf16.mxu0 %v997
      %4240 = vmatpush1.bf16.msra.mxu0 %v996
      %4241 = vmatprep.subr.bf16.mxu0 0
      %4242 = vmatpush1.bf16.msra.mxu0 0
      %4243 = vmatprep.subr.bf16.mxu0 0
      %4244 = vmatpush1.bf16.msra.mxu0 0
      %4245 = vmatprep.subr.bf16.mxu0 0
      %4246 = vmatpush1.bf16.msra.mxu0 0
      %4247 = vmatprep.subr.bf16.mxu0 0
      %4248 = vmatpush1.bf16.msra.mxu0 0
      %4249 = vmatprep.subr.bf16.mxu0 0
      %4250 = vmatpush1.bf16.msra.mxu0 0
      %4251 = vmatprep.subr.bf16.mxu0 0
      %4252 = vmatpush1.bf16.msra.mxu0 0
      %4253 = vmatprep.subr.bf16.mxu0 0
      %4254 = vmatpush1.bf16.msra.mxu0 0
      %4255 = vmatprep.subr.bf16.mxu0 0
      %4256 = vmatpush1.bf16.msra.mxu0 0
      %4257 = vmatprep.subr.bf16.mxu0 0
      %4258 = vmatpush1.bf16.msra.mxu0 0
      %4259 = vmatprep.subr.bf16.mxu0 0
      %4260 = vmatpush1.bf16.msra.mxu0 0
      %4261 = vmatprep.subr.bf16.mxu0 0
      %4262 = vmatpush1.bf16.msra.mxu0 0
      %4263 = vmatprep.subr.bf16.mxu0 0
      %4264 = vmatpush1.bf16.msra.mxu0 0
      %4265 = vmatprep.subr.bf16.mxu0 0
      %4266 = vmatpush1.bf16.msra.mxu0 0
      %4267 = vmatprep.subr.bf16.mxu0 0
      %4268 = vmatpush1.bf16.msra.mxu0 0
      %4269 = vmatprep.subr.bf16.mxu0 0
      %4270 = vmatpush1.bf16.msra.mxu0 0
      %4271 = vmatprep.mubr.bf16.mxu0 0
      %4272 = vmatmul.mubr.bf16.gmra.mrb[0].mxu0 %v1162
      %v4273 = vpop.f32.mrb[0].mxu0
      %v4274 = vadd.f32 %v372, %v4273
      %v4275 = vpop.f32.mrb[0].mxu0
      %v4276 = vadd.f32 %v372, %v4275
      %v4277 = vpop.f32.mrb[0].mxu0
      %v4278 = vpop.f32.mrb[0].mxu0
      %4279 = vdwg.mxu0
      %4280 = vmatprep.subr.bf16.mxu0 %v999
      %4281 = vmatpush1.bf16.msra.mxu0 %v998
      %4282 = vmatprep.subr.bf16.mxu0 0
      %4283 = vmatpush1.bf16.msra.mxu0 0
      %4284 = vmatprep.subr.bf16.mxu0 0
      %4285 = vmatpush1.bf16.msra.mxu0 0
      %4286 = vmatprep.subr.bf16.mxu0 0
      %4287 = vmatpush1.bf16.msra.mxu0 0
      %4288 = vmatprep.subr.bf16.mxu0 0
      %4289 = vmatpush1.bf16.msra.mxu0 0
      %4290 = vmatprep.subr.bf16.mxu0 0
      %4291 = vmatpush1.bf16.msra.mxu0 0
      %4292 = vmatprep.subr.bf16.mxu0 0
      %4293 = vmatpush1.bf16.msra.mxu0 0
      %4294 = vmatprep.subr.bf16.mxu0 0
      %4295 = vmatpush1.bf16.msra.mxu0 0
      %4296 = vmatprep.subr.bf16.mxu0 0
      %4297 = vmatpush1.bf16.msra.mxu0 0
      %4298 = vmatprep.subr.bf16.mxu0 0
      %4299 = vmatpush1.bf16.msra.mxu0 0
      %4300 = vmatprep.subr.bf16.mxu0 0
      %4301 = vmatpush1.bf16.msra.mxu0 0
      %4302 = vmatprep.subr.bf16.mxu0 0
      %4303 = vmatpush1.bf16.msra.mxu0 0
      %4304 = vmatprep.subr.bf16.mxu0 0
      %4305 = vmatpush1.bf16.msra.mxu0 0
      %4306 = vmatprep.subr.bf16.mxu0 0
      %4307 = vmatpush1.bf16.msra.mxu0 0
      %4308 = vmatprep.subr.bf16.mxu0 0
      %4309 = vmatpush1.bf16.msra.mxu0 0
      %4310 = vmatprep.subr.bf16.mxu0 0
      %4311 = vmatpush1.bf16.msra.mxu0 0
      %4312 = vmatprep.mubr.bf16.mxu0 0
      %4313 = vmatmul.mubr.bf16.gmra.mrb[0].mxu0 %v1162
      %v4314 = vpop.f32.mrb[0].mxu0
      %v4315 = vadd.f32 %v372, %v4314
      %v4316 = vpop.f32.mrb[0].mxu0
      %v4317 = vadd.f32 %v372, %v4316
      %v4318 = vpop.f32.mrb[0].mxu0
      %v4319 = vpop.f32.mrb[0].mxu0
      %4320 = vdwg.mxu0
      %4321 = vmatprep.subr.bf16.mxu0 %v1001
      %4322 = vmatpush1.bf16.msra.mxu0 %v1000
      %4323 = vmatprep.subr.bf16.mxu0 0
      %4324 = vmatpush1.bf16.msra.mxu0 0
      %4325 = vmatprep.subr.bf16.mxu0 0
      %4326 = vmatpush1.bf16.msra.mxu0 0
      %4327 = vmatprep.subr.bf16.mxu0 0
      %4328 = vmatpush1.bf16.msra.mxu0 0
      %4329 = vmatprep.subr.bf16.mxu0 0
      %4330 = vmatpush1.bf16.msra.mxu0 0
      %4331 = vmatprep.subr.bf16.mxu0 0
      %4332 = vmatpush1.bf16.msra.mxu0 0
      %4333 = vmatprep.subr.bf16.mxu0 0
      %4334 = vmatpush1.bf16.msra.mxu0 0
      %4335 = vmatprep.subr.bf16.mxu0 0
      %4336 = vmatpush1.bf16.msra.mxu0 0
      %4337 = vmatprep.subr.bf16.mxu0 0
      %4338 = vmatpush1.bf16.msra.mxu0 0
      %4339 = vmatprep.subr.bf16.mxu0 0
      %4340 = vmatpush1.bf16.msra.mxu0 0
      %4341 = vmatprep.subr.bf16.mxu0 0
      %4342 = vmatpush1.bf16.msra.mxu0 0
      %4343 = vmatprep.subr.bf16.mxu0 0
      %4344 = vmatpush1.bf16.msra.mxu0 0
      %4345 = vmatprep.subr.bf16.mxu0 0
      %4346 = vmatpush1.bf16.msra.mxu0 0
      %4347 = vmatprep.subr.bf16.mxu0 0
      %4348 = vmatpush1.bf16.msra.mxu0 0
      %4349 = vmatprep.subr.bf16.mxu0 0
      %4350 = vmatpush1.bf16.msra.mxu0 0
      %4351 = vmatprep.subr.bf16.mxu0 0
      %4352 = vmatpush1.bf16.msra.mxu0 0
      %4353 = vmatprep.mubr.bf16.mxu0 0
      %4354 = vmatmul.mubr.bf16.gmra.mrb[0].mxu0 %v1162
      %v4355 = vpop.f32.mrb[0].mxu0
      %v4356 = vadd.f32 %v372, %v4355
      %v4357 = vpop.f32.mrb[0].mxu0
      %v4358 = vadd.f32 %v372, %v4357
      %v4359 = vpop.f32.mrb[0].mxu0
      %v4360 = vpop.f32.mrb[0].mxu0
      %4361 = vdwg.mxu0
      %4362 = vmatprep.subr.bf16.mxu0 0
      %4363 = vmatpush1.bf16.msra.mxu0 %v1002
      %4364 = vmatprep.subr.bf16.mxu0 0
      %4365 = vmatpush1.bf16.msra.mxu0 0
      %4366 = vmatprep.subr.bf16.mxu0 0
      %4367 = vmatpush1.bf16.msra.mxu0 0
      %4368 = vmatprep.subr.bf16.mxu0 0
      %4369 = vmatpush1.bf16.msra.mxu0 0
      %4370 = vmatprep.subr.bf16.mxu0 0
      %4371 = vmatpush1.bf16.msra.mxu0 0
      %4372 = vmatprep.subr.bf16.mxu0 0
      %4373 = vmatpush1.bf16.msra.mxu0 0
      %4374 = vmatprep.subr.bf16.mxu0 0
      %4375 = vmatpush1.bf16.msra.mxu0 0
      %4376 = vmatprep.subr.bf16.mxu0 0
      %4377 = vmatpush1.bf16.msra.mxu0 0
      %4378 = vmatprep.subr.bf16.mxu0 0
      %4379 = vmatpush1.bf16.msra.mxu0 0
      %4380 = vmatprep.subr.bf16.mxu0 0
      %4381 = vmatpush1.bf16.msra.mxu0 0
      %4382 = vmatprep.subr.bf16.mxu0 0
      %4383 = vmatpush1.bf16.msra.mxu0 0
      %4384 = vmatprep.subr.bf16.mxu0 0
      %4385 = vmatpush1.bf16.msra.mxu0 0
      %4386 = vmatprep.subr.bf16.mxu0 0
      %4387 = vmatpush1.bf16.msra.mxu0 0
      %4388 = vmatprep.subr.bf16.mxu0 0
      %4389 = vmatpush1.bf16.msra.mxu0 0
      %4390 = vmatprep.subr.bf16.mxu0 0
      %4391 = vmatpush1.bf16.msra.mxu0 0
      %4392 = vmatprep.subr.bf16.mxu0 0
      %4393 = vmatpush1.bf16.msra.mxu0 0
      %4394 = vmatprep.mubr.bf16.mxu0 0
      %4395 = vmatmul.mubr.bf16.gmra.mrb[0].mxu0 %v1162
      %v4396 = vpop.f32.mrb[0].mxu0
      %v4397 = vadd.f32 %v372, %v4396
      %v4398 = vpop.f32.mrb[0].mxu0
      %v4399 = vpop.f32.mrb[0].mxu0
      %v4400 = vpop.f32.mrb[0].mxu0
      %4401 = vdwg.mxu0
      %v4402 = vmax.f32 %v1199, 0.0
      %v4403 = vmax.f32 %v1201, 0.0
      %v4404 = vmax.f32 %v1240, 0.0
      %v4405 = vmax.f32 %v1242, 0.0
      %v4406 = vmax.f32 %v1281, 0.0
      %v4407 = vmax.f32 %v1283, 0.0
      %v4408 = vmax.f32 %v1322, 0.0
      %v4409 = vmax.f32 %v1324, 0.0
      %v4410 = vmax.f32 %v1363, 0.0
      %v4411 = vmax.f32 %v1365, 0.0
      %v4412 = vmax.f32 %v1404, 0.0
      %v4413 = vmax.f32 %v1406, 0.0
      %v4414 = vmax.f32 %v1445, 0.0
      %v4415 = vmax.f32 %v1447, 0.0
      %v4416 = vmax.f32 %v1486, 0.0
      %v4417 = vmax.f32 %v1488, 0.0
      %v4418 = vmax.f32 %v1527, 0.0
      %v4419 = vmax.f32 %v1529, 0.0
      %v4420 = vmax.f32 %v1568, 0.0
      %v4421 = vmax.f32 %v1570, 0.0
      %v4422 = vmax.f32 %v1609, 0.0
      %v4423 = vmax.f32 %v1611, 0.0
      %v4424 = vmax.f32 %v1650, 0.0
      %v4425 = vmax.f32 %v1652, 0.0
      %v4426 = vmax.f32 %v1691, 0.0
      %v4427 = vmax.f32 %v1693, 0.0
      %v4428 = vmax.f32 %v1732, 0.0
      %v4429 = vmax.f32 %v1734, 0.0
      %v4430 = vmax.f32 %v1773, 0.0
      %v4431 = vmax.f32 %v1775, 0.0
      %v4432 = vmax.f32 %v1814, 0.0
      %v4433 = vmax.f32 %v1816, 0.0
      %v4434 = vmax.f32 %v1855, 0.0
      %v4435 = vmax.f32 %v1857, 0.0
      %v4436 = vmax.f32 %v1896, 0.0
      %v4437 = vmax.f32 %v1898, 0.0
      %v4438 = vmax.f32 %v1937, 0.0
      %v4439 = vmax.f32 %v1939, 0.0
      %v4440 = vmax.f32 %v1978, 0.0
      %v4441 = vmax.f32 %v1980, 0.0
      %v4442 = vmax.f32 %v2019, 0.0
      %v4443 = vmax.f32 %v2021, 0.0
      %v4444 = vmax.f32 %v2060, 0.0
      %v4445 = vmax.f32 %v2062, 0.0
      %v4446 = vmax.f32 %v2101, 0.0
      %v4447 = vmax.f32 %v2103, 0.0
      %v4448 = vmax.f32 %v2142, 0.0
      %v4449 = vmax.f32 %v2144, 0.0
      %v4450 = vmax.f32 %v2183, 0.0
      %v4451 = vmax.f32 %v2185, 0.0
      %v4452 = vmax.f32 %v2224, 0.0
      %v4453 = vmax.f32 %v2226, 0.0
      %v4454 = vmax.f32 %v2265, 0.0
      %v4455 = vmax.f32 %v2267, 0.0
      %v4456 = vmax.f32 %v2306, 0.0
      %v4457 = vmax.f32 %v2308, 0.0
      %v4458 = vmax.f32 %v2347, 0.0
      %v4459 = vmax.f32 %v2349, 0.0
      %v4460 = vmax.f32 %v2388, 0.0
      %v4461 = vmax.f32 %v2390, 0.0
      %v4462 = vmax.f32 %v2429, 0.0
      %v4463 = vmax.f32 %v2431, 0.0
      %v4464 = vmax.f32 %v2470, 0.0
      %v4465 = vmax.f32 %v2472, 0.0
      %v4466 = vmax.f32 %v2511, 0.0
      %v4467 = vmax.f32 %v2513, 0.0
      %v4468 = vmax.f32 %v2552, 0.0
      %v4469 = vmax.f32 %v2554, 0.0
      %v4470 = vmax.f32 %v2593, 0.0
      %v4471 = vmax.f32 %v2595, 0.0
      %v4472 = vmax.f32 %v2634, 0.0
      %v4473 = vmax.f32 %v2636, 0.0
      %v4474 = vmax.f32 %v2675, 0.0
      %v4475 = vmax.f32 %v2677, 0.0
      %v4476 = vmax.f32 %v2716, 0.0
      %v4477 = vmax.f32 %v2718, 0.0
      %v4478 = vmax.f32 %v2757, 0.0
      %v4479 = vmax.f32 %v2759, 0.0
      %v4480 = vmax.f32 %v2798, 0.0
      %v4481 = vmax.f32 %v2800, 0.0
      %v4482 = vmax.f32 %v2839, 0.0
      %v4483 = vmax.f32 %v2841, 0.0
      %v4484 = vmax.f32 %v2880, 0.0
      %v4485 = vmax.f32 %v2882, 0.0
      %v4486 = vmax.f32 %v2921, 0.0
      %v4487 = vmax.f32 %v2923, 0.0
      %v4488 = vmax.f32 %v2962, 0.0
      %v4489 = vmax.f32 %v2964, 0.0
      %v4490 = vmax.f32 %v3003, 0.0
      %v4491 = vmax.f32 %v3005, 0.0
      %v4492 = vmax.f32 %v3044, 0.0
      %v4493 = vmax.f32 %v3046, 0.0
      %v4494 = vmax.f32 %v3085, 0.0
      %v4495 = vmax.f32 %v3087, 0.0
      %v4496 = vmax.f32 %v3126, 0.0
      %v4497 = vmax.f32 %v3128, 0.0
      %v4498 = vmax.f32 %v3167, 0.0
      %v4499 = vmax.f32 %v3169, 0.0
      %v4500 = vmax.f32 %v3208, 0.0
      %v4501 = vmax.f32 %v3210, 0.0
      %v4502 = vmax.f32 %v3249, 0.0
      %v4503 = vmax.f32 %v3251, 0.0
      %v4504 = vmax.f32 %v3290, 0.0
      %v4505 = vmax.f32 %v3292, 0.0
      %v4506 = vmax.f32 %v3331, 0.0
      %v4507 = vmax.f32 %v3333, 0.0
      %v4508 = vmax.f32 %v3372, 0.0
      %v4509 = vmax.f32 %v3374, 0.0
      %v4510 = vmax.f32 %v3413, 0.0
      %v4511 = vmax.f32 %v3415, 0.0
      %v4512 = vmax.f32 %v3454, 0.0
      %v4513 = vmax.f32 %v3456, 0.0
      %v4514 = vmax.f32 %v3495, 0.0
      %v4515 = vmax.f32 %v3497, 0.0
      %v4516 = vmax.f32 %v3536, 0.0
      %v4517 = vmax.f32 %v3538, 0.0
      %v4518 = vmax.f32 %v3577, 0.0
      %v4519 = vmax.f32 %v3579, 0.0
      %v4520 = vmax.f32 %v3618, 0.0
      %v4521 = vmax.f32 %v3620, 0.0
      %v4522 = vmax.f32 %v3659, 0.0
      %v4523 = vmax.f32 %v3661, 0.0
      %v4524 = vmax.f32 %v3700, 0.0
      %v4525 = vmax.f32 %v3702, 0.0
      %v4526 = vmax.f32 %v3741, 0.0
      %v4527 = vmax.f32 %v3743, 0.0
      %v4528 = vmax.f32 %v3782, 0.0
      %v4529 = vmax.f32 %v3784, 0.0
      %v4530 = vmax.f32 %v3823, 0.0
      %v4531 = vmax.f32 %v3825, 0.0
      %v4532 = vmax.f32 %v3864, 0.0
      %v4533 = vmax.f32 %v3866, 0.0
      %v4534 = vmax.f32 %v3905, 0.0
      %v4535 = vmax.f32 %v3907, 0.0
      %v4536 = vmax.f32 %v3946, 0.0
      %v4537 = vmax.f32 %v3948, 0.0
      %v4538 = vmax.f32 %v3987, 0.0
      %v4539 = vmax.f32 %v3989, 0.0
      %v4540 = vmax.f32 %v4028, 0.0
      %v4541 = vmax.f32 %v4030, 0.0
      %v4542 = vmax.f32 %v4069, 0.0
      %v4543 = vmax.f32 %v4071, 0.0
      %v4544 = vmax.f32 %v4110, 0.0
      %v4545 = vmax.f32 %v4112, 0.0
      %v4546 = vmax.f32 %v4151, 0.0
      %v4547 = vmax.f32 %v4153, 0.0
      %v4548 = vmax.f32 %v4192, 0.0
      %v4549 = vmax.f32 %v4194, 0.0
      %v4550 = vmax.f32 %v4233, 0.0
      %v4551 = vmax.f32 %v4235, 0.0
      %v4552 = vmax.f32 %v4274, 0.0
      %v4553 = vmax.f32 %v4276, 0.0
      %v4554 = vmax.f32 %v4315, 0.0
      %v4555 = vmax.f32 %v4317, 0.0
      %v4556 = vmax.f32 %v4356, 0.0
      %v4557 = vmax.f32 %v4358, 0.0
      %v4558 = vmax.f32 %v4397, 0.0
      %v4559 = vpack.c.bf16 %v4402, %v4402
      %v4560 = vpack.c.bf16 %v4403, %v4403
      %v4561 = vpack.c.bf16 %v4404, %v4404
      %v4562 = vpack.c.bf16 %v4405, %v4405
      %v4563 = vpack.c.bf16 %v4406, %v4406
      %v4564 = vpack.c.bf16 %v4407, %v4407
      %v4565 = vpack.c.bf16 %v4408, %v4408
      %v4566 = vpack.c.bf16 %v4409, %v4409
      %v4567 = vpack.c.bf16 %v4410, %v4410
      %v4568 = vpack.c.bf16 %v4411, %v4411
      %v4569 = vpack.c.bf16 %v4412, %v4412
      %v4570 = vpack.c.bf16 %v4413, %v4413
      %v4571 = vpack.c.bf16 %v4414, %v4414
      %v4572 = vpack.c.bf16 %v4415, %v4415
      %v4573 = vpack.c.bf16 %v4416, %v4416
      %v4574 = vpack.c.bf16 %v4417, %v4417
      %v4575 = vpack.c.bf16 %v4418, %v4418
      %v4576 = vpack.c.bf16 %v4419, %v4419
      %v4577 = vpack.c.bf16 %v4420, %v4420
      %v4578 = vpack.c.bf16 %v4421, %v4421
      %v4579 = vpack.c.bf16 %v4422, %v4422
      %v4580 = vpack.c.bf16 %v4423, %v4423
      %v4581 = vpack.c.bf16 %v4424, %v4424
      %v4582 = vpack.c.bf16 %v4425, %v4425
      %v4583 = vpack.c.bf16 %v4426, %v4426
      %v4584 = vpack.c.bf16 %v4427, %v4427
      %v4585 = vpack.c.bf16 %v4428, %v4428
      %v4586 = vpack.c.bf16 %v4429, %v4429
      %v4587 = vpack.c.bf16 %v4430, %v4430
      %v4588 = vpack.c.bf16 %v4431, %v4431
      %v4589 = vpack.c.bf16 %v4432, %v4432
      %v4590 = vpack.c.bf16 %v4433, %v4433
      %v4591 = vpack.c.bf16 %v4434, %v4434
      %v4592 = vpack.c.bf16 %v4435, %v4435
      %v4593 = vpack.c.bf16 %v4436, %v4436
      %v4594 = vpack.c.bf16 %v4437, %v4437
      %v4595 = vpack.c.bf16 %v4438, %v4438
      %v4596 = vpack.c.bf16 %v4439, %v4439
      %v4597 = vpack.c.bf16 %v4440, %v4440
      %v4598 = vpack.c.bf16 %v4441, %v4441
      %v4599 = vpack.c.bf16 %v4442, %v4442
      %v4600 = vpack.c.bf16 %v4443, %v4443
      %v4601 = vpack.c.bf16 %v4444, %v4444
      %v4602 = vpack.c.bf16 %v4445, %v4445
      %v4603 = vpack.c.bf16 %v4446, %v4446
      %v4604 = vpack.c.bf16 %v4447, %v4447
      %v4605 = vpack.c.bf16 %v4448, %v4448
      %v4606 = vpack.c.bf16 %v4449, %v4449
      %v4607 = vpack.c.bf16 %v4450, %v4450
      %v4608 = vpack.c.bf16 %v4451, %v4451
      %v4609 = vpack.c.bf16 %v4452, %v4452
      %v4610 = vpack.c.bf16 %v4453, %v4453
      %v4611 = vpack.c.bf16 %v4454, %v4454
      %v4612 = vpack.c.bf16 %v4455, %v4455
      %v4613 = vpack.c.bf16 %v4456, %v4456
      %v4614 = vpack.c.bf16 %v4457, %v4457
      %v4615 = vpack.c.bf16 %v4458, %v4458
      %v4616 = vpack.c.bf16 %v4459, %v4459
      %v4617 = vpack.c.bf16 %v4460, %v4460
      %v4618 = vpack.c.bf16 %v4461, %v4461
      %v4619 = vpack.c.bf16 %v4462, %v4462
      %v4620 = vpack.c.bf16 %v4463, %v4463
      %v4621 = vpack.c.bf16 %v4464, %v4464
      %v4622 = vpack.c.bf16 %v4465, %v4465
      %v4623 = vpack.c.bf16 %v4466, %v4466
      %v4624 = vpack.c.bf16 %v4467, %v4467
      %v4625 = vpack.c.bf16 %v4468, %v4468
      %v4626 = vpack.c.bf16 %v4469, %v4469
      %v4627 = vpack.c.bf16 %v4470, %v4470
      %v4628 = vpack.c.bf16 %v4471, %v4471
      %v4629 = vpack.c.bf16 %v4472, %v4472
      %v4630 = vpack.c.bf16 %v4473, %v4473
      %v4631 = vpack.c.bf16 %v4474, %v4474
      %v4632 = vpack.c.bf16 %v4475, %v4475
      %v4633 = vpack.c.bf16 %v4476, %v4476
      %v4634 = vpack.c.bf16 %v4477, %v4477
      %v4635 = vpack.c.bf16 %v4478, %v4478
      %v4636 = vpack.c.bf16 %v4479, %v4479
      %v4637 = vpack.c.bf16 %v4480, %v4480
      %v4638 = vpack.c.bf16 %v4481, %v4481
      %v4639 = vpack.c.bf16 %v4482, %v4482
      %v4640 = vpack.c.bf16 %v4483, %v4483
      %v4641 = vpack.c.bf16 %v4484, %v4484
      %v4642 = vpack.c.bf16 %v4485, %v4485
      %v4643 = vpack.c.bf16 %v4486, %v4486
      %v4644 = vpack.c.bf16 %v4487, %v4487
      %v4645 = vpack.c.bf16 %v4488, %v4488
      %v4646 = vpack.c.bf16 %v4489, %v4489
      %v4647 = vpack.c.bf16 %v4490, %v4490
      %v4648 = vpack.c.bf16 %v4491, %v4491
      %v4649 = vpack.c.bf16 %v4492, %v4492
      %v4650 = vpack.c.bf16 %v4493, %v4493
      %v4651 = vpack.c.bf16 %v4494, %v4494
      %v4652 = vpack.c.bf16 %v4495, %v4495
      %v4653 = vpack.c.bf16 %v4496, %v4496
      %v4654 = vpack.c.bf16 %v4497, %v4497
      %v4655 = vpack.c.bf16 %v4498, %v4498
      %v4656 = vpack.c.bf16 %v4499, %v4499
      %v4657 = vpack.c.bf16 %v4500, %v4500
      %v4658 = vpack.c.bf16 %v4501, %v4501
      %v4659 = vpack.c.bf16 %v4502, %v4502
      %v4660 = vpack.c.bf16 %v4503, %v4503
      %v4661 = vpack.c.bf16 %v4504, %v4504
      %v4662 = vpack.c.bf16 %v4505, %v4505
      %v4663 = vpack.c.bf16 %v4506, %v4506
      %v4664 = vpack.c.bf16 %v4507, %v4507
      %v4665 = vpack.c.bf16 %v4508, %v4508
      %v4666 = vpack.c.bf16 %v4509, %v4509
      %v4667 = vpack.c.bf16 %v4510, %v4510
      %v4668 = vpack.c.bf16 %v4511, %v4511
      %v4669 = vpack.c.bf16 %v4512, %v4512
      %v4670 = vpack.c.bf16 %v4513, %v4513
      %v4671 = vpack.c.bf16 %v4514, %v4514
      %v4672 = vpack.c.bf16 %v4515, %v4515
      %v4673 = vpack.c.bf16 %v4516, %v4516
      %v4674 = vpack.c.bf16 %v4517, %v4517
      %v4675 = vpack.c.bf16 %v4518, %v4518
      %v4676 = vpack.c.bf16 %v4519, %v4519
      %v4677 = vpack.c.bf16 %v4520, %v4520
      %v4678 = vpack.c.bf16 %v4521, %v4521
      %v4679 = vpack.c.bf16 %v4522, %v4522
      %v4680 = vpack.c.bf16 %v4523, %v4523
      %v4681 = vpack.c.bf16 %v4524, %v4524
      %v4682 = vpack.c.bf16 %v4525, %v4525
      %v4683 = vpack.c.bf16 %v4526, %v4526
      %v4684 = vpack.c.bf16 %v4527, %v4527
      %v4685 = vpack.c.bf16 %v4528, %v4528
      %v4686 = vpack.c.bf16 %v4529, %v4529
      %v4687 = vpack.c.bf16 %v4530, %v4530
      %v4688 = vpack.c.bf16 %v4531, %v4531
      %v4689 = vpack.c.bf16 %v4532, %v4532
      %v4690 = vpack.c.bf16 %v4533, %v4533
      %v4691 = vpack.c.bf16 %v4534, %v4534
      %v4692 = vpack.c.bf16 %v4535, %v4535
      %v4693 = vpack.c.bf16 %v4536, %v4536
      %v4694 = vpack.c.bf16 %v4537, %v4537
      %v4695 = vpack.c.bf16 %v4538, %v4538
      %v4696 = vpack.c.bf16 %v4539, %v4539
      %v4697 = vpack.c.bf16 %v4540, %v4540
      %v4698 = vpack.c.bf16 %v4541, %v4541
      %v4699 = vpack.c.bf16 %v4542, %v4542
      %v4700 = vpack.c.bf16 %v4543, %v4543
      %v4701 = vpack.c.bf16 %v4544, %v4544
      %v4702 = vpack.c.bf16 %v4545, %v4545
      %v4703 = vpack.c.bf16 %v4546, %v4546
      %v4704 = vpack.c.bf16 %v4547, %v4547
      %v4705 = vpack.c.bf16 %v4548, %v4548
      %v4706 = vpack.c.bf16 %v4549, %v4549
      %v4707 = vpack.c.bf16 %v4550, %v4550
      %v4708 = vpack.c.bf16 %v4551, %v4551
      %v4709 = vpack.c.bf16 %v4552, %v4552
      %v4710 = vpack.c.bf16 %v4553, %v4553
      %v4711 = vpack.c.bf16 %v4554, %v4554
      %v4712 = vpack.c.bf16 %v4555, %v4555
      %v4713 = vpack.c.bf16 %v4556, %v4556
      %v4714 = vpack.c.bf16 %v4557, %v4557
      %v4715 = vpack.c.bf16 %v4558, %v4558
      %v4873 = vcombine.low %v4559, %v4560
      %v4874 = vcombine.low %v4561, %v4562
      %v4875 = vcombine.low %v4563, %v4564
      %v4876 = vcombine.low %v4565, %v4566
      %v4878 = vunpack.c.l.s4 1966171168
      %v4879 = vunpack.c.0.s8 %v4878
      %v4880 = vlaneseq
      %v4881 = vshrl.u32 %v4880, 7
      %v4882 = vsub.s32 %v4879, %v4881
      %v4883 = vrot.slane %v4873, %v4882
      %v4885 = vunpack.c.l.s4 1966171168
      %v4886 = vunpack.c.0.s8 %v4885
      %v4887 = vlaneseq
      %v4888 = vshrl.u32 %v4887, 7
      %v4889 = vsub.s32 %v4886, %v4888
      %v4890 = vrot.slane %v4874, %v4889
      %v4892 = vunpack.c.l.s4 1966171168
      %v4893 = vunpack.c.0.s8 %v4892
      %v4894 = vlaneseq
      %v4895 = vshrl.u32 %v4894, 7
      %v4896 = vsub.s32 %v4893, %v4895
      %v4897 = vrot.slane %v4875, %v4896
      %v4899 = vunpack.c.l.s4 1966171168
      %v4900 = vunpack.c.0.s8 %v4899
      %v4901 = vlaneseq
      %v4902 = vshrl.u32 %v4901, 7
      %v4903 = vsub.s32 %v4900, %v4902
      %v4904 = vrot.slane %v4876, %v4903
      %v4905 = vcombine.low %v4883, %v4890
      %v4906 = vcombine.low %v4897, %v4904
      %v4908 = vunpack.c.l.s4 1966171168
      %v4909 = vunpack.c.0.s8 %v4908
      %v4910 = vlaneseq
      %v4911 = vshrl.u32 %v4910, 7
      %v4912 = vsub.s32 %v4909, %v4911
      %v4913 = vrot.slane %v4905, %v4912
      %v4915 = vunpack.c.l.s4 1966171168
      %v4916 = vunpack.c.0.s8 %v4915
      %v4917 = vlaneseq
      %v4918 = vshrl.u32 %v4917, 7
      %v4919 = vsub.s32 %v4916, %v4918
      %v4920 = vrot.slane %v4906, %v4919
      %v4921 = vcombine.low %v4913, %v4920
      %v4922 = vcombine.low %v4567, %v4568
      %v4923 = vcombine.low %v4569, %v4570
      %v4924 = vcombine.low %v4571, %v4572
      %v4925 = vcombine.low %v4573, %v4574
      %v4927 = vunpack.c.l.s4 1966171168
      %v4928 = vunpack.c.0.s8 %v4927
      %v4929 = vlaneseq
      %v4930 = vshrl.u32 %v4929, 7
      %v4931 = vsub.s32 %v4928, %v4930
      %v4932 = vrot.slane %v4922, %v4931
      %v4934 = vunpack.c.l.s4 1966171168
      %v4935 = vunpack.c.0.s8 %v4934
      %v4936 = vlaneseq
      %v4937 = vshrl.u32 %v4936, 7
      %v4938 = vsub.s32 %v4935, %v4937
      %v4939 = vrot.slane %v4923, %v4938
      %v4941 = vunpack.c.l.s4 1966171168
      %v4942 = vunpack.c.0.s8 %v4941
      %v4943 = vlaneseq
      %v4944 = vshrl.u32 %v4943, 7
      %v4945 = vsub.s32 %v4942, %v4944
      %v4946 = vrot.slane %v4924, %v4945
      %v4948 = vunpack.c.l.s4 1966171168
      %v4949 = vunpack.c.0.s8 %v4948
      %v4950 = vlaneseq
      %v4951 = vshrl.u32 %v4950, 7
      %v4952 = vsub.s32 %v4949, %v4951
      %v4953 = vrot.slane %v4925, %v4952
      %v4954 = vcombine.low %v4932, %v4939
      %v4955 = vcombine.low %v4946, %v4953
      %v4957 = vunpack.c.l.s4 1966171168
      %v4958 = vunpack.c.0.s8 %v4957
      %v4959 = vlaneseq
      %v4960 = vshrl.u32 %v4959, 7
      %v4961 = vsub.s32 %v4958, %v4960
      %v4962 = vrot.slane %v4954, %v4961
      %v4964 = vunpack.c.l.s4 1966171168
      %v4965 = vunpack.c.0.s8 %v4964
      %v4966 = vlaneseq
      %v4967 = vshrl.u32 %v4966, 7
      %v4968 = vsub.s32 %v4965, %v4967
      %v4969 = vrot.slane %v4955, %v4968
      %v4970 = vcombine.low %v4962, %v4969
      %v4971 = vcombine.low %v4575, %v4576
      %v4972 = vcombine.low %v4577, %v4578
      %v4973 = vcombine.low %v4579, %v4580
      %v4974 = vcombine.low %v4581, %v4582
      %v4976 = vunpack.c.l.s4 1966171168
      %v4977 = vunpack.c.0.s8 %v4976
      %v4978 = vlaneseq
      %v4979 = vshrl.u32 %v4978, 7
      %v4980 = vsub.s32 %v4977, %v4979
      %v4981 = vrot.slane %v4971, %v4980
      %v4983 = vunpack.c.l.s4 1966171168
      %v4984 = vunpack.c.0.s8 %v4983
      %v4985 = vlaneseq
      %v4986 = vshrl.u32 %v4985, 7
      %v4987 = vsub.s32 %v4984, %v4986
      %v4988 = vrot.slane %v4972, %v4987
      %v4990 = vunpack.c.l.s4 1966171168
      %v4991 = vunpack.c.0.s8 %v4990
      %v4992 = vlaneseq
      %v4993 = vshrl.u32 %v4992, 7
      %v4994 = vsub.s32 %v4991, %v4993
      %v4995 = vrot.slane %v4973, %v4994
      %v4997 = vunpack.c.l.s4 1966171168
      %v4998 = vunpack.c.0.s8 %v4997
      %v4999 = vlaneseq
      %v5000 = vshrl.u32 %v4999, 7
      %v5001 = vsub.s32 %v4998, %v5000
      %v5002 = vrot.slane %v4974, %v5001
      %v5003 = vcombine.low %v4981, %v4988
      %v5004 = vcombine.low %v4995, %v5002
      %v5006 = vunpack.c.l.s4 1966171168
      %v5007 = vunpack.c.0.s8 %v5006
      %v5008 = vlaneseq
      %v5009 = vshrl.u32 %v5008, 7
      %v5010 = vsub.s32 %v5007, %v5009
      %v5011 = vrot.slane %v5003, %v5010
      %v5013 = vunpack.c.l.s4 1966171168
      %v5014 = vunpack.c.0.s8 %v5013
      %v5015 = vlaneseq
      %v5016 = vshrl.u32 %v5015, 7
      %v5017 = vsub.s32 %v5014, %v5016
      %v5018 = vrot.slane %v5004, %v5017
      %v5019 = vcombine.low %v5011, %v5018
      %v5020 = vcombine.low %v4583, %v4584
      %v5021 = vcombine.low %v4585, %v4586
      %v5022 = vcombine.low %v4587, %v4588
      %v5023 = vcombine.low %v4589, %v4590
      %v5025 = vunpack.c.l.s4 1966171168
      %v5026 = vunpack.c.0.s8 %v5025
      %v5027 = vlaneseq
      %v5028 = vshrl.u32 %v5027, 7
      %v5029 = vsub.s32 %v5026, %v5028
      %v5030 = vrot.slane %v5020, %v5029
      %v5032 = vunpack.c.l.s4 1966171168
      %v5033 = vunpack.c.0.s8 %v5032
      %v5034 = vlaneseq
      %v5035 = vshrl.u32 %v5034, 7
      %v5036 = vsub.s32 %v5033, %v5035
      %v5037 = vrot.slane %v5021, %v5036
      %v5039 = vunpack.c.l.s4 1966171168
      %v5040 = vunpack.c.0.s8 %v5039
      %v5041 = vlaneseq
      %v5042 = vshrl.u32 %v5041, 7
      %v5043 = vsub.s32 %v5040, %v5042
      %v5044 = vrot.slane %v5022, %v5043
      %v5046 = vunpack.c.l.s4 1966171168
      %v5047 = vunpack.c.0.s8 %v5046
      %v5048 = vlaneseq
      %v5049 = vshrl.u32 %v5048, 7
      %v5050 = vsub.s32 %v5047, %v5049
      %v5051 = vrot.slane %v5023, %v5050
      %v5052 = vcombine.low %v5030, %v5037
      %v5053 = vcombine.low %v5044, %v5051
      %v5055 = vunpack.c.l.s4 1966171168
      %v5056 = vunpack.c.0.s8 %v5055
      %v5057 = vlaneseq
      %v5058 = vshrl.u32 %v5057, 7
      %v5059 = vsub.s32 %v5056, %v5058
      %v5060 = vrot.slane %v5052, %v5059
      %v5062 = vunpack.c.l.s4 1966171168
      %v5063 = vunpack.c.0.s8 %v5062
      %v5064 = vlaneseq
      %v5065 = vshrl.u32 %v5064, 7
      %v5066 = vsub.s32 %v5063, %v5065
      %v5067 = vrot.slane %v5053, %v5066
      %v5068 = vcombine.low %v5060, %v5067
      %v5069 = vcombine.low %v4591, %v4592
      %v5070 = vcombine.low %v4593, %v4594
      %v5071 = vcombine.low %v4595, %v4596
      %v5072 = vcombine.low %v4597, %v4598
      %v5074 = vunpack.c.l.s4 1966171168
      %v5075 = vunpack.c.0.s8 %v5074
      %v5076 = vlaneseq
      %v5077 = vshrl.u32 %v5076, 7
      %v5078 = vsub.s32 %v5075, %v5077
      %v5079 = vrot.slane %v5069, %v5078
      %v5081 = vunpack.c.l.s4 1966171168
      %v5082 = vunpack.c.0.s8 %v5081
      %v5083 = vlaneseq
      %v5084 = vshrl.u32 %v5083, 7
      %v5085 = vsub.s32 %v5082, %v5084
      %v5086 = vrot.slane %v5070, %v5085
      %v5088 = vunpack.c.l.s4 1966171168
      %v5089 = vunpack.c.0.s8 %v5088
      %v5090 = vlaneseq
      %v5091 = vshrl.u32 %v5090, 7
      %v5092 = vsub.s32 %v5089, %v5091
      %v5093 = vrot.slane %v5071, %v5092
      %v5095 = vunpack.c.l.s4 1966171168
      %v5096 = vunpack.c.0.s8 %v5095
      %v5097 = vlaneseq
      %v5098 = vshrl.u32 %v5097, 7
      %v5099 = vsub.s32 %v5096, %v5098
      %v5100 = vrot.slane %v5072, %v5099
      %v5101 = vcombine.low %v5079, %v5086
      %v5102 = vcombine.low %v5093, %v5100
      %v5104 = vunpack.c.l.s4 1966171168
      %v5105 = vunpack.c.0.s8 %v5104
      %v5106 = vlaneseq
      %v5107 = vshrl.u32 %v5106, 7
      %v5108 = vsub.s32 %v5105, %v5107
      %v5109 = vrot.slane %v5101, %v5108
      %v5111 = vunpack.c.l.s4 1966171168
      %v5112 = vunpack.c.0.s8 %v5111
      %v5113 = vlaneseq
      %v5114 = vshrl.u32 %v5113, 7
      %v5115 = vsub.s32 %v5112, %v5114
      %v5116 = vrot.slane %v5102, %v5115
      %v5117 = vcombine.low %v5109, %v5116
      %v5118 = vcombine.low %v4599, %v4600
      %v5119 = vcombine.low %v4601, %v4602
      %v5120 = vcombine.low %v4603, %v4604
      %v5121 = vcombine.low %v4605, %v4606
      %v5123 = vunpack.c.l.s4 1966171168
      %v5124 = vunpack.c.0.s8 %v5123
      %v5125 = vlaneseq
      %v5126 = vshrl.u32 %v5125, 7
      %v5127 = vsub.s32 %v5124, %v5126
      %v5128 = vrot.slane %v5118, %v5127
      %v5130 = vunpack.c.l.s4 1966171168
      %v5131 = vunpack.c.0.s8 %v5130
      %v5132 = vlaneseq
      %v5133 = vshrl.u32 %v5132, 7
      %v5134 = vsub.s32 %v5131, %v5133
      %v5135 = vrot.slane %v5119, %v5134
      %v5137 = vunpack.c.l.s4 1966171168
      %v5138 = vunpack.c.0.s8 %v5137
      %v5139 = vlaneseq
      %v5140 = vshrl.u32 %v5139, 7
      %v5141 = vsub.s32 %v5138, %v5140
      %v5142 = vrot.slane %v5120, %v5141
      %v5144 = vunpack.c.l.s4 1966171168
      %v5145 = vunpack.c.0.s8 %v5144
      %v5146 = vlaneseq
      %v5147 = vshrl.u32 %v5146, 7
      %v5148 = vsub.s32 %v5145, %v5147
      %v5149 = vrot.slane %v5121, %v5148
      %v5150 = vcombine.low %v5128, %v5135
      %v5151 = vcombine.low %v5142, %v5149
      %v5153 = vunpack.c.l.s4 1966171168
      %v5154 = vunpack.c.0.s8 %v5153
      %v5155 = vlaneseq
      %v5156 = vshrl.u32 %v5155, 7
      %v5157 = vsub.s32 %v5154, %v5156
      %v5158 = vrot.slane %v5150, %v5157
      %v5160 = vunpack.c.l.s4 1966171168
      %v5161 = vunpack.c.0.s8 %v5160
      %v5162 = vlaneseq
      %v5163 = vshrl.u32 %v5162, 7
      %v5164 = vsub.s32 %v5161, %v5163
      %v5165 = vrot.slane %v5151, %v5164
      %v5166 = vcombine.low %v5158, %v5165
      %v5167 = vcombine.low %v4607, %v4608
      %v5168 = vcombine.low %v4609, %v4610
      %v5169 = vcombine.low %v4611, %v4612
      %v5170 = vcombine.low %v4613, %v4614
      %v5172 = vunpack.c.l.s4 1966171168
      %v5173 = vunpack.c.0.s8 %v5172
      %v5174 = vlaneseq
      %v5175 = vshrl.u32 %v5174, 7
      %v5176 = vsub.s32 %v5173, %v5175
      %v5177 = vrot.slane %v5167, %v5176
      %v5179 = vunpack.c.l.s4 1966171168
      %v5180 = vunpack.c.0.s8 %v5179
      %v5181 = vlaneseq
      %v5182 = vshrl.u32 %v5181, 7
      %v5183 = vsub.s32 %v5180, %v5182
      %v5184 = vrot.slane %v5168, %v5183
      %v5186 = vunpack.c.l.s4 1966171168
      %v5187 = vunpack.c.0.s8 %v5186
      %v5188 = vlaneseq
      %v5189 = vshrl.u32 %v5188, 7
      %v5190 = vsub.s32 %v5187, %v5189
      %v5191 = vrot.slane %v5169, %v5190
      %v5193 = vunpack.c.l.s4 1966171168
      %v5194 = vunpack.c.0.s8 %v5193
      %v5195 = vlaneseq
      %v5196 = vshrl.u32 %v5195, 7
      %v5197 = vsub.s32 %v5194, %v5196
      %v5198 = vrot.slane %v5170, %v5197
      %v5199 = vcombine.low %v5177, %v5184
      %v5200 = vcombine.low %v5191, %v5198
      %v5202 = vunpack.c.l.s4 1966171168
      %v5203 = vunpack.c.0.s8 %v5202
      %v5204 = vlaneseq
      %v5205 = vshrl.u32 %v5204, 7
      %v5206 = vsub.s32 %v5203, %v5205
      %v5207 = vrot.slane %v5199, %v5206
      %v5209 = vunpack.c.l.s4 1966171168
      %v5210 = vunpack.c.0.s8 %v5209
      %v5211 = vlaneseq
      %v5212 = vshrl.u32 %v5211, 7
      %v5213 = vsub.s32 %v5210, %v5212
      %v5214 = vrot.slane %v5200, %v5213
      %v5215 = vcombine.low %v5207, %v5214
      %v5216 = vcombine.low %v4615, %v4616
      %v5217 = vcombine.low %v4617, %v4618
      %v5218 = vcombine.low %v4619, %v4620
      %v5219 = vcombine.low %v4621, %v4622
      %v5221 = vunpack.c.l.s4 1966171168
      %v5222 = vunpack.c.0.s8 %v5221
      %v5223 = vlaneseq
      %v5224 = vshrl.u32 %v5223, 7
      %v5225 = vsub.s32 %v5222, %v5224
      %v5226 = vrot.slane %v5216, %v5225
      %v5228 = vunpack.c.l.s4 1966171168
      %v5229 = vunpack.c.0.s8 %v5228
      %v5230 = vlaneseq
      %v5231 = vshrl.u32 %v5230, 7
      %v5232 = vsub.s32 %v5229, %v5231
      %v5233 = vrot.slane %v5217, %v5232
      %v5235 = vunpack.c.l.s4 1966171168
      %v5236 = vunpack.c.0.s8 %v5235
      %v5237 = vlaneseq
      %v5238 = vshrl.u32 %v5237, 7
      %v5239 = vsub.s32 %v5236, %v5238
      %v5240 = vrot.slane %v5218, %v5239
      %v5242 = vunpack.c.l.s4 1966171168
      %v5243 = vunpack.c.0.s8 %v5242
      %v5244 = vlaneseq
      %v5245 = vshrl.u32 %v5244, 7
      %v5246 = vsub.s32 %v5243, %v5245
      %v5247 = vrot.slane %v5219, %v5246
      %v5248 = vcombine.low %v5226, %v5233
      %v5249 = vcombine.low %v5240, %v5247
      %v5251 = vunpack.c.l.s4 1966171168
      %v5252 = vunpack.c.0.s8 %v5251
      %v5253 = vlaneseq
      %v5254 = vshrl.u32 %v5253, 7
      %v5255 = vsub.s32 %v5252, %v5254
      %v5256 = vrot.slane %v5248, %v5255
      %v5258 = vunpack.c.l.s4 1966171168
      %v5259 = vunpack.c.0.s8 %v5258
      %v5260 = vlaneseq
      %v5261 = vshrl.u32 %v5260, 7
      %v5262 = vsub.s32 %v5259, %v5261
      %v5263 = vrot.slane %v5249, %v5262
      %v5264 = vcombine.low %v5256, %v5263
      %v5265 = vcombine.low %v4623, %v4624
      %v5266 = vcombine.low %v4625, %v4626
      %v5267 = vcombine.low %v4627, %v4628
      %v5268 = vcombine.low %v4629, %v4630
      %v5270 = vunpack.c.l.s4 1966171168
      %v5271 = vunpack.c.0.s8 %v5270
      %v5272 = vlaneseq
      %v5273 = vshrl.u32 %v5272, 7
      %v5274 = vsub.s32 %v5271, %v5273
      %v5275 = vrot.slane %v5265, %v5274
      %v5277 = vunpack.c.l.s4 1966171168
      %v5278 = vunpack.c.0.s8 %v5277
      %v5279 = vlaneseq
      %v5280 = vshrl.u32 %v5279, 7
      %v5281 = vsub.s32 %v5278, %v5280
      %v5282 = vrot.slane %v5266, %v5281
      %v5284 = vunpack.c.l.s4 1966171168
      %v5285 = vunpack.c.0.s8 %v5284
      %v5286 = vlaneseq
      %v5287 = vshrl.u32 %v5286, 7
      %v5288 = vsub.s32 %v5285, %v5287
      %v5289 = vrot.slane %v5267, %v5288
      %v5291 = vunpack.c.l.s4 1966171168
      %v5292 = vunpack.c.0.s8 %v5291
      %v5293 = vlaneseq
      %v5294 = vshrl.u32 %v5293, 7
      %v5295 = vsub.s32 %v5292, %v5294
      %v5296 = vrot.slane %v5268, %v5295
      %v5297 = vcombine.low %v5275, %v5282
      %v5298 = vcombine.low %v5289, %v5296
      %v5300 = vunpack.c.l.s4 1966171168
      %v5301 = vunpack.c.0.s8 %v5300
      %v5302 = vlaneseq
      %v5303 = vshrl.u32 %v5302, 7
      %v5304 = vsub.s32 %v5301, %v5303
      %v5305 = vrot.slane %v5297, %v5304
      %v5307 = vunpack.c.l.s4 1966171168
      %v5308 = vunpack.c.0.s8 %v5307
      %v5309 = vlaneseq
      %v5310 = vshrl.u32 %v5309, 7
      %v5311 = vsub.s32 %v5308, %v5310
      %v5312 = vrot.slane %v5298, %v5311
      %v5313 = vcombine.low %v5305, %v5312
      %v5314 = vcombine.low %v4631, %v4632
      %v5315 = vcombine.low %v4633, %v4634
      %v5316 = vcombine.low %v4635, %v4636
      %v5317 = vcombine.low %v4637, %v4638
      %v5319 = vunpack.c.l.s4 1966171168
      %v5320 = vunpack.c.0.s8 %v5319
      %v5321 = vlaneseq
      %v5322 = vshrl.u32 %v5321, 7
      %v5323 = vsub.s32 %v5320, %v5322
      %v5324 = vrot.slane %v5314, %v5323
      %v5326 = vunpack.c.l.s4 1966171168
      %v5327 = vunpack.c.0.s8 %v5326
      %v5328 = vlaneseq
      %v5329 = vshrl.u32 %v5328, 7
      %v5330 = vsub.s32 %v5327, %v5329
      %v5331 = vrot.slane %v5315, %v5330
      %v5333 = vunpack.c.l.s4 1966171168
      %v5334 = vunpack.c.0.s8 %v5333
      %v5335 = vlaneseq
      %v5336 = vshrl.u32 %v5335, 7
      %v5337 = vsub.s32 %v5334, %v5336
      %v5338 = vrot.slane %v5316, %v5337
      %v5340 = vunpack.c.l.s4 1966171168
      %v5341 = vunpack.c.0.s8 %v5340
      %v5342 = vlaneseq
      %v5343 = vshrl.u32 %v5342, 7
      %v5344 = vsub.s32 %v5341, %v5343
      %v5345 = vrot.slane %v5317, %v5344
      %v5346 = vcombine.low %v5324, %v5331
      %v5347 = vcombine.low %v5338, %v5345
      %v5349 = vunpack.c.l.s4 1966171168
      %v5350 = vunpack.c.0.s8 %v5349
      %v5351 = vlaneseq
      %v5352 = vshrl.u32 %v5351, 7
      %v5353 = vsub.s32 %v5350, %v5352
      %v5354 = vrot.slane %v5346, %v5353
      %v5356 = vunpack.c.l.s4 1966171168
      %v5357 = vunpack.c.0.s8 %v5356
      %v5358 = vlaneseq
      %v5359 = vshrl.u32 %v5358, 7
      %v5360 = vsub.s32 %v5357, %v5359
      %v5361 = vrot.slane %v5347, %v5360
      %v5362 = vcombine.low %v5354, %v5361
      %v5363 = vcombine.low %v4639, %v4640
      %v5364 = vcombine.low %v4641, %v4642
      %v5365 = vcombine.low %v4643, %v4644
      %v5366 = vcombine.low %v4645, %v4646
      %v5368 = vunpack.c.l.s4 1966171168
      %v5369 = vunpack.c.0.s8 %v5368
      %v5370 = vlaneseq
      %v5371 = vshrl.u32 %v5370, 7
      %v5372 = vsub.s32 %v5369, %v5371
      %v5373 = vrot.slane %v5363, %v5372
      %v5375 = vunpack.c.l.s4 1966171168
      %v5376 = vunpack.c.0.s8 %v5375
      %v5377 = vlaneseq
      %v5378 = vshrl.u32 %v5377, 7
      %v5379 = vsub.s32 %v5376, %v5378
      %v5380 = vrot.slane %v5364, %v5379
      %v5382 = vunpack.c.l.s4 1966171168
      %v5383 = vunpack.c.0.s8 %v5382
      %v5384 = vlaneseq
      %v5385 = vshrl.u32 %v5384, 7
      %v5386 = vsub.s32 %v5383, %v5385
      %v5387 = vrot.slane %v5365, %v5386
      %v5389 = vunpack.c.l.s4 1966171168
      %v5390 = vunpack.c.0.s8 %v5389
      %v5391 = vlaneseq
      %v5392 = vshrl.u32 %v5391, 7
      %v5393 = vsub.s32 %v5390, %v5392
      %v5394 = vrot.slane %v5366, %v5393
      %v5395 = vcombine.low %v5373, %v5380
      %v5396 = vcombine.low %v5387, %v5394
      %v5398 = vunpack.c.l.s4 1966171168
      %v5399 = vunpack.c.0.s8 %v5398
      %v5400 = vlaneseq
      %v5401 = vshrl.u32 %v5400, 7
      %v5402 = vsub.s32 %v5399, %v5401
      %v5403 = vrot.slane %v5395, %v5402
      %v5405 = vunpack.c.l.s4 1966171168
      %v5406 = vunpack.c.0.s8 %v5405
      %v5407 = vlaneseq
      %v5408 = vshrl.u32 %v5407, 7
      %v5409 = vsub.s32 %v5406, %v5408
      %v5410 = vrot.slane %v5396, %v5409
      %v5411 = vcombine.low %v5403, %v5410
      %v5412 = vcombine.low %v4647, %v4648
      %v5413 = vcombine.low %v4649, %v4650
      %v5414 = vcombine.low %v4651, %v4652
      %v5415 = vcombine.low %v4653, %v4654
      %v5417 = vunpack.c.l.s4 1966171168
      %v5418 = vunpack.c.0.s8 %v5417
      %v5419 = vlaneseq
      %v5420 = vshrl.u32 %v5419, 7
      %v5421 = vsub.s32 %v5418, %v5420
      %v5422 = vrot.slane %v5412, %v5421
      %v5424 = vunpack.c.l.s4 1966171168
      %v5425 = vunpack.c.0.s8 %v5424
      %v5426 = vlaneseq
      %v5427 = vshrl.u32 %v5426, 7
      %v5428 = vsub.s32 %v5425, %v5427
      %v5429 = vrot.slane %v5413, %v5428
      %v5431 = vunpack.c.l.s4 1966171168
      %v5432 = vunpack.c.0.s8 %v5431
      %v5433 = vlaneseq
      %v5434 = vshrl.u32 %v5433, 7
      %v5435 = vsub.s32 %v5432, %v5434
      %v5436 = vrot.slane %v5414, %v5435
      %v5438 = vunpack.c.l.s4 1966171168
      %v5439 = vunpack.c.0.s8 %v5438
      %v5440 = vlaneseq
      %v5441 = vshrl.u32 %v5440, 7
      %v5442 = vsub.s32 %v5439, %v5441
      %v5443 = vrot.slane %v5415, %v5442
      %v5444 = vcombine.low %v5422, %v5429
      %v5445 = vcombine.low %v5436, %v5443
      %v5447 = vunpack.c.l.s4 1966171168
      %v5448 = vunpack.c.0.s8 %v5447
      %v5449 = vlaneseq
      %v5450 = vshrl.u32 %v5449, 7
      %v5451 = vsub.s32 %v5448, %v5450
      %v5452 = vrot.slane %v5444, %v5451
      %v5454 = vunpack.c.l.s4 1966171168
      %v5455 = vunpack.c.0.s8 %v5454
      %v5456 = vlaneseq
      %v5457 = vshrl.u32 %v5456, 7
      %v5458 = vsub.s32 %v5455, %v5457
      %v5459 = vrot.slane %v5445, %v5458
      %v5460 = vcombine.low %v5452, %v5459
      %v5461 = vcombine.low %v4655, %v4656
      %v5462 = vcombine.low %v4657, %v4658
      %v5463 = vcombine.low %v4659, %v4660
      %v5464 = vcombine.low %v4661, %v4662
      %v5466 = vunpack.c.l.s4 1966171168
      %v5467 = vunpack.c.0.s8 %v5466
      %v5468 = vlaneseq
      %v5469 = vshrl.u32 %v5468, 7
      %v5470 = vsub.s32 %v5467, %v5469
      %v5471 = vrot.slane %v5461, %v5470
      %v5473 = vunpack.c.l.s4 1966171168
      %v5474 = vunpack.c.0.s8 %v5473
      %v5475 = vlaneseq
      %v5476 = vshrl.u32 %v5475, 7
      %v5477 = vsub.s32 %v5474, %v5476
      %v5478 = vrot.slane %v5462, %v5477
      %v5480 = vunpack.c.l.s4 1966171168
      %v5481 = vunpack.c.0.s8 %v5480
      %v5482 = vlaneseq
      %v5483 = vshrl.u32 %v5482, 7
      %v5484 = vsub.s32 %v5481, %v5483
      %v5485 = vrot.slane %v5463, %v5484
      %v5487 = vunpack.c.l.s4 1966171168
      %v5488 = vunpack.c.0.s8 %v5487
      %v5489 = vlaneseq
      %v5490 = vshrl.u32 %v5489, 7
      %v5491 = vsub.s32 %v5488, %v5490
      %v5492 = vrot.slane %v5464, %v5491
      %v5493 = vcombine.low %v5471, %v5478
      %v5494 = vcombine.low %v5485, %v5492
      %v5496 = vunpack.c.l.s4 1966171168
      %v5497 = vunpack.c.0.s8 %v5496
      %v5498 = vlaneseq
      %v5499 = vshrl.u32 %v5498, 7
      %v5500 = vsub.s32 %v5497, %v5499
      %v5501 = vrot.slane %v5493, %v5500
      %v5503 = vunpack.c.l.s4 1966171168
      %v5504 = vunpack.c.0.s8 %v5503
      %v5505 = vlaneseq
      %v5506 = vshrl.u32 %v5505, 7
      %v5507 = vsub.s32 %v5504, %v5506
      %v5508 = vrot.slane %v5494, %v5507
      %v5509 = vcombine.low %v5501, %v5508
      %v5510 = vcombine.low %v4663, %v4664
      %v5511 = vcombine.low %v4665, %v4666
      %v5512 = vcombine.low %v4667, %v4668
      %v5513 = vcombine.low %v4669, %v4670
      %v5515 = vunpack.c.l.s4 1966171168
      %v5516 = vunpack.c.0.s8 %v5515
      %v5517 = vlaneseq
      %v5518 = vshrl.u32 %v5517, 7
      %v5519 = vsub.s32 %v5516, %v5518
      %v5520 = vrot.slane %v5510, %v5519
      %v5522 = vunpack.c.l.s4 1966171168
      %v5523 = vunpack.c.0.s8 %v5522
      %v5524 = vlaneseq
      %v5525 = vshrl.u32 %v5524, 7
      %v5526 = vsub.s32 %v5523, %v5525
      %v5527 = vrot.slane %v5511, %v5526
      %v5529 = vunpack.c.l.s4 1966171168
      %v5530 = vunpack.c.0.s8 %v5529
      %v5531 = vlaneseq
      %v5532 = vshrl.u32 %v5531, 7
      %v5533 = vsub.s32 %v5530, %v5532
      %v5534 = vrot.slane %v5512, %v5533
      %v5536 = vunpack.c.l.s4 1966171168
      %v5537 = vunpack.c.0.s8 %v5536
      %v5538 = vlaneseq
      %v5539 = vshrl.u32 %v5538, 7
      %v5540 = vsub.s32 %v5537, %v5539
      %v5541 = vrot.slane %v5513, %v5540
      %v5542 = vcombine.low %v5520, %v5527
      %v5543 = vcombine.low %v5534, %v5541
      %v5545 = vunpack.c.l.s4 1966171168
      %v5546 = vunpack.c.0.s8 %v5545
      %v5547 = vlaneseq
      %v5548 = vshrl.u32 %v5547, 7
      %v5549 = vsub.s32 %v5546, %v5548
      %v5550 = vrot.slane %v5542, %v5549
      %v5552 = vunpack.c.l.s4 1966171168
      %v5553 = vunpack.c.0.s8 %v5552
      %v5554 = vlaneseq
      %v5555 = vshrl.u32 %v5554, 7
      %v5556 = vsub.s32 %v5553, %v5555
      %v5557 = vrot.slane %v5543, %v5556
      %v5558 = vcombine.low %v5550, %v5557
      %v5559 = vcombine.low %v4671, %v4672
      %v5560 = vcombine.low %v4673, %v4674
      %v5561 = vcombine.low %v4675, %v4676
      %v5562 = vcombine.low %v4677, %v4678
      %v5564 = vunpack.c.l.s4 1966171168
      %v5565 = vunpack.c.0.s8 %v5564
      %v5566 = vlaneseq
      %v5567 = vshrl.u32 %v5566, 7
      %v5568 = vsub.s32 %v5565, %v5567
      %v5569 = vrot.slane %v5559, %v5568
      %v5571 = vunpack.c.l.s4 1966171168
      %v5572 = vunpack.c.0.s8 %v5571
      %v5573 = vlaneseq
      %v5574 = vshrl.u32 %v5573, 7
      %v5575 = vsub.s32 %v5572, %v5574
      %v5576 = vrot.slane %v5560, %v5575
      %v5578 = vunpack.c.l.s4 1966171168
      %v5579 = vunpack.c.0.s8 %v5578
      %v5580 = vlaneseq
      %v5581 = vshrl.u32 %v5580, 7
      %v5582 = vsub.s32 %v5579, %v5581
      %v5583 = vrot.slane %v5561, %v5582
      %v5585 = vunpack.c.l.s4 1966171168
      %v5586 = vunpack.c.0.s8 %v5585
      %v5587 = vlaneseq
      %v5588 = vshrl.u32 %v5587, 7
      %v5589 = vsub.s32 %v5586, %v5588
      %v5590 = vrot.slane %v5562, %v5589
      %v5591 = vcombine.low %v5569, %v5576
      %v5592 = vcombine.low %v5583, %v5590
      %v5594 = vunpack.c.l.s4 1966171168
      %v5595 = vunpack.c.0.s8 %v5594
      %v5596 = vlaneseq
      %v5597 = vshrl.u32 %v5596, 7
      %v5598 = vsub.s32 %v5595, %v5597
      %v5599 = vrot.slane %v5591, %v5598
      %v5601 = vunpack.c.l.s4 1966171168
      %v5602 = vunpack.c.0.s8 %v5601
      %v5603 = vlaneseq
      %v5604 = vshrl.u32 %v5603, 7
      %v5605 = vsub.s32 %v5602, %v5604
      %v5606 = vrot.slane %v5592, %v5605
      %v5607 = vcombine.low %v5599, %v5606
      %v5608 = vcombine.low %v4679, %v4680
      %v5609 = vcombine.low %v4681, %v4682
      %v5610 = vcombine.low %v4683, %v4684
      %v5611 = vcombine.low %v4685, %v4686
      %v5613 = vunpack.c.l.s4 1966171168
      %v5614 = vunpack.c.0.s8 %v5613
      %v5615 = vlaneseq
      %v5616 = vshrl.u32 %v5615, 7
      %v5617 = vsub.s32 %v5614, %v5616
      %v5618 = vrot.slane %v5608, %v5617
      %v5620 = vunpack.c.l.s4 1966171168
      %v5621 = vunpack.c.0.s8 %v5620
      %v5622 = vlaneseq
      %v5623 = vshrl.u32 %v5622, 7
      %v5624 = vsub.s32 %v5621, %v5623
      %v5625 = vrot.slane %v5609, %v5624
      %v5627 = vunpack.c.l.s4 1966171168
      %v5628 = vunpack.c.0.s8 %v5627
      %v5629 = vlaneseq
      %v5630 = vshrl.u32 %v5629, 7
      %v5631 = vsub.s32 %v5628, %v5630
      %v5632 = vrot.slane %v5610, %v5631
      %v5634 = vunpack.c.l.s4 1966171168
      %v5635 = vunpack.c.0.s8 %v5634
      %v5636 = vlaneseq
      %v5637 = vshrl.u32 %v5636, 7
      %v5638 = vsub.s32 %v5635, %v5637
      %v5639 = vrot.slane %v5611, %v5638
      %v5640 = vcombine.low %v5618, %v5625
      %v5641 = vcombine.low %v5632, %v5639
      %v5643 = vunpack.c.l.s4 1966171168
      %v5644 = vunpack.c.0.s8 %v5643
      %v5645 = vlaneseq
      %v5646 = vshrl.u32 %v5645, 7
      %v5647 = vsub.s32 %v5644, %v5646
      %v5648 = vrot.slane %v5640, %v5647
      %v5650 = vunpack.c.l.s4 1966171168
      %v5651 = vunpack.c.0.s8 %v5650
      %v5652 = vlaneseq
      %v5653 = vshrl.u32 %v5652, 7
      %v5654 = vsub.s32 %v5651, %v5653
      %v5655 = vrot.slane %v5641, %v5654
      %v5656 = vcombine.low %v5648, %v5655
      %v5657 = vcombine.low %v4687, %v4688
      %v5658 = vcombine.low %v4689, %v4690
      %v5659 = vcombine.low %v4691, %v4692
      %v5660 = vcombine.low %v4693, %v4694
      %v5662 = vunpack.c.l.s4 1966171168
      %v5663 = vunpack.c.0.s8 %v5662
      %v5664 = vlaneseq
      %v5665 = vshrl.u32 %v5664, 7
      %v5666 = vsub.s32 %v5663, %v5665
      %v5667 = vrot.slane %v5657, %v5666
      %v5669 = vunpack.c.l.s4 1966171168
      %v5670 = vunpack.c.0.s8 %v5669
      %v5671 = vlaneseq
      %v5672 = vshrl.u32 %v5671, 7
      %v5673 = vsub.s32 %v5670, %v5672
      %v5674 = vrot.slane %v5658, %v5673
      %v5676 = vunpack.c.l.s4 1966171168
      %v5677 = vunpack.c.0.s8 %v5676
      %v5678 = vlaneseq
      %v5679 = vshrl.u32 %v5678, 7
      %v5680 = vsub.s32 %v5677, %v5679
      %v5681 = vrot.slane %v5659, %v5680
      %v5683 = vunpack.c.l.s4 1966171168
      %v5684 = vunpack.c.0.s8 %v5683
      %v5685 = vlaneseq
      %v5686 = vshrl.u32 %v5685, 7
      %v5687 = vsub.s32 %v5684, %v5686
      %v5688 = vrot.slane %v5660, %v5687
      %v5689 = vcombine.low %v5667, %v5674
      %v5690 = vcombine.low %v5681, %v5688
      %v5692 = vunpack.c.l.s4 1966171168
      %v5693 = vunpack.c.0.s8 %v5692
      %v5694 = vlaneseq
      %v5695 = vshrl.u32 %v5694, 7
      %v5696 = vsub.s32 %v5693, %v5695
      %v5697 = vrot.slane %v5689, %v5696
      %v5699 = vunpack.c.l.s4 1966171168
      %v5700 = vunpack.c.0.s8 %v5699
      %v5701 = vlaneseq
      %v5702 = vshrl.u32 %v5701, 7
      %v5703 = vsub.s32 %v5700, %v5702
      %v5704 = vrot.slane %v5690, %v5703
      %v5705 = vcombine.low %v5697, %v5704
      %v5706 = vcombine.low %v4695, %v4696
      %v5707 = vcombine.low %v4697, %v4698
      %v5708 = vcombine.low %v4699, %v4700
      %v5709 = vcombine.low %v4701, %v4702
      %v5711 = vunpack.c.l.s4 1966171168
      %v5712 = vunpack.c.0.s8 %v5711
      %v5713 = vlaneseq
      %v5714 = vshrl.u32 %v5713, 7
      %v5715 = vsub.s32 %v5712, %v5714
      %v5716 = vrot.slane %v5706, %v5715
      %v5718 = vunpack.c.l.s4 1966171168
      %v5719 = vunpack.c.0.s8 %v5718
      %v5720 = vlaneseq
      %v5721 = vshrl.u32 %v5720, 7
      %v5722 = vsub.s32 %v5719, %v5721
      %v5723 = vrot.slane %v5707, %v5722
      %v5725 = vunpack.c.l.s4 1966171168
      %v5726 = vunpack.c.0.s8 %v5725
      %v5727 = vlaneseq
      %v5728 = vshrl.u32 %v5727, 7
      %v5729 = vsub.s32 %v5726, %v5728
      %v5730 = vrot.slane %v5708, %v5729
      %v5732 = vunpack.c.l.s4 1966171168
      %v5733 = vunpack.c.0.s8 %v5732
      %v5734 = vlaneseq
      %v5735 = vshrl.u32 %v5734, 7
      %v5736 = vsub.s32 %v5733, %v5735
      %v5737 = vrot.slane %v5709, %v5736
      %v5738 = vcombine.low %v5716, %v5723
      %v5739 = vcombine.low %v5730, %v5737
      %v5741 = vunpack.c.l.s4 1966171168
      %v5742 = vunpack.c.0.s8 %v5741
      %v5743 = vlaneseq
      %v5744 = vshrl.u32 %v5743, 7
      %v5745 = vsub.s32 %v5742, %v5744
      %v5746 = vrot.slane %v5738, %v5745
      %v5748 = vunpack.c.l.s4 1966171168
      %v5749 = vunpack.c.0.s8 %v5748
      %v5750 = vlaneseq
      %v5751 = vshrl.u32 %v5750, 7
      %v5752 = vsub.s32 %v5749, %v5751
      %v5753 = vrot.slane %v5739, %v5752
      %v5754 = vcombine.low %v5746, %v5753
      %v5755 = vcombine.low %v4703, %v4704
      %v5756 = vcombine.low %v4705, %v4706
      %v5757 = vcombine.low %v4707, %v4708
      %v5758 = vcombine.low %v4709, %v4710
      %v5760 = vunpack.c.l.s4 1966171168
      %v5761 = vunpack.c.0.s8 %v5760
      %v5762 = vlaneseq
      %v5763 = vshrl.u32 %v5762, 7
      %v5764 = vsub.s32 %v5761, %v5763
      %v5765 = vrot.slane %v5755, %v5764
      %v5767 = vunpack.c.l.s4 1966171168
      %v5768 = vunpack.c.0.s8 %v5767
      %v5769 = vlaneseq
      %v5770 = vshrl.u32 %v5769, 7
      %v5771 = vsub.s32 %v5768, %v5770
      %v5772 = vrot.slane %v5756, %v5771
      %v5774 = vunpack.c.l.s4 1966171168
      %v5775 = vunpack.c.0.s8 %v5774
      %v5776 = vlaneseq
      %v5777 = vshrl.u32 %v5776, 7
      %v5778 = vsub.s32 %v5775, %v5777
      %v5779 = vrot.slane %v5757, %v5778
      %v5781 = vunpack.c.l.s4 1966171168
      %v5782 = vunpack.c.0.s8 %v5781
      %v5783 = vlaneseq
      %v5784 = vshrl.u32 %v5783, 7
      %v5785 = vsub.s32 %v5782, %v5784
      %v5786 = vrot.slane %v5758, %v5785
      %v5787 = vcombine.low %v5765, %v5772
      %v5788 = vcombine.low %v5779, %v5786
      %v5790 = vunpack.c.l.s4 1966171168
      %v5791 = vunpack.c.0.s8 %v5790
      %v5792 = vlaneseq
      %v5793 = vshrl.u32 %v5792, 7
      %v5794 = vsub.s32 %v5791, %v5793
      %v5795 = vrot.slane %v5787, %v5794
      %v5797 = vunpack.c.l.s4 1966171168
      %v5798 = vunpack.c.0.s8 %v5797
      %v5799 = vlaneseq
      %v5800 = vshrl.u32 %v5799, 7
      %v5801 = vsub.s32 %v5798, %v5800
      %v5802 = vrot.slane %v5788, %v5801
      %v5803 = vcombine.low %v5795, %v5802
      %v5804 = vcombine.low %v4711, %v4712
      %v5805 = vcombine.low %v4713, %v4714
      %v5807 = vunpack.c.l.s4 1966171168
      %v5808 = vunpack.c.0.s8 %v5807
      %v5809 = vlaneseq
      %v5810 = vshrl.u32 %v5809, 7
      %v5811 = vsub.s32 %v5808, %v5810
      %v5812 = vrot.slane %v5804, %v5811
      %v5814 = vunpack.c.l.s4 1966171168
      %v5815 = vunpack.c.0.s8 %v5814
      %v5816 = vlaneseq
      %v5817 = vshrl.u32 %v5816, 7
      %v5818 = vsub.s32 %v5815, %v5817
      %v5819 = vrot.slane %v5805, %v5818
      %v5821 = vunpack.c.l.s4 1966171168
      %v5822 = vunpack.c.0.s8 %v5821
      %v5823 = vlaneseq
      %v5824 = vshrl.u32 %v5823, 7
      %v5825 = vsub.s32 %v5822, %v5824
      %v5826 = vrot.slane %v4715, %v5825
      %v5827 = vcombine.low %v5812, %v5819
      %v5829 = vunpack.c.l.s4 1966171168
      %v5830 = vunpack.c.0.s8 %v5829
      %v5831 = vlaneseq
      %v5832 = vshrl.u32 %v5831, 7
      %v5833 = vsub.s32 %v5830, %v5832
      %v5834 = vrot.slane %v5827, %v5833
      %v5836 = vunpack.c.l.s4 1966171168
      %v5837 = vunpack.c.0.s8 %v5836
      %v5838 = vlaneseq
      %v5839 = vshrl.u32 %v5838, 7
      %v5840 = vsub.s32 %v5837, %v5839
      %v5841 = vrot.slane %v5826, %v5840
      %v5842 = vcombine.low %v5834, %v5841
      %5863 = vst [vmem:[%s206] sm:$0xff] %v4921
      %5864 = vst [vmem:[%s206 + $0x8] sm:$0xff] %v4970
      %5865 = vst [vmem:[%s206 + $0x10] sm:$0xff] %v5019
      %5866 = vst [vmem:[%s206 + $0x18] sm:$0xff] %v5068
      %5867 = vst [vmem:[%s206 + $0x20] sm:$0xff] %v5117
      %5868 = vst [vmem:[%s206 + $0x28] sm:$0xff] %v5166
      %5869 = vst [vmem:[%s206 + $0x30] sm:$0xff] %v5215
      %5870 = vst [vmem:[%s206 + $0x38] sm:$0xff] %v5264
      %5871 = vst [vmem:[%s206 + $0x40] sm:$0xff] %v5313
      %5872 = vst [vmem:[%s206 + $0x48] sm:$0xff] %v5362
      %5873 = vst [vmem:[%s206 + $0x50] sm:$0xff] %v5411
      %5874 = vst [vmem:[%s206 + $0x58] sm:$0xff] %v5460
      %5875 = vst [vmem:[%s206 + $0x60] sm:$0xff] %v5509
      %5876 = vst [vmem:[%s206 + $0x68] sm:$0xff] %v5558
      %5877 = vst [vmem:[%s206 + $0x70] sm:$0xff] %v5607
      %5878 = vst [vmem:[%s206 + $0x78] sm:$0xff] %v5656
      %5879 = vst [vmem:[%s206 + $0x80] sm:$0xff] %v5705
      %5880 = vst [vmem:[%s206 + $0x88] sm:$0xff] %v5754
      %5881 = vst [vmem:[%s206 + $0x90] sm:$0xff] %v5803
      %5882 = vst [vmem:[%s206 + $0x98] sm:$0x1f] %v5842
      %s5883 = smul.u32 157, %s19
      %p5884 = scmp.lt.s32.totalorder %s18, 1
      %s5885 = scalar_select %p5884, %s18, 1
      %p5886 = scmp.lt.s32.totalorder %s5883, 156
      %s5887 = scalar_select %p5886, %s5883, 156
      %s5888 = smul.addr %s5885, 157
      %s5889 = sadd.s32 %s5887, %s5888
      %s5890 = scalar_lea.vmem %s3, %s5889
      // Predicated region
      $region33: #{convnetwork_forward.3} parent=31 // pred_check
        %p5891 = pneg %p116
      $region34: #{convnetwork_forward.3} parent=31 // pred_check_branch
        %5893 = sbr.rel (%p5891) target = $region36
      $region35: #{convnetwork_forward.3} parent=31 // pred_region
        %s5894 = smul.u32 157, %s19
      $region36: #{convnetwork_forward.3} parent=31 // pred_fallthru
        _
    $region32: #{convnetwork_forward.3} parent=5 // pred_fallthru
      _
    %p5895 = scmp.le.s32.totalorder 2, %s9
    // Predicated region
    $region37: #{convnetwork_forward.3} parent=5 // pred_check
      %p5896 = pneg %p5895
    $region38: #{convnetwork_forward.3} parent=5 // pred_check_branch
      %5898 = sbr.rel (%p5896) target = $region40
    $region39: #{convnetwork_forward.3} parent=5 // pred_region
      %s5899 = ssub.s32 %s9, 2
      // Predicated region
      $region41: #{convnetwork_forward.3} parent=39 // pred_check
        %p5900 = pneg %p122
      $region42: #{convnetwork_forward.3} parent=39 // pred_check_branch
        %5902 = sbr.rel (%p5900) target = $region44
      $region43: #{convnetwork_forward.3} parent=39 // pred_region
        %s5903 = smul.u32 157, %s21
        %p5904 = scmp.lt.s32.totalorder %s20, 1
        %s5905 = scalar_select %p5904, %s20, 1
        %p5906 = scmp.lt.s32.totalorder %s5903, 156
        %s5907 = scalar_select %p5906, %s5903, 156
        %s5908 = smul.addr %s5905, 157
        %s5909 = sadd.s32 %s5907, %s5908
        %s5910 = scalar_lea.vmem %s3, %s5909
      $region44: #{convnetwork_forward.3} parent=39 // pred_fallthru
        _
    $region40: #{convnetwork_forward.3} parent=5 // pred_fallthru
      _
  $region6: #{convnetwork_forward.3} parent=0 // loop_footer
    %s13 = sadd.s32 1, %s9
  $region7: #{convnetwork_forward.3} parent=0 // loop_footer_branch
    %8 = sbr.rel target = $region3
  $region8: #{convnetwork_forward.3} parent=0 // loop_exit
    _

// kernel: convnetwork_forward.4
$region0: #{convnetwork_forward.4}
  #allocation0 [shape = 'u32[]', space=smem, size = 0x4, offset = 0x4, fixed_abs, tag = 'smem constant byte address 0x4 - core index']
  #allocation1 [shape = 'u32[144,128]{1,0:T(1,128)}', space=vmem, size = 0x12000, scoped, tag = 'internal scratch']
  %s0 = inlined_call_operand.vmem [shape: bf16[2,24,5120], index: 0, kind: input, shape index: {}]
  %s1 = inlined_call_operand.vmem [shape: bf16[5,24], index: 1, kind: input, shape index: {}]
  %s2 = inlined_call_operand.vmem [shape: f32[5,1], index: 2, kind: input, shape index: {}]
  %s3 = inlined_call_operand.vmem [shape: bf16[2,5,5120], index: 3, kind: output, shape index: {}]
  %s4 = sld [smem:[#allocation0]]
  $region45: #{convnetwork_forward.4} parent=0
    _
  %s6 = ssub.s32 1, %s4
  %s7 = scalar_select 0, %s6, %s4
  loop: start=0, step=1, limit=4
  $region2: #{convnetwork_forward.4} parent=0 // loop_pre_header
    _
  $region3: #{convnetwork_forward.4} parent=0 // loop_header
    %s9 = sphi 0, %s13
    %p10 = scmp.ge.s32.totalorder %s9, 4
    %s16 = sphi 0, %s28
    %s17 = sphi 0, %s24
    %s18 = sphi 0, %s16
    %s19 = sphi 0, %s17
    %s20 = sphi 0, %s18
    %s21 = sphi 0, %s19
    %s33 = sphi 0, %s35
    %s36 = sphi 0, %s33
    %s37 = sphi 0, %s36
    %s53 = sphi 0, %s37
    %s57 = sphi 0, %s57
    %s59 = sphi 0, %s57
    %s60 = sphi 0, %s59
    %s74 = sphi 0, %s60
    %s78 = sphi 0, %s78
    %s80 = sphi 0, %s78
    %s81 = sphi 0, %s80
    %s95 = sphi 0, %s81
    %s103 = sphi 0, %s105
    %s106 = sphi 0, %s103
    %s107 = sphi 0, %s106
    %s123 = sphi 0, %s107
  $region4: #{convnetwork_forward.4} parent=0 // loop_header_branch
    %12 = sbr.rel (%p10) target = $region8
  $region5: #{convnetwork_forward.4} parent=0 // loop_body
    %s14 = ssub.s32 %s9, 1
    %s15 = ssub.s32 %s9, 2
    %s22 = sadd.s32 1, %s17
    %p23 = scmp.ge.s32.totalorder %s22, 1
    %s24 = scalar_select %p23, 0, %s22
    %s25 = sadd.s32 1, %s16
    %s26 = scalar_select %p23, %s25, %s16
    %p27 = scmp.ge.s32.totalorder %s26, 2
    %s28 = scalar_select %p27, 0, %s26
    %s29 = ssub.s32 %s16, %s28
    %s30 = ssub.s32 %s17, %s24
    %s31 = sor.u32 %s29, %s30
    %p32 = scmp.eq.s32.totalorder %s31, 0
    %s34 = sadd.s32 %s33, 1
    %s35 = scalar_select %p32, %s33, %s34
    %p38 = pneg %p32
    %p39 = scmp.eq.s32.totalorder %s9, 1
    %p40 = por %p38, %p39
    %p41 = scmp.ne.s32.totalorder %s33, %s36
    %p42 = scmp.eq.s32.totalorder %s9, 0
    %p43 = por %p41, %p42
    %p44 = scmp.ne.s32.totalorder %s33, %s36
    %p45 = scmp.eq.s32.totalorder %s14, 1
    %p46 = por %p44, %p45
    %p47 = scmp.ne.s32.totalorder %s36, %s37
    %p48 = scmp.eq.s32.totalorder %s14, 0
    %p49 = por %p47, %p48
    %p50 = scmp.ne.s32.totalorder %s36, %s37
    %p51 = scmp.eq.s32.totalorder %s15, 1
    %p52 = por %p50, %p51
    %p54 = scmp.ne.s32.totalorder %s37, %s53
    %p55 = scmp.eq.s32.totalorder %s15, 0
    %p56 = por %p54, %p55
    %s58 = sadd.s32 %s57, 1
    %p61 = scmp.eq.s32.totalorder %s9, 1
    %p62 = scmp.ne.s32.totalorder %s57, %s59
    %p63 = scmp.eq.s32.totalorder %s9, 0
    %p64 = por %p62, %p63
    %p65 = scmp.ne.s32.totalorder %s57, %s59
    %p66 = scmp.eq.s32.totalorder %s14, 1
    %p67 = por %p65, %p66
    %p68 = scmp.ne.s32.totalorder %s59, %s60
    %p69 = scmp.eq.s32.totalorder %s14, 0
    %p70 = por %p68, %p69
    %p71 = scmp.ne.s32.totalorder %s59, %s60
    %p72 = scmp.eq.s32.totalorder %s15, 1
    %p73 = por %p71, %p72
    %p75 = scmp.ne.s32.totalorder %s60, %s74
    %p76 = scmp.eq.s32.totalorder %s15, 0
    %p77 = por %p75, %p76
    %s79 = sadd.s32 %s78, 1
    %p82 = scmp.eq.s32.totalorder %s9, 1
    %p83 = scmp.ne.s32.totalorder %s78, %s80
    %p84 = scmp.eq.s32.totalorder %s9, 0
    %p85 = por %p83, %p84
    %p86 = scmp.ne.s32.totalorder %s78, %s80
    %p87 = scmp.eq.s32.totalorder %s14, 1
    %p88 = por %p86, %p87
    %p89 = scmp.ne.s32.totalorder %s80, %s81
    %p90 = scmp.eq.s32.totalorder %s14, 0
    %p91 = por %p89, %p90
    %p92 = scmp.ne.s32.totalorder %s80, %s81
    %p93 = scmp.eq.s32.totalorder %s15, 1
    %p94 = por %p92, %p93
    %p96 = scmp.ne.s32.totalorder %s81, %s95
    %p97 = scmp.eq.s32.totalorder %s15, 0
    %p98 = por %p96, %p97
    %s99 = ssub.s32 %s16, %s28
    %s100 = ssub.s32 %s17, %s24
    %s101 = sor.u32 %s99, %s100
    %p102 = scmp.eq.s32.totalorder %s101, 0
    %s104 = sadd.s32 %s103, 1
    %s105 = scalar_select %p102, %s103, %s104
    %p108 = pneg %p102
    %p109 = scmp.eq.s32.totalorder %s9, 1
    %p110 = por %p108, %p109
    %p111 = scmp.ne.s32.totalorder %s103, %s106
    %p112 = scmp.eq.s32.totalorder %s9, 0
    %p113 = por %p111, %p112
    %p114 = scmp.ne.s32.totalorder %s103, %s106
    %p115 = scmp.eq.s32.totalorder %s14, 1
    %p116 = por %p114, %p115
    %p117 = scmp.ne.s32.totalorder %s106, %s107
    %p118 = scmp.eq.s32.totalorder %s14, 0
    %p119 = por %p117, %p118
    %p120 = scmp.ne.s32.totalorder %s106, %s107
    %p121 = scmp.eq.s32.totalorder %s15, 1
    %p122 = por %p120, %p121
    %p124 = scmp.ne.s32.totalorder %s107, %s123
    %p125 = scmp.eq.s32.totalorder %s15, 0
    %p126 = por %p124, %p125
    %p127 = scmp.le.s32.totalorder 1, %s9
    %p128 = scmp.lt.s32.totalorder %s9, 3
    %p129 = pnand %p127, %p128
    %p130 = pneg %p129
    // Predicated region
    $region9: #{convnetwork_forward.4} parent=5 // pred_check
      _
    $region10: #{convnetwork_forward.4} parent=5 // pred_check_branch
      %132 = sbr.rel (%p129) target = $region12
    $region11: #{convnetwork_forward.4} parent=5 // pred_region
      %s133 = ssub.s32 %s9, 1
      // Predicated region
      $region13: #{convnetwork_forward.4} parent=11 // pred_check
        %p134 = pneg %p70
      $region14: #{convnetwork_forward.4} parent=11 // pred_check_branch
        %136 = sbr.rel (%p134) target = $region16
      $region15: #{convnetwork_forward.4} parent=11 // pred_region
        _
      $region16: #{convnetwork_forward.4} parent=11 // pred_fallthru
        _
      // Predicated region
      $region17: #{convnetwork_forward.4} parent=11 // pred_check
        %p137 = pneg %p91
      $region18: #{convnetwork_forward.4} parent=11 // pred_check_branch
        %139 = sbr.rel (%p137) target = $region20
      $region19: #{convnetwork_forward.4} parent=11 // pred_region
        _
      $region20: #{convnetwork_forward.4} parent=11 // pred_fallthru
        _
    $region12: #{convnetwork_forward.4} parent=5 // pred_fallthru
      _
    %p140 = scmp.lt.s32.totalorder %s9, 2
    // Predicated region
    $region21: #{convnetwork_forward.4} parent=5 // pred_check
      %p141 = pneg %p140
    $region22: #{convnetwork_forward.4} parent=5 // pred_check_branch
      %143 = sbr.rel (%p141) target = $region24
    $region23: #{convnetwork_forward.4} parent=5 // pred_region
      // Predicated region
      $region25: #{convnetwork_forward.4} parent=23 // pred_check
        %p144 = pneg %p43
      $region26: #{convnetwork_forward.4} parent=23 // pred_check_branch
        %146 = sbr.rel (%p144) target = $region28
      $region27: #{convnetwork_forward.4} parent=23 // pred_region
        %s147 = smul.u32 40, %s17
        %p148 = scmp.lt.s32.totalorder %s16, 1
        %s149 = scalar_select %p148, %s16, 1
        %p150 = scmp.lt.s32.totalorder %s147, 39
        %s151 = scalar_select %p150, %s147, 39
        %s152 = smul.addr %s149, 120
        %s153 = sadd.s32 %s151, %s152
        %s154 = smul.addr %s153, 4
        %s155 = scalar_lea.vmem %s0, %s154
        %s156 = smul.u32 40, %s17
      $region28: #{convnetwork_forward.4} parent=23 // pred_fallthru
        _
    $region24: #{convnetwork_forward.4} parent=5 // pred_fallthru
      _
    %p157 = scmp.le.s32.totalorder 1, %s9
    %p158 = scmp.lt.s32.totalorder %s9, 3
    %p159 = pnand %p157, %p158
    %p160 = pneg %p159
    // Predicated region
    $region29: #{convnetwork_forward.4} parent=5 // pred_check
      _
    $region30: #{convnetwork_forward.4} parent=5 // pred_check_branch
      %162 = sbr.rel (%p159) target = $region32
    $region31: #{convnetwork_forward.4} parent=5 // pred_region
      %s163 = ssub.s32 %s9, 1
      %s164 = smul.u32 40, %s19
      %p165 = scmp.lt.s32.totalorder %s18, 1
      %s166 = scalar_select %p165, %s18, 1
      %p167 = scmp.lt.s32.totalorder %s164, 39
      %s168 = scalar_select %p167, %s164, 39
      %s169 = smul.addr %s166, 120
      %s170 = sadd.s32 %s168, %s169
      %s171 = smul.addr %s170, 4
      %s172 = scalar_lea.vmem %s0, %s171
      %p173 = pneg %p49
      %p174 = pneg %p46
      %p175 = pneg %p70
      %p176 = pneg %p67
      %p177 = pneg %p91
      %p178 = pneg %p88
      %p179 = pneg %p119
      %p180 = pneg %p116
      %s181 = smul.u32 40, %s19
      %p182 = scmp.lt.s32.totalorder %s18, 1
      %s183 = scalar_select %p182, %s18, 1
      %p184 = scmp.lt.s32.totalorder %s181, 39
      %s185 = scalar_select %p184, %s181, 39
      %s186 = smul.addr %s183, 40
      %s187 = sadd.s32 %s185, %s186
      %s188 = smul.addr %s187, 4
      %s189 = scalar_lea.vmem %s3, %s188
      %s190 = smul.u32 40, %s19
      %p191 = scmp.lt.s32.totalorder %s18, 1
      %s192 = scalar_select %p191, %s18, 1
      %p193 = scmp.lt.s32.totalorder %s190, 39
      %s194 = scalar_select %p193, %s190, 39
      %s195 = smul.addr %s192, 120
      %s196 = sadd.s32 %s194, %s195
      %s197 = smul.addr %s196, 4
      %s198 = scalar_lea.vmem %s0, %s197
      %s199 = smul.u32 40, %s19
      %s200 = smul.u32 40, %s19
      %p201 = scmp.lt.s32.totalorder %s18, 1
      %s202 = scalar_select %p201, %s18, 1
      %p203 = scmp.lt.s32.totalorder %s200, 39
      %s204 = scalar_select %p203, %s200, 39
      %s205 = smul.addr %s202, 40
      %s206 = sadd.s32 %s204, %s205
      %s207 = smul.addr %s206, 4
      %s208 = scalar_lea.vmem %s3, %s207
      %s209 = smul.u32 40, %s19
      %v211 = vld [vmem:[%s1] sm:$0x7]
      %v212 = vld [vmem:[%s198] sm:$0xff]
      %v213 = vld [vmem:[%s198 + $0x8] sm:$0xff]
      %v214 = vld [vmem:[%s198 + $0x10] sm:$0xff]
      %v215 = vld [vmem:[%s198 + $0x18] sm:$0xff]
      %v216 = vld [vmem:[%s198 + $0x20] sm:$0xff]
      %v217 = vld [vmem:[%s198 + $0x28] sm:$0xff]
      %v218 = vld [vmem:[%s198 + $0x30] sm:$0xff]
      %v219 = vld [vmem:[%s198 + $0x38] sm:$0xff]
      %v220 = vld [vmem:[%s198 + $0x40] sm:$0xff]
      %v221 = vld [vmem:[%s198 + $0x48] sm:$0xff]
      %v222 = vld [vmem:[%s198 + $0x50] sm:$0xff]
      %v223 = vld [vmem:[%s198 + $0x58] sm:$0xff]
      %v224 = vld [vmem:[%s198 + $0x60] sm:$0xff]
      %v225 = vld [vmem:[%s198 + $0x68] sm:$0xff]
      %v226 = vld [vmem:[%s198 + $0x70] sm:$0xff]
      %v227 = vld [vmem:[%s198 + $0x78] sm:$0xff]
      %v228 = vld [vmem:[%s198 + $0x80] sm:$0xff]
      %v229 = vld [vmem:[%s198 + $0x88] sm:$0xff]
      %v230 = vld [vmem:[%s198 + $0x90] sm:$0xff]
      %v231 = vld [vmem:[%s198 + $0x98] sm:$0xff]
      %v232 = vld [vmem:[%s198 + $0xa0] sm:$0xff]
      %v233 = vld [vmem:[%s198 + $0xa8] sm:$0xff]
      %v234 = vld [vmem:[%s198 + $0xb0] sm:$0xff]
      %v235 = vld [vmem:[%s198 + $0xb8] sm:$0xff]
      %v236 = vld [vmem:[%s198 + $0xc0] sm:$0xff]
      %v237 = vld [vmem:[%s198 + $0xc8] sm:$0xff]
      %v238 = vld [vmem:[%s198 + $0xd0] sm:$0xff]
      %v239 = vld [vmem:[%s198 + $0xd8] sm:$0xff]
      %v240 = vld [vmem:[%s198 + $0xe0] sm:$0xff]
      %v241 = vld [vmem:[%s198 + $0xe8] sm:$0xff]
      %v242 = vld [vmem:[%s198 + $0xf0] sm:$0xff]
      %v243 = vld [vmem:[%s198 + $0xf8] sm:$0xff]
      %v244 = vld [vmem:[%s198 + $0x100] sm:$0xff]
      %v245 = vld [vmem:[%s198 + $0x108] sm:$0xff]
      %v246 = vld [vmem:[%s198 + $0x110] sm:$0xff]
      %v247 = vld [vmem:[%s198 + $0x118] sm:$0xff]
      %v248 = vld [vmem:[%s198 + $0x120] sm:$0xff]
      %v249 = vld [vmem:[%s198 + $0x128] sm:$0xff]
      %v250 = vld [vmem:[%s198 + $0x130] sm:$0xff]
      %v251 = vld [vmem:[%s198 + $0x138] sm:$0xff]
      %v252 = vld [vmem:[%s198 + $0x140] sm:$0xff]
      %v253 = vld [vmem:[%s198 + $0x148] sm:$0xff]
      %v254 = vld [vmem:[%s198 + $0x150] sm:$0xff]
      %v255 = vld [vmem:[%s198 + $0x158] sm:$0xff]
      %v256 = vld [vmem:[%s198 + $0x160] sm:$0xff]
      %v257 = vld [vmem:[%s198 + $0x168] sm:$0xff]
      %v258 = vld [vmem:[%s198 + $0x170] sm:$0xff]
      %v259 = vld [vmem:[%s198 + $0x178] sm:$0xff]
      %v260 = vld [vmem:[%s198 + $0x180] sm:$0xff]
      %v261 = vld [vmem:[%s198 + $0x188] sm:$0xff]
      %v262 = vld [vmem:[%s198 + $0x190] sm:$0xff]
      %v263 = vld [vmem:[%s198 + $0x198] sm:$0xff]
      %v264 = vld [vmem:[%s198 + $0x1a0] sm:$0xff]
      %v265 = vld [vmem:[%s198 + $0x1a8] sm:$0xff]
      %v266 = vld [vmem:[%s198 + $0x1b0] sm:$0xff]
      %v267 = vld [vmem:[%s198 + $0x1b8] sm:$0xff]
      %v268 = vld [vmem:[%s198 + $0x1c0] sm:$0xff]
      %v269 = vld [vmem:[%s198 + $0x1c8] sm:$0xff]
      %v270 = vld [vmem:[%s198 + $0x1d0] sm:$0xff]
      %v271 = vld [vmem:[%s198 + $0x1d8] sm:$0xff]
      %v272 = vld [vmem:[%s2] sm:$0x1f]
      %274 = vset.pattern.permute.xlu0 0
      %275 = vperm.xlu0 %274, %v272
      %v276 = vpop.permute.xlu0 %275
      %v338 = vunpack.c.l.b16 %v212
      %v339 = vunpack.c.h.b16 %v212
      %v340 = vunpack.c.l.b16 %v213
      %v341 = vunpack.c.h.b16 %v213
      %v342 = vunpack.c.l.b16 %v214
      %v343 = vunpack.c.h.b16 %v214
      %v344 = vunpack.c.l.b16 %v215
      %v345 = vunpack.c.h.b16 %v215
      %v346 = vunpack.c.l.b16 %v216
      %v347 = vunpack.c.h.b16 %v216
      %v348 = vunpack.c.l.b16 %v217
      %v349 = vunpack.c.h.b16 %v217
      %v350 = vunpack.c.l.b16 %v218
      %v351 = vunpack.c.h.b16 %v218
      %v352 = vunpack.c.l.b16 %v219
      %v353 = vunpack.c.h.b16 %v219
      %v354 = vunpack.c.l.b16 %v220
      %v355 = vunpack.c.h.b16 %v220
      %v356 = vunpack.c.l.b16 %v221
      %v357 = vunpack.c.h.b16 %v221
      %v358 = vunpack.c.l.b16 %v222
      %v359 = vunpack.c.h.b16 %v222
      %v360 = vunpack.c.l.b16 %v223
      %v361 = vunpack.c.h.b16 %v223
      %v362 = vunpack.c.l.b16 %v224
      %v363 = vunpack.c.h.b16 %v224
      %v364 = vunpack.c.l.b16 %v225
      %v365 = vunpack.c.h.b16 %v225
      %v366 = vunpack.c.l.b16 %v226
      %v367 = vunpack.c.h.b16 %v226
      %v368 = vunpack.c.l.b16 %v227
      %v369 = vunpack.c.h.b16 %v227
      %v370 = vunpack.c.l.b16 %v228
      %v371 = vunpack.c.h.b16 %v228
      %v372 = vunpack.c.l.b16 %v229
      %v373 = vunpack.c.h.b16 %v229
      %v374 = vunpack.c.l.b16 %v230
      %v375 = vunpack.c.h.b16 %v230
      %v376 = vunpack.c.l.b16 %v231
      %v377 = vunpack.c.h.b16 %v231
      %v378 = vunpack.c.l.b16 %v232
      %v379 = vunpack.c.h.b16 %v232
      %v380 = vunpack.c.l.b16 %v233
      %v381 = vunpack.c.h.b16 %v233
      %v382 = vunpack.c.l.b16 %v234
      %v383 = vunpack.c.h.b16 %v234
      %v384 = vunpack.c.l.b16 %v235
      %v385 = vunpack.c.h.b16 %v235
      %v386 = vunpack.c.l.b16 %v236
      %v387 = vunpack.c.h.b16 %v236
      %v388 = vunpack.c.l.b16 %v237
      %v389 = vunpack.c.h.b16 %v237
      %v390 = vunpack.c.l.b16 %v238
      %v391 = vunpack.c.h.b16 %v238
      %v392 = vunpack.c.l.b16 %v239
      %v393 = vunpack.c.h.b16 %v239
      %v394 = vunpack.c.l.b16 %v240
      %v395 = vunpack.c.h.b16 %v240
      %v396 = vunpack.c.l.b16 %v241
      %v397 = vunpack.c.h.b16 %v241
      %v398 = vunpack.c.l.b16 %v242
      %v399 = vunpack.c.h.b16 %v242
      %v400 = vunpack.c.l.b16 %v243
      %v401 = vunpack.c.h.b16 %v243
      %v402 = vunpack.c.l.b16 %v244
      %v403 = vunpack.c.h.b16 %v244
      %v404 = vunpack.c.l.b16 %v245
      %v405 = vunpack.c.h.b16 %v245
      %v406 = vunpack.c.l.b16 %v246
      %v407 = vunpack.c.h.b16 %v246
      %v408 = vunpack.c.l.b16 %v247
      %v409 = vunpack.c.h.b16 %v247
      %v410 = vunpack.c.l.b16 %v248
      %v411 = vunpack.c.h.b16 %v248
      %v412 = vunpack.c.l.b16 %v249
      %v413 = vunpack.c.h.b16 %v249
      %v414 = vunpack.c.l.b16 %v250
      %v415 = vunpack.c.h.b16 %v250
      %v416 = vunpack.c.l.b16 %v251
      %v417 = vunpack.c.h.b16 %v251
      %v418 = vunpack.c.l.b16 %v252
      %v419 = vunpack.c.h.b16 %v252
      %v420 = vunpack.c.l.b16 %v253
      %v421 = vunpack.c.h.b16 %v253
      %v422 = vunpack.c.l.b16 %v254
      %v423 = vunpack.c.h.b16 %v254
      %v424 = vunpack.c.l.b16 %v255
      %v425 = vunpack.c.h.b16 %v255
      %v426 = vunpack.c.l.b16 %v256
      %v427 = vunpack.c.h.b16 %v256
      %v428 = vunpack.c.l.b16 %v257
      %v429 = vunpack.c.h.b16 %v257
      %v430 = vunpack.c.l.b16 %v258
      %v431 = vunpack.c.h.b16 %v258
      %v432 = vunpack.c.l.b16 %v259
      %v433 = vunpack.c.h.b16 %v259
      %v434 = vunpack.c.l.b16 %v260
      %v435 = vunpack.c.h.b16 %v260
      %v436 = vunpack.c.l.b16 %v261
      %v437 = vunpack.c.h.b16 %v261
      %v438 = vunpack.c.l.b16 %v262
      %v439 = vunpack.c.h.b16 %v262
      %v440 = vunpack.c.l.b16 %v263
      %v441 = vunpack.c.h.b16 %v263
      %v442 = vunpack.c.l.b16 %v264
      %v443 = vunpack.c.h.b16 %v264
      %v444 = vunpack.c.l.b16 %v265
      %v445 = vunpack.c.h.b16 %v265
      %v446 = vunpack.c.l.b16 %v266
      %v447 = vunpack.c.h.b16 %v266
      %v448 = vunpack.c.l.b16 %v267
      %v449 = vunpack.c.h.b16 %v267
      %v450 = vunpack.c.l.b16 %v268
      %v451 = vunpack.c.h.b16 %v268
      %v452 = vunpack.c.l.b16 %v269
      %v453 = vunpack.c.h.b16 %v269
      %v454 = vunpack.c.l.b16 %v270
      %v455 = vunpack.c.h.b16 %v270
      %v456 = vunpack.c.l.b16 %v271
      %v457 = vunpack.c.h.b16 %v271
      %v458 = vpack.c.b16 %v378, %v338
      %v459 = vpack.c.b16 %v379, %v339
      %v460 = vpack.c.b16 %v380, %v340
      %v461 = vpack.c.b16 %v381, %v341
      %v462 = vpack.c.b16 %v382, %v342
      %v463 = vpack.c.b16 %v383, %v343
      %v464 = vpack.c.b16 %v384, %v344
      %v465 = vpack.c.b16 %v385, %v345
      %v466 = vpack.c.b16 %v386, %v346
      %v467 = vpack.c.b16 %v387, %v347
      %v468 = vpack.c.b16 %v388, %v348
      %v469 = vpack.c.b16 %v389, %v349
      %v470 = vpack.c.b16 %v390, %v350
      %v471 = vpack.c.b16 %v391, %v351
      %v472 = vpack.c.b16 %v392, %v352
      %v473 = vpack.c.b16 %v393, %v353
      %v474 = vpack.c.b16 %v394, %v354
      %v475 = vpack.c.b16 %v395, %v355
      %v476 = vpack.c.b16 %v396, %v356
      %v477 = vpack.c.b16 %v397, %v357
      %v478 = vpack.c.b16 %v398, %v358
      %v479 = vpack.c.b16 %v399, %v359
      %v480 = vpack.c.b16 %v400, %v360
      %v481 = vpack.c.b16 %v401, %v361
      %v482 = vpack.c.b16 %v402, %v362
      %v483 = vpack.c.b16 %v403, %v363
      %v484 = vpack.c.b16 %v404, %v364
      %v485 = vpack.c.b16 %v405, %v365
      %v486 = vpack.c.b16 %v406, %v366
      %v487 = vpack.c.b16 %v407, %v367
      %v488 = vpack.c.b16 %v408, %v368
      %v489 = vpack.c.b16 %v409, %v369
      %v490 = vpack.c.b16 %v410, %v370
      %v491 = vpack.c.b16 %v411, %v371
      %v492 = vpack.c.b16 %v412, %v372
      %v493 = vpack.c.b16 %v413, %v373
      %v494 = vpack.c.b16 %v414, %v374
      %v495 = vpack.c.b16 %v415, %v375
      %v496 = vpack.c.b16 %v416, %v376
      %v497 = vpack.c.b16 %v417, %v377
      %v498 = vpack.c.b16 %v418, %v418
      %v499 = vpack.c.b16 %v419, %v419
      %v500 = vpack.c.b16 %v420, %v420
      %v501 = vpack.c.b16 %v421, %v421
      %v502 = vpack.c.b16 %v422, %v422
      %v503 = vpack.c.b16 %v423, %v423
      %v504 = vpack.c.b16 %v424, %v424
      %v505 = vpack.c.b16 %v425, %v425
      %v506 = vpack.c.b16 %v426, %v426
      %v507 = vpack.c.b16 %v427, %v427
      %v508 = vpack.c.b16 %v428, %v428
      %v509 = vpack.c.b16 %v429, %v429
      %v510 = vpack.c.b16 %v430, %v430
      %v511 = vpack.c.b16 %v431, %v431
      %v512 = vpack.c.b16 %v432, %v432
      %v513 = vpack.c.b16 %v433, %v433
      %v514 = vpack.c.b16 %v434, %v434
      %v515 = vpack.c.b16 %v435, %v435
      %v516 = vpack.c.b16 %v436, %v436
      %v517 = vpack.c.b16 %v437, %v437
      %v518 = vpack.c.b16 %v438, %v438
      %v519 = vpack.c.b16 %v439, %v439
      %v520 = vpack.c.b16 %v440, %v440
      %v521 = vpack.c.b16 %v441, %v441
      %v522 = vpack.c.b16 %v442, %v442
      %v523 = vpack.c.b16 %v443, %v443
      %v524 = vpack.c.b16 %v444, %v444
      %v525 = vpack.c.b16 %v445, %v445
      %v526 = vpack.c.b16 %v446, %v446
      %v527 = vpack.c.b16 %v447, %v447
      %v528 = vpack.c.b16 %v448, %v448
      %v529 = vpack.c.b16 %v449, %v449
      %v530 = vpack.c.b16 %v450, %v450
      %v531 = vpack.c.b16 %v451, %v451
      %v532 = vpack.c.b16 %v452, %v452
      %v533 = vpack.c.b16 %v453, %v453
      %v534 = vpack.c.b16 %v454, %v454
      %v535 = vpack.c.b16 %v455, %v455
      %v536 = vpack.c.b16 %v456, %v456
      %v537 = vpack.c.b16 %v457, %v457
      %vm578 = vcmask 195584
      %v580 = vsel %vm578, %v211, 0
      %vm582 = vcmask 1043456
      %v584 = vsel %vm582, %v498, 0
      %v587 = vsel %vm582, %v499, 0
      %v590 = vsel %vm582, %v500, 0
      %v593 = vsel %vm582, %v501, 0
      %v596 = vsel %vm582, %v502, 0
      %v599 = vsel %vm582, %v503, 0
      %v602 = vsel %vm582, %v504, 0
      %v605 = vsel %vm582, %v505, 0
      %v608 = vsel %vm582, %v506, 0
      %v611 = vsel %vm582, %v507, 0
      %v614 = vsel %vm582, %v508, 0
      %v617 = vsel %vm582, %v509, 0
      %v620 = vsel %vm582, %v510, 0
      %v623 = vsel %vm582, %v511, 0
      %v626 = vsel %vm582, %v512, 0
      %v629 = vsel %vm582, %v513, 0
      %v632 = vsel %vm582, %v514, 0
      %v635 = vsel %vm582, %v515, 0
      %v638 = vsel %vm582, %v516, 0
      %v641 = vsel %vm582, %v517, 0
      %v644 = vsel %vm582, %v518, 0
      %v647 = vsel %vm582, %v519, 0
      %v650 = vsel %vm582, %v520, 0
      %v653 = vsel %vm582, %v521, 0
      %v656 = vsel %vm582, %v522, 0
      %v659 = vsel %vm582, %v523, 0
      %v662 = vsel %vm582, %v524, 0
      %v665 = vsel %vm582, %v525, 0
      %v668 = vsel %vm582, %v526, 0
      %v671 = vsel %vm582, %v527, 0
      %v674 = vsel %vm582, %v528, 0
      %v677 = vsel %vm582, %v529, 0
      %v680 = vsel %vm582, %v530, 0
      %v683 = vsel %vm582, %v531, 0
      %v686 = vsel %vm582, %v532, 0
      %v689 = vsel %vm582, %v533, 0
      %v692 = vsel %vm582, %v534, 0
      %v695 = vsel %vm582, %v535, 0
      %v698 = vsel %vm582, %v536, 0
      %v701 = vsel %vm582, %v537, 0
      %703 = vmatprep.subr.bf16.mxu0 %v459
      %704 = vmatpush1.bf16.msra.mxu0 %v458
      %705 = vmatprep.subr.bf16.mxu0 %v587
      %706 = vmatpush1.bf16.msra.mxu0 %v584
      %707 = vmatprep.subr.bf16.mxu0 0
      %708 = vmatpush1.bf16.msra.mxu0 0
      %709 = vmatprep.subr.bf16.mxu0 0
      %710 = vmatpush1.bf16.msra.mxu0 0
      %711 = vmatprep.subr.bf16.mxu0 0
      %712 = vmatpush1.bf16.msra.mxu0 0
      %713 = vmatprep.subr.bf16.mxu0 0
      %714 = vmatpush1.bf16.msra.mxu0 0
      %715 = vmatprep.subr.bf16.mxu0 0
      %716 = vmatpush1.bf16.msra.mxu0 0
      %717 = vmatprep.subr.bf16.mxu0 0
      %718 = vmatpush1.bf16.msra.mxu0 0
      %719 = vmatprep.subr.bf16.mxu0 0
      %720 = vmatpush1.bf16.msra.mxu0 0
      %721 = vmatprep.subr.bf16.mxu0 0
      %722 = vmatpush1.bf16.msra.mxu0 0
      %723 = vmatprep.subr.bf16.mxu0 0
      %724 = vmatpush1.bf16.msra.mxu0 0
      %725 = vmatprep.subr.bf16.mxu0 0
      %726 = vmatpush1.bf16.msra.mxu0 0
      %727 = vmatprep.subr.bf16.mxu0 0
      %728 = vmatpush1.bf16.msra.mxu0 0
      %729 = vmatprep.subr.bf16.mxu0 0
      %730 = vmatpush1.bf16.msra.mxu0 0
      %731 = vmatprep.subr.bf16.mxu0 0
      %732 = vmatpush1.bf16.msra.mxu0 0
      %733 = vmatprep.subr.bf16.mxu0 0
      %734 = vmatpush1.bf16.msra.mxu0 0
      %735 = vmatprep.mubr.bf16.mxu0 0
      %736 = vmatmul.mubr.bf16.gmra.mrb[0].mxu0 %v580
      %v737 = vpop.f32.mrb[0].mxu0
      %v738 = vadd.f32 %v276, %v737
      %v739 = vpop.f32.mrb[0].mxu0
      %v740 = vadd.f32 %v276, %v739
      %v741 = vpop.f32.mrb[0].mxu0
      %v742 = vpop.f32.mrb[0].mxu0
      %743 = vdwg.mxu0
      %744 = vmatprep.subr.bf16.mxu0 %v461
      %745 = vmatpush1.bf16.msra.mxu0 %v460
      %746 = vmatprep.subr.bf16.mxu0 %v593
      %747 = vmatpush1.bf16.msra.mxu0 %v590
      %748 = vmatprep.subr.bf16.mxu0 0
      %749 = vmatpush1.bf16.msra.mxu0 0
      %750 = vmatprep.subr.bf16.mxu0 0
      %751 = vmatpush1.bf16.msra.mxu0 0
      %752 = vmatprep.subr.bf16.mxu0 0
      %753 = vmatpush1.bf16.msra.mxu0 0
      %754 = vmatprep.subr.bf16.mxu0 0
      %755 = vmatpush1.bf16.msra.mxu0 0
      %756 = vmatprep.subr.bf16.mxu0 0
      %757 = vmatpush1.bf16.msra.mxu0 0
      %758 = vmatprep.subr.bf16.mxu0 0
      %759 = vmatpush1.bf16.msra.mxu0 0
      %760 = vmatprep.subr.bf16.mxu0 0
      %761 = vmatpush1.bf16.msra.mxu0 0
      %762 = vmatprep.subr.bf16.mxu0 0
      %763 = vmatpush1.bf16.msra.mxu0 0
      %764 = vmatprep.subr.bf16.mxu0 0
      %765 = vmatpush1.bf16.msra.mxu0 0
      %766 = vmatprep.subr.bf16.mxu0 0
      %767 = vmatpush1.bf16.msra.mxu0 0
      %768 = vmatprep.subr.bf16.mxu0 0
      %769 = vmatpush1.bf16.msra.mxu0 0
      %770 = vmatprep.subr.bf16.mxu0 0
      %771 = vmatpush1.bf16.msra.mxu0 0
      %772 = vmatprep.subr.bf16.mxu0 0
      %773 = vmatpush1.bf16.msra.mxu0 0
      %774 = vmatprep.subr.bf16.mxu0 0
      %775 = vmatpush1.bf16.msra.mxu0 0
      %776 = vmatprep.mubr.bf16.mxu0 0
      %777 = vmatmul.mubr.bf16.gmra.mrb[0].mxu0 %v580
      %v778 = vpop.f32.mrb[0].mxu0
      %v779 = vadd.f32 %v276, %v778
      %v780 = vpop.f32.mrb[0].mxu0
      %v781 = vadd.f32 %v276, %v780
      %v782 = vpop.f32.mrb[0].mxu0
      %v783 = vpop.f32.mrb[0].mxu0
      %784 = vdwg.mxu0
      %785 = vmatprep.subr.bf16.mxu0 %v463
      %786 = vmatpush1.bf16.msra.mxu0 %v462
      %787 = vmatprep.subr.bf16.mxu0 %v599
      %788 = vmatpush1.bf16.msra.mxu0 %v596
      %789 = vmatprep.subr.bf16.mxu0 0
      %790 = vmatpush1.bf16.msra.mxu0 0
      %791 = vmatprep.subr.bf16.mxu0 0
      %792 = vmatpush1.bf16.msra.mxu0 0
      %793 = vmatprep.subr.bf16.mxu0 0
      %794 = vmatpush1.bf16.msra.mxu0 0
      %795 = vmatprep.subr.bf16.mxu0 0
      %796 = vmatpush1.bf16.msra.mxu0 0
      %797 = vmatprep.subr.bf16.mxu0 0
      %798 = vmatpush1.bf16.msra.mxu0 0
      %799 = vmatprep.subr.bf16.mxu0 0
      %800 = vmatpush1.bf16.msra.mxu0 0
      %801 = vmatprep.subr.bf16.mxu0 0
      %802 = vmatpush1.bf16.msra.mxu0 0
      %803 = vmatprep.subr.bf16.mxu0 0
      %804 = vmatpush1.bf16.msra.mxu0 0
      %805 = vmatprep.subr.bf16.mxu0 0
      %806 = vmatpush1.bf16.msra.mxu0 0
      %807 = vmatprep.subr.bf16.mxu0 0
      %808 = vmatpush1.bf16.msra.mxu0 0
      %809 = vmatprep.subr.bf16.mxu0 0
      %810 = vmatpush1.bf16.msra.mxu0 0
      %811 = vmatprep.subr.bf16.mxu0 0
      %812 = vmatpush1.bf16.msra.mxu0 0
      %813 = vmatprep.subr.bf16.mxu0 0
      %814 = vmatpush1.bf16.msra.mxu0 0
      %815 = vmatprep.subr.bf16.mxu0 0
      %816 = vmatpush1.bf16.msra.mxu0 0
      %817 = vmatprep.mubr.bf16.mxu0 0
      %818 = vmatmul.mubr.bf16.gmra.mrb[0].mxu0 %v580
      %v819 = vpop.f32.mrb[0].mxu0
      %v820 = vadd.f32 %v276, %v819
      %v821 = vpop.f32.mrb[0].mxu0
      %v822 = vadd.f32 %v276, %v821
      %v823 = vpop.f32.mrb[0].mxu0
      %v824 = vpop.f32.mrb[0].mxu0
      %825 = vdwg.mxu0
      %826 = vmatprep.subr.bf16.mxu0 %v465
      %827 = vmatpush1.bf16.msra.mxu0 %v464
      %828 = vmatprep.subr.bf16.mxu0 %v605
      %829 = vmatpush1.bf16.msra.mxu0 %v602
      %830 = vmatprep.subr.bf16.mxu0 0
      %831 = vmatpush1.bf16.msra.mxu0 0
      %832 = vmatprep.subr.bf16.mxu0 0
      %833 = vmatpush1.bf16.msra.mxu0 0
      %834 = vmatprep.subr.bf16.mxu0 0
      %835 = vmatpush1.bf16.msra.mxu0 0
      %836 = vmatprep.subr.bf16.mxu0 0
      %837 = vmatpush1.bf16.msra.mxu0 0
      %838 = vmatprep.subr.bf16.mxu0 0
      %839 = vmatpush1.bf16.msra.mxu0 0
      %840 = vmatprep.subr.bf16.mxu0 0
      %841 = vmatpush1.bf16.msra.mxu0 0
      %842 = vmatprep.subr.bf16.mxu0 0
      %843 = vmatpush1.bf16.msra.mxu0 0
      %844 = vmatprep.subr.bf16.mxu0 0
      %845 = vmatpush1.bf16.msra.mxu0 0
      %846 = vmatprep.subr.bf16.mxu0 0
      %847 = vmatpush1.bf16.msra.mxu0 0
      %848 = vmatprep.subr.bf16.mxu0 0
      %849 = vmatpush1.bf16.msra.mxu0 0
      %850 = vmatprep.subr.bf16.mxu0 0
      %851 = vmatpush1.bf16.msra.mxu0 0
      %852 = vmatprep.subr.bf16.mxu0 0
      %853 = vmatpush1.bf16.msra.mxu0 0
      %854 = vmatprep.subr.bf16.mxu0 0
      %855 = vmatpush1.bf16.msra.mxu0 0
      %856 = vmatprep.subr.bf16.mxu0 0
      %857 = vmatpush1.bf16.msra.mxu0 0
      %858 = vmatprep.mubr.bf16.mxu0 0
      %859 = vmatmul.mubr.bf16.gmra.mrb[0].mxu0 %v580
      %v860 = vpop.f32.mrb[0].mxu0
      %v861 = vadd.f32 %v276, %v860
      %v862 = vpop.f32.mrb[0].mxu0
      %v863 = vadd.f32 %v276, %v862
      %v864 = vpop.f32.mrb[0].mxu0
      %v865 = vpop.f32.mrb[0].mxu0
      %866 = vdwg.mxu0
      %867 = vmatprep.subr.bf16.mxu0 %v467
      %868 = vmatpush1.bf16.msra.mxu0 %v466
      %869 = vmatprep.subr.bf16.mxu0 %v611
      %870 = vmatpush1.bf16.msra.mxu0 %v608
      %871 = vmatprep.subr.bf16.mxu0 0
      %872 = vmatpush1.bf16.msra.mxu0 0
      %873 = vmatprep.subr.bf16.mxu0 0
      %874 = vmatpush1.bf16.msra.mxu0 0
      %875 = vmatprep.subr.bf16.mxu0 0
      %876 = vmatpush1.bf16.msra.mxu0 0
      %877 = vmatprep.subr.bf16.mxu0 0
      %878 = vmatpush1.bf16.msra.mxu0 0
      %879 = vmatprep.subr.bf16.mxu0 0
      %880 = vmatpush1.bf16.msra.mxu0 0
      %881 = vmatprep.subr.bf16.mxu0 0
      %882 = vmatpush1.bf16.msra.mxu0 0
      %883 = vmatprep.subr.bf16.mxu0 0
      %884 = vmatpush1.bf16.msra.mxu0 0
      %885 = vmatprep.subr.bf16.mxu0 0
      %886 = vmatpush1.bf16.msra.mxu0 0
      %887 = vmatprep.subr.bf16.mxu0 0
      %888 = vmatpush1.bf16.msra.mxu0 0
      %889 = vmatprep.subr.bf16.mxu0 0
      %890 = vmatpush1.bf16.msra.mxu0 0
      %891 = vmatprep.subr.bf16.mxu0 0
      %892 = vmatpush1.bf16.msra.mxu0 0
      %893 = vmatprep.subr.bf16.mxu0 0
      %894 = vmatpush1.bf16.msra.mxu0 0
      %895 = vmatprep.subr.bf16.mxu0 0
      %896 = vmatpush1.bf16.msra.mxu0 0
      %897 = vmatprep.subr.bf16.mxu0 0
      %898 = vmatpush1.bf16.msra.mxu0 0
      %899 = vmatprep.mubr.bf16.mxu0 0
      %900 = vmatmul.mubr.bf16.gmra.mrb[0].mxu0 %v580
      %v901 = vpop.f32.mrb[0].mxu0
      %v902 = vadd.f32 %v276, %v901
      %v903 = vpop.f32.mrb[0].mxu0
      %v904 = vadd.f32 %v276, %v903
      %v905 = vpop.f32.mrb[0].mxu0
      %v906 = vpop.f32.mrb[0].mxu0
      %907 = vdwg.mxu0
      %908 = vmatprep.subr.bf16.mxu0 %v469
      %909 = vmatpush1.bf16.msra.mxu0 %v468
      %910 = vmatprep.subr.bf16.mxu0 %v617
      %911 = vmatpush1.bf16.msra.mxu0 %v614
      %912 = vmatprep.subr.bf16.mxu0 0
      %913 = vmatpush1.bf16.msra.mxu0 0
      %914 = vmatprep.subr.bf16.mxu0 0
      %915 = vmatpush1.bf16.msra.mxu0 0
      %916 = vmatprep.subr.bf16.mxu0 0
      %917 = vmatpush1.bf16.msra.mxu0 0
      %918 = vmatprep.subr.bf16.mxu0 0
      %919 = vmatpush1.bf16.msra.mxu0 0
      %920 = vmatprep.subr.bf16.mxu0 0
      %921 = vmatpush1.bf16.msra.mxu0 0
      %922 = vmatprep.subr.bf16.mxu0 0
      %923 = vmatpush1.bf16.msra.mxu0 0
      %924 = vmatprep.subr.bf16.mxu0 0
      %925 = vmatpush1.bf16.msra.mxu0 0
      %926 = vmatprep.subr.bf16.mxu0 0
      %927 = vmatpush1.bf16.msra.mxu0 0
      %928 = vmatprep.subr.bf16.mxu0 0
      %929 = vmatpush1.bf16.msra.mxu0 0
      %930 = vmatprep.subr.bf16.mxu0 0
      %931 = vmatpush1.bf16.msra.mxu0 0
      %932 = vmatprep.subr.bf16.mxu0 0
      %933 = vmatpush1.bf16.msra.mxu0 0
      %934 = vmatprep.subr.bf16.mxu0 0
      %935 = vmatpush1.bf16.msra.mxu0 0
      %936 = vmatprep.subr.bf16.mxu0 0
      %937 = vmatpush1.bf16.msra.mxu0 0
      %938 = vmatprep.subr.bf16.mxu0 0
      %939 = vmatpush1.bf16.msra.mxu0 0
      %940 = vmatprep.mubr.bf16.mxu0 0
      %941 = vmatmul.mubr.bf16.gmra.mrb[0].mxu0 %v580
      %v942 = vpop.f32.mrb[0].mxu0
      %v943 = vadd.f32 %v276, %v942
      %v944 = vpop.f32.mrb[0].mxu0
      %v945 = vadd.f32 %v276, %v944
      %v946 = vpop.f32.mrb[0].mxu0
      %v947 = vpop.f32.mrb[0].mxu0
      %948 = vdwg.mxu0
      %949 = vmatprep.subr.bf16.mxu0 %v471
      %950 = vmatpush1.bf16.msra.mxu0 %v470
      %951 = vmatprep.subr.bf16.mxu0 %v623
      %952 = vmatpush1.bf16.msra.mxu0 %v620
      %953 = vmatprep.subr.bf16.mxu0 0
      %954 = vmatpush1.bf16.msra.mxu0 0
      %955 = vmatprep.subr.bf16.mxu0 0
      %956 = vmatpush1.bf16.msra.mxu0 0
      %957 = vmatprep.subr.bf16.mxu0 0
      %958 = vmatpush1.bf16.msra.mxu0 0
      %959 = vmatprep.subr.bf16.mxu0 0
      %960 = vmatpush1.bf16.msra.mxu0 0
      %961 = vmatprep.subr.bf16.mxu0 0
      %962 = vmatpush1.bf16.msra.mxu0 0
      %963 = vmatprep.subr.bf16.mxu0 0
      %964 = vmatpush1.bf16.msra.mxu0 0
      %965 = vmatprep.subr.bf16.mxu0 0
      %966 = vmatpush1.bf16.msra.mxu0 0
      %967 = vmatprep.subr.bf16.mxu0 0
      %968 = vmatpush1.bf16.msra.mxu0 0
      %969 = vmatprep.subr.bf16.mxu0 0
      %970 = vmatpush1.bf16.msra.mxu0 0
      %971 = vmatprep.subr.bf16.mxu0 0
      %972 = vmatpush1.bf16.msra.mxu0 0
      %973 = vmatprep.subr.bf16.mxu0 0
      %974 = vmatpush1.bf16.msra.mxu0 0
      %975 = vmatprep.subr.bf16.mxu0 0
      %976 = vmatpush1.bf16.msra.mxu0 0
      %977 = vmatprep.subr.bf16.mxu0 0
      %978 = vmatpush1.bf16.msra.mxu0 0
      %979 = vmatprep.subr.bf16.mxu0 0
      %980 = vmatpush1.bf16.msra.mxu0 0
      %981 = vmatprep.mubr.bf16.mxu0 0
      %982 = vmatmul.mubr.bf16.gmra.mrb[0].mxu0 %v580
      %v983 = vpop.f32.mrb[0].mxu0
      %v984 = vadd.f32 %v276, %v983
      %v985 = vpop.f32.mrb[0].mxu0
      %v986 = vadd.f32 %v276, %v985
      %v987 = vpop.f32.mrb[0].mxu0
      %v988 = vpop.f32.mrb[0].mxu0
      %989 = vdwg.mxu0
      %990 = vmatprep.subr.bf16.mxu0 %v473
      %991 = vmatpush1.bf16.msra.mxu0 %v472
      %992 = vmatprep.subr.bf16.mxu0 %v629
      %993 = vmatpush1.bf16.msra.mxu0 %v626
      %994 = vmatprep.subr.bf16.mxu0 0
      %995 = vmatpush1.bf16.msra.mxu0 0
      %996 = vmatprep.subr.bf16.mxu0 0
      %997 = vmatpush1.bf16.msra.mxu0 0
      %998 = vmatprep.subr.bf16.mxu0 0
      %999 = vmatpush1.bf16.msra.mxu0 0
      %1000 = vmatprep.subr.bf16.mxu0 0
      %1001 = vmatpush1.bf16.msra.mxu0 0
      %1002 = vmatprep.subr.bf16.mxu0 0
      %1003 = vmatpush1.bf16.msra.mxu0 0
      %1004 = vmatprep.subr.bf16.mxu0 0
      %1005 = vmatpush1.bf16.msra.mxu0 0
      %1006 = vmatprep.subr.bf16.mxu0 0
      %1007 = vmatpush1.bf16.msra.mxu0 0
      %1008 = vmatprep.subr.bf16.mxu0 0
      %1009 = vmatpush1.bf16.msra.mxu0 0
      %1010 = vmatprep.subr.bf16.mxu0 0
      %1011 = vmatpush1.bf16.msra.mxu0 0
      %1012 = vmatprep.subr.bf16.mxu0 0
      %1013 = vmatpush1.bf16.msra.mxu0 0
      %1014 = vmatprep.subr.bf16.mxu0 0
      %1015 = vmatpush1.bf16.msra.mxu0 0
      %1016 = vmatprep.subr.bf16.mxu0 0
      %1017 = vmatpush1.bf16.msra.mxu0 0
      %1018 = vmatprep.subr.bf16.mxu0 0
      %1019 = vmatpush1.bf16.msra.mxu0 0
      %1020 = vmatprep.subr.bf16.mxu0 0
      %1021 = vmatpush1.bf16.msra.mxu0 0
      %1022 = vmatprep.mubr.bf16.mxu0 0
      %1023 = vmatmul.mubr.bf16.gmra.mrb[0].mxu0 %v580
      %v1024 = vpop.f32.mrb[0].mxu0
      %v1025 = vadd.f32 %v276, %v1024
      %v1026 = vpop.f32.mrb[0].mxu0
      %v1027 = vadd.f32 %v276, %v1026
      %v1028 = vpop.f32.mrb[0].mxu0
      %v1029 = vpop.f32.mrb[0].mxu0
      %1030 = vdwg.mxu0
      %1031 = vmatprep.subr.bf16.mxu0 %v475
      %1032 = vmatpush1.bf16.msra.mxu0 %v474
      %1033 = vmatprep.subr.bf16.mxu0 %v635
      %1034 = vmatpush1.bf16.msra.mxu0 %v632
      %1035 = vmatprep.subr.bf16.mxu0 0
      %1036 = vmatpush1.bf16.msra.mxu0 0
      %1037 = vmatprep.subr.bf16.mxu0 0
      %1038 = vmatpush1.bf16.msra.mxu0 0
      %1039 = vmatprep.subr.bf16.mxu0 0
      %1040 = vmatpush1.bf16.msra.mxu0 0
      %1041 = vmatprep.subr.bf16.mxu0 0
      %1042 = vmatpush1.bf16.msra.mxu0 0
      %1043 = vmatprep.subr.bf16.mxu0 0
      %1044 = vmatpush1.bf16.msra.mxu0 0
      %1045 = vmatprep.subr.bf16.mxu0 0
      %1046 = vmatpush1.bf16.msra.mxu0 0
      %1047 = vmatprep.subr.bf16.mxu0 0
      %1048 = vmatpush1.bf16.msra.mxu0 0
      %1049 = vmatprep.subr.bf16.mxu0 0
      %1050 = vmatpush1.bf16.msra.mxu0 0
      %1051 = vmatprep.subr.bf16.mxu0 0
      %1052 = vmatpush1.bf16.msra.mxu0 0
      %1053 = vmatprep.subr.bf16.mxu0 0
      %1054 = vmatpush1.bf16.msra.mxu0 0
      %1055 = vmatprep.subr.bf16.mxu0 0
      %1056 = vmatpush1.bf16.msra.mxu0 0
      %1057 = vmatprep.subr.bf16.mxu0 0
      %1058 = vmatpush1.bf16.msra.mxu0 0
      %1059 = vmatprep.subr.bf16.mxu0 0
      %1060 = vmatpush1.bf16.msra.mxu0 0
      %1061 = vmatprep.subr.bf16.mxu0 0
      %1062 = vmatpush1.bf16.msra.mxu0 0
      %1063 = vmatprep.mubr.bf16.mxu0 0
      %1064 = vmatmul.mubr.bf16.gmra.mrb[0].mxu0 %v580
      %v1065 = vpop.f32.mrb[0].mxu0
      %v1066 = vadd.f32 %v276, %v1065
      %v1067 = vpop.f32.mrb[0].mxu0
      %v1068 = vadd.f32 %v276, %v1067
      %v1069 = vpop.f32.mrb[0].mxu0
      %v1070 = vpop.f32.mrb[0].mxu0
      %1071 = vdwg.mxu0
      %1072 = vmatprep.subr.bf16.mxu0 %v477
      %1073 = vmatpush1.bf16.msra.mxu0 %v476
      %1074 = vmatprep.subr.bf16.mxu0 %v641
      %1075 = vmatpush1.bf16.msra.mxu0 %v638
      %1076 = vmatprep.subr.bf16.mxu0 0
      %1077 = vmatpush1.bf16.msra.mxu0 0
      %1078 = vmatprep.subr.bf16.mxu0 0
      %1079 = vmatpush1.bf16.msra.mxu0 0
      %1080 = vmatprep.subr.bf16.mxu0 0
      %1081 = vmatpush1.bf16.msra.mxu0 0
      %1082 = vmatprep.subr.bf16.mxu0 0
      %1083 = vmatpush1.bf16.msra.mxu0 0
      %1084 = vmatprep.subr.bf16.mxu0 0
      %1085 = vmatpush1.bf16.msra.mxu0 0
      %1086 = vmatprep.subr.bf16.mxu0 0
      %1087 = vmatpush1.bf16.msra.mxu0 0
      %1088 = vmatprep.subr.bf16.mxu0 0
      %1089 = vmatpush1.bf16.msra.mxu0 0
      %1090 = vmatprep.subr.bf16.mxu0 0
      %1091 = vmatpush1.bf16.msra.mxu0 0
      %1092 = vmatprep.subr.bf16.mxu0 0
      %1093 = vmatpush1.bf16.msra.mxu0 0
      %1094 = vmatprep.subr.bf16.mxu0 0
      %1095 = vmatpush1.bf16.msra.mxu0 0
      %1096 = vmatprep.subr.bf16.mxu0 0
      %1097 = vmatpush1.bf16.msra.mxu0 0
      %1098 = vmatprep.subr.bf16.mxu0 0
      %1099 = vmatpush1.bf16.msra.mxu0 0
      %1100 = vmatprep.subr.bf16.mxu0 0
      %1101 = vmatpush1.bf16.msra.mxu0 0
      %1102 = vmatprep.subr.bf16.mxu0 0
      %1103 = vmatpush1.bf16.msra.mxu0 0
      %1104 = vmatprep.mubr.bf16.mxu0 0
      %1105 = vmatmul.mubr.bf16.gmra.mrb[0].mxu0 %v580
      %v1106 = vpop.f32.mrb[0].mxu0
      %v1107 = vadd.f32 %v276, %v1106
      %v1108 = vpop.f32.mrb[0].mxu0
      %v1109 = vadd.f32 %v276, %v1108
      %v1110 = vpop.f32.mrb[0].mxu0
      %v1111 = vpop.f32.mrb[0].mxu0
      %1112 = vdwg.mxu0
      %1113 = vmatprep.subr.bf16.mxu0 %v479
      %1114 = vmatpush1.bf16.msra.mxu0 %v478
      %1115 = vmatprep.subr.bf16.mxu0 %v647
      %1116 = vmatpush1.bf16.msra.mxu0 %v644
      %1117 = vmatprep.subr.bf16.mxu0 0
      %1118 = vmatpush1.bf16.msra.mxu0 0
      %1119 = vmatprep.subr.bf16.mxu0 0
      %1120 = vmatpush1.bf16.msra.mxu0 0
      %1121 = vmatprep.subr.bf16.mxu0 0
      %1122 = vmatpush1.bf16.msra.mxu0 0
      %1123 = vmatprep.subr.bf16.mxu0 0
      %1124 = vmatpush1.bf16.msra.mxu0 0
      %1125 = vmatprep.subr.bf16.mxu0 0
      %1126 = vmatpush1.bf16.msra.mxu0 0
      %1127 = vmatprep.subr.bf16.mxu0 0
      %1128 = vmatpush1.bf16.msra.mxu0 0
      %1129 = vmatprep.subr.bf16.mxu0 0
      %1130 = vmatpush1.bf16.msra.mxu0 0
      %1131 = vmatprep.subr.bf16.mxu0 0
      %1132 = vmatpush1.bf16.msra.mxu0 0
      %1133 = vmatprep.subr.bf16.mxu0 0
      %1134 = vmatpush1.bf16.msra.mxu0 0
      %1135 = vmatprep.subr.bf16.mxu0 0
      %1136 = vmatpush1.bf16.msra.mxu0 0
      %1137 = vmatprep.subr.bf16.mxu0 0
      %1138 = vmatpush1.bf16.msra.mxu0 0
      %1139 = vmatprep.subr.bf16.mxu0 0
      %1140 = vmatpush1.bf16.msra.mxu0 0
      %1141 = vmatprep.subr.bf16.mxu0 0
      %1142 = vmatpush1.bf16.msra.mxu0 0
      %1143 = vmatprep.subr.bf16.mxu0 0
      %1144 = vmatpush1.bf16.msra.mxu0 0
      %1145 = vmatprep.mubr.bf16.mxu0 0
      %1146 = vmatmul.mubr.bf16.gmra.mrb[0].mxu0 %v580
      %v1147 = vpop.f32.mrb[0].mxu0
      %v1148 = vadd.f32 %v276, %v1147
      %v1149 = vpop.f32.mrb[0].mxu0
      %v1150 = vadd.f32 %v276, %v1149
      %v1151 = vpop.f32.mrb[0].mxu0
      %v1152 = vpop.f32.mrb[0].mxu0
      %1153 = vdwg.mxu0
      %1154 = vmatprep.subr.bf16.mxu0 %v481
      %1155 = vmatpush1.bf16.msra.mxu0 %v480
      %1156 = vmatprep.subr.bf16.mxu0 %v653
      %1157 = vmatpush1.bf16.msra.mxu0 %v650
      %1158 = vmatprep.subr.bf16.mxu0 0
      %1159 = vmatpush1.bf16.msra.mxu0 0
      %1160 = vmatprep.subr.bf16.mxu0 0
      %1161 = vmatpush1.bf16.msra.mxu0 0
      %1162 = vmatprep.subr.bf16.mxu0 0
      %1163 = vmatpush1.bf16.msra.mxu0 0
      %1164 = vmatprep.subr.bf16.mxu0 0
      %1165 = vmatpush1.bf16.msra.mxu0 0
      %1166 = vmatprep.subr.bf16.mxu0 0
      %1167 = vmatpush1.bf16.msra.mxu0 0
      %1168 = vmatprep.subr.bf16.mxu0 0
      %1169 = vmatpush1.bf16.msra.mxu0 0
      %1170 = vmatprep.subr.bf16.mxu0 0
      %1171 = vmatpush1.bf16.msra.mxu0 0
      %1172 = vmatprep.subr.bf16.mxu0 0
      %1173 = vmatpush1.bf16.msra.mxu0 0
      %1174 = vmatprep.subr.bf16.mxu0 0
      %1175 = vmatpush1.bf16.msra.mxu0 0
      %1176 = vmatprep.subr.bf16.mxu0 0
      %1177 = vmatpush1.bf16.msra.mxu0 0
      %1178 = vmatprep.subr.bf16.mxu0 0
      %1179 = vmatpush1.bf16.msra.mxu0 0
      %1180 = vmatprep.subr.bf16.mxu0 0
      %1181 = vmatpush1.bf16.msra.mxu0 0
      %1182 = vmatprep.subr.bf16.mxu0 0
      %1183 = vmatpush1.bf16.msra.mxu0 0
      %1184 = vmatprep.subr.bf16.mxu0 0
      %1185 = vmatpush1.bf16.msra.mxu0 0
      %1186 = vmatprep.mubr.bf16.mxu0 0
      %1187 = vmatmul.mubr.bf16.gmra.mrb[0].mxu0 %v580
      %v1188 = vpop.f32.mrb[0].mxu0
      %v1189 = vadd.f32 %v276, %v1188
      %v1190 = vpop.f32.mrb[0].mxu0
      %v1191 = vadd.f32 %v276, %v1190
      %v1192 = vpop.f32.mrb[0].mxu0
      %v1193 = vpop.f32.mrb[0].mxu0
      %1194 = vdwg.mxu0
      %1195 = vmatprep.subr.bf16.mxu0 %v483
      %1196 = vmatpush1.bf16.msra.mxu0 %v482
      %1197 = vmatprep.subr.bf16.mxu0 %v659
      %1198 = vmatpush1.bf16.msra.mxu0 %v656
      %1199 = vmatprep.subr.bf16.mxu0 0
      %1200 = vmatpush1.bf16.msra.mxu0 0
      %1201 = vmatprep.subr.bf16.mxu0 0
      %1202 = vmatpush1.bf16.msra.mxu0 0
      %1203 = vmatprep.subr.bf16.mxu0 0
      %1204 = vmatpush1.bf16.msra.mxu0 0
      %1205 = vmatprep.subr.bf16.mxu0 0
      %1206 = vmatpush1.bf16.msra.mxu0 0
      %1207 = vmatprep.subr.bf16.mxu0 0
      %1208 = vmatpush1.bf16.msra.mxu0 0
      %1209 = vmatprep.subr.bf16.mxu0 0
      %1210 = vmatpush1.bf16.msra.mxu0 0
      %1211 = vmatprep.subr.bf16.mxu0 0
      %1212 = vmatpush1.bf16.msra.mxu0 0
      %1213 = vmatprep.subr.bf16.mxu0 0
      %1214 = vmatpush1.bf16.msra.mxu0 0
      %1215 = vmatprep.subr.bf16.mxu0 0
      %1216 = vmatpush1.bf16.msra.mxu0 0
      %1217 = vmatprep.subr.bf16.mxu0 0
      %1218 = vmatpush1.bf16.msra.mxu0 0
      %1219 = vmatprep.subr.bf16.mxu0 0
      %1220 = vmatpush1.bf16.msra.mxu0 0
      %1221 = vmatprep.subr.bf16.mxu0 0
      %1222 = vmatpush1.bf16.msra.mxu0 0
      %1223 = vmatprep.subr.bf16.mxu0 0
      %1224 = vmatpush1.bf16.msra.mxu0 0
      %1225 = vmatprep.subr.bf16.mxu0 0
      %1226 = vmatpush1.bf16.msra.mxu0 0
      %1227 = vmatprep.mubr.bf16.mxu0 0
      %1228 = vmatmul.mubr.bf16.gmra.mrb[0].mxu0 %v580
      %v1229 = vpop.f32.mrb[0].mxu0
      %v1230 = vadd.f32 %v276, %v1229
      %v1231 = vpop.f32.mrb[0].mxu0
      %v1232 = vadd.f32 %v276, %v1231
      %v1233 = vpop.f32.mrb[0].mxu0
      %v1234 = vpop.f32.mrb[0].mxu0
      %1235 = vdwg.mxu0
      %1236 = vmatprep.subr.bf16.mxu0 %v485
      %1237 = vmatpush1.bf16.msra.mxu0 %v484
      %1238 = vmatprep.subr.bf16.mxu0 %v665
      %1239 = vmatpush1.bf16.msra.mxu0 %v662
      %1240 = vmatprep.subr.bf16.mxu0 0
      %1241 = vmatpush1.bf16.msra.mxu0 0
      %1242 = vmatprep.subr.bf16.mxu0 0
      %1243 = vmatpush1.bf16.msra.mxu0 0
      %1244 = vmatprep.subr.bf16.mxu0 0
      %1245 = vmatpush1.bf16.msra.mxu0 0
      %1246 = vmatprep.subr.bf16.mxu0 0
      %1247 = vmatpush1.bf16.msra.mxu0 0
      %1248 = vmatprep.subr.bf16.mxu0 0
      %1249 = vmatpush1.bf16.msra.mxu0 0
      %1250 = vmatprep.subr.bf16.mxu0 0
      %1251 = vmatpush1.bf16.msra.mxu0 0
      %1252 = vmatprep.subr.bf16.mxu0 0
      %1253 = vmatpush1.bf16.msra.mxu0 0
      %1254 = vmatprep.subr.bf16.mxu0 0
      %1255 = vmatpush1.bf16.msra.mxu0 0
      %1256 = vmatprep.subr.bf16.mxu0 0
      %1257 = vmatpush1.bf16.msra.mxu0 0
      %1258 = vmatprep.subr.bf16.mxu0 0
      %1259 = vmatpush1.bf16.msra.mxu0 0
      %1260 = vmatprep.subr.bf16.mxu0 0
      %1261 = vmatpush1.bf16.msra.mxu0 0
      %1262 = vmatprep.subr.bf16.mxu0 0
      %1263 = vmatpush1.bf16.msra.mxu0 0
      %1264 = vmatprep.subr.bf16.mxu0 0
      %1265 = vmatpush1.bf16.msra.mxu0 0
      %1266 = vmatprep.subr.bf16.mxu0 0
      %1267 = vmatpush1.bf16.msra.mxu0 0
      %1268 = vmatprep.mubr.bf16.mxu0 0
      %1269 = vmatmul.mubr.bf16.gmra.mrb[0].mxu0 %v580
      %v1270 = vpop.f32.mrb[0].mxu0
      %v1271 = vadd.f32 %v276, %v1270
      %v1272 = vpop.f32.mrb[0].mxu0
      %v1273 = vadd.f32 %v276, %v1272
      %v1274 = vpop.f32.mrb[0].mxu0
      %v1275 = vpop.f32.mrb[0].mxu0
      %1276 = vdwg.mxu0
      %1277 = vmatprep.subr.bf16.mxu0 %v487
      %1278 = vmatpush1.bf16.msra.mxu0 %v486
      %1279 = vmatprep.subr.bf16.mxu0 %v671
      %1280 = vmatpush1.bf16.msra.mxu0 %v668
      %1281 = vmatprep.subr.bf16.mxu0 0
      %1282 = vmatpush1.bf16.msra.mxu0 0
      %1283 = vmatprep.subr.bf16.mxu0 0
      %1284 = vmatpush1.bf16.msra.mxu0 0
      %1285 = vmatprep.subr.bf16.mxu0 0
      %1286 = vmatpush1.bf16.msra.mxu0 0
      %1287 = vmatprep.subr.bf16.mxu0 0
      %1288 = vmatpush1.bf16.msra.mxu0 0
      %1289 = vmatprep.subr.bf16.mxu0 0
      %1290 = vmatpush1.bf16.msra.mxu0 0
      %1291 = vmatprep.subr.bf16.mxu0 0
      %1292 = vmatpush1.bf16.msra.mxu0 0
      %1293 = vmatprep.subr.bf16.mxu0 0
      %1294 = vmatpush1.bf16.msra.mxu0 0
      %1295 = vmatprep.subr.bf16.mxu0 0
      %1296 = vmatpush1.bf16.msra.mxu0 0
      %1297 = vmatprep.subr.bf16.mxu0 0
      %1298 = vmatpush1.bf16.msra.mxu0 0
      %1299 = vmatprep.subr.bf16.mxu0 0
      %1300 = vmatpush1.bf16.msra.mxu0 0
      %1301 = vmatprep.subr.bf16.mxu0 0
      %1302 = vmatpush1.bf16.msra.mxu0 0
      %1303 = vmatprep.subr.bf16.mxu0 0
      %1304 = vmatpush1.bf16.msra.mxu0 0
      %1305 = vmatprep.subr.bf16.mxu0 0
      %1306 = vmatpush1.bf16.msra.mxu0 0
      %1307 = vmatprep.subr.bf16.mxu0 0
      %1308 = vmatpush1.bf16.msra.mxu0 0
      %1309 = vmatprep.mubr.bf16.mxu0 0
      %1310 = vmatmul.mubr.bf16.gmra.mrb[0].mxu0 %v580
      %v1311 = vpop.f32.mrb[0].mxu0
      %v1312 = vadd.f32 %v276, %v1311
      %v1313 = vpop.f32.mrb[0].mxu0
      %v1314 = vadd.f32 %v276, %v1313
      %v1315 = vpop.f32.mrb[0].mxu0
      %v1316 = vpop.f32.mrb[0].mxu0
      %1317 = vdwg.mxu0
      %1318 = vmatprep.subr.bf16.mxu0 %v489
      %1319 = vmatpush1.bf16.msra.mxu0 %v488
      %1320 = vmatprep.subr.bf16.mxu0 %v677
      %1321 = vmatpush1.bf16.msra.mxu0 %v674
      %1322 = vmatprep.subr.bf16.mxu0 0
      %1323 = vmatpush1.bf16.msra.mxu0 0
      %1324 = vmatprep.subr.bf16.mxu0 0
      %1325 = vmatpush1.bf16.msra.mxu0 0
      %1326 = vmatprep.subr.bf16.mxu0 0
      %1327 = vmatpush1.bf16.msra.mxu0 0
      %1328 = vmatprep.subr.bf16.mxu0 0
      %1329 = vmatpush1.bf16.msra.mxu0 0
      %1330 = vmatprep.subr.bf16.mxu0 0
      %1331 = vmatpush1.bf16.msra.mxu0 0
      %1332 = vmatprep.subr.bf16.mxu0 0
      %1333 = vmatpush1.bf16.msra.mxu0 0
      %1334 = vmatprep.subr.bf16.mxu0 0
      %1335 = vmatpush1.bf16.msra.mxu0 0
      %1336 = vmatprep.subr.bf16.mxu0 0
      %1337 = vmatpush1.bf16.msra.mxu0 0
      %1338 = vmatprep.subr.bf16.mxu0 0
      %1339 = vmatpush1.bf16.msra.mxu0 0
      %1340 = vmatprep.subr.bf16.mxu0 0
      %1341 = vmatpush1.bf16.msra.mxu0 0
      %1342 = vmatprep.subr.bf16.mxu0 0
      %1343 = vmatpush1.bf16.msra.mxu0 0
      %1344 = vmatprep.subr.bf16.mxu0 0
      %1345 = vmatpush1.bf16.msra.mxu0 0
      %1346 = vmatprep.subr.bf16.mxu0 0
      %1347 = vmatpush1.bf16.msra.mxu0 0
      %1348 = vmatprep.subr.bf16.mxu0 0
      %1349 = vmatpush1.bf16.msra.mxu0 0
      %1350 = vmatprep.mubr.bf16.mxu0 0
      %1351 = vmatmul.mubr.bf16.gmra.mrb[0].mxu0 %v580
      %v1352 = vpop.f32.mrb[0].mxu0
      %v1353 = vadd.f32 %v276, %v1352
      %v1354 = vpop.f32.mrb[0].mxu0
      %v1355 = vadd.f32 %v276, %v1354
      %v1356 = vpop.f32.mrb[0].mxu0
      %v1357 = vpop.f32.mrb[0].mxu0
      %1358 = vdwg.mxu0
      %1359 = vmatprep.subr.bf16.mxu0 %v491
      %1360 = vmatpush1.bf16.msra.mxu0 %v490
      %1361 = vmatprep.subr.bf16.mxu0 %v683
      %1362 = vmatpush1.bf16.msra.mxu0 %v680
      %1363 = vmatprep.subr.bf16.mxu0 0
      %1364 = vmatpush1.bf16.msra.mxu0 0
      %1365 = vmatprep.subr.bf16.mxu0 0
      %1366 = vmatpush1.bf16.msra.mxu0 0
      %1367 = vmatprep.subr.bf16.mxu0 0
      %1368 = vmatpush1.bf16.msra.mxu0 0
      %1369 = vmatprep.subr.bf16.mxu0 0
      %1370 = vmatpush1.bf16.msra.mxu0 0
      %1371 = vmatprep.subr.bf16.mxu0 0
      %1372 = vmatpush1.bf16.msra.mxu0 0
      %1373 = vmatprep.subr.bf16.mxu0 0
      %1374 = vmatpush1.bf16.msra.mxu0 0
      %1375 = vmatprep.subr.bf16.mxu0 0
      %1376 = vmatpush1.bf16.msra.mxu0 0
      %1377 = vmatprep.subr.bf16.mxu0 0
      %1378 = vmatpush1.bf16.msra.mxu0 0
      %1379 = vmatprep.subr.bf16.mxu0 0
      %1380 = vmatpush1.bf16.msra.mxu0 0
      %1381 = vmatprep.subr.bf16.mxu0 0
      %1382 = vmatpush1.bf16.msra.mxu0 0
      %1383 = vmatprep.subr.bf16.mxu0 0
      %1384 = vmatpush1.bf16.msra.mxu0 0
      %1385 = vmatprep.subr.bf16.mxu0 0
      %1386 = vmatpush1.bf16.msra.mxu0 0
      %1387 = vmatprep.subr.bf16.mxu0 0
      %1388 = vmatpush1.bf16.msra.mxu0 0
      %1389 = vmatprep.subr.bf16.mxu0 0
      %1390 = vmatpush1.bf16.msra.mxu0 0
      %1391 = vmatprep.mubr.bf16.mxu0 0
      %1392 = vmatmul.mubr.bf16.gmra.mrb[0].mxu0 %v580
      %v1393 = vpop.f32.mrb[0].mxu0
      %v1394 = vadd.f32 %v276, %v1393
      %v1395 = vpop.f32.mrb[0].mxu0
      %v1396 = vadd.f32 %v276, %v1395
      %v1397 = vpop.f32.mrb[0].mxu0
      %v1398 = vpop.f32.mrb[0].mxu0
      %1399 = vdwg.mxu0
      %1400 = vmatprep.subr.bf16.mxu0 %v493
      %1401 = vmatpush1.bf16.msra.mxu0 %v492
      %1402 = vmatprep.subr.bf16.mxu0 %v689
      %1403 = vmatpush1.bf16.msra.mxu0 %v686
      %1404 = vmatprep.subr.bf16.mxu0 0
      %1405 = vmatpush1.bf16.msra.mxu0 0
      %1406 = vmatprep.subr.bf16.mxu0 0
      %1407 = vmatpush1.bf16.msra.mxu0 0
      %1408 = vmatprep.subr.bf16.mxu0 0
      %1409 = vmatpush1.bf16.msra.mxu0 0
      %1410 = vmatprep.subr.bf16.mxu0 0
      %1411 = vmatpush1.bf16.msra.mxu0 0
      %1412 = vmatprep.subr.bf16.mxu0 0
      %1413 = vmatpush1.bf16.msra.mxu0 0
      %1414 = vmatprep.subr.bf16.mxu0 0
      %1415 = vmatpush1.bf16.msra.mxu0 0
      %1416 = vmatprep.subr.bf16.mxu0 0
      %1417 = vmatpush1.bf16.msra.mxu0 0
      %1418 = vmatprep.subr.bf16.mxu0 0
      %1419 = vmatpush1.bf16.msra.mxu0 0
      %1420 = vmatprep.subr.bf16.mxu0 0
      %1421 = vmatpush1.bf16.msra.mxu0 0
      %1422 = vmatprep.subr.bf16.mxu0 0
      %1423 = vmatpush1.bf16.msra.mxu0 0
      %1424 = vmatprep.subr.bf16.mxu0 0
      %1425 = vmatpush1.bf16.msra.mxu0 0
      %1426 = vmatprep.subr.bf16.mxu0 0
      %1427 = vmatpush1.bf16.msra.mxu0 0
      %1428 = vmatprep.subr.bf16.mxu0 0
      %1429 = vmatpush1.bf16.msra.mxu0 0
      %1430 = vmatprep.subr.bf16.mxu0 0
      %1431 = vmatpush1.bf16.msra.mxu0 0
      %1432 = vmatprep.mubr.bf16.mxu0 0
      %1433 = vmatmul.mubr.bf16.gmra.mrb[0].mxu0 %v580
      %v1434 = vpop.f32.mrb[0].mxu0
      %v1435 = vadd.f32 %v276, %v1434
      %v1436 = vpop.f32.mrb[0].mxu0
      %v1437 = vadd.f32 %v276, %v1436
      %v1438 = vpop.f32.mrb[0].mxu0
      %v1439 = vpop.f32.mrb[0].mxu0
      %1440 = vdwg.mxu0
      %1441 = vmatprep.subr.bf16.mxu0 %v495
      %1442 = vmatpush1.bf16.msra.mxu0 %v494
      %1443 = vmatprep.subr.bf16.mxu0 %v695
      %1444 = vmatpush1.bf16.msra.mxu0 %v692
      %1445 = vmatprep.subr.bf16.mxu0 0
      %1446 = vmatpush1.bf16.msra.mxu0 0
      %1447 = vmatprep.subr.bf16.mxu0 0
      %1448 = vmatpush1.bf16.msra.mxu0 0
      %1449 = vmatprep.subr.bf16.mxu0 0
      %1450 = vmatpush1.bf16.msra.mxu0 0
      %1451 = vmatprep.subr.bf16.mxu0 0
      %1452 = vmatpush1.bf16.msra.mxu0 0
      %1453 = vmatprep.subr.bf16.mxu0 0
      %1454 = vmatpush1.bf16.msra.mxu0 0
      %1455 = vmatprep.subr.bf16.mxu0 0
      %1456 = vmatpush1.bf16.msra.mxu0 0
      %1457 = vmatprep.subr.bf16.mxu0 0
      %1458 = vmatpush1.bf16.msra.mxu0 0
      %1459 = vmatprep.subr.bf16.mxu0 0
      %1460 = vmatpush1.bf16.msra.mxu0 0
      %1461 = vmatprep.subr.bf16.mxu0 0
      %1462 = vmatpush1.bf16.msra.mxu0 0
      %1463 = vmatprep.subr.bf16.mxu0 0
      %1464 = vmatpush1.bf16.msra.mxu0 0
      %1465 = vmatprep.subr.bf16.mxu0 0
      %1466 = vmatpush1.bf16.msra.mxu0 0
      %1467 = vmatprep.subr.bf16.mxu0 0
      %1468 = vmatpush1.bf16.msra.mxu0 0
      %1469 = vmatprep.subr.bf16.mxu0 0
      %1470 = vmatpush1.bf16.msra.mxu0 0
      %1471 = vmatprep.subr.bf16.mxu0 0
      %1472 = vmatpush1.bf16.msra.mxu0 0
      %1473 = vmatprep.mubr.bf16.mxu0 0
      %1474 = vmatmul.mubr.bf16.gmra.mrb[0].mxu0 %v580
      %v1475 = vpop.f32.mrb[0].mxu0
      %v1476 = vadd.f32 %v276, %v1475
      %v1477 = vpop.f32.mrb[0].mxu0
      %v1478 = vadd.f32 %v276, %v1477
      %v1479 = vpop.f32.mrb[0].mxu0
      %v1480 = vpop.f32.mrb[0].mxu0
      %1481 = vdwg.mxu0
      %1482 = vmatprep.subr.bf16.mxu0 %v497
      %1483 = vmatpush1.bf16.msra.mxu0 %v496
      %1484 = vmatprep.subr.bf16.mxu0 %v701
      %1485 = vmatpush1.bf16.msra.mxu0 %v698
      %1486 = vmatprep.subr.bf16.mxu0 0
      %1487 = vmatpush1.bf16.msra.mxu0 0
      %1488 = vmatprep.subr.bf16.mxu0 0
      %1489 = vmatpush1.bf16.msra.mxu0 0
      %1490 = vmatprep.subr.bf16.mxu0 0
      %1491 = vmatpush1.bf16.msra.mxu0 0
      %1492 = vmatprep.subr.bf16.mxu0 0
      %1493 = vmatpush1.bf16.msra.mxu0 0
      %1494 = vmatprep.subr.bf16.mxu0 0
      %1495 = vmatpush1.bf16.msra.mxu0 0
      %1496 = vmatprep.subr.bf16.mxu0 0
      %1497 = vmatpush1.bf16.msra.mxu0 0
      %1498 = vmatprep.subr.bf16.mxu0 0
      %1499 = vmatpush1.bf16.msra.mxu0 0
      %1500 = vmatprep.subr.bf16.mxu0 0
      %1501 = vmatpush1.bf16.msra.mxu0 0
      %1502 = vmatprep.subr.bf16.mxu0 0
      %1503 = vmatpush1.bf16.msra.mxu0 0
      %1504 = vmatprep.subr.bf16.mxu0 0
      %1505 = vmatpush1.bf16.msra.mxu0 0
      %1506 = vmatprep.subr.bf16.mxu0 0
      %1507 = vmatpush1.bf16.msra.mxu0 0
      %1508 = vmatprep.subr.bf16.mxu0 0
      %1509 = vmatpush1.bf16.msra.mxu0 0
      %1510 = vmatprep.subr.bf16.mxu0 0
      %1511 = vmatpush1.bf16.msra.mxu0 0
      %1512 = vmatprep.subr.bf16.mxu0 0
      %1513 = vmatpush1.bf16.msra.mxu0 0
      %1514 = vmatprep.mubr.bf16.mxu0 0
      %1515 = vmatmul.mubr.bf16.gmra.mrb[0].mxu0 %v580
      %v1516 = vpop.f32.mrb[0].mxu0
      %v1517 = vadd.f32 %v276, %v1516
      %v1518 = vpop.f32.mrb[0].mxu0
      %v1519 = vadd.f32 %v276, %v1518
      %v1520 = vpop.f32.mrb[0].mxu0
      %v1521 = vpop.f32.mrb[0].mxu0
      %1522 = vdwg.mxu0
      %v1523 = vmax.f32 %v738, 0.0
      %v1524 = vmax.f32 %v740, 0.0
      %v1525 = vmax.f32 %v779, 0.0
      %v1526 = vmax.f32 %v781, 0.0
      %v1527 = vmax.f32 %v820, 0.0
      %v1528 = vmax.f32 %v822, 0.0
      %v1529 = vmax.f32 %v861, 0.0
      %v1530 = vmax.f32 %v863, 0.0
      %v1531 = vmax.f32 %v902, 0.0
      %v1532 = vmax.f32 %v904, 0.0
      %v1533 = vmax.f32 %v943, 0.0
      %v1534 = vmax.f32 %v945, 0.0
      %v1535 = vmax.f32 %v984, 0.0
      %v1536 = vmax.f32 %v986, 0.0
      %v1537 = vmax.f32 %v1025, 0.0
      %v1538 = vmax.f32 %v1027, 0.0
      %v1539 = vmax.f32 %v1066, 0.0
      %v1540 = vmax.f32 %v1068, 0.0
      %v1541 = vmax.f32 %v1107, 0.0
      %v1542 = vmax.f32 %v1109, 0.0
      %v1543 = vmax.f32 %v1148, 0.0
      %v1544 = vmax.f32 %v1150, 0.0
      %v1545 = vmax.f32 %v1189, 0.0
      %v1546 = vmax.f32 %v1191, 0.0
      %v1547 = vmax.f32 %v1230, 0.0
      %v1548 = vmax.f32 %v1232, 0.0
      %v1549 = vmax.f32 %v1271, 0.0
      %v1550 = vmax.f32 %v1273, 0.0
      %v1551 = vmax.f32 %v1312, 0.0
      %v1552 = vmax.f32 %v1314, 0.0
      %v1553 = vmax.f32 %v1353, 0.0
      %v1554 = vmax.f32 %v1355, 0.0
      %v1555 = vmax.f32 %v1394, 0.0
      %v1556 = vmax.f32 %v1396, 0.0
      %v1557 = vmax.f32 %v1435, 0.0
      %v1558 = vmax.f32 %v1437, 0.0
      %v1559 = vmax.f32 %v1476, 0.0
      %v1560 = vmax.f32 %v1478, 0.0
      %v1561 = vmax.f32 %v1517, 0.0
      %v1562 = vmax.f32 %v1519, 0.0
      %v1563 = vpack.c.bf16 %v1523, %v1523
      %v1564 = vpack.c.bf16 %v1524, %v1524
      %v1565 = vpack.c.bf16 %v1525, %v1525
      %v1566 = vpack.c.bf16 %v1526, %v1526
      %v1567 = vpack.c.bf16 %v1527, %v1527
      %v1568 = vpack.c.bf16 %v1528, %v1528
      %v1569 = vpack.c.bf16 %v1529, %v1529
      %v1570 = vpack.c.bf16 %v1530, %v1530
      %v1571 = vpack.c.bf16 %v1531, %v1531
      %v1572 = vpack.c.bf16 %v1532, %v1532
      %v1573 = vpack.c.bf16 %v1533, %v1533
      %v1574 = vpack.c.bf16 %v1534, %v1534
      %v1575 = vpack.c.bf16 %v1535, %v1535
      %v1576 = vpack.c.bf16 %v1536, %v1536
      %v1577 = vpack.c.bf16 %v1537, %v1537
      %v1578 = vpack.c.bf16 %v1538, %v1538
      %v1579 = vpack.c.bf16 %v1539, %v1539
      %v1580 = vpack.c.bf16 %v1540, %v1540
      %v1581 = vpack.c.bf16 %v1541, %v1541
      %v1582 = vpack.c.bf16 %v1542, %v1542
      %v1583 = vpack.c.bf16 %v1543, %v1543
      %v1584 = vpack.c.bf16 %v1544, %v1544
      %v1585 = vpack.c.bf16 %v1545, %v1545
      %v1586 = vpack.c.bf16 %v1546, %v1546
      %v1587 = vpack.c.bf16 %v1547, %v1547
      %v1588 = vpack.c.bf16 %v1548, %v1548
      %v1589 = vpack.c.bf16 %v1549, %v1549
      %v1590 = vpack.c.bf16 %v1550, %v1550
      %v1591 = vpack.c.bf16 %v1551, %v1551
      %v1592 = vpack.c.bf16 %v1552, %v1552
      %v1593 = vpack.c.bf16 %v1553, %v1553
      %v1594 = vpack.c.bf16 %v1554, %v1554
      %v1595 = vpack.c.bf16 %v1555, %v1555
      %v1596 = vpack.c.bf16 %v1556, %v1556
      %v1597 = vpack.c.bf16 %v1557, %v1557
      %v1598 = vpack.c.bf16 %v1558, %v1558
      %v1599 = vpack.c.bf16 %v1559, %v1559
      %v1600 = vpack.c.bf16 %v1560, %v1560
      %v1601 = vpack.c.bf16 %v1561, %v1561
      %v1602 = vpack.c.bf16 %v1562, %v1562
      %v1643 = vunpack.c.l.b16 %v1563
      %v1644 = vunpack.c.l.b16 %v1564
      %v1645 = vunpack.c.l.b16 %v1565
      %v1646 = vunpack.c.l.b16 %v1566
      %v1647 = vunpack.c.l.b16 %v1567
      %v1648 = vunpack.c.l.b16 %v1568
      %v1649 = vunpack.c.l.b16 %v1569
      %v1650 = vunpack.c.l.b16 %v1570
      %v1651 = vunpack.c.l.b16 %v1571
      %v1652 = vunpack.c.l.b16 %v1572
      %v1653 = vunpack.c.l.b16 %v1573
      %v1654 = vunpack.c.l.b16 %v1574
      %v1655 = vunpack.c.l.b16 %v1575
      %v1656 = vunpack.c.l.b16 %v1576
      %v1657 = vunpack.c.l.b16 %v1577
      %v1658 = vunpack.c.l.b16 %v1578
      %v1659 = vunpack.c.l.b16 %v1579
      %v1660 = vunpack.c.l.b16 %v1580
      %v1661 = vunpack.c.l.b16 %v1581
      %v1662 = vunpack.c.l.b16 %v1582
      %v1663 = vunpack.c.l.b16 %v1583
      %v1664 = vunpack.c.l.b16 %v1584
      %v1665 = vunpack.c.l.b16 %v1585
      %v1666 = vunpack.c.l.b16 %v1586
      %v1667 = vunpack.c.l.b16 %v1587
      %v1668 = vunpack.c.l.b16 %v1588
      %v1669 = vunpack.c.l.b16 %v1589
      %v1670 = vunpack.c.l.b16 %v1590
      %v1671 = vunpack.c.l.b16 %v1591
      %v1672 = vunpack.c.l.b16 %v1592
      %v1673 = vunpack.c.l.b16 %v1593
      %v1674 = vunpack.c.l.b16 %v1594
      %v1675 = vunpack.c.l.b16 %v1595
      %v1676 = vunpack.c.l.b16 %v1596
      %v1677 = vunpack.c.l.b16 %v1597
      %v1678 = vunpack.c.l.b16 %v1598
      %v1679 = vunpack.c.l.b16 %v1599
      %v1680 = vunpack.c.l.b16 %v1600
      %v1681 = vunpack.c.l.b16 %v1601
      %v1682 = vunpack.c.l.b16 %v1602
      %v1683 = vpack.c.b16 %v1644, %v1643
      %v1684 = vpack.c.b16 %v1646, %v1645
      %v1685 = vpack.c.b16 %v1648, %v1647
      %v1686 = vpack.c.b16 %v1650, %v1649
      %v1687 = vpack.c.b16 %v1652, %v1651
      %v1688 = vpack.c.b16 %v1654, %v1653
      %v1689 = vpack.c.b16 %v1656, %v1655
      %v1690 = vpack.c.b16 %v1658, %v1657
      %v1691 = vpack.c.b16 %v1660, %v1659
      %v1692 = vpack.c.b16 %v1662, %v1661
      %v1693 = vpack.c.b16 %v1664, %v1663
      %v1694 = vpack.c.b16 %v1666, %v1665
      %v1695 = vpack.c.b16 %v1668, %v1667
      %v1696 = vpack.c.b16 %v1670, %v1669
      %v1697 = vpack.c.b16 %v1672, %v1671
      %v1698 = vpack.c.b16 %v1674, %v1673
      %v1699 = vpack.c.b16 %v1676, %v1675
      %v1700 = vpack.c.b16 %v1678, %v1677
      %v1701 = vpack.c.b16 %v1680, %v1679
      %v1702 = vpack.c.b16 %v1682, %v1681
      %vm1723 = vcmask 1042432
      %vm1724 = vsmask.f32 2304
      %vm1725 = vmand %vm1723, %vm1724
      %vm1726 = vcmask 1046532
      %vm1727 = vsmask.f32 6400
      %vm1728 = vmand %vm1726, %vm1727
      %vm1729 = vmor %vm1728, %vm1725
      %v1730 = vld [vmem:[%s208] sm:$0x77]
      %v1731 = vsel %vm1729, %v1683, %v1730
      %1732 = vst [vmem:[%s208] sm:$0x77] %v1731
      %v1733 = vld [vmem:[%s208 + $0x8] sm:$0x77]
      %v1734 = vsel %vm1729, %v1684, %v1733
      %1735 = vst [vmem:[%s208 + $0x8] sm:$0x77] %v1734
      %v1736 = vld [vmem:[%s208 + $0x10] sm:$0x77]
      %v1737 = vsel %vm1729, %v1685, %v1736
      %1738 = vst [vmem:[%s208 + $0x10] sm:$0x77] %v1737
      %v1739 = vld [vmem:[%s208 + $0x18] sm:$0x77]
      %v1740 = vsel %vm1729, %v1686, %v1739
      %1741 = vst [vmem:[%s208 + $0x18] sm:$0x77] %v1740
      %v1742 = vld [vmem:[%s208 + $0x20] sm:$0x77]
      %v1743 = vsel %vm1729, %v1687, %v1742
      %1744 = vst [vmem:[%s208 + $0x20] sm:$0x77] %v1743
      %v1745 = vld [vmem:[%s208 + $0x28] sm:$0x77]
      %v1746 = vsel %vm1729, %v1688, %v1745
      %1747 = vst [vmem:[%s208 + $0x28] sm:$0x77] %v1746
      %v1748 = vld [vmem:[%s208 + $0x30] sm:$0x77]
      %v1749 = vsel %vm1729, %v1689, %v1748
      %1750 = vst [vmem:[%s208 + $0x30] sm:$0x77] %v1749
      %v1751 = vld [vmem:[%s208 + $0x38] sm:$0x77]
      %v1752 = vsel %vm1729, %v1690, %v1751
      %1753 = vst [vmem:[%s208 + $0x38] sm:$0x77] %v1752
      %v1754 = vld [vmem:[%s208 + $0x40] sm:$0x77]
      %v1755 = vsel %vm1729, %v1691, %v1754
      %1756 = vst [vmem:[%s208 + $0x40] sm:$0x77] %v1755
      %v1757 = vld [vmem:[%s208 + $0x48] sm:$0x77]
      %v1758 = vsel %vm1729, %v1692, %v1757
      %1759 = vst [vmem:[%s208 + $0x48] sm:$0x77] %v1758
      %v1760 = vld [vmem:[%s208 + $0x50] sm:$0x77]
      %v1761 = vsel %vm1729, %v1693, %v1760
      %1762 = vst [vmem:[%s208 + $0x50] sm:$0x77] %v1761
      %v1763 = vld [vmem:[%s208 + $0x58] sm:$0x77]
      %v1764 = vsel %vm1729, %v1694, %v1763
      %1765 = vst [vmem:[%s208 + $0x58] sm:$0x77] %v1764
      %v1766 = vld [vmem:[%s208 + $0x60] sm:$0x77]
      %v1767 = vsel %vm1729, %v1695, %v1766
      %1768 = vst [vmem:[%s208 + $0x60] sm:$0x77] %v1767
      %v1769 = vld [vmem:[%s208 + $0x68] sm:$0x77]
      %v1770 = vsel %vm1729, %v1696, %v1769
      %1771 = vst [vmem:[%s208 + $0x68] sm:$0x77] %v1770
      %v1772 = vld [vmem:[%s208 + $0x70] sm:$0x77]
      %v1773 = vsel %vm1729, %v1697, %v1772
      %1774 = vst [vmem:[%s208 + $0x70] sm:$0x77] %v1773
      %v1775 = vld [vmem:[%s208 + $0x78] sm:$0x77]
      %v1776 = vsel %vm1729, %v1698, %v1775
      %1777 = vst [vmem:[%s208 + $0x78] sm:$0x77] %v1776
      %v1778 = vld [vmem:[%s208 + $0x80] sm:$0x77]
      %v1779 = vsel %vm1729, %v1699, %v1778
      %1780 = vst [vmem:[%s208 + $0x80] sm:$0x77] %v1779
      %v1781 = vld [vmem:[%s208 + $0x88] sm:$0x77]
      %v1782 = vsel %vm1729, %v1700, %v1781
      %1783 = vst [vmem:[%s208 + $0x88] sm:$0x77] %v1782
      %v1784 = vld [vmem:[%s208 + $0x90] sm:$0x77]
      %v1785 = vsel %vm1729, %v1701, %v1784
      %1786 = vst [vmem:[%s208 + $0x90] sm:$0x77] %v1785
      %v1787 = vld [vmem:[%s208 + $0x98] sm:$0x77]
      %v1788 = vsel %vm1729, %v1702, %v1787
      %1789 = vst [vmem:[%s208 + $0x98] sm:$0x77] %v1788
      %s1790 = smul.u32 40, %s19
      %p1791 = scmp.lt.s32.totalorder %s18, 1
      %s1792 = scalar_select %p1791, %s18, 1
      %p1793 = scmp.lt.s32.totalorder %s1790, 39
      %s1794 = scalar_select %p1793, %s1790, 39
      %s1795 = smul.addr %s1792, 40
      %s1796 = sadd.s32 %s1794, %s1795
      %s1797 = smul.addr %s1796, 4
      %s1798 = scalar_lea.vmem %s3, %s1797
      // Predicated region
      $region33: #{convnetwork_forward.4} parent=31 // pred_check
        %p1799 = pneg %p116
      $region34: #{convnetwork_forward.4} parent=31 // pred_check_branch
        %1801 = sbr.rel (%p1799) target = $region36
      $region35: #{convnetwork_forward.4} parent=31 // pred_region
        %s1802 = smul.u32 40, %s19
      $region36: #{convnetwork_forward.4} parent=31 // pred_fallthru
        _
    $region32: #{convnetwork_forward.4} parent=5 // pred_fallthru
      _
    %p1803 = scmp.le.s32.totalorder 2, %s9
    // Predicated region
    $region37: #{convnetwork_forward.4} parent=5 // pred_check
      %p1804 = pneg %p1803
    $region38: #{convnetwork_forward.4} parent=5 // pred_check_branch
      %1806 = sbr.rel (%p1804) target = $region40
    $region39: #{convnetwork_forward.4} parent=5 // pred_region
      %s1807 = ssub.s32 %s9, 2
      // Predicated region
      $region41: #{convnetwork_forward.4} parent=39 // pred_check
        %p1808 = pneg %p122
      $region42: #{convnetwork_forward.4} parent=39 // pred_check_branch
        %1810 = sbr.rel (%p1808) target = $region44
      $region43: #{convnetwork_forward.4} parent=39 // pred_region
        %s1811 = smul.u32 40, %s21
        %p1812 = scmp.lt.s32.totalorder %s20, 1
        %s1813 = scalar_select %p1812, %s20, 1
        %p1814 = scmp.lt.s32.totalorder %s1811, 39
        %s1815 = scalar_select %p1814, %s1811, 39
        %s1816 = smul.addr %s1813, 40
        %s1817 = sadd.s32 %s1815, %s1816
        %s1818 = smul.addr %s1817, 4
        %s1819 = scalar_lea.vmem %s3, %s1818
      $region44: #{convnetwork_forward.4} parent=39 // pred_fallthru
        _
    $region40: #{convnetwork_forward.4} parent=5 // pred_fallthru
      _
  $region6: #{convnetwork_forward.4} parent=0 // loop_footer
    %s13 = sadd.s32 1, %s9
  $region7: #{convnetwork_forward.4} parent=0 // loop_footer_branch
    %8 = sbr.rel target = $region3
  $region8: #{convnetwork_forward.4} parent=0 // loop_exit
    _

// kernel: convnetwork_forward.5
$region0: #{convnetwork_forward.5}
  #allocation0 [shape = 'u32[]', space=smem, size = 0x4, offset = 0x4, fixed_abs, tag = 'smem constant byte address 0x4 - core index']
  #allocation1 [shape = 'u32[144,128]{1,0:T(1,128)}', space=vmem, size = 0x12000, scoped, tag = 'internal scratch']
  %s0 = inlined_call_operand.vmem [shape: bf16[2,96,1024], index: 0, kind: input, shape index: {}]
  %s1 = inlined_call_operand.vmem [shape: bf16[10,96], index: 1, kind: input, shape index: {}]
  %s2 = inlined_call_operand.vmem [shape: f32[10,1], index: 2, kind: input, shape index: {}]
  %s3 = inlined_call_operand.vmem [shape: bf16[8,25,10], index: 3, kind: input, shape index: {}]
  %s4 = inlined_call_operand.vmem [shape: f32[25,1], index: 4, kind: input, shape index: {}]
  %s5 = inlined_call_operand.vmem [shape: f32[25,25,128], index: 5, kind: input, shape index: {}]
  %s6 = inlined_call_operand.vmem [shape: f32[25,1], index: 6, kind: input, shape index: {}]
  %s7 = inlined_call_operand.vmem [shape: f32[2,25,1], index: 7, kind: output, shape index: {}]
  %s8 = sld [smem:[#allocation0]]
  $region61: #{convnetwork_forward.5} parent=0
    _
  %s10 = ssub.s32 1, %s8
  %s11 = scalar_select 0, %s10, %s8
  loop: start=0, step=1, limit=4
  $region2: #{convnetwork_forward.5} parent=0 // loop_pre_header
    _
  $region3: #{convnetwork_forward.5} parent=0 // loop_header
    %s13 = sphi 0, %s17
    %p14 = scmp.ge.s32.totalorder %s13, 4
    %s23 = sphi 0, %s25
    %s26 = sphi 0, %s23
    %s27 = sphi 0, %s26
    %s43 = sphi 0, %s27
    %s47 = sphi 0, %s47
    %s49 = sphi 0, %s47
    %s50 = sphi 0, %s49
    %s64 = sphi 0, %s50
    %s68 = sphi 0, %s68
    %s70 = sphi 0, %s68
    %s71 = sphi 0, %s70
    %s85 = sphi 0, %s71
    %s89 = sphi 0, %s89
    %s91 = sphi 0, %s89
    %s92 = sphi 0, %s91
    %s106 = sphi 0, %s92
    %s110 = sphi 0, %s110
    %s112 = sphi 0, %s110
    %s113 = sphi 0, %s112
    %s127 = sphi 0, %s113
    %s131 = sphi 0, %s131
    %s133 = sphi 0, %s131
    %s134 = sphi 0, %s133
    %s148 = sphi 0, %s134
    %s152 = sphi 0, %s152
    %s154 = sphi 0, %s152
    %s155 = sphi 0, %s154
    %s169 = sphi 0, %s155
    %s175 = sphi 0, %s177
    %s178 = sphi 0, %s175
    %s179 = sphi 0, %s178
    %s195 = sphi 0, %s179
  $region4: #{convnetwork_forward.5} parent=0 // loop_header_branch
    %16 = sbr.rel (%p14) target = $region8
  $region5: #{convnetwork_forward.5} parent=0 // loop_body
    %s18 = ssub.s32 %s13, 1
    %s19 = ssub.s32 %s13, 2
    %s20 = sadd.s32 %s13, 1
    %s21 = ssub.s32 %s13, %s20
    %p22 = scmp.eq.s32.totalorder %s21, 0
    %s24 = sadd.s32 %s23, 1
    %s25 = scalar_select %p22, %s23, %s24
    %p28 = pneg %p22
    %p29 = scmp.eq.s32.totalorder %s13, 1
    %p30 = por %p28, %p29
    %p31 = scmp.ne.s32.totalorder %s23, %s26
    %p32 = scmp.eq.s32.totalorder %s13, 0
    %p33 = por %p31, %p32
    %p34 = scmp.ne.s32.totalorder %s23, %s26
    %p35 = scmp.eq.s32.totalorder %s18, 1
    %p36 = por %p34, %p35
    %p37 = scmp.ne.s32.totalorder %s26, %s27
    %p38 = scmp.eq.s32.totalorder %s18, 0
    %p39 = por %p37, %p38
    %p40 = scmp.ne.s32.totalorder %s26, %s27
    %p41 = scmp.eq.s32.totalorder %s19, 1
    %p42 = por %p40, %p41
    %p44 = scmp.ne.s32.totalorder %s27, %s43
    %p45 = scmp.eq.s32.totalorder %s19, 0
    %p46 = por %p44, %p45
    %s48 = sadd.s32 %s47, 1
    %p51 = scmp.eq.s32.totalorder %s13, 1
    %p52 = scmp.ne.s32.totalorder %s47, %s49
    %p53 = scmp.eq.s32.totalorder %s13, 0
    %p54 = por %p52, %p53
    %p55 = scmp.ne.s32.totalorder %s47, %s49
    %p56 = scmp.eq.s32.totalorder %s18, 1
    %p57 = por %p55, %p56
    %p58 = scmp.ne.s32.totalorder %s49, %s50
    %p59 = scmp.eq.s32.totalorder %s18, 0
    %p60 = por %p58, %p59
    %p61 = scmp.ne.s32.totalorder %s49, %s50
    %p62 = scmp.eq.s32.totalorder %s19, 1
    %p63 = por %p61, %p62
    %p65 = scmp.ne.s32.totalorder %s50, %s64
    %p66 = scmp.eq.s32.totalorder %s19, 0
    %p67 = por %p65, %p66
    %s69 = sadd.s32 %s68, 1
    %p72 = scmp.eq.s32.totalorder %s13, 1
    %p73 = scmp.ne.s32.totalorder %s68, %s70
    %p74 = scmp.eq.s32.totalorder %s13, 0
    %p75 = por %p73, %p74
    %p76 = scmp.ne.s32.totalorder %s68, %s70
    %p77 = scmp.eq.s32.totalorder %s18, 1
    %p78 = por %p76, %p77
    %p79 = scmp.ne.s32.totalorder %s70, %s71
    %p80 = scmp.eq.s32.totalorder %s18, 0
    %p81 = por %p79, %p80
    %p82 = scmp.ne.s32.totalorder %s70, %s71
    %p83 = scmp.eq.s32.totalorder %s19, 1
    %p84 = por %p82, %p83
    %p86 = scmp.ne.s32.totalorder %s71, %s85
    %p87 = scmp.eq.s32.totalorder %s19, 0
    %p88 = por %p86, %p87
    %s90 = sadd.s32 %s89, 1
    %p93 = scmp.eq.s32.totalorder %s13, 1
    %p94 = scmp.ne.s32.totalorder %s89, %s91
    %p95 = scmp.eq.s32.totalorder %s13, 0
    %p96 = por %p94, %p95
    %p97 = scmp.ne.s32.totalorder %s89, %s91
    %p98 = scmp.eq.s32.totalorder %s18, 1
    %p99 = por %p97, %p98
    %p100 = scmp.ne.s32.totalorder %s91, %s92
    %p101 = scmp.eq.s32.totalorder %s18, 0
    %p102 = por %p100, %p101
    %p103 = scmp.ne.s32.totalorder %s91, %s92
    %p104 = scmp.eq.s32.totalorder %s19, 1
    %p105 = por %p103, %p104
    %p107 = scmp.ne.s32.totalorder %s92, %s106
    %p108 = scmp.eq.s32.totalorder %s19, 0
    %p109 = por %p107, %p108
    %s111 = sadd.s32 %s110, 1
    %p114 = scmp.eq.s32.totalorder %s13, 1
    %p115 = scmp.ne.s32.totalorder %s110, %s112
    %p116 = scmp.eq.s32.totalorder %s13, 0
    %p117 = por %p115, %p116
    %p118 = scmp.ne.s32.totalorder %s110, %s112
    %p119 = scmp.eq.s32.totalorder %s18, 1
    %p120 = por %p118, %p119
    %p121 = scmp.ne.s32.totalorder %s112, %s113
    %p122 = scmp.eq.s32.totalorder %s18, 0
    %p123 = por %p121, %p122
    %p124 = scmp.ne.s32.totalorder %s112, %s113
    %p125 = scmp.eq.s32.totalorder %s19, 1
    %p126 = por %p124, %p125
    %p128 = scmp.ne.s32.totalorder %s113, %s127
    %p129 = scmp.eq.s32.totalorder %s19, 0
    %p130 = por %p128, %p129
    %s132 = sadd.s32 %s131, 1
    %p135 = scmp.eq.s32.totalorder %s13, 1
    %p136 = scmp.ne.s32.totalorder %s131, %s133
    %p137 = scmp.eq.s32.totalorder %s13, 0
    %p138 = por %p136, %p137
    %p139 = scmp.ne.s32.totalorder %s131, %s133
    %p140 = scmp.eq.s32.totalorder %s18, 1
    %p141 = por %p139, %p140
    %p142 = scmp.ne.s32.totalorder %s133, %s134
    %p143 = scmp.eq.s32.totalorder %s18, 0
    %p144 = por %p142, %p143
    %p145 = scmp.ne.s32.totalorder %s133, %s134
    %p146 = scmp.eq.s32.totalorder %s19, 1
    %p147 = por %p145, %p146
    %p149 = scmp.ne.s32.totalorder %s134, %s148
    %p150 = scmp.eq.s32.totalorder %s19, 0
    %p151 = por %p149, %p150
    %s153 = sadd.s32 %s152, 1
    %p156 = scmp.eq.s32.totalorder %s13, 1
    %p157 = scmp.ne.s32.totalorder %s152, %s154
    %p158 = scmp.eq.s32.totalorder %s13, 0
    %p159 = por %p157, %p158
    %p160 = scmp.ne.s32.totalorder %s152, %s154
    %p161 = scmp.eq.s32.totalorder %s18, 1
    %p162 = por %p160, %p161
    %p163 = scmp.ne.s32.totalorder %s154, %s155
    %p164 = scmp.eq.s32.totalorder %s18, 0
    %p165 = por %p163, %p164
    %p166 = scmp.ne.s32.totalorder %s154, %s155
    %p167 = scmp.eq.s32.totalorder %s19, 1
    %p168 = por %p166, %p167
    %p170 = scmp.ne.s32.totalorder %s155, %s169
    %p171 = scmp.eq.s32.totalorder %s19, 0
    %p172 = por %p170, %p171
    %s173 = ssub.s32 %s13, %s20
    %p174 = scmp.eq.s32.totalorder %s173, 0
    %s176 = sadd.s32 %s175, 1
    %s177 = scalar_select %p174, %s175, %s176
    %p180 = pneg %p174
    %p181 = scmp.eq.s32.totalorder %s13, 1
    %p182 = por %p180, %p181
    %p183 = scmp.ne.s32.totalorder %s175, %s178
    %p184 = scmp.eq.s32.totalorder %s13, 0
    %p185 = por %p183, %p184
    %p186 = scmp.ne.s32.totalorder %s175, %s178
    %p187 = scmp.eq.s32.totalorder %s18, 1
    %p188 = por %p186, %p187
    %p189 = scmp.ne.s32.totalorder %s178, %s179
    %p190 = scmp.eq.s32.totalorder %s18, 0
    %p191 = por %p189, %p190
    %p192 = scmp.ne.s32.totalorder %s178, %s179
    %p193 = scmp.eq.s32.totalorder %s19, 1
    %p194 = por %p192, %p193
    %p196 = scmp.ne.s32.totalorder %s179, %s195
    %p197 = scmp.eq.s32.totalorder %s19, 0
    %p198 = por %p196, %p197
    %p199 = scmp.le.s32.totalorder 1, %s13
    %p200 = scmp.lt.s32.totalorder %s13, 3
    %p201 = pnand %p199, %p200
    %p202 = pneg %p201
    // Predicated region
    $region9: #{convnetwork_forward.5} parent=5 // pred_check
      _
    $region10: #{convnetwork_forward.5} parent=5 // pred_check_branch
      %204 = sbr.rel (%p201) target = $region12
    $region11: #{convnetwork_forward.5} parent=5 // pred_region
      %s205 = ssub.s32 %s13, 1
      // Predicated region
      $region13: #{convnetwork_forward.5} parent=11 // pred_check
        %p206 = pneg %p60
      $region14: #{convnetwork_forward.5} parent=11 // pred_check_branch
        %208 = sbr.rel (%p206) target = $region16
      $region15: #{convnetwork_forward.5} parent=11 // pred_region
        _
      $region16: #{convnetwork_forward.5} parent=11 // pred_fallthru
        _
      // Predicated region
      $region17: #{convnetwork_forward.5} parent=11 // pred_check
        %p209 = pneg %p81
      $region18: #{convnetwork_forward.5} parent=11 // pred_check_branch
        %211 = sbr.rel (%p209) target = $region20
      $region19: #{convnetwork_forward.5} parent=11 // pred_region
        _
      $region20: #{convnetwork_forward.5} parent=11 // pred_fallthru
        _
      // Predicated region
      $region21: #{convnetwork_forward.5} parent=11 // pred_check
        %p212 = pneg %p102
      $region22: #{convnetwork_forward.5} parent=11 // pred_check_branch
        %214 = sbr.rel (%p212) target = $region24
      $region23: #{convnetwork_forward.5} parent=11 // pred_region
        _
      $region24: #{convnetwork_forward.5} parent=11 // pred_fallthru
        _
      // Predicated region
      $region25: #{convnetwork_forward.5} parent=11 // pred_check
        %p215 = pneg %p123
      $region26: #{convnetwork_forward.5} parent=11 // pred_check_branch
        %217 = sbr.rel (%p215) target = $region28
      $region27: #{convnetwork_forward.5} parent=11 // pred_region
        _
      $region28: #{convnetwork_forward.5} parent=11 // pred_fallthru
        _
      // Predicated region
      $region29: #{convnetwork_forward.5} parent=11 // pred_check
        %p218 = pneg %p144
      $region30: #{convnetwork_forward.5} parent=11 // pred_check_branch
        %220 = sbr.rel (%p218) target = $region32
      $region31: #{convnetwork_forward.5} parent=11 // pred_region
        _
      $region32: #{convnetwork_forward.5} parent=11 // pred_fallthru
        _
      // Predicated region
      $region33: #{convnetwork_forward.5} parent=11 // pred_check
        %p221 = pneg %p165
      $region34: #{convnetwork_forward.5} parent=11 // pred_check_branch
        %223 = sbr.rel (%p221) target = $region36
      $region35: #{convnetwork_forward.5} parent=11 // pred_region
        _
      $region36: #{convnetwork_forward.5} parent=11 // pred_fallthru
        _
    $region12: #{convnetwork_forward.5} parent=5 // pred_fallthru
      _
    %p224 = scmp.lt.s32.totalorder %s13, 2
    // Predicated region
    $region37: #{convnetwork_forward.5} parent=5 // pred_check
      %p225 = pneg %p224
    $region38: #{convnetwork_forward.5} parent=5 // pred_check_branch
      %227 = sbr.rel (%p225) target = $region40
    $region39: #{convnetwork_forward.5} parent=5 // pred_region
      // Predicated region
      $region41: #{convnetwork_forward.5} parent=39 // pred_check
        %p228 = pneg %p33
      $region42: #{convnetwork_forward.5} parent=39 // pred_check_branch
        %230 = sbr.rel (%p228) target = $region44
      $region43: #{convnetwork_forward.5} parent=39 // pred_region
        %p231 = scmp.lt.s32.totalorder %s13, 1
        %s232 = scalar_select %p231, %s13, 1
        %s233 = smul.addr %s232, 96
        %s234 = smul.addr %s233, 4
        %s235 = scalar_lea.vmem %s0, %s234
      $region44: #{convnetwork_forward.5} parent=39 // pred_fallthru
        _
    $region40: #{convnetwork_forward.5} parent=5 // pred_fallthru
      _
    %p236 = scmp.le.s32.totalorder 1, %s13
    %p237 = scmp.lt.s32.totalorder %s13, 3
    %p238 = pnand %p236, %p237
    %p239 = pneg %p238
    // Predicated region
    $region45: #{convnetwork_forward.5} parent=5 // pred_check
      _
    $region46: #{convnetwork_forward.5} parent=5 // pred_check_branch
      %241 = sbr.rel (%p238) target = $region48
    $region47: #{convnetwork_forward.5} parent=5 // pred_region
      %s242 = ssub.s32 %s13, 1
      %p243 = scmp.lt.s32.totalorder %s18, 1
      %s244 = scalar_select %p243, %s18, 1
      %s245 = smul.addr %s244, 96
      %s246 = smul.addr %s245, 4
      %s247 = scalar_lea.vmem %s0, %s246
      %p248 = pneg %p39
      %p249 = pneg %p36
      %p250 = pneg %p60
      %p251 = pneg %p57
      %p252 = pneg %p81
      %p253 = pneg %p78
      %p254 = pneg %p102
      %p255 = pneg %p99
      %p256 = pneg %p123
      %p257 = pneg %p120
      %p258 = pneg %p144
      %p259 = pneg %p141
      %p260 = pneg %p165
      %p261 = pneg %p162
      %p262 = pneg %p191
      %p263 = pneg %p188
      %p264 = scmp.lt.s32.totalorder %s18, 1
      %s265 = scalar_select %p264, %s18, 1
      %s266 = smul.addr %s265, 4
      %s267 = smul.addr %s266, 8
      %s268 = scalar_lea.vmem %s7, %s267
      %p269 = scmp.lt.s32.totalorder %s18, 1
      %s270 = scalar_select %p269, %s18, 1
      %s271 = smul.addr %s270, 96
      %s272 = smul.addr %s271, 4
      %s273 = scalar_lea.vmem %s0, %s272
      %p274 = scmp.lt.s32.totalorder %s18, 1
      %s275 = scalar_select %p274, %s18, 1
      %s276 = smul.addr %s275, 4
      %s277 = smul.addr %s276, 8
      %s278 = scalar_lea.vmem %s7, %s277
      %v280 = vld [vmem:[%s1] sm:$0xf]
      %v281 = vld [vmem:[%s1 + $0x4] sm:$0x1]
      %v282 = vld [vmem:[%s273] sm:$0xff]
      %v283 = vld [vmem:[%s273 + $0x8] sm:$0xff]
      %v284 = vld [vmem:[%s273 + $0x10] sm:$0xff]
      %v285 = vld [vmem:[%s273 + $0x18] sm:$0xff]
      %v286 = vld [vmem:[%s273 + $0x20] sm:$0xff]
      %v287 = vld [vmem:[%s273 + $0x28] sm:$0xff]
      %v288 = vld [vmem:[%s273 + $0x30] sm:$0xff]
      %v289 = vld [vmem:[%s273 + $0x38] sm:$0xff]
      %v290 = vld [vmem:[%s273 + $0x40] sm:$0xff]
      %v291 = vld [vmem:[%s273 + $0x48] sm:$0xff]
      %v292 = vld [vmem:[%s273 + $0x50] sm:$0xff]
      %v293 = vld [vmem:[%s273 + $0x58] sm:$0xff]
      %v294 = vld [vmem:[%s273 + $0x60] sm:$0xff]
      %v295 = vld [vmem:[%s273 + $0x68] sm:$0xff]
      %v296 = vld [vmem:[%s273 + $0x70] sm:$0xff]
      %v297 = vld [vmem:[%s273 + $0x78] sm:$0xff]
      %v298 = vld [vmem:[%s273 + $0x80] sm:$0xff]
      %v299 = vld [vmem:[%s273 + $0x88] sm:$0xff]
      %v300 = vld [vmem:[%s273 + $0x90] sm:$0xff]
      %v301 = vld [vmem:[%s273 + $0x98] sm:$0xff]
      %v302 = vld [vmem:[%s273 + $0xa0] sm:$0xff]
      %v303 = vld [vmem:[%s273 + $0xa8] sm:$0xff]
      %v304 = vld [vmem:[%s273 + $0xb0] sm:$0xff]
      %v305 = vld [vmem:[%s273 + $0xb8] sm:$0xff]
      %v306 = vld [vmem:[%s273 + $0xc0] sm:$0xff]
      %v307 = vld [vmem:[%s273 + $0xc8] sm:$0xff]
      %v308 = vld [vmem:[%s273 + $0xd0] sm:$0xff]
      %v309 = vld [vmem:[%s273 + $0xd8] sm:$0xff]
      %v310 = vld [vmem:[%s273 + $0xe0] sm:$0xff]
      %v311 = vld [vmem:[%s273 + $0xe8] sm:$0xff]
      %v312 = vld [vmem:[%s273 + $0xf0] sm:$0xff]
      %v313 = vld [vmem:[%s273 + $0xf8] sm:$0xff]
      %v314 = vld [vmem:[%s273 + $0x100] sm:$0xff]
      %v315 = vld [vmem:[%s273 + $0x108] sm:$0xff]
      %v316 = vld [vmem:[%s273 + $0x110] sm:$0xff]
      %v317 = vld [vmem:[%s273 + $0x118] sm:$0xff]
      %v318 = vld [vmem:[%s273 + $0x120] sm:$0xff]
      %v319 = vld [vmem:[%s273 + $0x128] sm:$0xff]
      %v320 = vld [vmem:[%s273 + $0x130] sm:$0xff]
      %v321 = vld [vmem:[%s273 + $0x138] sm:$0xff]
      %v322 = vld [vmem:[%s273 + $0x140] sm:$0xff]
      %v323 = vld [vmem:[%s273 + $0x148] sm:$0xff]
      %v324 = vld [vmem:[%s273 + $0x150] sm:$0xff]
      %v325 = vld [vmem:[%s273 + $0x158] sm:$0xff]
      %v326 = vld [vmem:[%s273 + $0x160] sm:$0xff]
      %v327 = vld [vmem:[%s273 + $0x168] sm:$0xff]
      %v328 = vld [vmem:[%s273 + $0x170] sm:$0xff]
      %v329 = vld [vmem:[%s273 + $0x178] sm:$0xff]
      %v330 = vld [vmem:[%s2] sm:$0xff]
      %v331 = vld [vmem:[%s2 + $0x8] sm:$0x3]
      %333 = vset.pattern.permute.xlu0 0
      %334 = vperm.xlu0 %333, %v330
      %v335 = vpop.permute.xlu0 %334
      %338 = vset.pattern.permute.xlu0 0
      %339 = vperm.xlu0 %338, %v331
      %v340 = vpop.permute.xlu0 %339
      %v344 = vunpack.c.l.b16 %v280
      %v345 = vunpack.c.l.b16 %v281
      %v346 = vpack.c.b16 %v345, %v344
      %v395 = vunpack.c.l.b16 %v282
      %v396 = vunpack.c.h.b16 %v282
      %v397 = vunpack.c.l.b16 %v283
      %v398 = vunpack.c.h.b16 %v283
      %v399 = vunpack.c.l.b16 %v284
      %v400 = vunpack.c.h.b16 %v284
      %v401 = vunpack.c.l.b16 %v285
      %v402 = vunpack.c.h.b16 %v285
      %v403 = vunpack.c.l.b16 %v286
      %v404 = vunpack.c.h.b16 %v286
      %v405 = vunpack.c.l.b16 %v287
      %v406 = vunpack.c.h.b16 %v287
      %v407 = vunpack.c.l.b16 %v288
      %v408 = vunpack.c.h.b16 %v288
      %v409 = vunpack.c.l.b16 %v289
      %v410 = vunpack.c.h.b16 %v289
      %v411 = vunpack.c.l.b16 %v290
      %v412 = vunpack.c.h.b16 %v290
      %v413 = vunpack.c.l.b16 %v291
      %v414 = vunpack.c.h.b16 %v291
      %v415 = vunpack.c.l.b16 %v292
      %v416 = vunpack.c.h.b16 %v292
      %v417 = vunpack.c.l.b16 %v293
      %v418 = vunpack.c.h.b16 %v293
      %v419 = vunpack.c.l.b16 %v294
      %v420 = vunpack.c.h.b16 %v294
      %v421 = vunpack.c.l.b16 %v295
      %v422 = vunpack.c.h.b16 %v295
      %v423 = vunpack.c.l.b16 %v296
      %v424 = vunpack.c.h.b16 %v296
      %v425 = vunpack.c.l.b16 %v297
      %v426 = vunpack.c.h.b16 %v297
      %v427 = vunpack.c.l.b16 %v298
      %v428 = vunpack.c.h.b16 %v298
      %v429 = vunpack.c.l.b16 %v299
      %v430 = vunpack.c.h.b16 %v299
      %v431 = vunpack.c.l.b16 %v300
      %v432 = vunpack.c.h.b16 %v300
      %v433 = vunpack.c.l.b16 %v301
      %v434 = vunpack.c.h.b16 %v301
      %v435 = vunpack.c.l.b16 %v302
      %v436 = vunpack.c.h.b16 %v302
      %v437 = vunpack.c.l.b16 %v303
      %v438 = vunpack.c.h.b16 %v303
      %v439 = vunpack.c.l.b16 %v304
      %v440 = vunpack.c.h.b16 %v304
      %v441 = vunpack.c.l.b16 %v305
      %v442 = vunpack.c.h.b16 %v305
      %v443 = vunpack.c.l.b16 %v306
      %v444 = vunpack.c.h.b16 %v306
      %v445 = vunpack.c.l.b16 %v307
      %v446 = vunpack.c.h.b16 %v307
      %v447 = vunpack.c.l.b16 %v308
      %v448 = vunpack.c.h.b16 %v308
      %v449 = vunpack.c.l.b16 %v309
      %v450 = vunpack.c.h.b16 %v309
      %v451 = vunpack.c.l.b16 %v310
      %v452 = vunpack.c.h.b16 %v310
      %v453 = vunpack.c.l.b16 %v311
      %v454 = vunpack.c.h.b16 %v311
      %v455 = vunpack.c.l.b16 %v312
      %v456 = vunpack.c.h.b16 %v312
      %v457 = vunpack.c.l.b16 %v313
      %v458 = vunpack.c.h.b16 %v313
      %v459 = vunpack.c.l.b16 %v314
      %v460 = vunpack.c.h.b16 %v314
      %v461 = vunpack.c.l.b16 %v315
      %v462 = vunpack.c.h.b16 %v315
      %v463 = vunpack.c.l.b16 %v316
      %v464 = vunpack.c.h.b16 %v316
      %v465 = vunpack.c.l.b16 %v317
      %v466 = vunpack.c.h.b16 %v317
      %v467 = vunpack.c.l.b16 %v318
      %v468 = vunpack.c.h.b16 %v318
      %v469 = vunpack.c.l.b16 %v319
      %v470 = vunpack.c.h.b16 %v319
      %v471 = vunpack.c.l.b16 %v320
      %v472 = vunpack.c.h.b16 %v320
      %v473 = vunpack.c.l.b16 %v321
      %v474 = vunpack.c.h.b16 %v321
      %v475 = vunpack.c.l.b16 %v322
      %v476 = vunpack.c.h.b16 %v322
      %v477 = vunpack.c.l.b16 %v323
      %v478 = vunpack.c.h.b16 %v323
      %v479 = vunpack.c.l.b16 %v324
      %v480 = vunpack.c.h.b16 %v324
      %v481 = vunpack.c.l.b16 %v325
      %v482 = vunpack.c.h.b16 %v325
      %v483 = vunpack.c.l.b16 %v326
      %v484 = vunpack.c.h.b16 %v326
      %v485 = vunpack.c.l.b16 %v327
      %v486 = vunpack.c.h.b16 %v327
      %v487 = vunpack.c.l.b16 %v328
      %v488 = vunpack.c.h.b16 %v328
      %v489 = vunpack.c.l.b16 %v329
      %v490 = vunpack.c.h.b16 %v329
      %v491 = vpack.c.b16 %v403, %v395
      %v492 = vpack.c.b16 %v404, %v396
      %v493 = vpack.c.b16 %v405, %v397
      %v494 = vpack.c.b16 %v406, %v398
      %v495 = vpack.c.b16 %v407, %v399
      %v496 = vpack.c.b16 %v408, %v400
      %v497 = vpack.c.b16 %v409, %v401
      %v498 = vpack.c.b16 %v410, %v402
      %v499 = vpack.c.b16 %v419, %v411
      %v500 = vpack.c.b16 %v420, %v412
      %v501 = vpack.c.b16 %v421, %v413
      %v502 = vpack.c.b16 %v422, %v414
      %v503 = vpack.c.b16 %v423, %v415
      %v504 = vpack.c.b16 %v424, %v416
      %v505 = vpack.c.b16 %v425, %v417
      %v506 = vpack.c.b16 %v426, %v418
      %v507 = vpack.c.b16 %v435, %v427
      %v508 = vpack.c.b16 %v436, %v428
      %v509 = vpack.c.b16 %v437, %v429
      %v510 = vpack.c.b16 %v438, %v430
      %v511 = vpack.c.b16 %v439, %v431
      %v512 = vpack.c.b16 %v440, %v432
      %v513 = vpack.c.b16 %v441, %v433
      %v514 = vpack.c.b16 %v442, %v434
      %v515 = vpack.c.b16 %v451, %v443
      %v516 = vpack.c.b16 %v452, %v444
      %v517 = vpack.c.b16 %v453, %v445
      %v518 = vpack.c.b16 %v454, %v446
      %v519 = vpack.c.b16 %v455, %v447
      %v520 = vpack.c.b16 %v456, %v448
      %v521 = vpack.c.b16 %v457, %v449
      %v522 = vpack.c.b16 %v458, %v450
      %v523 = vpack.c.b16 %v467, %v459
      %v524 = vpack.c.b16 %v468, %v460
      %v525 = vpack.c.b16 %v469, %v461
      %v526 = vpack.c.b16 %v470, %v462
      %v527 = vpack.c.b16 %v471, %v463
      %v528 = vpack.c.b16 %v472, %v464
      %v529 = vpack.c.b16 %v473, %v465
      %v530 = vpack.c.b16 %v474, %v466
      %v531 = vpack.c.b16 %v483, %v475
      %v532 = vpack.c.b16 %v484, %v476
      %v533 = vpack.c.b16 %v485, %v477
      %v534 = vpack.c.b16 %v486, %v478
      %v535 = vpack.c.b16 %v487, %v479
      %v536 = vpack.c.b16 %v488, %v480
      %v537 = vpack.c.b16 %v489, %v481
      %v538 = vpack.c.b16 %v490, %v482
      %vm587 = vcmask 785408
      %v589 = vsel %vm587, %v346, 0
      %591 = vmatprep.subr.bf16.mxu0 %v492
      %592 = vmatpush1.bf16.msra.mxu0 %v491
      %593 = vmatprep.subr.bf16.mxu0 %v500
      %594 = vmatpush1.bf16.msra.mxu0 %v499
      %595 = vmatprep.subr.bf16.mxu0 %v508
      %596 = vmatpush1.bf16.msra.mxu0 %v507
      %597 = vmatprep.subr.bf16.mxu0 %v516
      %598 = vmatpush1.bf16.msra.mxu0 %v515
      %599 = vmatprep.subr.bf16.mxu0 %v524
      %600 = vmatpush1.bf16.msra.mxu0 %v523
      %601 = vmatprep.subr.bf16.mxu0 %v532
      %602 = vmatpush1.bf16.msra.mxu0 %v531
      %603 = vmatprep.subr.bf16.mxu0 0
      %604 = vmatpush1.bf16.msra.mxu0 0
      %605 = vmatprep.subr.bf16.mxu0 0
      %606 = vmatpush1.bf16.msra.mxu0 0
      %607 = vmatprep.subr.bf16.mxu0 0
      %608 = vmatpush1.bf16.msra.mxu0 0
      %609 = vmatprep.subr.bf16.mxu0 0
      %610 = vmatpush1.bf16.msra.mxu0 0
      %611 = vmatprep.subr.bf16.mxu0 0
      %612 = vmatpush1.bf16.msra.mxu0 0
      %613 = vmatprep.subr.bf16.mxu0 0
      %614 = vmatpush1.bf16.msra.mxu0 0
      %615 = vmatprep.subr.bf16.mxu0 0
      %616 = vmatpush1.bf16.msra.mxu0 0
      %617 = vmatprep.subr.bf16.mxu0 0
      %618 = vmatpush1.bf16.msra.mxu0 0
      %619 = vmatprep.subr.bf16.mxu0 0
      %620 = vmatpush1.bf16.msra.mxu0 0
      %621 = vmatprep.subr.bf16.mxu0 0
      %622 = vmatpush1.bf16.msra.mxu0 0
      %623 = vmatprep.mubr.bf16.mxu0 0
      %624 = vmatmul.mubr.bf16.gmra.mrb[0].mxu0 %v589
      %v625 = vpop.f32.mrb[0].mxu0
      %v626 = vadd.f32 %v335, %v625
      %v627 = vpop.f32.mrb[0].mxu0
      %v628 = vadd.f32 %v335, %v627
      %v629 = vpop.f32.mrb[0].mxu0
      %v630 = vadd.f32 %v340, %v629
      %v631 = vpop.f32.mrb[0].mxu0
      %v632 = vadd.f32 %v340, %v631
      %633 = vdwg.mxu0
      %634 = vmatprep.subr.bf16.mxu0 %v494
      %635 = vmatpush1.bf16.msra.mxu0 %v493
      %636 = vmatprep.subr.bf16.mxu0 %v502
      %637 = vmatpush1.bf16.msra.mxu0 %v501
      %638 = vmatprep.subr.bf16.mxu0 %v510
      %639 = vmatpush1.bf16.msra.mxu0 %v509
      %640 = vmatprep.subr.bf16.mxu0 %v518
      %641 = vmatpush1.bf16.msra.mxu0 %v517
      %642 = vmatprep.subr.bf16.mxu0 %v526
      %643 = vmatpush1.bf16.msra.mxu0 %v525
      %644 = vmatprep.subr.bf16.mxu0 %v534
      %645 = vmatpush1.bf16.msra.mxu0 %v533
      %646 = vmatprep.subr.bf16.mxu0 0
      %647 = vmatpush1.bf16.msra.mxu0 0
      %648 = vmatprep.subr.bf16.mxu0 0
      %649 = vmatpush1.bf16.msra.mxu0 0
      %650 = vmatprep.subr.bf16.mxu0 0
      %651 = vmatpush1.bf16.msra.mxu0 0
      %652 = vmatprep.subr.bf16.mxu0 0
      %653 = vmatpush1.bf16.msra.mxu0 0
      %654 = vmatprep.subr.bf16.mxu0 0
      %655 = vmatpush1.bf16.msra.mxu0 0
      %656 = vmatprep.subr.bf16.mxu0 0
      %657 = vmatpush1.bf16.msra.mxu0 0
      %658 = vmatprep.subr.bf16.mxu0 0
      %659 = vmatpush1.bf16.msra.mxu0 0
      %660 = vmatprep.subr.bf16.mxu0 0
      %661 = vmatpush1.bf16.msra.mxu0 0
      %662 = vmatprep.subr.bf16.mxu0 0
      %663 = vmatpush1.bf16.msra.mxu0 0
      %664 = vmatprep.subr.bf16.mxu0 0
      %665 = vmatpush1.bf16.msra.mxu0 0
      %666 = vmatprep.mubr.bf16.mxu0 0
      %667 = vmatmul.mubr.bf16.gmra.mrb[0].mxu0 %v589
      %v668 = vpop.f32.mrb[0].mxu0
      %v669 = vadd.f32 %v335, %v668
      %v670 = vpop.f32.mrb[0].mxu0
      %v671 = vadd.f32 %v335, %v670
      %v672 = vpop.f32.mrb[0].mxu0
      %v673 = vadd.f32 %v340, %v672
      %v674 = vpop.f32.mrb[0].mxu0
      %v675 = vadd.f32 %v340, %v674
      %676 = vdwg.mxu0
      %677 = vmatprep.subr.bf16.mxu0 %v496
      %678 = vmatpush1.bf16.msra.mxu0 %v495
      %679 = vmatprep.subr.bf16.mxu0 %v504
      %680 = vmatpush1.bf16.msra.mxu0 %v503
      %681 = vmatprep.subr.bf16.mxu0 %v512
      %682 = vmatpush1.bf16.msra.mxu0 %v511
      %683 = vmatprep.subr.bf16.mxu0 %v520
      %684 = vmatpush1.bf16.msra.mxu0 %v519
      %685 = vmatprep.subr.bf16.mxu0 %v528
      %686 = vmatpush1.bf16.msra.mxu0 %v527
      %687 = vmatprep.subr.bf16.mxu0 %v536
      %688 = vmatpush1.bf16.msra.mxu0 %v535
      %689 = vmatprep.subr.bf16.mxu0 0
      %690 = vmatpush1.bf16.msra.mxu0 0
      %691 = vmatprep.subr.bf16.mxu0 0
      %692 = vmatpush1.bf16.msra.mxu0 0
      %693 = vmatprep.subr.bf16.mxu0 0
      %694 = vmatpush1.bf16.msra.mxu0 0
      %695 = vmatprep.subr.bf16.mxu0 0
      %696 = vmatpush1.bf16.msra.mxu0 0
      %697 = vmatprep.subr.bf16.mxu0 0
      %698 = vmatpush1.bf16.msra.mxu0 0
      %699 = vmatprep.subr.bf16.mxu0 0
      %700 = vmatpush1.bf16.msra.mxu0 0
      %701 = vmatprep.subr.bf16.mxu0 0
      %702 = vmatpush1.bf16.msra.mxu0 0
      %703 = vmatprep.subr.bf16.mxu0 0
      %704 = vmatpush1.bf16.msra.mxu0 0
      %705 = vmatprep.subr.bf16.mxu0 0
      %706 = vmatpush1.bf16.msra.mxu0 0
      %707 = vmatprep.subr.bf16.mxu0 0
      %708 = vmatpush1.bf16.msra.mxu0 0
      %709 = vmatprep.mubr.bf16.mxu0 0
      %710 = vmatmul.mubr.bf16.gmra.mrb[0].mxu0 %v589
      %v711 = vpop.f32.mrb[0].mxu0
      %v712 = vadd.f32 %v335, %v711
      %v713 = vpop.f32.mrb[0].mxu0
      %v714 = vadd.f32 %v335, %v713
      %v715 = vpop.f32.mrb[0].mxu0
      %v716 = vadd.f32 %v340, %v715
      %v717 = vpop.f32.mrb[0].mxu0
      %v718 = vadd.f32 %v340, %v717
      %719 = vdwg.mxu0
      %720 = vmatprep.subr.bf16.mxu0 %v498
      %721 = vmatpush1.bf16.msra.mxu0 %v497
      %722 = vmatprep.subr.bf16.mxu0 %v506
      %723 = vmatpush1.bf16.msra.mxu0 %v505
      %724 = vmatprep.subr.bf16.mxu0 %v514
      %725 = vmatpush1.bf16.msra.mxu0 %v513
      %726 = vmatprep.subr.bf16.mxu0 %v522
      %727 = vmatpush1.bf16.msra.mxu0 %v521
      %728 = vmatprep.subr.bf16.mxu0 %v530
      %729 = vmatpush1.bf16.msra.mxu0 %v529
      %730 = vmatprep.subr.bf16.mxu0 %v538
      %731 = vmatpush1.bf16.msra.mxu0 %v537
      %732 = vmatprep.subr.bf16.mxu0 0
      %733 = vmatpush1.bf16.msra.mxu0 0
      %734 = vmatprep.subr.bf16.mxu0 0
      %735 = vmatpush1.bf16.msra.mxu0 0
      %736 = vmatprep.subr.bf16.mxu0 0
      %737 = vmatpush1.bf16.msra.mxu0 0
      %738 = vmatprep.subr.bf16.mxu0 0
      %739 = vmatpush1.bf16.msra.mxu0 0
      %740 = vmatprep.subr.bf16.mxu0 0
      %741 = vmatpush1.bf16.msra.mxu0 0
      %742 = vmatprep.subr.bf16.mxu0 0
      %743 = vmatpush1.bf16.msra.mxu0 0
      %744 = vmatprep.subr.bf16.mxu0 0
      %745 = vmatpush1.bf16.msra.mxu0 0
      %746 = vmatprep.subr.bf16.mxu0 0
      %747 = vmatpush1.bf16.msra.mxu0 0
      %748 = vmatprep.subr.bf16.mxu0 0
      %749 = vmatpush1.bf16.msra.mxu0 0
      %750 = vmatprep.subr.bf16.mxu0 0
      %751 = vmatpush1.bf16.msra.mxu0 0
      %752 = vmatprep.mubr.bf16.mxu0 0
      %753 = vmatmul.mubr.bf16.gmra.mrb[0].mxu0 %v589
      %v754 = vpop.f32.mrb[0].mxu0
      %v755 = vadd.f32 %v335, %v754
      %v756 = vpop.f32.mrb[0].mxu0
      %v757 = vadd.f32 %v335, %v756
      %v758 = vpop.f32.mrb[0].mxu0
      %v759 = vadd.f32 %v340, %v758
      %v760 = vpop.f32.mrb[0].mxu0
      %v761 = vadd.f32 %v340, %v760
      %762 = vdwg.mxu0
      %v763 = vmax.f32 %v626, 0.0
      %v764 = vmax.f32 %v628, 0.0
      %v765 = vmax.f32 %v669, 0.0
      %v766 = vmax.f32 %v671, 0.0
      %v767 = vmax.f32 %v712, 0.0
      %v768 = vmax.f32 %v714, 0.0
      %v769 = vmax.f32 %v755, 0.0
      %v770 = vmax.f32 %v757, 0.0
      %v771 = vmax.f32 %v630, 0.0
      %v772 = vmax.f32 %v632, 0.0
      %v773 = vmax.f32 %v673, 0.0
      %v774 = vmax.f32 %v675, 0.0
      %v775 = vmax.f32 %v716, 0.0
      %v776 = vmax.f32 %v718, 0.0
      %v777 = vmax.f32 %v759, 0.0
      %v778 = vmax.f32 %v761, 0.0
      %v779 = vpack.c.bf16 %v771, %v763
      %v780 = vpack.c.bf16 %v772, %v764
      %v781 = vpack.c.bf16 %v773, %v765
      %v782 = vpack.c.bf16 %v774, %v766
      %v783 = vpack.c.bf16 %v775, %v767
      %v784 = vpack.c.bf16 %v776, %v768
      %v785 = vpack.c.bf16 %v777, %v769
      %v786 = vpack.c.bf16 %v778, %v770
      %v787 = vld [vmem:[%s3] sm:$0xf]
      %v788 = vld [vmem:[%s3 + $0x4] sm:$0xf]
      %v789 = vld [vmem:[%s3 + $0x8] sm:$0xf]
      %v790 = vld [vmem:[%s3 + $0xc] sm:$0x1]
      %s791 = scalar_lea.vmem %s3, 16
      %v792 = vld [vmem:[%s791] sm:$0xf]
      %v793 = vld [vmem:[%s791 + $0x4] sm:$0xf]
      %v794 = vld [vmem:[%s791 + $0x8] sm:$0xf]
      %v795 = vld [vmem:[%s791 + $0xc] sm:$0x1]
      %v800 = vunpack.c.l.b16 %v792
      %v801 = vunpack.c.l.b16 %v793
      %v802 = vunpack.c.l.b16 %v794
      %v803 = vunpack.c.l.b16 %v795
      %v804 = vpack.c.b16 %v801, %v800
      %v805 = vpack.c.b16 %v803, %v802
      %vm806 = vcmask 80896
      %v808 = vsel %vm806, %v804, 0
      %v811 = vsel %vm806, %v805, 0
      %vm813 = vcmask 1044480
      %v815 = vsel %vm813, %v780, 0
      %817 = vmatprep.subr.bf16.mxu0 0
      %818 = vmatpush1.bf16.msra.mxu0 %v815
      %819 = vmatprep.subr.bf16.mxu0 0
      %820 = vmatpush1.bf16.msra.mxu0 0
      %821 = vmatprep.subr.bf16.mxu0 0
      %822 = vmatpush1.bf16.msra.mxu0 0
      %823 = vmatprep.subr.bf16.mxu0 0
      %824 = vmatpush1.bf16.msra.mxu0 0
      %825 = vmatprep.subr.bf16.mxu0 0
      %826 = vmatpush1.bf16.msra.mxu0 0
      %827 = vmatprep.subr.bf16.mxu0 0
      %828 = vmatpush1.bf16.msra.mxu0 0
      %829 = vmatprep.subr.bf16.mxu0 0
      %830 = vmatpush1.bf16.msra.mxu0 0
      %831 = vmatprep.subr.bf16.mxu0 0
      %832 = vmatpush1.bf16.msra.mxu0 0
      %833 = vmatprep.subr.bf16.mxu0 0
      %834 = vmatpush1.bf16.msra.mxu0 0
      %835 = vmatprep.subr.bf16.mxu0 0
      %836 = vmatpush1.bf16.msra.mxu0 0
      %837 = vmatprep.subr.bf16.mxu0 0
      %838 = vmatpush1.bf16.msra.mxu0 0
      %839 = vmatprep.subr.bf16.mxu0 0
      %840 = vmatpush1.bf16.msra.mxu0 0
      %841 = vmatprep.subr.bf16.mxu0 0
      %842 = vmatpush1.bf16.msra.mxu0 0
      %843 = vmatprep.subr.bf16.mxu0 0
      %844 = vmatpush1.bf16.msra.mxu0 0
      %845 = vmatprep.subr.bf16.mxu0 0
      %846 = vmatpush1.bf16.msra.mxu0 0
      %847 = vmatprep.subr.bf16.mxu0 0
      %848 = vmatpush1.bf16.msra.mxu0 0
      %849 = vmatprep.mubr.bf16.mxu0 0
      %850 = vmatmul.mubr.bf16.gmra.mrb[0].mxu0 %v808
      %v851 = vpop.f32.mrb[0].mxu0
      %v852 = vadd.f32 0.0, %v851
      %v853 = vpop.f32.mrb[0].mxu0
      %v854 = vpop.f32.mrb[0].mxu0
      %v855 = vadd.f32 0.0, %v854
      %v856 = vpop.f32.mrb[0].mxu0
      %857 = vmatprep.mubr.bf16.mxu0 0
      %858 = vmatmul.mubr.bf16.gmra.mrb[0].mxu0 %v811
      %v859 = vpop.f32.mrb[0].mxu0
      %v860 = vadd.f32 0.0, %v859
      %v861 = vpop.f32.mrb[0].mxu0
      %v862 = vpop.f32.mrb[0].mxu0
      %v863 = vadd.f32 0.0, %v862
      %v864 = vpop.f32.mrb[0].mxu0
      %865 = vdwg.mxu0
      %v870 = vunpack.c.l.b16 %v787
      %v871 = vunpack.c.l.b16 %v788
      %v872 = vunpack.c.l.b16 %v789
      %v873 = vunpack.c.l.b16 %v790
      %v874 = vpack.c.b16 %v871, %v870
      %v875 = vpack.c.b16 %v873, %v872
      %v877 = vsel %vm806, %v874, 0
      %v880 = vsel %vm806, %v875, 0
      %v883 = vsel %vm813, %v779, 0
      %885 = vmatprep.subr.bf16.mxu0 0
      %886 = vmatpush1.bf16.msra.mxu0 %v883
      %887 = vmatprep.subr.bf16.mxu0 0
      %888 = vmatpush1.bf16.msra.mxu0 0
      %889 = vmatprep.subr.bf16.mxu0 0
      %890 = vmatpush1.bf16.msra.mxu0 0
      %891 = vmatprep.subr.bf16.mxu0 0
      %892 = vmatpush1.bf16.msra.mxu0 0
      %893 = vmatprep.subr.bf16.mxu0 0
      %894 = vmatpush1.bf16.msra.mxu0 0
      %895 = vmatprep.subr.bf16.mxu0 0
      %896 = vmatpush1.bf16.msra.mxu0 0
      %897 = vmatprep.subr.bf16.mxu0 0
      %898 = vmatpush1.bf16.msra.mxu0 0
      %899 = vmatprep.subr.bf16.mxu0 0
      %900 = vmatpush1.bf16.msra.mxu0 0
      %901 = vmatprep.subr.bf16.mxu0 0
      %902 = vmatpush1.bf16.msra.mxu0 0
      %903 = vmatprep.subr.bf16.mxu0 0
      %904 = vmatpush1.bf16.msra.mxu0 0
      %905 = vmatprep.subr.bf16.mxu0 0
      %906 = vmatpush1.bf16.msra.mxu0 0
      %907 = vmatprep.subr.bf16.mxu0 0
      %908 = vmatpush1.bf16.msra.mxu0 0
      %909 = vmatprep.subr.bf16.mxu0 0
      %910 = vmatpush1.bf16.msra.mxu0 0
      %911 = vmatprep.subr.bf16.mxu0 0
      %912 = vmatpush1.bf16.msra.mxu0 0
      %913 = vmatprep.subr.bf16.mxu0 0
      %914 = vmatpush1.bf16.msra.mxu0 0
      %915 = vmatprep.subr.bf16.mxu0 0
      %916 = vmatpush1.bf16.msra.mxu0 0
      %917 = vmatprep.mubr.bf16.mxu0 0
      %918 = vmatmul.mubr.bf16.gmra.mrb[0].mxu0 %v877
      %v919 = vpop.f32.mrb[0].mxu0
      %v920 = vadd.f32 %v852, %v919
      %v921 = vpop.f32.mrb[0].mxu0
      %v922 = vpop.f32.mrb[0].mxu0
      %v923 = vadd.f32 %v855, %v922
      %v924 = vpop.f32.mrb[0].mxu0
      %925 = vmatprep.mubr.bf16.mxu0 0
      %926 = vmatmul.mubr.bf16.gmra.mrb[0].mxu0 %v880
      %v927 = vpop.f32.mrb[0].mxu0
      %v928 = vadd.f32 %v860, %v927
      %v929 = vpop.f32.mrb[0].mxu0
      %v930 = vpop.f32.mrb[0].mxu0
      %v931 = vadd.f32 %v863, %v930
      %v932 = vpop.f32.mrb[0].mxu0
      %933 = vdwg.mxu0
      %s934 = scalar_lea.vmem %s3, 32
      %v935 = vld [vmem:[%s934] sm:$0xf]
      %v936 = vld [vmem:[%s934 + $0x4] sm:$0xf]
      %v937 = vld [vmem:[%s934 + $0x8] sm:$0xf]
      %v938 = vld [vmem:[%s934 + $0xc] sm:$0x1]
      %v943 = vunpack.c.l.b16 %v935
      %v944 = vunpack.c.l.b16 %v936
      %v945 = vunpack.c.l.b16 %v937
      %v946 = vunpack.c.l.b16 %v938
      %v947 = vpack.c.b16 %v944, %v943
      %v948 = vpack.c.b16 %v946, %v945
      %v950 = vsel %vm806, %v947, 0
      %v953 = vsel %vm806, %v948, 0
      %v956 = vsel %vm813, %v781, 0
      %958 = vmatprep.subr.bf16.mxu0 0
      %959 = vmatpush1.bf16.msra.mxu0 %v956
      %960 = vmatprep.subr.bf16.mxu0 0
      %961 = vmatpush1.bf16.msra.mxu0 0
      %962 = vmatprep.subr.bf16.mxu0 0
      %963 = vmatpush1.bf16.msra.mxu0 0
      %964 = vmatprep.subr.bf16.mxu0 0
      %965 = vmatpush1.bf16.msra.mxu0 0
      %966 = vmatprep.subr.bf16.mxu0 0
      %967 = vmatpush1.bf16.msra.mxu0 0
      %968 = vmatprep.subr.bf16.mxu0 0
      %969 = vmatpush1.bf16.msra.mxu0 0
      %970 = vmatprep.subr.bf16.mxu0 0
      %971 = vmatpush1.bf16.msra.mxu0 0
      %972 = vmatprep.subr.bf16.mxu0 0
      %973 = vmatpush1.bf16.msra.mxu0 0
      %974 = vmatprep.subr.bf16.mxu0 0
      %975 = vmatpush1.bf16.msra.mxu0 0
      %976 = vmatprep.subr.bf16.mxu0 0
      %977 = vmatpush1.bf16.msra.mxu0 0
      %978 = vmatprep.subr.bf16.mxu0 0
      %979 = vmatpush1.bf16.msra.mxu0 0
      %980 = vmatprep.subr.bf16.mxu0 0
      %981 = vmatpush1.bf16.msra.mxu0 0
      %982 = vmatprep.subr.bf16.mxu0 0
      %983 = vmatpush1.bf16.msra.mxu0 0
      %984 = vmatprep.subr.bf16.mxu0 0
      %985 = vmatpush1.bf16.msra.mxu0 0
      %986 = vmatprep.subr.bf16.mxu0 0
      %987 = vmatpush1.bf16.msra.mxu0 0
      %988 = vmatprep.subr.bf16.mxu0 0
      %989 = vmatpush1.bf16.msra.mxu0 0
      %990 = vmatprep.mubr.bf16.mxu0 0
      %991 = vmatmul.mubr.bf16.gmra.mrb[0].mxu0 %v950
      %v992 = vpop.f32.mrb[0].mxu0
      %v993 = vadd.f32 0.0, %v992
      %v994 = vpop.f32.mrb[0].mxu0
      %v995 = vpop.f32.mrb[0].mxu0
      %v996 = vadd.f32 0.0, %v995
      %v997 = vpop.f32.mrb[0].mxu0
      %998 = vmatprep.mubr.bf16.mxu0 0
      %999 = vmatmul.mubr.bf16.gmra.mrb[0].mxu0 %v953
      %v1000 = vpop.f32.mrb[0].mxu0
      %v1001 = vadd.f32 0.0, %v1000
      %v1002 = vpop.f32.mrb[0].mxu0
      %v1003 = vpop.f32.mrb[0].mxu0
      %v1004 = vadd.f32 0.0, %v1003
      %v1005 = vpop.f32.mrb[0].mxu0
      %1006 = vdwg.mxu0
      %v1007 = vadd.f32 %v920, %v993
      %v1008 = vadd.f32 %v923, %v996
      %v1009 = vadd.f32 %v928, %v1001
      %v1010 = vadd.f32 %v931, %v1004
      %s1011 = scalar_lea.vmem %s3, 48
      %v1012 = vld [vmem:[%s1011] sm:$0xf]
      %v1013 = vld [vmem:[%s1011 + $0x4] sm:$0xf]
      %v1014 = vld [vmem:[%s1011 + $0x8] sm:$0xf]
      %v1015 = vld [vmem:[%s1011 + $0xc] sm:$0x1]
      %v1020 = vunpack.c.l.b16 %v1012
      %v1021 = vunpack.c.l.b16 %v1013
      %v1022 = vunpack.c.l.b16 %v1014
      %v1023 = vunpack.c.l.b16 %v1015
      %v1024 = vpack.c.b16 %v1021, %v1020
      %v1025 = vpack.c.b16 %v1023, %v1022
      %v1027 = vsel %vm806, %v1024, 0
      %v1030 = vsel %vm806, %v1025, 0
      %v1033 = vsel %vm813, %v782, 0
      %1035 = vmatprep.subr.bf16.mxu0 0
      %1036 = vmatpush1.bf16.msra.mxu0 %v1033
      %1037 = vmatprep.subr.bf16.mxu0 0
      %1038 = vmatpush1.bf16.msra.mxu0 0
      %1039 = vmatprep.subr.bf16.mxu0 0
      %1040 = vmatpush1.bf16.msra.mxu0 0
      %1041 = vmatprep.subr.bf16.mxu0 0
      %1042 = vmatpush1.bf16.msra.mxu0 0
      %1043 = vmatprep.subr.bf16.mxu0 0
      %1044 = vmatpush1.bf16.msra.mxu0 0
      %1045 = vmatprep.subr.bf16.mxu0 0
      %1046 = vmatpush1.bf16.msra.mxu0 0
      %1047 = vmatprep.subr.bf16.mxu0 0
      %1048 = vmatpush1.bf16.msra.mxu0 0
      %1049 = vmatprep.subr.bf16.mxu0 0
      %1050 = vmatpush1.bf16.msra.mxu0 0
      %1051 = vmatprep.subr.bf16.mxu0 0
      %1052 = vmatpush1.bf16.msra.mxu0 0
      %1053 = vmatprep.subr.bf16.mxu0 0
      %1054 = vmatpush1.bf16.msra.mxu0 0
      %1055 = vmatprep.subr.bf16.mxu0 0
      %1056 = vmatpush1.bf16.msra.mxu0 0
      %1057 = vmatprep.subr.bf16.mxu0 0
      %1058 = vmatpush1.bf16.msra.mxu0 0
      %1059 = vmatprep.subr.bf16.mxu0 0
      %1060 = vmatpush1.bf16.msra.mxu0 0
      %1061 = vmatprep.subr.bf16.mxu0 0
      %1062 = vmatpush1.bf16.msra.mxu0 0
      %1063 = vmatprep.subr.bf16.mxu0 0
      %1064 = vmatpush1.bf16.msra.mxu0 0
      %1065 = vmatprep.subr.bf16.mxu0 0
      %1066 = vmatpush1.bf16.msra.mxu0 0
      %1067 = vmatprep.mubr.bf16.mxu0 0
      %1068 = vmatmul.mubr.bf16.gmra.mrb[0].mxu0 %v1027
      %v1069 = vpop.f32.mrb[0].mxu0
      %v1070 = vadd.f32 0.0, %v1069
      %v1071 = vpop.f32.mrb[0].mxu0
      %v1072 = vpop.f32.mrb[0].mxu0
      %v1073 = vadd.f32 0.0, %v1072
      %v1074 = vpop.f32.mrb[0].mxu0
      %1075 = vmatprep.mubr.bf16.mxu0 0
      %1076 = vmatmul.mubr.bf16.gmra.mrb[0].mxu0 %v1030
      %v1077 = vpop.f32.mrb[0].mxu0
      %v1078 = vadd.f32 0.0, %v1077
      %v1079 = vpop.f32.mrb[0].mxu0
      %v1080 = vpop.f32.mrb[0].mxu0
      %v1081 = vadd.f32 0.0, %v1080
      %v1082 = vpop.f32.mrb[0].mxu0
      %1083 = vdwg.mxu0
      %v1084 = vadd.f32 %v1007, %v1070
      %v1085 = vadd.f32 %v1008, %v1073
      %v1086 = vadd.f32 %v1009, %v1078
      %v1087 = vadd.f32 %v1010, %v1081
      %s1088 = scalar_lea.vmem %s3, 64
      %v1089 = vld [vmem:[%s1088] sm:$0xf]
      %v1090 = vld [vmem:[%s1088 + $0x4] sm:$0xf]
      %v1091 = vld [vmem:[%s1088 + $0x8] sm:$0xf]
      %v1092 = vld [vmem:[%s1088 + $0xc] sm:$0x1]
      %v1097 = vunpack.c.l.b16 %v1089
      %v1098 = vunpack.c.l.b16 %v1090
      %v1099 = vunpack.c.l.b16 %v1091
      %v1100 = vunpack.c.l.b16 %v1092
      %v1101 = vpack.c.b16 %v1098, %v1097
      %v1102 = vpack.c.b16 %v1100, %v1099
      %v1104 = vsel %vm806, %v1101, 0
      %v1107 = vsel %vm806, %v1102, 0
      %v1110 = vsel %vm813, %v783, 0
      %1112 = vmatprep.subr.bf16.mxu0 0
      %1113 = vmatpush1.bf16.msra.mxu0 %v1110
      %1114 = vmatprep.subr.bf16.mxu0 0
      %1115 = vmatpush1.bf16.msra.mxu0 0
      %1116 = vmatprep.subr.bf16.mxu0 0
      %1117 = vmatpush1.bf16.msra.mxu0 0
      %1118 = vmatprep.subr.bf16.mxu0 0
      %1119 = vmatpush1.bf16.msra.mxu0 0
      %1120 = vmatprep.subr.bf16.mxu0 0
      %1121 = vmatpush1.bf16.msra.mxu0 0
      %1122 = vmatprep.subr.bf16.mxu0 0
      %1123 = vmatpush1.bf16.msra.mxu0 0
      %1124 = vmatprep.subr.bf16.mxu0 0
      %1125 = vmatpush1.bf16.msra.mxu0 0
      %1126 = vmatprep.subr.bf16.mxu0 0
      %1127 = vmatpush1.bf16.msra.mxu0 0
      %1128 = vmatprep.subr.bf16.mxu0 0
      %1129 = vmatpush1.bf16.msra.mxu0 0
      %1130 = vmatprep.subr.bf16.mxu0 0
      %1131 = vmatpush1.bf16.msra.mxu0 0
      %1132 = vmatprep.subr.bf16.mxu0 0
      %1133 = vmatpush1.bf16.msra.mxu0 0
      %1134 = vmatprep.subr.bf16.mxu0 0
      %1135 = vmatpush1.bf16.msra.mxu0 0
      %1136 = vmatprep.subr.bf16.mxu0 0
      %1137 = vmatpush1.bf16.msra.mxu0 0
      %1138 = vmatprep.subr.bf16.mxu0 0
      %1139 = vmatpush1.bf16.msra.mxu0 0
      %1140 = vmatprep.subr.bf16.mxu0 0
      %1141 = vmatpush1.bf16.msra.mxu0 0
      %1142 = vmatprep.subr.bf16.mxu0 0
      %1143 = vmatpush1.bf16.msra.mxu0 0
      %1144 = vmatprep.mubr.bf16.mxu0 0
      %1145 = vmatmul.mubr.bf16.gmra.mrb[0].mxu0 %v1104
      %v1146 = vpop.f32.mrb[0].mxu0
      %v1147 = vadd.f32 0.0, %v1146
      %v1148 = vpop.f32.mrb[0].mxu0
      %v1149 = vpop.f32.mrb[0].mxu0
      %v1150 = vadd.f32 0.0, %v1149
      %v1151 = vpop.f32.mrb[0].mxu0
      %1152 = vmatprep.mubr.bf16.mxu0 0
      %1153 = vmatmul.mubr.bf16.gmra.mrb[0].mxu0 %v1107
      %v1154 = vpop.f32.mrb[0].mxu0
      %v1155 = vadd.f32 0.0, %v1154
      %v1156 = vpop.f32.mrb[0].mxu0
      %v1157 = vpop.f32.mrb[0].mxu0
      %v1158 = vadd.f32 0.0, %v1157
      %v1159 = vpop.f32.mrb[0].mxu0
      %1160 = vdwg.mxu0
      %v1161 = vadd.f32 %v1084, %v1147
      %v1162 = vadd.f32 %v1085, %v1150
      %v1163 = vadd.f32 %v1086, %v1155
      %v1164 = vadd.f32 %v1087, %v1158
      %s1165 = scalar_lea.vmem %s3, 80
      %v1166 = vld [vmem:[%s1165] sm:$0xf]
      %v1167 = vld [vmem:[%s1165 + $0x4] sm:$0xf]
      %v1168 = vld [vmem:[%s1165 + $0x8] sm:$0xf]
      %v1169 = vld [vmem:[%s1165 + $0xc] sm:$0x1]
      %v1174 = vunpack.c.l.b16 %v1166
      %v1175 = vunpack.c.l.b16 %v1167
      %v1176 = vunpack.c.l.b16 %v1168
      %v1177 = vunpack.c.l.b16 %v1169
      %v1178 = vpack.c.b16 %v1175, %v1174
      %v1179 = vpack.c.b16 %v1177, %v1176
      %v1181 = vsel %vm806, %v1178, 0
      %v1184 = vsel %vm806, %v1179, 0
      %v1187 = vsel %vm813, %v784, 0
      %1189 = vmatprep.subr.bf16.mxu0 0
      %1190 = vmatpush1.bf16.msra.mxu0 %v1187
      %1191 = vmatprep.subr.bf16.mxu0 0
      %1192 = vmatpush1.bf16.msra.mxu0 0
      %1193 = vmatprep.subr.bf16.mxu0 0
      %1194 = vmatpush1.bf16.msra.mxu0 0
      %1195 = vmatprep.subr.bf16.mxu0 0
      %1196 = vmatpush1.bf16.msra.mxu0 0
      %1197 = vmatprep.subr.bf16.mxu0 0
      %1198 = vmatpush1.bf16.msra.mxu0 0
      %1199 = vmatprep.subr.bf16.mxu0 0
      %1200 = vmatpush1.bf16.msra.mxu0 0
      %1201 = vmatprep.subr.bf16.mxu0 0
      %1202 = vmatpush1.bf16.msra.mxu0 0
      %1203 = vmatprep.subr.bf16.mxu0 0
      %1204 = vmatpush1.bf16.msra.mxu0 0
      %1205 = vmatprep.subr.bf16.mxu0 0
      %1206 = vmatpush1.bf16.msra.mxu0 0
      %1207 = vmatprep.subr.bf16.mxu0 0
      %1208 = vmatpush1.bf16.msra.mxu0 0
      %1209 = vmatprep.subr.bf16.mxu0 0
      %1210 = vmatpush1.bf16.msra.mxu0 0
      %1211 = vmatprep.subr.bf16.mxu0 0
      %1212 = vmatpush1.bf16.msra.mxu0 0
      %1213 = vmatprep.subr.bf16.mxu0 0
      %1214 = vmatpush1.bf16.msra.mxu0 0
      %1215 = vmatprep.subr.bf16.mxu0 0
      %1216 = vmatpush1.bf16.msra.mxu0 0
      %1217 = vmatprep.subr.bf16.mxu0 0
      %1218 = vmatpush1.bf16.msra.mxu0 0
      %1219 = vmatprep.subr.bf16.mxu0 0
      %1220 = vmatpush1.bf16.msra.mxu0 0
      %1221 = vmatprep.mubr.bf16.mxu0 0
      %1222 = vmatmul.mubr.bf16.gmra.mrb[0].mxu0 %v1181
      %v1223 = vpop.f32.mrb[0].mxu0
      %v1224 = vadd.f32 0.0, %v1223
      %v1225 = vpop.f32.mrb[0].mxu0
      %v1226 = vpop.f32.mrb[0].mxu0
      %v1227 = vadd.f32 0.0, %v1226
      %v1228 = vpop.f32.mrb[0].mxu0
      %1229 = vmatprep.mubr.bf16.mxu0 0
      %1230 = vmatmul.mubr.bf16.gmra.mrb[0].mxu0 %v1184
      %v1231 = vpop.f32.mrb[0].mxu0
      %v1232 = vadd.f32 0.0, %v1231
      %v1233 = vpop.f32.mrb[0].mxu0
      %v1234 = vpop.f32.mrb[0].mxu0
      %v1235 = vadd.f32 0.0, %v1234
      %v1236 = vpop.f32.mrb[0].mxu0
      %1237 = vdwg.mxu0
      %v1238 = vadd.f32 %v1161, %v1224
      %v1239 = vadd.f32 %v1162, %v1227
      %v1240 = vadd.f32 %v1163, %v1232
      %v1241 = vadd.f32 %v1164, %v1235
      %s1242 = scalar_lea.vmem %s3, 96
      %v1243 = vld [vmem:[%s1242] sm:$0xf]
      %v1244 = vld [vmem:[%s1242 + $0x4] sm:$0xf]
      %v1245 = vld [vmem:[%s1242 + $0x8] sm:$0xf]
      %v1246 = vld [vmem:[%s1242 + $0xc] sm:$0x1]
      %v1251 = vunpack.c.l.b16 %v1243
      %v1252 = vunpack.c.l.b16 %v1244
      %v1253 = vunpack.c.l.b16 %v1245
      %v1254 = vunpack.c.l.b16 %v1246
      %v1255 = vpack.c.b16 %v1252, %v1251
      %v1256 = vpack.c.b16 %v1254, %v1253
      %v1258 = vsel %vm806, %v1255, 0
      %v1261 = vsel %vm806, %v1256, 0
      %v1264 = vsel %vm813, %v785, 0
      %1266 = vmatprep.subr.bf16.mxu0 0
      %1267 = vmatpush1.bf16.msra.mxu0 %v1264
      %1268 = vmatprep.subr.bf16.mxu0 0
      %1269 = vmatpush1.bf16.msra.mxu0 0
      %1270 = vmatprep.subr.bf16.mxu0 0
      %1271 = vmatpush1.bf16.msra.mxu0 0
      %1272 = vmatprep.subr.bf16.mxu0 0
      %1273 = vmatpush1.bf16.msra.mxu0 0
      %1274 = vmatprep.subr.bf16.mxu0 0
      %1275 = vmatpush1.bf16.msra.mxu0 0
      %1276 = vmatprep.subr.bf16.mxu0 0
      %1277 = vmatpush1.bf16.msra.mxu0 0
      %1278 = vmatprep.subr.bf16.mxu0 0
      %1279 = vmatpush1.bf16.msra.mxu0 0
      %1280 = vmatprep.subr.bf16.mxu0 0
      %1281 = vmatpush1.bf16.msra.mxu0 0
      %1282 = vmatprep.subr.bf16.mxu0 0
      %1283 = vmatpush1.bf16.msra.mxu0 0
      %1284 = vmatprep.subr.bf16.mxu0 0
      %1285 = vmatpush1.bf16.msra.mxu0 0
      %1286 = vmatprep.subr.bf16.mxu0 0
      %1287 = vmatpush1.bf16.msra.mxu0 0
      %1288 = vmatprep.subr.bf16.mxu0 0
      %1289 = vmatpush1.bf16.msra.mxu0 0
      %1290 = vmatprep.subr.bf16.mxu0 0
      %1291 = vmatpush1.bf16.msra.mxu0 0
      %1292 = vmatprep.subr.bf16.mxu0 0
      %1293 = vmatpush1.bf16.msra.mxu0 0
      %1294 = vmatprep.subr.bf16.mxu0 0
      %1295 = vmatpush1.bf16.msra.mxu0 0
      %1296 = vmatprep.subr.bf16.mxu0 0
      %1297 = vmatpush1.bf16.msra.mxu0 0
      %1298 = vmatprep.mubr.bf16.mxu0 0
      %1299 = vmatmul.mubr.bf16.gmra.mrb[0].mxu0 %v1258
      %v1300 = vpop.f32.mrb[0].mxu0
      %v1301 = vadd.f32 0.0, %v1300
      %v1302 = vpop.f32.mrb[0].mxu0
      %v1303 = vpop.f32.mrb[0].mxu0
      %v1304 = vadd.f32 0.0, %v1303
      %v1305 = vpop.f32.mrb[0].mxu0
      %1306 = vmatprep.mubr.bf16.mxu0 0
      %1307 = vmatmul.mubr.bf16.gmra.mrb[0].mxu0 %v1261
      %v1308 = vpop.f32.mrb[0].mxu0
      %v1309 = vadd.f32 0.0, %v1308
      %v1310 = vpop.f32.mrb[0].mxu0
      %v1311 = vpop.f32.mrb[0].mxu0
      %v1312 = vadd.f32 0.0, %v1311
      %v1313 = vpop.f32.mrb[0].mxu0
      %1314 = vdwg.mxu0
      %v1315 = vadd.f32 %v1238, %v1301
      %v1316 = vadd.f32 %v1239, %v1304
      %v1317 = vadd.f32 %v1240, %v1309
      %v1318 = vadd.f32 %v1241, %v1312
      %s1319 = scalar_lea.vmem %s3, 112
      %v1320 = vld [vmem:[%s1319] sm:$0xf]
      %v1321 = vld [vmem:[%s1319 + $0x4] sm:$0xf]
      %v1322 = vld [vmem:[%s1319 + $0x8] sm:$0xf]
      %v1323 = vld [vmem:[%s1319 + $0xc] sm:$0x1]
      %v1328 = vunpack.c.l.b16 %v1320
      %v1329 = vunpack.c.l.b16 %v1321
      %v1330 = vunpack.c.l.b16 %v1322
      %v1331 = vunpack.c.l.b16 %v1323
      %v1332 = vpack.c.b16 %v1329, %v1328
      %v1333 = vpack.c.b16 %v1331, %v1330
      %v1335 = vsel %vm806, %v1332, 0
      %v1338 = vsel %vm806, %v1333, 0
      %v1341 = vsel %vm813, %v786, 0
      %1343 = vmatprep.subr.bf16.mxu0 0
      %1344 = vmatpush1.bf16.msra.mxu0 %v1341
      %1345 = vmatprep.subr.bf16.mxu0 0
      %1346 = vmatpush1.bf16.msra.mxu0 0
      %1347 = vmatprep.subr.bf16.mxu0 0
      %1348 = vmatpush1.bf16.msra.mxu0 0
      %1349 = vmatprep.subr.bf16.mxu0 0
      %1350 = vmatpush1.bf16.msra.mxu0 0
      %1351 = vmatprep.subr.bf16.mxu0 0
      %1352 = vmatpush1.bf16.msra.mxu0 0
      %1353 = vmatprep.subr.bf16.mxu0 0
      %1354 = vmatpush1.bf16.msra.mxu0 0
      %1355 = vmatprep.subr.bf16.mxu0 0
      %1356 = vmatpush1.bf16.msra.mxu0 0
      %1357 = vmatprep.subr.bf16.mxu0 0
      %1358 = vmatpush1.bf16.msra.mxu0 0
      %1359 = vmatprep.subr.bf16.mxu0 0
      %1360 = vmatpush1.bf16.msra.mxu0 0
      %1361 = vmatprep.subr.bf16.mxu0 0
      %1362 = vmatpush1.bf16.msra.mxu0 0
      %1363 = vmatprep.subr.bf16.mxu0 0
      %1364 = vmatpush1.bf16.msra.mxu0 0
      %1365 = vmatprep.subr.bf16.mxu0 0
      %1366 = vmatpush1.bf16.msra.mxu0 0
      %1367 = vmatprep.subr.bf16.mxu0 0
      %1368 = vmatpush1.bf16.msra.mxu0 0
      %1369 = vmatprep.subr.bf16.mxu0 0
      %1370 = vmatpush1.bf16.msra.mxu0 0
      %1371 = vmatprep.subr.bf16.mxu0 0
      %1372 = vmatpush1.bf16.msra.mxu0 0
      %1373 = vmatprep.subr.bf16.mxu0 0
      %1374 = vmatpush1.bf16.msra.mxu0 0
      %1375 = vmatprep.mubr.bf16.mxu0 0
      %1376 = vmatmul.mubr.bf16.gmra.mrb[0].mxu0 %v1335
      %v1377 = vpop.f32.mrb[0].mxu0
      %v1378 = vadd.f32 0.0, %v1377
      %v1379 = vpop.f32.mrb[0].mxu0
      %v1380 = vpop.f32.mrb[0].mxu0
      %v1381 = vadd.f32 0.0, %v1380
      %v1382 = vpop.f32.mrb[0].mxu0
      %1383 = vmatprep.mubr.bf16.mxu0 0
      %1384 = vmatmul.mubr.bf16.gmra.mrb[0].mxu0 %v1338
      %v1385 = vpop.f32.mrb[0].mxu0
      %v1386 = vadd.f32 0.0, %v1385
      %v1387 = vpop.f32.mrb[0].mxu0
      %v1388 = vpop.f32.mrb[0].mxu0
      %v1389 = vadd.f32 0.0, %v1388
      %v1390 = vpop.f32.mrb[0].mxu0
      %1391 = vdwg.mxu0
      %v1392 = vadd.f32 %v1315, %v1378
      %v1393 = vadd.f32 %v1316, %v1381
      %v1394 = vadd.f32 %v1317, %v1386
      %v1395 = vadd.f32 %v1318, %v1389
      %v1396 = vld [vmem:[%s4] sm:$0xff]
      %v1397 = vld [vmem:[%s4 + $0x8] sm:$0xff]
      %v1398 = vld [vmem:[%s4 + $0x10] sm:$0xff]
      %v1399 = vld [vmem:[%s4 + $0x18] sm:$0x1]
      %1401 = vset.pattern.permute.xlu0 0
      %1402 = vperm.xlu0 %1401, %v1396
      %v1403 = vpop.permute.xlu0 %1402
      %1406 = vset.pattern.permute.xlu0 0
      %1407 = vperm.xlu0 %1406, %v1397
      %v1408 = vpop.permute.xlu0 %1407
      %1411 = vset.pattern.permute.xlu0 0
      %1412 = vperm.xlu0 %1411, %v1398
      %v1413 = vpop.permute.xlu0 %1412
      %1416 = vset.pattern.permute.xlu0 0
      %1417 = vperm.xlu0 %1416, %v1399
      %v1418 = vpop.permute.xlu0 %1417
      %v1420 = vadd.f32 %v1392, %v1403
      %v1421 = vadd.f32 %v1393, %v1408
      %v1422 = vadd.f32 %v1394, %v1413
      %v1423 = vadd.f32 %v1395, %v1418
      %v1424 = vmax.f32 %v1420, 0.0
      %v1425 = vmax.f32 %v1421, 0.0
      %v1426 = vmax.f32 %v1422, 0.0
      %v1427 = vmax.f32 %v1423, 0.0
      %v1428 = vld [vmem:[%s5] sm:$0xff]
      %v1429 = vld [vmem:[%s5 + $0x8] sm:$0xff]
      %v1430 = vld [vmem:[%s5 + $0x10] sm:$0xff]
      %v1431 = vld [vmem:[%s5 + $0x18] sm:$0x1]
      %v1432 = vld [vmem:[%s5 + $0x20] sm:$0xff]
      %v1433 = vld [vmem:[%s5 + $0x28] sm:$0xff]
      %v1434 = vld [vmem:[%s5 + $0x30] sm:$0xff]
      %v1435 = vld [vmem:[%s5 + $0x38] sm:$0x1]
      %v1436 = vld [vmem:[%s5 + $0x40] sm:$0xff]
      %v1437 = vld [vmem:[%s5 + $0x48] sm:$0xff]
      %v1438 = vld [vmem:[%s5 + $0x50] sm:$0xff]
      %v1439 = vld [vmem:[%s5 + $0x58] sm:$0x1]
      %v1440 = vld [vmem:[%s5 + $0x60] sm:$0xff]
      %v1441 = vld [vmem:[%s5 + $0x68] sm:$0xff]
      %v1442 = vld [vmem:[%s5 + $0x70] sm:$0xff]
      %v1443 = vld [vmem:[%s5 + $0x78] sm:$0x1]
      %v1444 = vld [vmem:[%s5 + $0x80] sm:$0xff]
      %v1445 = vld [vmem:[%s5 + $0x88] sm:$0xff]
      %v1446 = vld [vmem:[%s5 + $0x90] sm:$0xff]
      %v1447 = vld [vmem:[%s5 + $0x98] sm:$0x1]
      %v1448 = vld [vmem:[%s5 + $0xa0] sm:$0xff]
      %v1449 = vld [vmem:[%s5 + $0xa8] sm:$0xff]
      %v1450 = vld [vmem:[%s5 + $0xb0] sm:$0xff]
      %v1451 = vld [vmem:[%s5 + $0xb8] sm:$0x1]
      %v1452 = vld [vmem:[%s5 + $0xc0] sm:$0xff]
      %v1453 = vld [vmem:[%s5 + $0xc8] sm:$0xff]
      %v1454 = vld [vmem:[%s5 + $0xd0] sm:$0xff]
      %v1455 = vld [vmem:[%s5 + $0xd8] sm:$0x1]
      %v1456 = vld [vmem:[%s5 + $0xe0] sm:$0xff]
      %v1457 = vld [vmem:[%s5 + $0xe8] sm:$0xff]
      %v1458 = vld [vmem:[%s5 + $0xf0] sm:$0xff]
      %v1459 = vld [vmem:[%s5 + $0xf8] sm:$0x1]
      %v1460 = vld [vmem:[%s5 + $0x100] sm:$0xff]
      %v1461 = vld [vmem:[%s5 + $0x108] sm:$0xff]
      %v1462 = vld [vmem:[%s5 + $0x110] sm:$0xff]
      %v1463 = vld [vmem:[%s5 + $0x118] sm:$0x1]
      %v1464 = vld [vmem:[%s5 + $0x120] sm:$0xff]
      %v1465 = vld [vmem:[%s5 + $0x128] sm:$0xff]
      %v1466 = vld [vmem:[%s5 + $0x130] sm:$0xff]
      %v1467 = vld [vmem:[%s5 + $0x138] sm:$0x1]
      %v1468 = vld [vmem:[%s5 + $0x140] sm:$0xff]
      %v1469 = vld [vmem:[%s5 + $0x148] sm:$0xff]
      %v1470 = vld [vmem:[%s5 + $0x150] sm:$0xff]
      %v1471 = vld [vmem:[%s5 + $0x158] sm:$0x1]
      %v1472 = vld [vmem:[%s5 + $0x160] sm:$0xff]
      %v1473 = vld [vmem:[%s5 + $0x168] sm:$0xff]
      %v1474 = vld [vmem:[%s5 + $0x170] sm:$0xff]
      %v1475 = vld [vmem:[%s5 + $0x178] sm:$0x1]
      %v1476 = vld [vmem:[%s5 + $0x180] sm:$0xff]
      %v1477 = vld [vmem:[%s5 + $0x188] sm:$0xff]
      %v1478 = vld [vmem:[%s5 + $0x190] sm:$0xff]
      %v1479 = vld [vmem:[%s5 + $0x198] sm:$0x1]
      %v1480 = vld [vmem:[%s5 + $0x1a0] sm:$0xff]
      %v1481 = vld [vmem:[%s5 + $0x1a8] sm:$0xff]
      %v1482 = vld [vmem:[%s5 + $0x1b0] sm:$0xff]
      %v1483 = vld [vmem:[%s5 + $0x1b8] sm:$0x1]
      %v1484 = vld [vmem:[%s5 + $0x1c0] sm:$0xff]
      %v1485 = vld [vmem:[%s5 + $0x1c8] sm:$0xff]
      %v1486 = vld [vmem:[%s5 + $0x1d0] sm:$0xff]
      %v1487 = vld [vmem:[%s5 + $0x1d8] sm:$0x1]
      %v1488 = vld [vmem:[%s5 + $0x1e0] sm:$0xff]
      %v1489 = vld [vmem:[%s5 + $0x1e8] sm:$0xff]
      %v1490 = vld [vmem:[%s5 + $0x1f0] sm:$0xff]
      %v1491 = vld [vmem:[%s5 + $0x1f8] sm:$0x1]
      %v1492 = vld [vmem:[%s5 + $0x200] sm:$0xff]
      %v1493 = vld [vmem:[%s5 + $0x208] sm:$0xff]
      %v1494 = vld [vmem:[%s5 + $0x210] sm:$0xff]
      %v1495 = vld [vmem:[%s5 + $0x218] sm:$0x1]
      %v1496 = vld [vmem:[%s5 + $0x220] sm:$0xff]
      %v1497 = vld [vmem:[%s5 + $0x228] sm:$0xff]
      %v1498 = vld [vmem:[%s5 + $0x230] sm:$0xff]
      %v1499 = vld [vmem:[%s5 + $0x238] sm:$0x1]
      %v1500 = vld [vmem:[%s5 + $0x240] sm:$0xff]
      %v1501 = vld [vmem:[%s5 + $0x248] sm:$0xff]
      %v1502 = vld [vmem:[%s5 + $0x250] sm:$0xff]
      %v1503 = vld [vmem:[%s5 + $0x258] sm:$0x1]
      %v1504 = vld [vmem:[%s5 + $0x260] sm:$0xff]
      %v1505 = vld [vmem:[%s5 + $0x268] sm:$0xff]
      %v1506 = vld [vmem:[%s5 + $0x270] sm:$0xff]
      %v1507 = vld [vmem:[%s5 + $0x278] sm:$0x1]
      %v1508 = vld [vmem:[%s5 + $0x280] sm:$0xff]
      %v1509 = vld [vmem:[%s5 + $0x288] sm:$0xff]
      %v1510 = vld [vmem:[%s5 + $0x290] sm:$0xff]
      %v1511 = vld [vmem:[%s5 + $0x298] sm:$0x1]
      %v1512 = vld [vmem:[%s5 + $0x2a0] sm:$0xff]
      %v1513 = vld [vmem:[%s5 + $0x2a8] sm:$0xff]
      %v1514 = vld [vmem:[%s5 + $0x2b0] sm:$0xff]
      %v1515 = vld [vmem:[%s5 + $0x2b8] sm:$0x1]
      %v1516 = vld [vmem:[%s5 + $0x2c0] sm:$0xff]
      %v1517 = vld [vmem:[%s5 + $0x2c8] sm:$0xff]
      %v1518 = vld [vmem:[%s5 + $0x2d0] sm:$0xff]
      %v1519 = vld [vmem:[%s5 + $0x2d8] sm:$0x1]
      %v1520 = vld [vmem:[%s5 + $0x2e0] sm:$0xff]
      %v1521 = vld [vmem:[%s5 + $0x2e8] sm:$0xff]
      %v1522 = vld [vmem:[%s5 + $0x2f0] sm:$0xff]
      %v1523 = vld [vmem:[%s5 + $0x2f8] sm:$0x1]
      %v1524 = vld [vmem:[%s5 + $0x300] sm:$0xff]
      %v1525 = vld [vmem:[%s5 + $0x308] sm:$0xff]
      %v1526 = vld [vmem:[%s5 + $0x310] sm:$0xff]
      %v1527 = vld [vmem:[%s5 + $0x318] sm:$0x1]
      %v1528 = vmul.f32 %v1428, %v1424
      %v1529 = vmul.f32 %v1429, %v1425
      %v1530 = vmul.f32 %v1430, %v1426
      %v1531 = vmul.f32 %v1431, %v1427
      %v1532 = vmul.f32 %v1432, %v1424
      %v1533 = vmul.f32 %v1433, %v1425
      %v1534 = vmul.f32 %v1434, %v1426
      %v1535 = vmul.f32 %v1435, %v1427
      %v1536 = vmul.f32 %v1436, %v1424
      %v1537 = vmul.f32 %v1437, %v1425
      %v1538 = vmul.f32 %v1438, %v1426
      %v1539 = vmul.f32 %v1439, %v1427
      %v1540 = vmul.f32 %v1440, %v1424
      %v1541 = vmul.f32 %v1441, %v1425
      %v1542 = vmul.f32 %v1442, %v1426
      %v1543 = vmul.f32 %v1443, %v1427
      %v1544 = vmul.f32 %v1444, %v1424
      %v1545 = vmul.f32 %v1445, %v1425
      %v1546 = vmul.f32 %v1446, %v1426
      %v1547 = vmul.f32 %v1447, %v1427
      %v1548 = vmul.f32 %v1448, %v1424
      %v1549 = vmul.f32 %v1449, %v1425
      %v1550 = vmul.f32 %v1450, %v1426
      %v1551 = vmul.f32 %v1451, %v1427
      %v1552 = vmul.f32 %v1452, %v1424
      %v1553 = vmul.f32 %v1453, %v1425
      %v1554 = vmul.f32 %v1454, %v1426
      %v1555 = vmul.f32 %v1455, %v1427
      %v1556 = vmul.f32 %v1456, %v1424
      %v1557 = vmul.f32 %v1457, %v1425
      %v1558 = vmul.f32 %v1458, %v1426
      %v1559 = vmul.f32 %v1459, %v1427
      %v1560 = vmul.f32 %v1460, %v1424
      %v1561 = vmul.f32 %v1461, %v1425
      %v1562 = vmul.f32 %v1462, %v1426
      %v1563 = vmul.f32 %v1463, %v1427
      %v1564 = vmul.f32 %v1464, %v1424
      %v1565 = vmul.f32 %v1465, %v1425
      %v1566 = vmul.f32 %v1466, %v1426
      %v1567 = vmul.f32 %v1467, %v1427
      %v1568 = vmul.f32 %v1468, %v1424
      %v1569 = vmul.f32 %v1469, %v1425
      %v1570 = vmul.f32 %v1470, %v1426
      %v1571 = vmul.f32 %v1471, %v1427
      %v1572 = vmul.f32 %v1472, %v1424
      %v1573 = vmul.f32 %v1473, %v1425
      %v1574 = vmul.f32 %v1474, %v1426
      %v1575 = vmul.f32 %v1475, %v1427
      %v1576 = vmul.f32 %v1476, %v1424
      %v1577 = vmul.f32 %v1477, %v1425
      %v1578 = vmul.f32 %v1478, %v1426
      %v1579 = vmul.f32 %v1479, %v1427
      %v1580 = vmul.f32 %v1480, %v1424
      %v1581 = vmul.f32 %v1481, %v1425
      %v1582 = vmul.f32 %v1482, %v1426
      %v1583 = vmul.f32 %v1483, %v1427
      %v1584 = vmul.f32 %v1484, %v1424
      %v1585 = vmul.f32 %v1485, %v1425
      %v1586 = vmul.f32 %v1486, %v1426
      %v1587 = vmul.f32 %v1487, %v1427
      %v1588 = vmul.f32 %v1488, %v1424
      %v1589 = vmul.f32 %v1489, %v1425
      %v1590 = vmul.f32 %v1490, %v1426
      %v1591 = vmul.f32 %v1491, %v1427
      %v1592 = vmul.f32 %v1492, %v1424
      %v1593 = vmul.f32 %v1493, %v1425
      %v1594 = vmul.f32 %v1494, %v1426
      %v1595 = vmul.f32 %v1495, %v1427
      %v1596 = vmul.f32 %v1496, %v1424
      %v1597 = vmul.f32 %v1497, %v1425
      %v1598 = vmul.f32 %v1498, %v1426
      %v1599 = vmul.f32 %v1499, %v1427
      %v1600 = vmul.f32 %v1500, %v1424
      %v1601 = vmul.f32 %v1501, %v1425
      %v1602 = vmul.f32 %v1502, %v1426
      %v1603 = vmul.f32 %v1503, %v1427
      %v1604 = vmul.f32 %v1504, %v1424
      %v1605 = vmul.f32 %v1505, %v1425
      %v1606 = vmul.f32 %v1506, %v1426
      %v1607 = vmul.f32 %v1507, %v1427
      %v1608 = vmul.f32 %v1508, %v1424
      %v1609 = vmul.f32 %v1509, %v1425
      %v1610 = vmul.f32 %v1510, %v1426
      %v1611 = vmul.f32 %v1511, %v1427
      %v1612 = vmul.f32 %v1512, %v1424
      %v1613 = vmul.f32 %v1513, %v1425
      %v1614 = vmul.f32 %v1514, %v1426
      %v1615 = vmul.f32 %v1515, %v1427
      %v1616 = vmul.f32 %v1516, %v1424
      %v1617 = vmul.f32 %v1517, %v1425
      %v1618 = vmul.f32 %v1518, %v1426
      %v1619 = vmul.f32 %v1519, %v1427
      %v1620 = vmul.f32 %v1520, %v1424
      %v1621 = vmul.f32 %v1521, %v1425
      %v1622 = vmul.f32 %v1522, %v1426
      %v1623 = vmul.f32 %v1523, %v1427
      %v1624 = vmul.f32 %v1524, %v1424
      %v1625 = vmul.f32 %v1525, %v1425
      %v1626 = vmul.f32 %v1526, %v1426
      %v1627 = vmul.f32 %v1527, %v1427
      %1628 = vadd.xlane.f32.xlu0 %v1528
      %v1629 = vpop.xlane.xlu0 %1628
      %1630 = vadd.xlane.f32.xlu0 %v1529
      %v1631 = vpop.xlane.xlu0 %1630
      %1632 = vadd.xlane.f32.xlu0 %v1530
      %v1633 = vpop.xlane.xlu0 %1632
      %vm1634 = vcmask 1040384
      %v1635 = vsel %vm1634, %v1531, 0.0
      %1636 = vadd.xlane.f32.xlu0 %v1635
      %v1637 = vpop.xlane.xlu0 %1636
      %1638 = vadd.xlane.f32.xlu0 %v1532
      %v1639 = vpop.xlane.xlu0 %1638
      %1640 = vadd.xlane.f32.xlu0 %v1533
      %v1641 = vpop.xlane.xlu0 %1640
      %1642 = vadd.xlane.f32.xlu0 %v1534
      %v1643 = vpop.xlane.xlu0 %1642
      %v1644 = vsel %vm1634, %v1535, 0.0
      %1645 = vadd.xlane.f32.xlu0 %v1644
      %v1646 = vpop.xlane.xlu0 %1645
      %1647 = vadd.xlane.f32.xlu0 %v1536
      %v1648 = vpop.xlane.xlu0 %1647
      %1649 = vadd.xlane.f32.xlu0 %v1537
      %v1650 = vpop.xlane.xlu0 %1649
      %1651 = vadd.xlane.f32.xlu0 %v1538
      %v1652 = vpop.xlane.xlu0 %1651
      %v1653 = vsel %vm1634, %v1539, 0.0
      %1654 = vadd.xlane.f32.xlu0 %v1653
      %v1655 = vpop.xlane.xlu0 %1654
      %1656 = vadd.xlane.f32.xlu0 %v1540
      %v1657 = vpop.xlane.xlu0 %1656
      %1658 = vadd.xlane.f32.xlu0 %v1541
      %v1659 = vpop.xlane.xlu0 %1658
      %1660 = vadd.xlane.f32.xlu0 %v1542
      %v1661 = vpop.xlane.xlu0 %1660
      %v1662 = vsel %vm1634, %v1543, 0.0
      %1663 = vadd.xlane.f32.xlu0 %v1662
      %v1664 = vpop.xlane.xlu0 %1663
      %1665 = vadd.xlane.f32.xlu0 %v1544
      %v1666 = vpop.xlane.xlu0 %1665
      %1667 = vadd.xlane.f32.xlu0 %v1545
      %v1668 = vpop.xlane.xlu0 %1667
      %1669 = vadd.xlane.f32.xlu0 %v1546
      %v1670 = vpop.xlane.xlu0 %1669
      %v1671 = vsel %vm1634, %v1547, 0.0
      %1672 = vadd.xlane.f32.xlu0 %v1671
      %v1673 = vpop.xlane.xlu0 %1672
      %1674 = vadd.xlane.f32.xlu0 %v1548
      %v1675 = vpop.xlane.xlu0 %1674
      %1676 = vadd.xlane.f32.xlu0 %v1549
      %v1677 = vpop.xlane.xlu0 %1676
      %1678 = vadd.xlane.f32.xlu0 %v1550
      %v1679 = vpop.xlane.xlu0 %1678
      %v1680 = vsel %vm1634, %v1551, 0.0
      %1681 = vadd.xlane.f32.xlu0 %v1680
      %v1682 = vpop.xlane.xlu0 %1681
      %1683 = vadd.xlane.f32.xlu0 %v1552
      %v1684 = vpop.xlane.xlu0 %1683
      %1685 = vadd.xlane.f32.xlu0 %v1553
      %v1686 = vpop.xlane.xlu0 %1685
      %1687 = vadd.xlane.f32.xlu0 %v1554
      %v1688 = vpop.xlane.xlu0 %1687
      %v1689 = vsel %vm1634, %v1555, 0.0
      %1690 = vadd.xlane.f32.xlu0 %v1689
      %v1691 = vpop.xlane.xlu0 %1690
      %1692 = vadd.xlane.f32.xlu0 %v1556
      %v1693 = vpop.xlane.xlu0 %1692
      %1694 = vadd.xlane.f32.xlu0 %v1557
      %v1695 = vpop.xlane.xlu0 %1694
      %1696 = vadd.xlane.f32.xlu0 %v1558
      %v1697 = vpop.xlane.xlu0 %1696
      %v1698 = vsel %vm1634, %v1559, 0.0
      %1699 = vadd.xlane.f32.xlu0 %v1698
      %v1700 = vpop.xlane.xlu0 %1699
      %1701 = vadd.xlane.f32.xlu0 %v1560
      %v1702 = vpop.xlane.xlu0 %1701
      %1703 = vadd.xlane.f32.xlu0 %v1561
      %v1704 = vpop.xlane.xlu0 %1703
      %1705 = vadd.xlane.f32.xlu0 %v1562
      %v1706 = vpop.xlane.xlu0 %1705
      %v1707 = vsel %vm1634, %v1563, 0.0
      %1708 = vadd.xlane.f32.xlu0 %v1707
      %v1709 = vpop.xlane.xlu0 %1708
      %1710 = vadd.xlane.f32.xlu0 %v1564
      %v1711 = vpop.xlane.xlu0 %1710
      %1712 = vadd.xlane.f32.xlu0 %v1565
      %v1713 = vpop.xlane.xlu0 %1712
      %1714 = vadd.xlane.f32.xlu0 %v1566
      %v1715 = vpop.xlane.xlu0 %1714
      %v1716 = vsel %vm1634, %v1567, 0.0
      %1717 = vadd.xlane.f32.xlu0 %v1716
      %v1718 = vpop.xlane.xlu0 %1717
      %1719 = vadd.xlane.f32.xlu0 %v1568
      %v1720 = vpop.xlane.xlu0 %1719
      %1721 = vadd.xlane.f32.xlu0 %v1569
      %v1722 = vpop.xlane.xlu0 %1721
      %1723 = vadd.xlane.f32.xlu0 %v1570
      %v1724 = vpop.xlane.xlu0 %1723
      %v1725 = vsel %vm1634, %v1571, 0.0
      %1726 = vadd.xlane.f32.xlu0 %v1725
      %v1727 = vpop.xlane.xlu0 %1726
      %1728 = vadd.xlane.f32.xlu0 %v1572
      %v1729 = vpop.xlane.xlu0 %1728
      %1730 = vadd.xlane.f32.xlu0 %v1573
      %v1731 = vpop.xlane.xlu0 %1730
      %1732 = vadd.xlane.f32.xlu0 %v1574
      %v1733 = vpop.xlane.xlu0 %1732
      %v1734 = vsel %vm1634, %v1575, 0.0
      %1735 = vadd.xlane.f32.xlu0 %v1734
      %v1736 = vpop.xlane.xlu0 %1735
      %1737 = vadd.xlane.f32.xlu0 %v1576
      %v1738 = vpop.xlane.xlu0 %1737
      %1739 = vadd.xlane.f32.xlu0 %v1577
      %v1740 = vpop.xlane.xlu0 %1739
      %1741 = vadd.xlane.f32.xlu0 %v1578
      %v1742 = vpop.xlane.xlu0 %1741
      %v1743 = vsel %vm1634, %v1579, 0.0
      %1744 = vadd.xlane.f32.xlu0 %v1743
      %v1745 = vpop.xlane.xlu0 %1744
      %1746 = vadd.xlane.f32.xlu0 %v1580
      %v1747 = vpop.xlane.xlu0 %1746
      %1748 = vadd.xlane.f32.xlu0 %v1581
      %v1749 = vpop.xlane.xlu0 %1748
      %1750 = vadd.xlane.f32.xlu0 %v1582
      %v1751 = vpop.xlane.xlu0 %1750
      %v1752 = vsel %vm1634, %v1583, 0.0
      %1753 = vadd.xlane.f32.xlu0 %v1752
      %v1754 = vpop.xlane.xlu0 %1753
      %1755 = vadd.xlane.f32.xlu0 %v1584
      %v1756 = vpop.xlane.xlu0 %1755
      %1757 = vadd.xlane.f32.xlu0 %v1585
      %v1758 = vpop.xlane.xlu0 %1757
      %1759 = vadd.xlane.f32.xlu0 %v1586
      %v1760 = vpop.xlane.xlu0 %1759
      %v1761 = vsel %vm1634, %v1587, 0.0
      %1762 = vadd.xlane.f32.xlu0 %v1761
      %v1763 = vpop.xlane.xlu0 %1762
      %1764 = vadd.xlane.f32.xlu0 %v1588
      %v1765 = vpop.xlane.xlu0 %1764
      %1766 = vadd.xlane.f32.xlu0 %v1589
      %v1767 = vpop.xlane.xlu0 %1766
      %1768 = vadd.xlane.f32.xlu0 %v1590
      %v1769 = vpop.xlane.xlu0 %1768
      %v1770 = vsel %vm1634, %v1591, 0.0
      %1771 = vadd.xlane.f32.xlu0 %v1770
      %v1772 = vpop.xlane.xlu0 %1771
      %1773 = vadd.xlane.f32.xlu0 %v1592
      %v1774 = vpop.xlane.xlu0 %1773
      %1775 = vadd.xlane.f32.xlu0 %v1593
      %v1776 = vpop.xlane.xlu0 %1775
      %1777 = vadd.xlane.f32.xlu0 %v1594
      %v1778 = vpop.xlane.xlu0 %1777
      %v1779 = vsel %vm1634, %v1595, 0.0
      %1780 = vadd.xlane.f32.xlu0 %v1779
      %v1781 = vpop.xlane.xlu0 %1780
      %1782 = vadd.xlane.f32.xlu0 %v1596
      %v1783 = vpop.xlane.xlu0 %1782
      %1784 = vadd.xlane.f32.xlu0 %v1597
      %v1785 = vpop.xlane.xlu0 %1784
      %1786 = vadd.xlane.f32.xlu0 %v1598
      %v1787 = vpop.xlane.xlu0 %1786
      %v1788 = vsel %vm1634, %v1599, 0.0
      %1789 = vadd.xlane.f32.xlu0 %v1788
      %v1790 = vpop.xlane.xlu0 %1789
      %1791 = vadd.xlane.f32.xlu0 %v1600
      %v1792 = vpop.xlane.xlu0 %1791
      %1793 = vadd.xlane.f32.xlu0 %v1601
      %v1794 = vpop.xlane.xlu0 %1793
      %1795 = vadd.xlane.f32.xlu0 %v1602
      %v1796 = vpop.xlane.xlu0 %1795
      %v1797 = vsel %vm1634, %v1603, 0.0
      %1798 = vadd.xlane.f32.xlu0 %v1797
      %v1799 = vpop.xlane.xlu0 %1798
      %1800 = vadd.xlane.f32.xlu0 %v1604
      %v1801 = vpop.xlane.xlu0 %1800
      %1802 = vadd.xlane.f32.xlu0 %v1605
      %v1803 = vpop.xlane.xlu0 %1802
      %1804 = vadd.xlane.f32.xlu0 %v1606
      %v1805 = vpop.xlane.xlu0 %1804
      %v1806 = vsel %vm1634, %v1607, 0.0
      %1807 = vadd.xlane.f32.xlu0 %v1806
      %v1808 = vpop.xlane.xlu0 %1807
      %1809 = vadd.xlane.f32.xlu0 %v1608
      %v1810 = vpop.xlane.xlu0 %1809
      %1811 = vadd.xlane.f32.xlu0 %v1609
      %v1812 = vpop.xlane.xlu0 %1811
      %1813 = vadd.xlane.f32.xlu0 %v1610
      %v1814 = vpop.xlane.xlu0 %1813
      %v1815 = vsel %vm1634, %v1611, 0.0
      %1816 = vadd.xlane.f32.xlu0 %v1815
      %v1817 = vpop.xlane.xlu0 %1816
      %1818 = vadd.xlane.f32.xlu0 %v1612
      %v1819 = vpop.xlane.xlu0 %1818
      %1820 = vadd.xlane.f32.xlu0 %v1613
      %v1821 = vpop.xlane.xlu0 %1820
      %1822 = vadd.xlane.f32.xlu0 %v1614
      %v1823 = vpop.xlane.xlu0 %1822
      %v1824 = vsel %vm1634, %v1615, 0.0
      %1825 = vadd.xlane.f32.xlu0 %v1824
      %v1826 = vpop.xlane.xlu0 %1825
      %1827 = vadd.xlane.f32.xlu0 %v1616
      %v1828 = vpop.xlane.xlu0 %1827
      %1829 = vadd.xlane.f32.xlu0 %v1617
      %v1830 = vpop.xlane.xlu0 %1829
      %1831 = vadd.xlane.f32.xlu0 %v1618
      %v1832 = vpop.xlane.xlu0 %1831
      %v1833 = vsel %vm1634, %v1619, 0.0
      %1834 = vadd.xlane.f32.xlu0 %v1833
      %v1835 = vpop.xlane.xlu0 %1834
      %1836 = vadd.xlane.f32.xlu0 %v1620
      %v1837 = vpop.xlane.xlu0 %1836
      %1838 = vadd.xlane.f32.xlu0 %v1621
      %v1839 = vpop.xlane.xlu0 %1838
      %1840 = vadd.xlane.f32.xlu0 %v1622
      %v1841 = vpop.xlane.xlu0 %1840
      %v1842 = vsel %vm1634, %v1623, 0.0
      %1843 = vadd.xlane.f32.xlu0 %v1842
      %v1844 = vpop.xlane.xlu0 %1843
      %1845 = vadd.xlane.f32.xlu0 %v1624
      %v1846 = vpop.xlane.xlu0 %1845
      %1847 = vadd.xlane.f32.xlu0 %v1625
      %v1848 = vpop.xlane.xlu0 %1847
      %1849 = vadd.xlane.f32.xlu0 %v1626
      %v1850 = vpop.xlane.xlu0 %1849
      %v1851 = vsel %vm1634, %v1627, 0.0
      %1852 = vadd.xlane.f32.xlu0 %v1851
      %v1853 = vpop.xlane.xlu0 %1852
      %v1954 = vlaneseq
      %v1955 = vand.u32 %v1954, 127
      %v1956 = vlaneseq
      %v1957 = vshrl.u32 %v1956, 7
      %v1958 = vsub.s32 %v1955, %v1957
      %v1959 = vrot.slane %v1629, %v1958
      %v1960 = vadd.s32 %v1955, 4294967288
      %v1961 = vlaneseq
      %v1962 = vshrl.u32 %v1961, 7
      %v1963 = vsub.s32 %v1960, %v1962
      %v1964 = vrot.slane %v1631, %v1963
      %vm1965 = vcmask 130112
      %v1966 = vsel %vm1965, %v1964, %v1959
      %v1967 = vadd.s32 %v1955, 4294967280
      %v1968 = vlaneseq
      %v1969 = vshrl.u32 %v1968, 7
      %v1970 = vsub.s32 %v1967, %v1969
      %v1971 = vrot.slane %v1633, %v1970
      %vm1972 = vcmask 195712
      %v1973 = vsel %vm1972, %v1971, %v1966
      %v1974 = vadd.s32 %v1955, 4294967272
      %v1975 = vlaneseq
      %v1976 = vshrl.u32 %v1975, 7
      %v1977 = vsub.s32 %v1974, %v1976
      %v1978 = vrot.slane %v1637, %v1977
      %vm1979 = vcmask 261312
      %v1980 = vsel %vm1979, %v1978, %v1973
      %v1981 = vlaneseq
      %v1982 = vshrl.u32 %v1981, 7
      %v1983 = vsub.s32 %v1955, %v1982
      %v1984 = vrot.slane %v1639, %v1983
      %v1985 = vlaneseq
      %v1986 = vshrl.u32 %v1985, 7
      %v1987 = vsub.s32 %v1960, %v1986
      %v1988 = vrot.slane %v1641, %v1987
      %v1989 = vsel %vm1965, %v1988, %v1984
      %v1990 = vlaneseq
      %v1991 = vshrl.u32 %v1990, 7
      %v1992 = vsub.s32 %v1967, %v1991
      %v1993 = vrot.slane %v1643, %v1992
      %v1994 = vsel %vm1972, %v1993, %v1989
      %v1995 = vlaneseq
      %v1996 = vshrl.u32 %v1995, 7
      %v1997 = vsub.s32 %v1974, %v1996
      %v1998 = vrot.slane %v1646, %v1997
      %v1999 = vsel %vm1979, %v1998, %v1994
      %v2000 = vlaneseq
      %v2001 = vshrl.u32 %v2000, 7
      %v2002 = vsub.s32 %v1955, %v2001
      %v2003 = vrot.slane %v1648, %v2002
      %v2004 = vlaneseq
      %v2005 = vshrl.u32 %v2004, 7
      %v2006 = vsub.s32 %v1960, %v2005
      %v2007 = vrot.slane %v1650, %v2006
      %v2008 = vsel %vm1965, %v2007, %v2003
      %v2009 = vlaneseq
      %v2010 = vshrl.u32 %v2009, 7
      %v2011 = vsub.s32 %v1967, %v2010
      %v2012 = vrot.slane %v1652, %v2011
      %v2013 = vsel %vm1972, %v2012, %v2008
      %v2014 = vlaneseq
      %v2015 = vshrl.u32 %v2014, 7
      %v2016 = vsub.s32 %v1974, %v2015
      %v2017 = vrot.slane %v1655, %v2016
      %v2018 = vsel %vm1979, %v2017, %v2013
      %v2019 = vlaneseq
      %v2020 = vshrl.u32 %v2019, 7
      %v2021 = vsub.s32 %v1955, %v2020
      %v2022 = vrot.slane %v1657, %v2021
      %v2023 = vlaneseq
      %v2024 = vshrl.u32 %v2023, 7
      %v2025 = vsub.s32 %v1960, %v2024
      %v2026 = vrot.slane %v1659, %v2025
      %v2027 = vsel %vm1965, %v2026, %v2022
      %v2028 = vlaneseq
      %v2029 = vshrl.u32 %v2028, 7
      %v2030 = vsub.s32 %v1967, %v2029
      %v2031 = vrot.slane %v1661, %v2030
      %v2032 = vsel %vm1972, %v2031, %v2027
      %v2033 = vlaneseq
      %v2034 = vshrl.u32 %v2033, 7
      %v2035 = vsub.s32 %v1974, %v2034
      %v2036 = vrot.slane %v1664, %v2035
      %v2037 = vsel %vm1979, %v2036, %v2032
      %v2038 = vlaneseq
      %v2039 = vshrl.u32 %v2038, 7
      %v2040 = vsub.s32 %v1955, %v2039
      %v2041 = vrot.slane %v1666, %v2040
      %v2042 = vlaneseq
      %v2043 = vshrl.u32 %v2042, 7
      %v2044 = vsub.s32 %v1960, %v2043
      %v2045 = vrot.slane %v1668, %v2044
      %v2046 = vsel %vm1965, %v2045, %v2041
      %v2047 = vlaneseq
      %v2048 = vshrl.u32 %v2047, 7
      %v2049 = vsub.s32 %v1967, %v2048
      %v2050 = vrot.slane %v1670, %v2049
      %v2051 = vsel %vm1972, %v2050, %v2046
      %v2052 = vlaneseq
      %v2053 = vshrl.u32 %v2052, 7
      %v2054 = vsub.s32 %v1974, %v2053
      %v2055 = vrot.slane %v1673, %v2054
      %v2056 = vsel %vm1979, %v2055, %v2051
      %v2057 = vlaneseq
      %v2058 = vshrl.u32 %v2057, 7
      %v2059 = vsub.s32 %v1955, %v2058
      %v2060 = vrot.slane %v1675, %v2059
      %v2061 = vlaneseq
      %v2062 = vshrl.u32 %v2061, 7
      %v2063 = vsub.s32 %v1960, %v2062
      %v2064 = vrot.slane %v1677, %v2063
      %v2065 = vsel %vm1965, %v2064, %v2060
      %v2066 = vlaneseq
      %v2067 = vshrl.u32 %v2066, 7
      %v2068 = vsub.s32 %v1967, %v2067
      %v2069 = vrot.slane %v1679, %v2068
      %v2070 = vsel %vm1972, %v2069, %v2065
      %v2071 = vlaneseq
      %v2072 = vshrl.u32 %v2071, 7
      %v2073 = vsub.s32 %v1974, %v2072
      %v2074 = vrot.slane %v1682, %v2073
      %v2075 = vsel %vm1979, %v2074, %v2070
      %v2076 = vlaneseq
      %v2077 = vshrl.u32 %v2076, 7
      %v2078 = vsub.s32 %v1955, %v2077
      %v2079 = vrot.slane %v1684, %v2078
      %v2080 = vlaneseq
      %v2081 = vshrl.u32 %v2080, 7
      %v2082 = vsub.s32 %v1960, %v2081
      %v2083 = vrot.slane %v1686, %v2082
      %v2084 = vsel %vm1965, %v2083, %v2079
      %v2085 = vlaneseq
      %v2086 = vshrl.u32 %v2085, 7
      %v2087 = vsub.s32 %v1967, %v2086
      %v2088 = vrot.slane %v1688, %v2087
      %v2089 = vsel %vm1972, %v2088, %v2084
      %v2090 = vlaneseq
      %v2091 = vshrl.u32 %v2090, 7
      %v2092 = vsub.s32 %v1974, %v2091
      %v2093 = vrot.slane %v1691, %v2092
      %v2094 = vsel %vm1979, %v2093, %v2089
      %v2095 = vlaneseq
      %v2096 = vshrl.u32 %v2095, 7
      %v2097 = vsub.s32 %v1955, %v2096
      %v2098 = vrot.slane %v1693, %v2097
      %v2099 = vlaneseq
      %v2100 = vshrl.u32 %v2099, 7
      %v2101 = vsub.s32 %v1960, %v2100
      %v2102 = vrot.slane %v1695, %v2101
      %v2103 = vsel %vm1965, %v2102, %v2098
      %v2104 = vlaneseq
      %v2105 = vshrl.u32 %v2104, 7
      %v2106 = vsub.s32 %v1967, %v2105
      %v2107 = vrot.slane %v1697, %v2106
      %v2108 = vsel %vm1972, %v2107, %v2103
      %v2109 = vlaneseq
      %v2110 = vshrl.u32 %v2109, 7
      %v2111 = vsub.s32 %v1974, %v2110
      %v2112 = vrot.slane %v1700, %v2111
      %v2113 = vsel %vm1979, %v2112, %v2108
      %v2114 = vlaneseq
      %v2115 = vshrl.u32 %v2114, 7
      %v2116 = vsub.s32 %v1955, %v2115
      %v2117 = vrot.slane %v1702, %v2116
      %v2118 = vlaneseq
      %v2119 = vshrl.u32 %v2118, 7
      %v2120 = vsub.s32 %v1960, %v2119
      %v2121 = vrot.slane %v1704, %v2120
      %v2122 = vsel %vm1965, %v2121, %v2117
      %v2123 = vlaneseq
      %v2124 = vshrl.u32 %v2123, 7
      %v2125 = vsub.s32 %v1967, %v2124
      %v2126 = vrot.slane %v1706, %v2125
      %v2127 = vsel %vm1972, %v2126, %v2122
      %v2128 = vlaneseq
      %v2129 = vshrl.u32 %v2128, 7
      %v2130 = vsub.s32 %v1974, %v2129
      %v2131 = vrot.slane %v1709, %v2130
      %v2132 = vsel %vm1979, %v2131, %v2127
      %v2133 = vlaneseq
      %v2134 = vshrl.u32 %v2133, 7
      %v2135 = vsub.s32 %v1955, %v2134
      %v2136 = vrot.slane %v1711, %v2135
      %v2137 = vlaneseq
      %v2138 = vshrl.u32 %v2137, 7
      %v2139 = vsub.s32 %v1960, %v2138
      %v2140 = vrot.slane %v1713, %v2139
      %v2141 = vsel %vm1965, %v2140, %v2136
      %v2142 = vlaneseq
      %v2143 = vshrl.u32 %v2142, 7
      %v2144 = vsub.s32 %v1967, %v2143
      %v2145 = vrot.slane %v1715, %v2144
      %v2146 = vsel %vm1972, %v2145, %v2141
      %v2147 = vlaneseq
      %v2148 = vshrl.u32 %v2147, 7
      %v2149 = vsub.s32 %v1974, %v2148
      %v2150 = vrot.slane %v1718, %v2149
      %v2151 = vsel %vm1979, %v2150, %v2146
      %v2152 = vlaneseq
      %v2153 = vshrl.u32 %v2152, 7
      %v2154 = vsub.s32 %v1955, %v2153
      %v2155 = vrot.slane %v1720, %v2154
      %v2156 = vlaneseq
      %v2157 = vshrl.u32 %v2156, 7
      %v2158 = vsub.s32 %v1960, %v2157
      %v2159 = vrot.slane %v1722, %v2158
      %v2160 = vsel %vm1965, %v2159, %v2155
      %v2161 = vlaneseq
      %v2162 = vshrl.u32 %v2161, 7
      %v2163 = vsub.s32 %v1967, %v2162
      %v2164 = vrot.slane %v1724, %v2163
      %v2165 = vsel %vm1972, %v2164, %v2160
      %v2166 = vlaneseq
      %v2167 = vshrl.u32 %v2166, 7
      %v2168 = vsub.s32 %v1974, %v2167
      %v2169 = vrot.slane %v1727, %v2168
      %v2170 = vsel %vm1979, %v2169, %v2165
      %v2171 = vlaneseq
      %v2172 = vshrl.u32 %v2171, 7
      %v2173 = vsub.s32 %v1955, %v2172
      %v2174 = vrot.slane %v1729, %v2173
      %v2175 = vlaneseq
      %v2176 = vshrl.u32 %v2175, 7
      %v2177 = vsub.s32 %v1960, %v2176
      %v2178 = vrot.slane %v1731, %v2177
      %v2179 = vsel %vm1965, %v2178, %v2174
      %v2180 = vlaneseq
      %v2181 = vshrl.u32 %v2180, 7
      %v2182 = vsub.s32 %v1967, %v2181
      %v2183 = vrot.slane %v1733, %v2182
      %v2184 = vsel %vm1972, %v2183, %v2179
      %v2185 = vlaneseq
      %v2186 = vshrl.u32 %v2185, 7
      %v2187 = vsub.s32 %v1974, %v2186
      %v2188 = vrot.slane %v1736, %v2187
      %v2189 = vsel %vm1979, %v2188, %v2184
      %v2190 = vlaneseq
      %v2191 = vshrl.u32 %v2190, 7
      %v2192 = vsub.s32 %v1955, %v2191
      %v2193 = vrot.slane %v1738, %v2192
      %v2194 = vlaneseq
      %v2195 = vshrl.u32 %v2194, 7
      %v2196 = vsub.s32 %v1960, %v2195
      %v2197 = vrot.slane %v1740, %v2196
      %v2198 = vsel %vm1965, %v2197, %v2193
      %v2199 = vlaneseq
      %v2200 = vshrl.u32 %v2199, 7
      %v2201 = vsub.s32 %v1967, %v2200
      %v2202 = vrot.slane %v1742, %v2201
      %v2203 = vsel %vm1972, %v2202, %v2198
      %v2204 = vlaneseq
      %v2205 = vshrl.u32 %v2204, 7
      %v2206 = vsub.s32 %v1974, %v2205
      %v2207 = vrot.slane %v1745, %v2206
      %v2208 = vsel %vm1979, %v2207, %v2203
      %v2209 = vlaneseq
      %v2210 = vshrl.u32 %v2209, 7
      %v2211 = vsub.s32 %v1955, %v2210
      %v2212 = vrot.slane %v1747, %v2211
      %v2213 = vlaneseq
      %v2214 = vshrl.u32 %v2213, 7
      %v2215 = vsub.s32 %v1960, %v2214
      %v2216 = vrot.slane %v1749, %v2215
      %v2217 = vsel %vm1965, %v2216, %v2212
      %v2218 = vlaneseq
      %v2219 = vshrl.u32 %v2218, 7
      %v2220 = vsub.s32 %v1967, %v2219
      %v2221 = vrot.slane %v1751, %v2220
      %v2222 = vsel %vm1972, %v2221, %v2217
      %v2223 = vlaneseq
      %v2224 = vshrl.u32 %v2223, 7
      %v2225 = vsub.s32 %v1974, %v2224
      %v2226 = vrot.slane %v1754, %v2225
      %v2227 = vsel %vm1979, %v2226, %v2222
      %v2228 = vlaneseq
      %v2229 = vshrl.u32 %v2228, 7
      %v2230 = vsub.s32 %v1955, %v2229
      %v2231 = vrot.slane %v1756, %v2230
      %v2232 = vlaneseq
      %v2233 = vshrl.u32 %v2232, 7
      %v2234 = vsub.s32 %v1960, %v2233
      %v2235 = vrot.slane %v1758, %v2234
      %v2236 = vsel %vm1965, %v2235, %v2231
      %v2237 = vlaneseq
      %v2238 = vshrl.u32 %v2237, 7
      %v2239 = vsub.s32 %v1967, %v2238
      %v2240 = vrot.slane %v1760, %v2239
      %v2241 = vsel %vm1972, %v2240, %v2236
      %v2242 = vlaneseq
      %v2243 = vshrl.u32 %v2242, 7
      %v2244 = vsub.s32 %v1974, %v2243
      %v2245 = vrot.slane %v1763, %v2244
      %v2246 = vsel %vm1979, %v2245, %v2241
      %v2247 = vlaneseq
      %v2248 = vshrl.u32 %v2247, 7
      %v2249 = vsub.s32 %v1955, %v2248
      %v2250 = vrot.slane %v1765, %v2249
      %v2251 = vlaneseq
      %v2252 = vshrl.u32 %v2251, 7
      %v2253 = vsub.s32 %v1960, %v2252
      %v2254 = vrot.slane %v1767, %v2253
      %v2255 = vsel %vm1965, %v2254, %v2250
      %v2256 = vlaneseq
      %v2257 = vshrl.u32 %v2256, 7
      %v2258 = vsub.s32 %v1967, %v2257
      %v2259 = vrot.slane %v1769, %v2258
      %v2260 = vsel %vm1972, %v2259, %v2255
      %v2261 = vlaneseq
      %v2262 = vshrl.u32 %v2261, 7
      %v2263 = vsub.s32 %v1974, %v2262
      %v2264 = vrot.slane %v1772, %v2263
      %v2265 = vsel %vm1979, %v2264, %v2260
      %v2266 = vlaneseq
      %v2267 = vshrl.u32 %v2266, 7
      %v2268 = vsub.s32 %v1955, %v2267
      %v2269 = vrot.slane %v1774, %v2268
      %v2270 = vlaneseq
      %v2271 = vshrl.u32 %v2270, 7
      %v2272 = vsub.s32 %v1960, %v2271
      %v2273 = vrot.slane %v1776, %v2272
      %v2274 = vsel %vm1965, %v2273, %v2269
      %v2275 = vlaneseq
      %v2276 = vshrl.u32 %v2275, 7
      %v2277 = vsub.s32 %v1967, %v2276
      %v2278 = vrot.slane %v1778, %v2277
      %v2279 = vsel %vm1972, %v2278, %v2274
      %v2280 = vlaneseq
      %v2281 = vshrl.u32 %v2280, 7
      %v2282 = vsub.s32 %v1974, %v2281
      %v2283 = vrot.slane %v1781, %v2282
      %v2284 = vsel %vm1979, %v2283, %v2279
      %v2285 = vlaneseq
      %v2286 = vshrl.u32 %v2285, 7
      %v2287 = vsub.s32 %v1955, %v2286
      %v2288 = vrot.slane %v1783, %v2287
      %v2289 = vlaneseq
      %v2290 = vshrl.u32 %v2289, 7
      %v2291 = vsub.s32 %v1960, %v2290
      %v2292 = vrot.slane %v1785, %v2291
      %v2293 = vsel %vm1965, %v2292, %v2288
      %v2294 = vlaneseq
      %v2295 = vshrl.u32 %v2294, 7
      %v2296 = vsub.s32 %v1967, %v2295
      %v2297 = vrot.slane %v1787, %v2296
      %v2298 = vsel %vm1972, %v2297, %v2293
      %v2299 = vlaneseq
      %v2300 = vshrl.u32 %v2299, 7
      %v2301 = vsub.s32 %v1974, %v2300
      %v2302 = vrot.slane %v1790, %v2301
      %v2303 = vsel %vm1979, %v2302, %v2298
      %v2304 = vlaneseq
      %v2305 = vshrl.u32 %v2304, 7
      %v2306 = vsub.s32 %v1955, %v2305
      %v2307 = vrot.slane %v1792, %v2306
      %v2308 = vlaneseq
      %v2309 = vshrl.u32 %v2308, 7
      %v2310 = vsub.s32 %v1960, %v2309
      %v2311 = vrot.slane %v1794, %v2310
      %v2312 = vsel %vm1965, %v2311, %v2307
      %v2313 = vlaneseq
      %v2314 = vshrl.u32 %v2313, 7
      %v2315 = vsub.s32 %v1967, %v2314
      %v2316 = vrot.slane %v1796, %v2315
      %v2317 = vsel %vm1972, %v2316, %v2312
      %v2318 = vlaneseq
      %v2319 = vshrl.u32 %v2318, 7
      %v2320 = vsub.s32 %v1974, %v2319
      %v2321 = vrot.slane %v1799, %v2320
      %v2322 = vsel %vm1979, %v2321, %v2317
      %v2323 = vlaneseq
      %v2324 = vshrl.u32 %v2323, 7
      %v2325 = vsub.s32 %v1955, %v2324
      %v2326 = vrot.slane %v1801, %v2325
      %v2327 = vlaneseq
      %v2328 = vshrl.u32 %v2327, 7
      %v2329 = vsub.s32 %v1960, %v2328
      %v2330 = vrot.slane %v1803, %v2329
      %v2331 = vsel %vm1965, %v2330, %v2326
      %v2332 = vlaneseq
      %v2333 = vshrl.u32 %v2332, 7
      %v2334 = vsub.s32 %v1967, %v2333
      %v2335 = vrot.slane %v1805, %v2334
      %v2336 = vsel %vm1972, %v2335, %v2331
      %v2337 = vlaneseq
      %v2338 = vshrl.u32 %v2337, 7
      %v2339 = vsub.s32 %v1974, %v2338
      %v2340 = vrot.slane %v1808, %v2339
      %v2341 = vsel %vm1979, %v2340, %v2336
      %v2342 = vlaneseq
      %v2343 = vshrl.u32 %v2342, 7
      %v2344 = vsub.s32 %v1955, %v2343
      %v2345 = vrot.slane %v1810, %v2344
      %v2346 = vlaneseq
      %v2347 = vshrl.u32 %v2346, 7
      %v2348 = vsub.s32 %v1960, %v2347
      %v2349 = vrot.slane %v1812, %v2348
      %v2350 = vsel %vm1965, %v2349, %v2345
      %v2351 = vlaneseq
      %v2352 = vshrl.u32 %v2351, 7
      %v2353 = vsub.s32 %v1967, %v2352
      %v2354 = vrot.slane %v1814, %v2353
      %v2355 = vsel %vm1972, %v2354, %v2350
      %v2356 = vlaneseq
      %v2357 = vshrl.u32 %v2356, 7
      %v2358 = vsub.s32 %v1974, %v2357
      %v2359 = vrot.slane %v1817, %v2358
      %v2360 = vsel %vm1979, %v2359, %v2355
      %v2361 = vlaneseq
      %v2362 = vshrl.u32 %v2361, 7
      %v2363 = vsub.s32 %v1955, %v2362
      %v2364 = vrot.slane %v1819, %v2363
      %v2365 = vlaneseq
      %v2366 = vshrl.u32 %v2365, 7
      %v2367 = vsub.s32 %v1960, %v2366
      %v2368 = vrot.slane %v1821, %v2367
      %v2369 = vsel %vm1965, %v2368, %v2364
      %v2370 = vlaneseq
      %v2371 = vshrl.u32 %v2370, 7
      %v2372 = vsub.s32 %v1967, %v2371
      %v2373 = vrot.slane %v1823, %v2372
      %v2374 = vsel %vm1972, %v2373, %v2369
      %v2375 = vlaneseq
      %v2376 = vshrl.u32 %v2375, 7
      %v2377 = vsub.s32 %v1974, %v2376
      %v2378 = vrot.slane %v1826, %v2377
      %v2379 = vsel %vm1979, %v2378, %v2374
      %v2380 = vlaneseq
      %v2381 = vshrl.u32 %v2380, 7
      %v2382 = vsub.s32 %v1955, %v2381
      %v2383 = vrot.slane %v1828, %v2382
      %v2384 = vlaneseq
      %v2385 = vshrl.u32 %v2384, 7
      %v2386 = vsub.s32 %v1960, %v2385
      %v2387 = vrot.slane %v1830, %v2386
      %v2388 = vsel %vm1965, %v2387, %v2383
      %v2389 = vlaneseq
      %v2390 = vshrl.u32 %v2389, 7
      %v2391 = vsub.s32 %v1967, %v2390
      %v2392 = vrot.slane %v1832, %v2391
      %v2393 = vsel %vm1972, %v2392, %v2388
      %v2394 = vlaneseq
      %v2395 = vshrl.u32 %v2394, 7
      %v2396 = vsub.s32 %v1974, %v2395
      %v2397 = vrot.slane %v1835, %v2396
      %v2398 = vsel %vm1979, %v2397, %v2393
      %v2399 = vlaneseq
      %v2400 = vshrl.u32 %v2399, 7
      %v2401 = vsub.s32 %v1955, %v2400
      %v2402 = vrot.slane %v1837, %v2401
      %v2403 = vlaneseq
      %v2404 = vshrl.u32 %v2403, 7
      %v2405 = vsub.s32 %v1960, %v2404
      %v2406 = vrot.slane %v1839, %v2405
      %v2407 = vsel %vm1965, %v2406, %v2402
      %v2408 = vlaneseq
      %v2409 = vshrl.u32 %v2408, 7
      %v2410 = vsub.s32 %v1967, %v2409
      %v2411 = vrot.slane %v1841, %v2410
      %v2412 = vsel %vm1972, %v2411, %v2407
      %v2413 = vlaneseq
      %v2414 = vshrl.u32 %v2413, 7
      %v2415 = vsub.s32 %v1974, %v2414
      %v2416 = vrot.slane %v1844, %v2415
      %v2417 = vsel %vm1979, %v2416, %v2412
      %v2418 = vlaneseq
      %v2419 = vshrl.u32 %v2418, 7
      %v2420 = vsub.s32 %v1955, %v2419
      %v2421 = vrot.slane %v1846, %v2420
      %v2422 = vlaneseq
      %v2423 = vshrl.u32 %v2422, 7
      %v2424 = vsub.s32 %v1960, %v2423
      %v2425 = vrot.slane %v1848, %v2424
      %v2426 = vsel %vm1965, %v2425, %v2421
      %v2427 = vlaneseq
      %v2428 = vshrl.u32 %v2427, 7
      %v2429 = vsub.s32 %v1967, %v2428
      %v2430 = vrot.slane %v1850, %v2429
      %v2431 = vsel %vm1972, %v2430, %v2426
      %v2432 = vlaneseq
      %v2433 = vshrl.u32 %v2432, 7
      %v2434 = vsub.s32 %v1974, %v2433
      %v2435 = vrot.slane %v1853, %v2434
      %v2436 = vsel %vm1979, %v2435, %v2431
      %vm2437 = vcmask 1041409
      %v2438 = vsel %vm2437, %v1999, %v1980
      %vm2439 = vcmask 1042434
      %v2440 = vsel %vm2439, %v2018, %v2438
      %vm2441 = vcmask 1043459
      %v2442 = vsel %vm2441, %v2037, %v2440
      %vm2443 = vcmask 1044484
      %v2444 = vsel %vm2443, %v2056, %v2442
      %vm2445 = vcmask 1045509
      %v2446 = vsel %vm2445, %v2075, %v2444
      %vm2447 = vcmask 1046534
      %v2448 = vsel %vm2447, %v2094, %v2446
      %vm2449 = vcmask 1047559
      %v2450 = vsel %vm2449, %v2113, %v2448
      %v2451 = vsel %vm2437, %v2151, %v2132
      %v2452 = vsel %vm2439, %v2170, %v2451
      %v2453 = vsel %vm2441, %v2189, %v2452
      %v2454 = vsel %vm2443, %v2208, %v2453
      %v2455 = vsel %vm2445, %v2227, %v2454
      %v2456 = vsel %vm2447, %v2246, %v2455
      %v2457 = vsel %vm2449, %v2265, %v2456
      %v2458 = vsel %vm2437, %v2303, %v2284
      %v2459 = vsel %vm2439, %v2322, %v2458
      %v2460 = vsel %vm2441, %v2341, %v2459
      %v2461 = vsel %vm2443, %v2360, %v2460
      %v2462 = vsel %vm2445, %v2379, %v2461
      %v2463 = vsel %vm2447, %v2398, %v2462
      %v2464 = vsel %vm2449, %v2417, %v2463
      %vm2469 = vcmask 203776
      %v2470 = vsel %vm2469, %v2450, 0.0
      %2471 = vadd.xlane.f32.xlu0 %v2470
      %v2472 = vpop.xlane.xlu0 %2471
      %v2473 = vsel %vm2469, %v2457, 0.0
      %2474 = vadd.xlane.f32.xlu0 %v2473
      %v2475 = vpop.xlane.xlu0 %2474
      %v2476 = vsel %vm2469, %v2464, 0.0
      %2477 = vadd.xlane.f32.xlu0 %v2476
      %v2478 = vpop.xlane.xlu0 %2477
      %vm2479 = vcmask 196608
      %v2480 = vsel %vm2479, %v2436, 0.0
      %2481 = vadd.xlane.f32.xlu0 %v2480
      %v2482 = vpop.xlane.xlu0 %2481
      %v2483 = vld [vmem:[%s6] sm:$0xff]
      %v2484 = vld [vmem:[%s6 + $0x8] sm:$0xff]
      %v2485 = vld [vmem:[%s6 + $0x10] sm:$0xff]
      %v2486 = vld [vmem:[%s6 + $0x18] sm:$0x1]
      %v2487 = vadd.f32 %v2472, %v2483
      %v2488 = vadd.f32 %v2475, %v2484
      %v2489 = vadd.f32 %v2478, %v2485
      %v2490 = vadd.f32 %v2482, %v2486
      %vm2491 = vcmask 7168
      %2492 = vst.msk [vmem:[%s278] sm:$0xff] %vm2491, %v2487
      %2493 = vst.msk [vmem:[%s278 + $0x8] sm:$0xff] %vm2491, %v2488
      %2494 = vst.msk [vmem:[%s278 + $0x10] sm:$0xff] %vm2491, %v2489
      %vm2495 = vcmask 0
      %2496 = vst.msk [vmem:[%s278 + $0x18] sm:$0x1] %vm2495, %v2490
      %p2497 = scmp.lt.s32.totalorder %s18, 1
      %s2498 = scalar_select %p2497, %s18, 1
      %s2499 = smul.addr %s2498, 4
      %s2500 = smul.addr %s2499, 8
      %s2501 = scalar_lea.vmem %s7, %s2500
      // Predicated region
      $region49: #{convnetwork_forward.5} parent=47 // pred_check
        %p2502 = pneg %p188
      $region50: #{convnetwork_forward.5} parent=47 // pred_check_branch
        %2504 = sbr.rel (%p2502) target = $region52
      $region51: #{convnetwork_forward.5} parent=47 // pred_region
        _
      $region52: #{convnetwork_forward.5} parent=47 // pred_fallthru
        _
    $region48: #{convnetwork_forward.5} parent=5 // pred_fallthru
      _
    %p2505 = scmp.le.s32.totalorder 2, %s13
    // Predicated region
    $region53: #{convnetwork_forward.5} parent=5 // pred_check
      %p2506 = pneg %p2505
    $region54: #{convnetwork_forward.5} parent=5 // pred_check_branch
      %2508 = sbr.rel (%p2506) target = $region56
    $region55: #{convnetwork_forward.5} parent=5 // pred_region
      %s2509 = ssub.s32 %s13, 2
      // Predicated region
      $region57: #{convnetwork_forward.5} parent=55 // pred_check
        %p2510 = pneg %p194
      $region58: #{convnetwork_forward.5} parent=55 // pred_check_branch
        %2512 = sbr.rel (%p2510) target = $region60
      $region59: #{convnetwork_forward.5} parent=55 // pred_region
        %p2513 = scmp.lt.s32.totalorder %s19, 1
        %s2514 = scalar_select %p2513, %s19, 1
        %s2515 = smul.addr %s2514, 4
        %s2516 = smul.addr %s2515, 8
        %s2517 = scalar_lea.vmem %s7, %s2516
      $region60: #{convnetwork_forward.5} parent=55 // pred_fallthru
        _
    $region56: #{convnetwork_forward.5} parent=5 // pred_fallthru
      _
  $region6: #{convnetwork_forward.5} parent=0 // loop_footer
    %s17 = sadd.s32 1, %s13
  $region7: #{convnetwork_forward.5} parent=0 // loop_footer_branch
    %12 = sbr.rel target = $region3
  $region8: #{convnetwork_forward.5} parent=0 // loop_exit
    _

</llo_original>
